<compile_context>
chip_gen: v6e
topology: v6e:2x2x1
jax: 0.10.0
libtpu: 0.0.40
codegen_flags: <defaults>
</compile_context>

<pallas_src>
import functools

import jax
import jax.numpy as jnp
import numpy as np
from jax.experimental import pallas as pl
from jax.experimental.pallas import tpu as pltpu


# ---------------------------------------------------------------------------
# Partition / reverse helpers (pure layout glue; exact ports of the PyTorch fns)
# ---------------------------------------------------------------------------
def window_partition(x, wh, ww):
    B, C, H, W = x.shape
    w = x.reshape(B, C, H // wh, wh, W // ww, ww)
    w = jnp.transpose(w, (0, 2, 4, 3, 5, 1))
    return w.reshape(-1, wh, ww, C)


def window_reverse(windows, original_size, wh, ww):
    H, W = original_size
    C = windows.shape[-1]
    B = (windows.shape[0] * wh * ww) // (H * W)
    out = windows.reshape(B, H // wh, W // ww, wh, ww, C)
    out = jnp.transpose(out, (0, 5, 1, 3, 2, 4))
    return out.reshape(B, C, H, W)


def grid_partition(x, gh, gw):
    B, C, H, W = x.shape
    g = x.reshape(B, C, gh, H // gh, gw, W // gw)
    g = jnp.transpose(g, (0, 3, 5, 2, 4, 1))
    return g.reshape(-1, gh, gw, C)


def grid_reverse(grid, original_size, gh, gw):
    H, W = original_size
    C = grid.shape[-1]
    B = (grid.shape[0] * gh * gw) // (H * W)
    out = grid.reshape(B, H // gh, W // gw, gh, gw, C)
    out = jnp.transpose(out, (0, 5, 3, 1, 4, 2))
    return out.reshape(B, C, H, W)


def get_relative_position_index(gh, gw):
    coords = np.stack(np.meshgrid(np.arange(gh), np.arange(gw), indexing="ij"))
    cf = coords.reshape(2, -1)
    rel = cf[:, :, None] - cf[:, None, :]
    rel = rel.transpose(1, 2, 0).copy()
    rel[:, :, 0] += gh - 1
    rel[:, :, 1] += gw - 1
    rel[:, :, 0] *= 2 * gw - 1
    return rel.sum(-1)  # (N, N) int


def relative_positional_bias(table, gh, gw, n_head):
    N = gh * gw
    idx = jnp.asarray(get_relative_position_index(gh, gw)).reshape(-1)
    bias = table[idx].reshape(N, N, n_head)
    return jnp.transpose(bias, (2, 0, 1))  # (n_head, N, N)


def prepare_block_params(raw, gh, gw, n_head):
    """One-time host precompute: transposed bf16 weights + gathered rel-pos bias."""
    return {
        "gamma": raw["gamma"],
        "beta": raw["beta"],
        "wqkv_t": raw["wqkv"].T.astype(jnp.bfloat16),    # (C, 3C) bf16
        "bqkv": raw["bqkv"],                             # (1, 3C) f32
        "wproj_t": raw["wproj"].T.astype(jnp.bfloat16),  # (C, C) bf16
        "bproj": raw["bproj"],                           # (1, C) f32
        "bias": relative_positional_bias(raw["table"], gh, gw, n_head),  # (n_head, N, N)
    }


# ---------------------------------------------------------------------------
# Pallas kernel: fused LayerNorm + relative self-attention + proj + residual
# (processes a block of W_BLK windows per grid step)
# ---------------------------------------------------------------------------
def _attn_kernel(x_ref, gamma_ref, beta_ref, wqkv_t_ref, bqkv_ref,
                 wproj_t_ref, bproj_ref, bias_ref, o_ref, *, n_head):
    w_blk, n_tok, emb = x_ref.shape
    d_head = emb // n_head
    scale = n_head ** (-0.5)      # NOTE: matches the PyTorch module (n_head, not head_dim)

    x = x_ref[...]                                    # (Wb, N, C) f32
    xf = x.reshape(w_blk * n_tok, emb)                # (M, C), M = Wb*N  -> big-M matmuls

    # LayerNorm over C (eps = 1e-5, PyTorch default); statistics in f32.
    mean = jnp.mean(xf, axis=-1, keepdims=True)
    var = jnp.mean(jnp.square(xf - mean), axis=-1, keepdims=True)
    xn = (xf - mean) * jax.lax.rsqrt(var + 1e-5)
    xn = xn * gamma_ref[...] + beta_ref[...]

    # QKV projection: single (M, C) x (C, 3C) matmul, bf16 operands, f32 accumulate.
    qkv = jnp.dot(xn.astype(jnp.bfloat16), wqkv_t_ref[...],
                  preferred_element_type=jnp.float32) + bqkv_ref[...]
    # qkv columns: [q | k | v], head-major inside each third (matches the torch reshape).

    head_outs = []
    for h in range(n_head):                           # short static loop (n_head small)
        q_h = qkv[:, h * d_head:(h + 1) * d_head]
        k_h = qkv[:, emb + h * d_head:emb + (h + 1) * d_head]
        v_h = qkv[:, 2 * emb + h * d_head:2 * emb + (h + 1) * d_head]
        q_h = q_h.reshape(w_blk, n_tok, d_head).astype(jnp.bfloat16)
        k_h = k_h.reshape(w_blk, n_tok, d_head).astype(jnp.bfloat16)
        v_h = v_h.reshape(w_blk, n_tok, d_head).astype(jnp.bfloat16)

        # Batched over all windows in the block (single leading batch dim).
        logits = jnp.einsum("bnd,bmd->bnm", q_h, k_h,
                            preferred_element_type=jnp.float32)
        logits = logits * scale + bias_ref[h][None]   # rel-pos bias added in f32
        logits = logits - jnp.max(logits, axis=-1, keepdims=True)
        p = jnp.exp(logits)
        p = p * pl.reciprocal(jnp.sum(p, axis=-1, keepdims=True), approx=True)

        o_h = jnp.einsum("bnm,bmd->bnd", p.astype(jnp.bfloat16), v_h,
                         preferred_element_type=jnp.float32)
        head_outs.append(o_h.reshape(w_blk * n_tok, d_head))

    attn_out = jnp.concatenate(head_outs, axis=-1)    # (M, C), head-major == torch reshape

    # Output projection (single big matmul) + residual with the pre-norm input.
    proj = jnp.dot(attn_out.astype(jnp.bfloat16), wproj_t_ref[...],
                   preferred_element_type=jnp.float32) + bproj_ref[...]
    o_ref[...] = (xf + proj).reshape(w_blk, n_tok, emb)


def attention_over_windows(x_part, prepared, n_head, w_blk=None):
    """x_part: (num_windows, N, C) float32; returns same shape."""
    nw, N, C = x_part.shape
    if w_blk is None:
        # Two grid steps when possible so a "parallel" axis can use both v7x TensorCores;
        # everything easily fits in VMEM either way (a 16x16x32 f32 block is 32 KB).
        w_blk = nw // 2 if (nw % 2 == 0 and nw >= 2) else nw
    assert nw % w_blk == 0
    kernel = functools.partial(_attn_kernel, n_head=n_head)
    return pl.pallas_call(
        kernel,
        out_shape=jax.ShapeDtypeStruct((nw, N, C), x_part.dtype),
        grid=(nw // w_blk,),
        in_specs=[
            pl.BlockSpec((w_blk, N, C), lambda w: (w, 0, 0)),       # x window block
            pl.BlockSpec((1, C), lambda w: (0, 0)),                 # ln gamma
            pl.BlockSpec((1, C), lambda w: (0, 0)),                 # ln beta
            pl.BlockSpec((C, 3 * C), lambda w: (0, 0)),             # Wqkv^T (bf16)
            pl.BlockSpec((1, 3 * C), lambda w: (0, 0)),             # bqkv
            pl.BlockSpec((C, C), lambda w: (0, 0)),                 # Wproj^T (bf16)
            pl.BlockSpec((1, C), lambda w: (0, 0)),                 # bproj
            pl.BlockSpec((n_head, N, N), lambda w: (0, 0, 0)),      # rel-pos bias
        ],
        out_specs=pl.BlockSpec((w_blk, N, C), lambda w: (w, 0, 0)),
        compiler_params=pltpu.CompilerParams(dimension_semantics=("parallel",)),
    )(x_part, prepared["gamma"], prepared["beta"],
      prepared["wqkv_t"], prepared["bqkv"],
      prepared["wproj_t"], prepared["bproj"], prepared["bias"])


# ---------------------------------------------------------------------------
# Module-level forward (MaxViTTransformerBlock x2 = MulitAxisSelfAttention)
# ---------------------------------------------------------------------------
def maxvit_transformer_block(x, prepared, partition_fn, reverse_fn, gh, gw, n_head):
    B, C, H, W = x.shape
    N = gh * gw
    xp = partition_fn(x, gh, gw).reshape(-1, N, C)
    out = attention_over_windows(xp, prepared, n_head)
    return reverse_fn(out, (H, W), gh, gw)


@functools.partial(jax.jit, static_argnames=("gh", "gw", "n_head"))
def multi_axis_self_attention(x, block_params, grid_params, gh, gw, n_head):
    x = maxvit_transformer_block(x, block_params, window_partition, window_reverse,
                                 gh, gw, n_head)
    x = maxvit_transformer_block(x, grid_params, grid_partition, grid_reverse,
                                 gh, gw, n_head)
    return x


# ---------------------------------------------------------------------------
# Pure-JAX f32 reference (for correctness check, uses the raw params)
# ---------------------------------------------------------------------------
def _ref_attn(xp, params, bias, n_head):
    HP = jax.lax.Precision.HIGHEST
    nw, N, C = xp.shape
    D = C // n_head
    mean = xp.mean(-1, keepdims=True)
    var = ((xp - mean) ** 2).mean(-1, keepdims=True)
    xn = (xp - mean) / jnp.sqrt(var + 1e-5)
    xn = xn * params["gamma"][0] + params["beta"][0]
    qkv = jnp.einsum("wnc,dc->wnd", xn, params["wqkv"], precision=HP) + params["bqkv"][0]
    qkv = qkv.reshape(nw, N, 3, n_head, D)
    q = qkv[:, :, 0].transpose(0, 2, 1, 3) * n_head ** (-0.5)
    k = qkv[:, :, 1].transpose(0, 2, 1, 3)
    v = qkv[:, :, 2].transpose(0, 2, 1, 3)
    logits = jnp.einsum("whnd,whmd->whnm", q, k, precision=HP) + bias[None]
    p = jax.nn.softmax(logits, axis=-1)
    out = jnp.einsum("whnm,whmd->whnd", p, v, precision=HP)
    out = out.transpose(0, 2, 1, 3).reshape(nw, N, C)
    out = jnp.einsum("wnc,dc->wnd", out, params["wproj"], precision=HP) + params["bproj"][0]
    return xp + out


def _ref_block(x, params, partition_fn, reverse_fn, gh, gw, n_head):
    B, C, H, W = x.shape
    N = gh * gw
    xp = partition_fn(x, gh, gw).reshape(-1, N, C)
    bias = relative_positional_bias(params["table"], gh, gw, n_head)
    out = _ref_attn(xp, params, bias, n_head)
    return reverse_fn(out, (H, W), gh, gw)


def _ref_forward(x, block_params, grid_params, gh, gw, n_head):
    x = _ref_block(x, block_params, window_partition, window_reverse, gh, gw, n_head)
    x = _ref_block(x, grid_params, grid_partition, grid_reverse, gh, gw, n_head)
    return x


# ---------------------------------------------------------------------------
# Deterministic synthetic parameter init
# ---------------------------------------------------------------------------
def init_block_params(key, emb_dim, n_head, gh, gw):
    ks = jax.random.split(key, 7)
    return {
        "gamma": 1.0 + 0.1 * jax.random.normal(ks[0], (1, emb_dim), jnp.float32),
        "beta": 0.1 * jax.random.normal(ks[1], (1, emb_dim), jnp.float32),
        "wqkv": 0.1 * jax.random.normal(ks[2], (3 * emb_dim, emb_dim), jnp.float32),
        "bqkv": 0.1 * jax.random.normal(ks[3], (1, 3 * emb_dim), jnp.float32),
        "wproj": 0.1 * jax.random.normal(ks[4], (emb_dim, emb_dim), jnp.float32),
        "bproj": 0.1 * jax.random.normal(ks[5], (1, emb_dim), jnp.float32),
        "table": jax.random.normal(
            ks[6], ((2 * gh - 1) * (2 * gw - 1), n_head), jnp.float32),
    }


if __name__ == "__main__":
    # Shapes consistent with the module's forward:
    # x: (B, C, H, W) = (2, 32, 16, 16); grid_window = (4, 4); n_head = 4.
    B, C, H, W = 2, 32, 16, 16
    gh, gw, n_head = 4, 4, 4

    root = jax.random.PRNGKey(0)
    k_x, k_blk, k_grd = jax.random.split(root, 3)
    x = jax.random.normal(k_x, (B, C, H, W), dtype=jnp.float32)
    block_raw = init_block_params(k_blk, C, n_head, gh, gw)
    grid_raw = init_block_params(k_grd, C, n_head, gh, gw)

    # One-time host precompute (transposed bf16 weights, gathered rel-pos bias).
    block_prep = prepare_block_params(block_raw, gh, gw, n_head)
    grid_prep = prepare_block_params(grid_raw, gh, gw, n_head)

    out = multi_axis_self_attention(x, block_prep, grid_prep, gh=gh, gw=gw, n_head=n_head)
    out = jax.block_until_ready(out)

    ref = _ref_forward(x, block_raw, grid_raw, gh, gw, n_head)
    # Tolerance accounts for bf16 MXU operands (f32 accumulation) and the approx
    # EUP reciprocal in the softmax; everything else is kept in f32.
    np.testing.assert_allclose(np.asarray(out), np.asarray(ref), rtol=2e-2, atol=3e-2)

    print("KERNEL_OK")
</pallas_src>

<mosaic_0001>
module attributes {stable_mosaic.version = 11 : i64} {
  func.func @_attn_kernel(%arg0: i32, %arg1: memref<16x16x32xf32, #tpu.memory_space<vmem>>, %arg2: memref<1x32xf32, #tpu.memory_space<vmem>>, %arg3: memref<1x32xf32, #tpu.memory_space<vmem>>, %arg4: memref<32x96xbf16, #tpu.memory_space<vmem>>, %arg5: memref<1x96xf32, #tpu.memory_space<vmem>>, %arg6: memref<32x32xbf16, #tpu.memory_space<vmem>>, %arg7: memref<1x32xf32, #tpu.memory_space<vmem>>, %arg8: memref<4x16x16xf32, #tpu.memory_space<vmem>>, %arg9: memref<16x16x32xf32, #tpu.memory_space<vmem>>) attributes {dimension_semantics = [#tpu.dimension_semantics<parallel>], iteration_bounds = array<i64: 2>, scalar_prefetch = 0 : i64, scratch_operands = 0 : i64, tpu.core_type = #tpu.core_type<tc>, window_params = [{transform_indices = @transform_0, window_bounds = array<i64: 16, 16, 32>}, {pipeline_mode = #tpu.pipeline_mode<synchronous>, transform_indices = @transform_1, window_bounds = array<i64: 1, 32>}, {pipeline_mode = #tpu.pipeline_mode<synchronous>, transform_indices = @transform_2, window_bounds = array<i64: 1, 32>}, {pipeline_mode = #tpu.pipeline_mode<synchronous>, transform_indices = @transform_3, window_bounds = array<i64: 32, 96>}, {pipeline_mode = #tpu.pipeline_mode<synchronous>, transform_indices = @transform_4, window_bounds = array<i64: 1, 96>}, {pipeline_mode = #tpu.pipeline_mode<synchronous>, transform_indices = @transform_5, window_bounds = array<i64: 32, 32>}, {pipeline_mode = #tpu.pipeline_mode<synchronous>, transform_indices = @transform_6, window_bounds = array<i64: 1, 32>}, {pipeline_mode = #tpu.pipeline_mode<synchronous>, transform_indices = @transform_7, window_bounds = array<i64: 4, 16, 16>}, {transform_indices = @transform_8, window_bounds = array<i64: 16, 16, 32>}]} {
    %c0 = arith.constant 0 : index
    %c0_0 = arith.constant 0 : index
    %c0_1 = arith.constant 0 : index
    %0 = vector.load %arg1[%c0, %c0_0, %c0_1] : memref<16x16x32xf32, #tpu.memory_space<vmem>>, vector<16x16x32xf32>
    %1 = vector.shape_cast %0 : vector<16x16x32xf32> to vector<256x32xf32>
    %cst = arith.constant dense<0.000000e+00> : vector<256xf32>
    %2 = vector.multi_reduction <add>, %1, %cst [1] : vector<256x32xf32> to vector<256xf32>
    %3 = vector.shape_cast %2 : vector<256xf32> to vector<256x1xf32>
    %cst_2 = arith.constant 3.200000e+01 : f32
    %4 = vector.broadcast %cst_2 : f32 to vector<256x1xf32>
    %5 = arith.divf %3, %4 : vector<256x1xf32>
    %6 = vector.broadcast %5 : vector<256x1xf32> to vector<256x32xf32>
    %7 = arith.subf %1, %6 : vector<256x32xf32>
    %8 = arith.mulf %7, %7 : vector<256x32xf32>
    %cst_3 = arith.constant dense<0.000000e+00> : vector<256xf32>
    %9 = vector.multi_reduction <add>, %8, %cst_3 [1] : vector<256x32xf32> to vector<256xf32>
    %10 = vector.shape_cast %9 : vector<256xf32> to vector<256x1xf32>
    %cst_4 = arith.constant 3.200000e+01 : f32
    %11 = vector.broadcast %cst_4 : f32 to vector<256x1xf32>
    %12 = arith.divf %10, %11 : vector<256x1xf32>
    %13 = vector.broadcast %5 : vector<256x1xf32> to vector<256x32xf32>
    %14 = arith.subf %1, %13 : vector<256x32xf32>
    %cst_5 = arith.constant 9.99999974E-6 : f32
    %15 = vector.broadcast %cst_5 : f32 to vector<256x1xf32>
    %16 = arith.addf %12, %15 : vector<256x1xf32>
    %17 = math.rsqrt %16 : vector<256x1xf32>
    %18 = vector.broadcast %17 : vector<256x1xf32> to vector<256x32xf32>
    %19 = arith.mulf %14, %18 : vector<256x32xf32>
    %c0_6 = arith.constant 0 : index
    %c0_7 = arith.constant 0 : index
    %20 = vector.load %arg2[%c0_6, %c0_7] : memref<1x32xf32, #tpu.memory_space<vmem>>, vector<1x32xf32>
    %21 = vector.broadcast %20 : vector<1x32xf32> to vector<256x32xf32>
    %22 = arith.mulf %19, %21 : vector<256x32xf32>
    %c0_8 = arith.constant 0 : index
    %c0_9 = arith.constant 0 : index
    %23 = vector.load %arg3[%c0_8, %c0_9] : memref<1x32xf32, #tpu.memory_space<vmem>>, vector<1x32xf32>
    %24 = vector.broadcast %23 : vector<1x32xf32> to vector<256x32xf32>
    %25 = arith.addf %22, %24 : vector<256x32xf32>
    %26 = arith.truncf %25 : vector<256x32xf32> to vector<256x32xbf16>
    %c0_10 = arith.constant 0 : index
    %c0_11 = arith.constant 0 : index
    %27 = vector.load %arg4[%c0_10, %c0_11] : memref<32x96xbf16, #tpu.memory_space<vmem>>, vector<32x96xbf16>
    %cst_12 = arith.constant dense<0.000000e+00> : vector<256x96xf32>
    %28 = tpu.matmul %26, %27, %cst_12 {dimension_numbers = #tpu.dot_dimension_numbers<[1], [0], [0], [1], [0, 0, 1, 1], [], []>} : vector<256x32xbf16>, vector<32x96xbf16>, vector<256x96xf32> -> vector<256x96xf32>
    %c0_13 = arith.constant 0 : index
    %c0_14 = arith.constant 0 : index
    %29 = vector.load %arg5[%c0_13, %c0_14] : memref<1x96xf32, #tpu.memory_space<vmem>>, vector<1x96xf32>
    %30 = vector.broadcast %29 : vector<1x96xf32> to vector<256x96xf32>
    %31 = arith.addf %28, %30 : vector<256x96xf32>
    %32 = vector.extract_strided_slice %31 {offsets = [0, 0], sizes = [256, 8], strides = [1, 1]} : vector<256x96xf32> to vector<256x8xf32>
    %33 = vector.extract_strided_slice %31 {offsets = [0, 32], sizes = [256, 8], strides = [1, 1]} : vector<256x96xf32> to vector<256x8xf32>
    %34 = vector.extract_strided_slice %31 {offsets = [0, 64], sizes = [256, 8], strides = [1, 1]} : vector<256x96xf32> to vector<256x8xf32>
    %35 = vector.shape_cast %32 : vector<256x8xf32> to vector<16x16x8xf32>
    %36 = arith.truncf %35 : vector<16x16x8xf32> to vector<16x16x8xbf16>
    %37 = vector.shape_cast %33 : vector<256x8xf32> to vector<16x16x8xf32>
    %38 = arith.truncf %37 : vector<16x16x8xf32> to vector<16x16x8xbf16>
    %39 = vector.shape_cast %34 : vector<256x8xf32> to vector<16x16x8xf32>
    %40 = arith.truncf %39 : vector<16x16x8xf32> to vector<16x16x8xbf16>
    "tpu.trace_start"() <{level = 10 : i32, message = "bnd,bmd->bnm"}> : () -> ()
    %cst_15 = arith.constant dense<0.000000e+00> : vector<16x16x16xf32>
    %41 = tpu.matmul %36, %38, %cst_15 {dimension_numbers = #tpu.dot_dimension_numbers<[2], [2], [1], [1], [0, 0, 0, 1, 1, 1], [0], [0]>} : vector<16x16x8xbf16>, vector<16x16x8xbf16>, vector<16x16x16xf32> -> vector<16x16x16xf32>
    "tpu.trace_stop"() : () -> ()
    %cst_16 = arith.constant 5.000000e-01 : f32
    %42 = vector.broadcast %cst_16 : f32 to vector<16x16x16xf32>
    %43 = arith.mulf %41, %42 : vector<16x16x16xf32>
    %c0_17 = arith.constant 0 : index
    %c0_18 = arith.constant 0 : index
    %c0_19 = arith.constant 0 : index
    %44 = vector.load %arg8[%c0_17, %c0_18, %c0_19] : memref<4x16x16xf32, #tpu.memory_space<vmem>>, vector<1x16x16xf32>
    %45 = vector.shape_cast %44 : vector<1x16x16xf32> to vector<16x16xf32>
    %46 = vector.shape_cast %45 : vector<16x16xf32> to vector<1x16x16xf32>
    %47 = vector.broadcast %46 : vector<1x16x16xf32> to vector<16x16x16xf32>
    %48 = arith.addf %43, %47 : vector<16x16x16xf32>
    %cst_20 = arith.constant dense<0xFF800000> : vector<16x16xf32>
    %49 = vector.multi_reduction <maximumf>, %48, %cst_20 [2] : vector<16x16x16xf32> to vector<16x16xf32>
    %50 = vector.shape_cast %49 : vector<16x16xf32> to vector<16x16x1xf32>
    %51 = vector.broadcast %50 : vector<16x16x1xf32> to vector<16x16x16xf32>
    %52 = arith.subf %48, %51 : vector<16x16x16xf32>
    %53 = math.exp %52 : vector<16x16x16xf32>
    %cst_21 = arith.constant dense<0.000000e+00> : vector<16x16xf32>
    %54 = vector.multi_reduction <add>, %53, %cst_21 [2] : vector<16x16x16xf32> to vector<16x16xf32>
    %55 = vector.shape_cast %54 : vector<16x16xf32> to vector<16x16x1xf32>
    %56 = tpu.reciprocal %55 {approx = true} : vector<16x16x1xf32> -> vector<16x16x1xf32>
    %57 = vector.broadcast %56 : vector<16x16x1xf32> to vector<16x16x16xf32>
    %58 = arith.mulf %53, %57 : vector<16x16x16xf32>
    %59 = arith.truncf %58 : vector<16x16x16xf32> to vector<16x16x16xbf16>
    "tpu.trace_start"() <{level = 10 : i32, message = "bnm,bmd->bnd"}> : () -> ()
    %cst_22 = arith.constant dense<0.000000e+00> : vector<16x16x8xf32>
    %60 = tpu.matmul %59, %40, %cst_22 {dimension_numbers = #tpu.dot_dimension_numbers<[2], [1], [1], [2], [0, 0, 0, 1, 1, 2], [0], [0]>} : vector<16x16x16xbf16>, vector<16x16x8xbf16>, vector<16x16x8xf32> -> vector<16x16x8xf32>
    "tpu.trace_stop"() : () -> ()
    %61 = vector.shape_cast %60 : vector<16x16x8xf32> to vector<256x8xf32>
    %62 = vector.extract_strided_slice %31 {offsets = [0, 8], sizes = [256, 8], strides = [1, 1]} : vector<256x96xf32> to vector<256x8xf32>
    %63 = vector.extract_strided_slice %31 {offsets = [0, 40], sizes = [256, 8], strides = [1, 1]} : vector<256x96xf32> to vector<256x8xf32>
    %64 = vector.extract_strided_slice %31 {offsets = [0, 72], sizes = [256, 8], strides = [1, 1]} : vector<256x96xf32> to vector<256x8xf32>
    %65 = vector.shape_cast %62 : vector<256x8xf32> to vector<16x16x8xf32>
    %66 = arith.truncf %65 : vector<16x16x8xf32> to vector<16x16x8xbf16>
    %67 = vector.shape_cast %63 : vector<256x8xf32> to vector<16x16x8xf32>
    %68 = arith.truncf %67 : vector<16x16x8xf32> to vector<16x16x8xbf16>
    %69 = vector.shape_cast %64 : vector<256x8xf32> to vector<16x16x8xf32>
    %70 = arith.truncf %69 : vector<16x16x8xf32> to vector<16x16x8xbf16>
    "tpu.trace_start"() <{level = 10 : i32, message = "bnd,bmd->bnm"}> : () -> ()
    %cst_23 = arith.constant dense<0.000000e+00> : vector<16x16x16xf32>
    %71 = tpu.matmul %66, %68, %cst_23 {dimension_numbers = #tpu.dot_dimension_numbers<[2], [2], [1], [1], [0, 0, 0, 1, 1, 1], [0], [0]>} : vector<16x16x8xbf16>, vector<16x16x8xbf16>, vector<16x16x16xf32> -> vector<16x16x16xf32>
    "tpu.trace_stop"() : () -> ()
    %cst_24 = arith.constant 5.000000e-01 : f32
    %72 = vector.broadcast %cst_24 : f32 to vector<16x16x16xf32>
    %73 = arith.mulf %71, %72 : vector<16x16x16xf32>
    %c1 = arith.constant 1 : index
    %c0_25 = arith.constant 0 : index
    %c0_26 = arith.constant 0 : index
    %74 = vector.load %arg8[%c1, %c0_25, %c0_26] : memref<4x16x16xf32, #tpu.memory_space<vmem>>, vector<1x16x16xf32>
    %75 = vector.shape_cast %74 : vector<1x16x16xf32> to vector<16x16xf32>
    %76 = vector.shape_cast %75 : vector<16x16xf32> to vector<1x16x16xf32>
    %77 = vector.broadcast %76 : vector<1x16x16xf32> to vector<16x16x16xf32>
    %78 = arith.addf %73, %77 : vector<16x16x16xf32>
    %cst_27 = arith.constant dense<0xFF800000> : vector<16x16xf32>
    %79 = vector.multi_reduction <maximumf>, %78, %cst_27 [2] : vector<16x16x16xf32> to vector<16x16xf32>
    %80 = vector.shape_cast %79 : vector<16x16xf32> to vector<16x16x1xf32>
    %81 = vector.broadcast %80 : vector<16x16x1xf32> to vector<16x16x16xf32>
    %82 = arith.subf %78, %81 : vector<16x16x16xf32>
    %83 = math.exp %82 : vector<16x16x16xf32>
    %cst_28 = arith.constant dense<0.000000e+00> : vector<16x16xf32>
    %84 = vector.multi_reduction <add>, %83, %cst_28 [2] : vector<16x16x16xf32> to vector<16x16xf32>
    %85 = vector.shape_cast %84 : vector<16x16xf32> to vector<16x16x1xf32>
    %86 = tpu.reciprocal %85 {approx = true} : vector<16x16x1xf32> -> vector<16x16x1xf32>
    %87 = vector.broadcast %86 : vector<16x16x1xf32> to vector<16x16x16xf32>
    %88 = arith.mulf %83, %87 : vector<16x16x16xf32>
    %89 = arith.truncf %88 : vector<16x16x16xf32> to vector<16x16x16xbf16>
    "tpu.trace_start"() <{level = 10 : i32, message = "bnm,bmd->bnd"}> : () -> ()
    %cst_29 = arith.constant dense<0.000000e+00> : vector<16x16x8xf32>
    %90 = tpu.matmul %89, %70, %cst_29 {dimension_numbers = #tpu.dot_dimension_numbers<[2], [1], [1], [2], [0, 0, 0, 1, 1, 2], [0], [0]>} : vector<16x16x16xbf16>, vector<16x16x8xbf16>, vector<16x16x8xf32> -> vector<16x16x8xf32>
    "tpu.trace_stop"() : () -> ()
    %91 = vector.shape_cast %90 : vector<16x16x8xf32> to vector<256x8xf32>
    %92 = vector.extract_strided_slice %31 {offsets = [0, 16], sizes = [256, 8], strides = [1, 1]} : vector<256x96xf32> to vector<256x8xf32>
    %93 = vector.extract_strided_slice %31 {offsets = [0, 48], sizes = [256, 8], strides = [1, 1]} : vector<256x96xf32> to vector<256x8xf32>
    %94 = vector.extract_strided_slice %31 {offsets = [0, 80], sizes = [256, 8], strides = [1, 1]} : vector<256x96xf32> to vector<256x8xf32>
    %95 = vector.shape_cast %92 : vector<256x8xf32> to vector<16x16x8xf32>
    %96 = arith.truncf %95 : vector<16x16x8xf32> to vector<16x16x8xbf16>
    %97 = vector.shape_cast %93 : vector<256x8xf32> to vector<16x16x8xf32>
    %98 = arith.truncf %97 : vector<16x16x8xf32> to vector<16x16x8xbf16>
    %99 = vector.shape_cast %94 : vector<256x8xf32> to vector<16x16x8xf32>
    %100 = arith.truncf %99 : vector<16x16x8xf32> to vector<16x16x8xbf16>
    "tpu.trace_start"() <{level = 10 : i32, message = "bnd,bmd->bnm"}> : () -> ()
    %cst_30 = arith.constant dense<0.000000e+00> : vector<16x16x16xf32>
    %101 = tpu.matmul %96, %98, %cst_30 {dimension_numbers = #tpu.dot_dimension_numbers<[2], [2], [1], [1], [0, 0, 0, 1, 1, 1], [0], [0]>} : vector<16x16x8xbf16>, vector<16x16x8xbf16>, vector<16x16x16xf32> -> vector<16x16x16xf32>
    "tpu.trace_stop"() : () -> ()
    %cst_31 = arith.constant 5.000000e-01 : f32
    %102 = vector.broadcast %cst_31 : f32 to vector<16x16x16xf32>
    %103 = arith.mulf %101, %102 : vector<16x16x16xf32>
    %c2 = arith.constant 2 : index
    %c0_32 = arith.constant 0 : index
    %c0_33 = arith.constant 0 : index
    %104 = vector.load %arg8[%c2, %c0_32, %c0_33] : memref<4x16x16xf32, #tpu.memory_space<vmem>>, vector<1x16x16xf32>
    %105 = vector.shape_cast %104 : vector<1x16x16xf32> to vector<16x16xf32>
    %106 = vector.shape_cast %105 : vector<16x16xf32> to vector<1x16x16xf32>
    %107 = vector.broadcast %106 : vector<1x16x16xf32> to vector<16x16x16xf32>
    %108 = arith.addf %103, %107 : vector<16x16x16xf32>
    %cst_34 = arith.constant dense<0xFF800000> : vector<16x16xf32>
    %109 = vector.multi_reduction <maximumf>, %108, %cst_34 [2] : vector<16x16x16xf32> to vector<16x16xf32>
    %110 = vector.shape_cast %109 : vector<16x16xf32> to vector<16x16x1xf32>
    %111 = vector.broadcast %110 : vector<16x16x1xf32> to vector<16x16x16xf32>
    %112 = arith.subf %108, %111 : vector<16x16x16xf32>
    %113 = math.exp %112 : vector<16x16x16xf32>
    %cst_35 = arith.constant dense<0.000000e+00> : vector<16x16xf32>
    %114 = vector.multi_reduction <add>, %113, %cst_35 [2] : vector<16x16x16xf32> to vector<16x16xf32>
    %115 = vector.shape_cast %114 : vector<16x16xf32> to vector<16x16x1xf32>
    %116 = tpu.reciprocal %115 {approx = true} : vector<16x16x1xf32> -> vector<16x16x1xf32>
    %117 = vector.broadcast %116 : vector<16x16x1xf32> to vector<16x16x16xf32>
    %118 = arith.mulf %113, %117 : vector<16x16x16xf32>
    %119 = arith.truncf %118 : vector<16x16x16xf32> to vector<16x16x16xbf16>
    "tpu.trace_start"() <{level = 10 : i32, message = "bnm,bmd->bnd"}> : () -> ()
    %cst_36 = arith.constant dense<0.000000e+00> : vector<16x16x8xf32>
    %120 = tpu.matmul %119, %100, %cst_36 {dimension_numbers = #tpu.dot_dimension_numbers<[2], [1], [1], [2], [0, 0, 0, 1, 1, 2], [0], [0]>} : vector<16x16x16xbf16>, vector<16x16x8xbf16>, vector<16x16x8xf32> -> vector<16x16x8xf32>
    "tpu.trace_stop"() : () -> ()
    %121 = vector.shape_cast %120 : vector<16x16x8xf32> to vector<256x8xf32>
    %122 = vector.extract_strided_slice %31 {offsets = [0, 24], sizes = [256, 8], strides = [1, 1]} : vector<256x96xf32> to vector<256x8xf32>
    %123 = vector.extract_strided_slice %31 {offsets = [0, 56], sizes = [256, 8], strides = [1, 1]} : vector<256x96xf32> to vector<256x8xf32>
    %124 = vector.extract_strided_slice %31 {offsets = [0, 88], sizes = [256, 8], strides = [1, 1]} : vector<256x96xf32> to vector<256x8xf32>
    %125 = vector.shape_cast %122 : vector<256x8xf32> to vector<16x16x8xf32>
    %126 = arith.truncf %125 : vector<16x16x8xf32> to vector<16x16x8xbf16>
    %127 = vector.shape_cast %123 : vector<256x8xf32> to vector<16x16x8xf32>
    %128 = arith.truncf %127 : vector<16x16x8xf32> to vector<16x16x8xbf16>
    %129 = vector.shape_cast %124 : vector<256x8xf32> to vector<16x16x8xf32>
    %130 = arith.truncf %129 : vector<16x16x8xf32> to vector<16x16x8xbf16>
    "tpu.trace_start"() <{level = 10 : i32, message = "bnd,bmd->bnm"}> : () -> ()
    %cst_37 = arith.constant dense<0.000000e+00> : vector<16x16x16xf32>
    %131 = tpu.matmul %126, %128, %cst_37 {dimension_numbers = #tpu.dot_dimension_numbers<[2], [2], [1], [1], [0, 0, 0, 1, 1, 1], [0], [0]>} : vector<16x16x8xbf16>, vector<16x16x8xbf16>, vector<16x16x16xf32> -> vector<16x16x16xf32>
    "tpu.trace_stop"() : () -> ()
    %cst_38 = arith.constant 5.000000e-01 : f32
    %132 = vector.broadcast %cst_38 : f32 to vector<16x16x16xf32>
    %133 = arith.mulf %131, %132 : vector<16x16x16xf32>
    %c3 = arith.constant 3 : index
    %c0_39 = arith.constant 0 : index
    %c0_40 = arith.constant 0 : index
    %134 = vector.load %arg8[%c3, %c0_39, %c0_40] : memref<4x16x16xf32, #tpu.memory_space<vmem>>, vector<1x16x16xf32>
    %135 = vector.shape_cast %134 : vector<1x16x16xf32> to vector<16x16xf32>
    %136 = vector.shape_cast %135 : vector<16x16xf32> to vector<1x16x16xf32>
    %137 = vector.broadcast %136 : vector<1x16x16xf32> to vector<16x16x16xf32>
    %138 = arith.addf %133, %137 : vector<16x16x16xf32>
    %cst_41 = arith.constant dense<0xFF800000> : vector<16x16xf32>
    %139 = vector.multi_reduction <maximumf>, %138, %cst_41 [2] : vector<16x16x16xf32> to vector<16x16xf32>
    %140 = vector.shape_cast %139 : vector<16x16xf32> to vector<16x16x1xf32>
    %141 = vector.broadcast %140 : vector<16x16x1xf32> to vector<16x16x16xf32>
    %142 = arith.subf %138, %141 : vector<16x16x16xf32>
    %143 = math.exp %142 : vector<16x16x16xf32>
    %cst_42 = arith.constant dense<0.000000e+00> : vector<16x16xf32>
    %144 = vector.multi_reduction <add>, %143, %cst_42 [2] : vector<16x16x16xf32> to vector<16x16xf32>
    %145 = vector.shape_cast %144 : vector<16x16xf32> to vector<16x16x1xf32>
    %146 = tpu.reciprocal %145 {approx = true} : vector<16x16x1xf32> -> vector<16x16x1xf32>
    %147 = vector.broadcast %146 : vector<16x16x1xf32> to vector<16x16x16xf32>
    %148 = arith.mulf %143, %147 : vector<16x16x16xf32>
    %149 = arith.truncf %148 : vector<16x16x16xf32> to vector<16x16x16xbf16>
    "tpu.trace_start"() <{level = 10 : i32, message = "bnm,bmd->bnd"}> : () -> ()
    %cst_43 = arith.constant dense<0.000000e+00> : vector<16x16x8xf32>
    %150 = tpu.matmul %149, %130, %cst_43 {dimension_numbers = #tpu.dot_dimension_numbers<[2], [1], [1], [2], [0, 0, 0, 1, 1, 2], [0], [0]>} : vector<16x16x16xbf16>, vector<16x16x8xbf16>, vector<16x16x8xf32> -> vector<16x16x8xf32>
    "tpu.trace_stop"() : () -> ()
    %151 = vector.shape_cast %150 : vector<16x16x8xf32> to vector<256x8xf32>
    %152 = tpu.concatenate %61, %91, %121, %151 in 1 : vector<256x8xf32>, vector<256x8xf32>, vector<256x8xf32>, vector<256x8xf32> -> vector<256x32xf32>
    %153 = arith.truncf %152 : vector<256x32xf32> to vector<256x32xbf16>
    %c0_44 = arith.constant 0 : index
    %c0_45 = arith.constant 0 : index
    %154 = vector.load %arg6[%c0_44, %c0_45] : memref<32x32xbf16, #tpu.memory_space<vmem>>, vector<32x32xbf16>
    %cst_46 = arith.constant dense<0.000000e+00> : vector<256x32xf32>
    %155 = tpu.matmul %153, %154, %cst_46 {dimension_numbers = #tpu.dot_dimension_numbers<[1], [0], [0], [1], [0, 0, 1, 1], [], []>} : vector<256x32xbf16>, vector<32x32xbf16>, vector<256x32xf32> -> vector<256x32xf32>
    %c0_47 = arith.constant 0 : index
    %c0_48 = arith.constant 0 : index
    %156 = vector.load %arg7[%c0_47, %c0_48] : memref<1x32xf32, #tpu.memory_space<vmem>>, vector<1x32xf32>
    %157 = vector.broadcast %156 : vector<1x32xf32> to vector<256x32xf32>
    %158 = arith.addf %155, %157 : vector<256x32xf32>
    %159 = arith.addf %1, %158 : vector<256x32xf32>
    %160 = vector.shape_cast %159 : vector<256x32xf32> to vector<16x16x32xf32>
    %c0_49 = arith.constant 0 : index
    %c0_50 = arith.constant 0 : index
    %c0_51 = arith.constant 0 : index
    %161 = vector.load %arg9[%c0_49, %c0_50, %c0_51] : memref<16x16x32xf32, #tpu.memory_space<vmem>>, vector<16x16x32xf32>
    tpu.vector_store %arg9[%c0_49, %c0_50, %c0_51], %160 {strides = array<i32>} : memref<16x16x32xf32, #tpu.memory_space<vmem>>, vector<16x16x32xf32>,
    return
  }
  func.func @transform_0(%arg0: i32) -> (i32, i32, i32) {
    %c0_i32 = arith.constant 0 : i32
    %c0_i32_0 = arith.constant 0 : i32
    %c0_i32_1 = arith.constant 0 : i32
    return %arg0, %c0_i32, %c0_i32_0 : i32, i32, i32
  }
  func.func @transform_1(%arg0: i32) -> (i32, i32) {
    %c0_i32 = arith.constant 0 : i32
    %c0_i32_0 = arith.constant 0 : i32
    %c0_i32_1 = arith.constant 0 : i32
    return %c0_i32, %c0_i32_0 : i32, i32
  }
  func.func @transform_2(%arg0: i32) -> (i32, i32) {
    %c0_i32 = arith.constant 0 : i32
    %c0_i32_0 = arith.constant 0 : i32
    %c0_i32_1 = arith.constant 0 : i32
    return %c0_i32, %c0_i32_0 : i32, i32
  }
  func.func @transform_3(%arg0: i32) -> (i32, i32) {
    %c0_i32 = arith.constant 0 : i32
    %c0_i32_0 = arith.constant 0 : i32
    %c0_i32_1 = arith.constant 0 : i32
    return %c0_i32, %c0_i32_0 : i32, i32
  }
  func.func @transform_4(%arg0: i32) -> (i32, i32) {
    %c0_i32 = arith.constant 0 : i32
    %c0_i32_0 = arith.constant 0 : i32
    %c0_i32_1 = arith.constant 0 : i32
    return %c0_i32, %c0_i32_0 : i32, i32
  }
  func.func @transform_5(%arg0: i32) -> (i32, i32) {
    %c0_i32 = arith.constant 0 : i32
    %c0_i32_0 = arith.constant 0 : i32
    %c0_i32_1 = arith.constant 0 : i32
    return %c0_i32, %c0_i32_0 : i32, i32
  }
  func.func @transform_6(%arg0: i32) -> (i32, i32) {
    %c0_i32 = arith.constant 0 : i32
    %c0_i32_0 = arith.constant 0 : i32
    %c0_i32_1 = arith.constant 0 : i32
    return %c0_i32, %c0_i32_0 : i32, i32
  }
  func.func @transform_7(%arg0: i32) -> (i32, i32, i32) {
    %c0_i32 = arith.constant 0 : i32
    %c0_i32_0 = arith.constant 0 : i32
    %c0_i32_1 = arith.constant 0 : i32
    %c0_i32_2 = arith.constant 0 : i32
    return %c0_i32, %c0_i32_0, %c0_i32_1 : i32, i32, i32
  }
  func.func @transform_8(%arg0: i32) -> (i32, i32, i32) {
    %c0_i32 = arith.constant 0 : i32
    %c0_i32_0 = arith.constant 0 : i32
    %c0_i32_1 = arith.constant 0 : i32
    return %arg0, %c0_i32, %c0_i32_0 : i32, i32, i32
  }
}

</mosaic_0001>

<llo_original>
// kernel: multi_axis_self_attention.2
$region0: #{multi_axis_self_attention.2}
  #allocation0 [shape = 'u32[]', space=smem, size = 0x4, offset = 0x4, fixed_abs, tag = 'smem constant byte address 0x4 - core index']
  #allocation1 [shape = 'u32[144,128]{1,0:T(1,128)}', space=vmem, size = 0x12000, scoped, tag = 'internal scratch']
  %s0 = inlined_call_operand.vmem [shape: f32[32,16,32], index: 0, kind: input, shape index: {}]
  %s1 = inlined_call_operand.vmem [shape: f32[1,32], index: 1, kind: input, shape index: {}]
  %s2 = inlined_call_operand.vmem [shape: f32[1,32], index: 2, kind: input, shape index: {}]
  %s3 = inlined_call_operand.vmem [shape: bf16[32,96], index: 3, kind: input, shape index: {}]
  %s4 = inlined_call_operand.vmem [shape: f32[1,96], index: 4, kind: input, shape index: {}]
  %s5 = inlined_call_operand.vmem [shape: bf16[32,32], index: 5, kind: input, shape index: {}]
  %s6 = inlined_call_operand.vmem [shape: f32[1,32], index: 6, kind: input, shape index: {}]
  %s7 = inlined_call_operand.vmem [shape: f32[4,16,16], index: 7, kind: input, shape index: {}]
  %s8 = inlined_call_operand.vmem [shape: f32[32,16,32], index: 8, kind: output, shape index: {}]
  %s9 = sld [smem:[#allocation0]]
  $region65: #{multi_axis_self_attention.2} parent=0
    _
  %s11 = ssub.s32 1, %s9
  %s12 = scalar_select 0, %s11, %s9
  loop: start=0, step=1, limit=4
  $region2: #{multi_axis_self_attention.2} parent=0 // loop_pre_header
    _
  $region3: #{multi_axis_self_attention.2} parent=0 // loop_header
    %s14 = sphi 0, %s18
    %p15 = scmp.ge.s32.totalorder %s14, 4
    %s24 = sphi 0, %s26
    %s27 = sphi 0, %s24
    %s28 = sphi 0, %s27
    %s44 = sphi 0, %s28
    %s48 = sphi 0, %s48
    %s50 = sphi 0, %s48
    %s51 = sphi 0, %s50
    %s65 = sphi 0, %s51
    %s69 = sphi 0, %s69
    %s71 = sphi 0, %s69
    %s72 = sphi 0, %s71
    %s86 = sphi 0, %s72
    %s90 = sphi 0, %s90
    %s92 = sphi 0, %s90
    %s93 = sphi 0, %s92
    %s107 = sphi 0, %s93
    %s111 = sphi 0, %s111
    %s113 = sphi 0, %s111
    %s114 = sphi 0, %s113
    %s128 = sphi 0, %s114
    %s132 = sphi 0, %s132
    %s134 = sphi 0, %s132
    %s135 = sphi 0, %s134
    %s149 = sphi 0, %s135
    %s153 = sphi 0, %s153
    %s155 = sphi 0, %s153
    %s156 = sphi 0, %s155
    %s170 = sphi 0, %s156
    %s174 = sphi 0, %s174
    %s176 = sphi 0, %s174
    %s177 = sphi 0, %s176
    %s191 = sphi 0, %s177
    %s197 = sphi 0, %s199
    %s200 = sphi 0, %s197
    %s201 = sphi 0, %s200
    %s217 = sphi 0, %s201
  $region4: #{multi_axis_self_attention.2} parent=0 // loop_header_branch
    %17 = sbr.rel (%p15) target = $region8
  $region5: #{multi_axis_self_attention.2} parent=0 // loop_body
    %s19 = ssub.s32 %s14, 1
    %s20 = ssub.s32 %s14, 2
    %s21 = sadd.s32 %s14, 1
    %s22 = ssub.s32 %s14, %s21
    %p23 = scmp.eq.s32.totalorder %s22, 0
    %s25 = sadd.s32 %s24, 1
    %s26 = scalar_select %p23, %s24, %s25
    %p29 = pneg %p23
    %p30 = scmp.eq.s32.totalorder %s14, 1
    %p31 = por %p29, %p30
    %p32 = scmp.ne.s32.totalorder %s24, %s27
    %p33 = scmp.eq.s32.totalorder %s14, 0
    %p34 = por %p32, %p33
    %p35 = scmp.ne.s32.totalorder %s24, %s27
    %p36 = scmp.eq.s32.totalorder %s19, 1
    %p37 = por %p35, %p36
    %p38 = scmp.ne.s32.totalorder %s27, %s28
    %p39 = scmp.eq.s32.totalorder %s19, 0
    %p40 = por %p38, %p39
    %p41 = scmp.ne.s32.totalorder %s27, %s28
    %p42 = scmp.eq.s32.totalorder %s20, 1
    %p43 = por %p41, %p42
    %p45 = scmp.ne.s32.totalorder %s28, %s44
    %p46 = scmp.eq.s32.totalorder %s20, 0
    %p47 = por %p45, %p46
    %s49 = sadd.s32 %s48, 1
    %p52 = scmp.eq.s32.totalorder %s14, 1
    %p53 = scmp.ne.s32.totalorder %s48, %s50
    %p54 = scmp.eq.s32.totalorder %s14, 0
    %p55 = por %p53, %p54
    %p56 = scmp.ne.s32.totalorder %s48, %s50
    %p57 = scmp.eq.s32.totalorder %s19, 1
    %p58 = por %p56, %p57
    %p59 = scmp.ne.s32.totalorder %s50, %s51
    %p60 = scmp.eq.s32.totalorder %s19, 0
    %p61 = por %p59, %p60
    %p62 = scmp.ne.s32.totalorder %s50, %s51
    %p63 = scmp.eq.s32.totalorder %s20, 1
    %p64 = por %p62, %p63
    %p66 = scmp.ne.s32.totalorder %s51, %s65
    %p67 = scmp.eq.s32.totalorder %s20, 0
    %p68 = por %p66, %p67
    %s70 = sadd.s32 %s69, 1
    %p73 = scmp.eq.s32.totalorder %s14, 1
    %p74 = scmp.ne.s32.totalorder %s69, %s71
    %p75 = scmp.eq.s32.totalorder %s14, 0
    %p76 = por %p74, %p75
    %p77 = scmp.ne.s32.totalorder %s69, %s71
    %p78 = scmp.eq.s32.totalorder %s19, 1
    %p79 = por %p77, %p78
    %p80 = scmp.ne.s32.totalorder %s71, %s72
    %p81 = scmp.eq.s32.totalorder %s19, 0
    %p82 = por %p80, %p81
    %p83 = scmp.ne.s32.totalorder %s71, %s72
    %p84 = scmp.eq.s32.totalorder %s20, 1
    %p85 = por %p83, %p84
    %p87 = scmp.ne.s32.totalorder %s72, %s86
    %p88 = scmp.eq.s32.totalorder %s20, 0
    %p89 = por %p87, %p88
    %s91 = sadd.s32 %s90, 1
    %p94 = scmp.eq.s32.totalorder %s14, 1
    %p95 = scmp.ne.s32.totalorder %s90, %s92
    %p96 = scmp.eq.s32.totalorder %s14, 0
    %p97 = por %p95, %p96
    %p98 = scmp.ne.s32.totalorder %s90, %s92
    %p99 = scmp.eq.s32.totalorder %s19, 1
    %p100 = por %p98, %p99
    %p101 = scmp.ne.s32.totalorder %s92, %s93
    %p102 = scmp.eq.s32.totalorder %s19, 0
    %p103 = por %p101, %p102
    %p104 = scmp.ne.s32.totalorder %s92, %s93
    %p105 = scmp.eq.s32.totalorder %s20, 1
    %p106 = por %p104, %p105
    %p108 = scmp.ne.s32.totalorder %s93, %s107
    %p109 = scmp.eq.s32.totalorder %s20, 0
    %p110 = por %p108, %p109
    %s112 = sadd.s32 %s111, 1
    %p115 = scmp.eq.s32.totalorder %s14, 1
    %p116 = scmp.ne.s32.totalorder %s111, %s113
    %p117 = scmp.eq.s32.totalorder %s14, 0
    %p118 = por %p116, %p117
    %p119 = scmp.ne.s32.totalorder %s111, %s113
    %p120 = scmp.eq.s32.totalorder %s19, 1
    %p121 = por %p119, %p120
    %p122 = scmp.ne.s32.totalorder %s113, %s114
    %p123 = scmp.eq.s32.totalorder %s19, 0
    %p124 = por %p122, %p123
    %p125 = scmp.ne.s32.totalorder %s113, %s114
    %p126 = scmp.eq.s32.totalorder %s20, 1
    %p127 = por %p125, %p126
    %p129 = scmp.ne.s32.totalorder %s114, %s128
    %p130 = scmp.eq.s32.totalorder %s20, 0
    %p131 = por %p129, %p130
    %s133 = sadd.s32 %s132, 1
    %p136 = scmp.eq.s32.totalorder %s14, 1
    %p137 = scmp.ne.s32.totalorder %s132, %s134
    %p138 = scmp.eq.s32.totalorder %s14, 0
    %p139 = por %p137, %p138
    %p140 = scmp.ne.s32.totalorder %s132, %s134
    %p141 = scmp.eq.s32.totalorder %s19, 1
    %p142 = por %p140, %p141
    %p143 = scmp.ne.s32.totalorder %s134, %s135
    %p144 = scmp.eq.s32.totalorder %s19, 0
    %p145 = por %p143, %p144
    %p146 = scmp.ne.s32.totalorder %s134, %s135
    %p147 = scmp.eq.s32.totalorder %s20, 1
    %p148 = por %p146, %p147
    %p150 = scmp.ne.s32.totalorder %s135, %s149
    %p151 = scmp.eq.s32.totalorder %s20, 0
    %p152 = por %p150, %p151
    %s154 = sadd.s32 %s153, 1
    %p157 = scmp.eq.s32.totalorder %s14, 1
    %p158 = scmp.ne.s32.totalorder %s153, %s155
    %p159 = scmp.eq.s32.totalorder %s14, 0
    %p160 = por %p158, %p159
    %p161 = scmp.ne.s32.totalorder %s153, %s155
    %p162 = scmp.eq.s32.totalorder %s19, 1
    %p163 = por %p161, %p162
    %p164 = scmp.ne.s32.totalorder %s155, %s156
    %p165 = scmp.eq.s32.totalorder %s19, 0
    %p166 = por %p164, %p165
    %p167 = scmp.ne.s32.totalorder %s155, %s156
    %p168 = scmp.eq.s32.totalorder %s20, 1
    %p169 = por %p167, %p168
    %p171 = scmp.ne.s32.totalorder %s156, %s170
    %p172 = scmp.eq.s32.totalorder %s20, 0
    %p173 = por %p171, %p172
    %s175 = sadd.s32 %s174, 1
    %p178 = scmp.eq.s32.totalorder %s14, 1
    %p179 = scmp.ne.s32.totalorder %s174, %s176
    %p180 = scmp.eq.s32.totalorder %s14, 0
    %p181 = por %p179, %p180
    %p182 = scmp.ne.s32.totalorder %s174, %s176
    %p183 = scmp.eq.s32.totalorder %s19, 1
    %p184 = por %p182, %p183
    %p185 = scmp.ne.s32.totalorder %s176, %s177
    %p186 = scmp.eq.s32.totalorder %s19, 0
    %p187 = por %p185, %p186
    %p188 = scmp.ne.s32.totalorder %s176, %s177
    %p189 = scmp.eq.s32.totalorder %s20, 1
    %p190 = por %p188, %p189
    %p192 = scmp.ne.s32.totalorder %s177, %s191
    %p193 = scmp.eq.s32.totalorder %s20, 0
    %p194 = por %p192, %p193
    %s195 = ssub.s32 %s14, %s21
    %p196 = scmp.eq.s32.totalorder %s195, 0
    %s198 = sadd.s32 %s197, 1
    %s199 = scalar_select %p196, %s197, %s198
    %p202 = pneg %p196
    %p203 = scmp.eq.s32.totalorder %s14, 1
    %p204 = por %p202, %p203
    %p205 = scmp.ne.s32.totalorder %s197, %s200
    %p206 = scmp.eq.s32.totalorder %s14, 0
    %p207 = por %p205, %p206
    %p208 = scmp.ne.s32.totalorder %s197, %s200
    %p209 = scmp.eq.s32.totalorder %s19, 1
    %p210 = por %p208, %p209
    %p211 = scmp.ne.s32.totalorder %s200, %s201
    %p212 = scmp.eq.s32.totalorder %s19, 0
    %p213 = por %p211, %p212
    %p214 = scmp.ne.s32.totalorder %s200, %s201
    %p215 = scmp.eq.s32.totalorder %s20, 1
    %p216 = por %p214, %p215
    %p218 = scmp.ne.s32.totalorder %s201, %s217
    %p219 = scmp.eq.s32.totalorder %s20, 0
    %p220 = por %p218, %p219
    %p221 = scmp.le.s32.totalorder 1, %s14
    %p222 = scmp.lt.s32.totalorder %s14, 3
    %p223 = pnand %p221, %p222
    %p224 = pneg %p223
    // Predicated region
    $region9: #{multi_axis_self_attention.2} parent=5 // pred_check
      _
    $region10: #{multi_axis_self_attention.2} parent=5 // pred_check_branch
      %226 = sbr.rel (%p223) target = $region12
    $region11: #{multi_axis_self_attention.2} parent=5 // pred_region
      %s227 = ssub.s32 %s14, 1
      // Predicated region
      $region13: #{multi_axis_self_attention.2} parent=11 // pred_check
        %p228 = pneg %p61
      $region14: #{multi_axis_self_attention.2} parent=11 // pred_check_branch
        %230 = sbr.rel (%p228) target = $region16
      $region15: #{multi_axis_self_attention.2} parent=11 // pred_region
        _
      $region16: #{multi_axis_self_attention.2} parent=11 // pred_fallthru
        _
      // Predicated region
      $region17: #{multi_axis_self_attention.2} parent=11 // pred_check
        %p231 = pneg %p82
      $region18: #{multi_axis_self_attention.2} parent=11 // pred_check_branch
        %233 = sbr.rel (%p231) target = $region20
      $region19: #{multi_axis_self_attention.2} parent=11 // pred_region
        _
      $region20: #{multi_axis_self_attention.2} parent=11 // pred_fallthru
        _
      // Predicated region
      $region21: #{multi_axis_self_attention.2} parent=11 // pred_check
        %p234 = pneg %p103
      $region22: #{multi_axis_self_attention.2} parent=11 // pred_check_branch
        %236 = sbr.rel (%p234) target = $region24
      $region23: #{multi_axis_self_attention.2} parent=11 // pred_region
        _
      $region24: #{multi_axis_self_attention.2} parent=11 // pred_fallthru
        _
      // Predicated region
      $region25: #{multi_axis_self_attention.2} parent=11 // pred_check
        %p237 = pneg %p124
      $region26: #{multi_axis_self_attention.2} parent=11 // pred_check_branch
        %239 = sbr.rel (%p237) target = $region28
      $region27: #{multi_axis_self_attention.2} parent=11 // pred_region
        _
      $region28: #{multi_axis_self_attention.2} parent=11 // pred_fallthru
        _
      // Predicated region
      $region29: #{multi_axis_self_attention.2} parent=11 // pred_check
        %p240 = pneg %p145
      $region30: #{multi_axis_self_attention.2} parent=11 // pred_check_branch
        %242 = sbr.rel (%p240) target = $region32
      $region31: #{multi_axis_self_attention.2} parent=11 // pred_region
        _
      $region32: #{multi_axis_self_attention.2} parent=11 // pred_fallthru
        _
      // Predicated region
      $region33: #{multi_axis_self_attention.2} parent=11 // pred_check
        %p243 = pneg %p166
      $region34: #{multi_axis_self_attention.2} parent=11 // pred_check_branch
        %245 = sbr.rel (%p243) target = $region36
      $region35: #{multi_axis_self_attention.2} parent=11 // pred_region
        _
      $region36: #{multi_axis_self_attention.2} parent=11 // pred_fallthru
        _
      // Predicated region
      $region37: #{multi_axis_self_attention.2} parent=11 // pred_check
        %p246 = pneg %p187
      $region38: #{multi_axis_self_attention.2} parent=11 // pred_check_branch
        %248 = sbr.rel (%p246) target = $region40
      $region39: #{multi_axis_self_attention.2} parent=11 // pred_region
        _
      $region40: #{multi_axis_self_attention.2} parent=11 // pred_fallthru
        _
    $region12: #{multi_axis_self_attention.2} parent=5 // pred_fallthru
      _
    %p249 = scmp.lt.s32.totalorder %s14, 2
    // Predicated region
    $region41: #{multi_axis_self_attention.2} parent=5 // pred_check
      %p250 = pneg %p249
    $region42: #{multi_axis_self_attention.2} parent=5 // pred_check_branch
      %252 = sbr.rel (%p250) target = $region44
    $region43: #{multi_axis_self_attention.2} parent=5 // pred_region
      // Predicated region
      $region45: #{multi_axis_self_attention.2} parent=43 // pred_check
        %p253 = pneg %p34
      $region46: #{multi_axis_self_attention.2} parent=43 // pred_check_branch
        %255 = sbr.rel (%p253) target = $region48
      $region47: #{multi_axis_self_attention.2} parent=43 // pred_region
        %s256 = smul.u32 16, %s14
        %p257 = scmp.lt.s32.totalorder %s256, 31
        %s258 = scalar_select %p257, %s256, 31
        %s259 = smul.addr %s258, 2
        %s260 = smul.addr %s259, 8
        %s261 = scalar_lea.vmem %s0, %s260
        %s262 = smul.u32 16, %s14
      $region48: #{multi_axis_self_attention.2} parent=43 // pred_fallthru
        _
    $region44: #{multi_axis_self_attention.2} parent=5 // pred_fallthru
      _
    %p263 = scmp.le.s32.totalorder 1, %s14
    %p264 = scmp.lt.s32.totalorder %s14, 3
    %p265 = pnand %p263, %p264
    %p266 = pneg %p265
    // Predicated region
    $region49: #{multi_axis_self_attention.2} parent=5 // pred_check
      _
    $region50: #{multi_axis_self_attention.2} parent=5 // pred_check_branch
      %268 = sbr.rel (%p265) target = $region52
    $region51: #{multi_axis_self_attention.2} parent=5 // pred_region
      %s269 = ssub.s32 %s14, 1
      %s270 = smul.u32 16, %s19
      %p271 = scmp.lt.s32.totalorder %s270, 31
      %s272 = scalar_select %p271, %s270, 31
      %s273 = smul.addr %s272, 2
      %s274 = smul.addr %s273, 8
      %s275 = scalar_lea.vmem %s0, %s274
      %p276 = pneg %p40
      %p277 = pneg %p37
      %p278 = pneg %p61
      %p279 = pneg %p58
      %p280 = pneg %p82
      %p281 = pneg %p79
      %p282 = pneg %p103
      %p283 = pneg %p100
      %p284 = pneg %p124
      %p285 = pneg %p121
      %p286 = pneg %p145
      %p287 = pneg %p142
      %p288 = pneg %p166
      %p289 = pneg %p163
      %p290 = pneg %p187
      %p291 = pneg %p184
      %p292 = pneg %p213
      %p293 = pneg %p210
      %s294 = smul.u32 16, %s19
      %p295 = scmp.lt.s32.totalorder %s294, 31
      %s296 = scalar_select %p295, %s294, 31
      %s297 = smul.addr %s296, 2
      %s298 = smul.addr %s297, 8
      %s299 = scalar_lea.vmem %s8, %s298
      %s300 = smul.u32 16, %s19
      %p301 = scmp.lt.s32.totalorder %s300, 31
      %s302 = scalar_select %p301, %s300, 31
      %s303 = smul.addr %s302, 2
      %s304 = smul.addr %s303, 8
      %s305 = scalar_lea.vmem %s0, %s304
      %s306 = smul.u32 16, %s19
      %s307 = smul.u32 16, %s19
      %p308 = scmp.lt.s32.totalorder %s307, 31
      %s309 = scalar_select %p308, %s307, 31
      %s310 = smul.addr %s309, 2
      %s311 = smul.addr %s310, 8
      %s312 = scalar_lea.vmem %s8, %s311
      %s313 = smul.u32 16, %s19
      %v315 = vld [vmem:[%s305] sm:$0xff]
      %v316 = vld [vmem:[%s305 + $0x8] sm:$0xff]
      %v317 = vld [vmem:[%s305 + $0x10] sm:$0xff]
      %v318 = vld [vmem:[%s305 + $0x18] sm:$0xff]
      %v319 = vld [vmem:[%s305 + $0x20] sm:$0xff]
      %v320 = vld [vmem:[%s305 + $0x28] sm:$0xff]
      %v321 = vld [vmem:[%s305 + $0x30] sm:$0xff]
      %v322 = vld [vmem:[%s305 + $0x38] sm:$0xff]
      %v323 = vld [vmem:[%s305 + $0x40] sm:$0xff]
      %v324 = vld [vmem:[%s305 + $0x48] sm:$0xff]
      %v325 = vld [vmem:[%s305 + $0x50] sm:$0xff]
      %v326 = vld [vmem:[%s305 + $0x58] sm:$0xff]
      %v327 = vld [vmem:[%s305 + $0x60] sm:$0xff]
      %v328 = vld [vmem:[%s305 + $0x68] sm:$0xff]
      %v329 = vld [vmem:[%s305 + $0x70] sm:$0xff]
      %v330 = vld [vmem:[%s305 + $0x78] sm:$0xff]
      %v331 = vld [vmem:[%s305 + $0x80] sm:$0xff]
      %v332 = vld [vmem:[%s305 + $0x88] sm:$0xff]
      %v333 = vld [vmem:[%s305 + $0x90] sm:$0xff]
      %v334 = vld [vmem:[%s305 + $0x98] sm:$0xff]
      %v335 = vld [vmem:[%s305 + $0xa0] sm:$0xff]
      %v336 = vld [vmem:[%s305 + $0xa8] sm:$0xff]
      %v337 = vld [vmem:[%s305 + $0xb0] sm:$0xff]
      %v338 = vld [vmem:[%s305 + $0xb8] sm:$0xff]
      %v339 = vld [vmem:[%s305 + $0xc0] sm:$0xff]
      %v340 = vld [vmem:[%s305 + $0xc8] sm:$0xff]
      %v341 = vld [vmem:[%s305 + $0xd0] sm:$0xff]
      %v342 = vld [vmem:[%s305 + $0xd8] sm:$0xff]
      %v343 = vld [vmem:[%s305 + $0xe0] sm:$0xff]
      %v344 = vld [vmem:[%s305 + $0xe8] sm:$0xff]
      %v345 = vld [vmem:[%s305 + $0xf0] sm:$0xff]
      %v346 = vld [vmem:[%s305 + $0xf8] sm:$0xff]
      %vm347 = vcmask 261120
      %v348 = vsel %vm347, %v315, 0.0
      %349 = vadd.xlane.f32.xlu0 %v348
      %v350 = vpop.xlane.xlu0 %349
      %v351 = vsel %vm347, %v316, 0.0
      %352 = vadd.xlane.f32.xlu0 %v351
      %v353 = vpop.xlane.xlu0 %352
      %v354 = vsel %vm347, %v317, 0.0
      %355 = vadd.xlane.f32.xlu0 %v354
      %v356 = vpop.xlane.xlu0 %355
      %v357 = vsel %vm347, %v318, 0.0
      %358 = vadd.xlane.f32.xlu0 %v357
      %v359 = vpop.xlane.xlu0 %358
      %v360 = vsel %vm347, %v319, 0.0
      %361 = vadd.xlane.f32.xlu0 %v360
      %v362 = vpop.xlane.xlu0 %361
      %v363 = vsel %vm347, %v320, 0.0
      %364 = vadd.xlane.f32.xlu0 %v363
      %v365 = vpop.xlane.xlu0 %364
      %v366 = vsel %vm347, %v321, 0.0
      %367 = vadd.xlane.f32.xlu0 %v366
      %v368 = vpop.xlane.xlu0 %367
      %v369 = vsel %vm347, %v322, 0.0
      %370 = vadd.xlane.f32.xlu0 %v369
      %v371 = vpop.xlane.xlu0 %370
      %v372 = vsel %vm347, %v323, 0.0
      %373 = vadd.xlane.f32.xlu0 %v372
      %v374 = vpop.xlane.xlu0 %373
      %v375 = vsel %vm347, %v324, 0.0
      %376 = vadd.xlane.f32.xlu0 %v375
      %v377 = vpop.xlane.xlu0 %376
      %v378 = vsel %vm347, %v325, 0.0
      %379 = vadd.xlane.f32.xlu0 %v378
      %v380 = vpop.xlane.xlu0 %379
      %v381 = vsel %vm347, %v326, 0.0
      %382 = vadd.xlane.f32.xlu0 %v381
      %v383 = vpop.xlane.xlu0 %382
      %v384 = vsel %vm347, %v327, 0.0
      %385 = vadd.xlane.f32.xlu0 %v384
      %v386 = vpop.xlane.xlu0 %385
      %v387 = vsel %vm347, %v328, 0.0
      %388 = vadd.xlane.f32.xlu0 %v387
      %v389 = vpop.xlane.xlu0 %388
      %v390 = vsel %vm347, %v329, 0.0
      %391 = vadd.xlane.f32.xlu0 %v390
      %v392 = vpop.xlane.xlu0 %391
      %v393 = vsel %vm347, %v330, 0.0
      %394 = vadd.xlane.f32.xlu0 %v393
      %v395 = vpop.xlane.xlu0 %394
      %v396 = vsel %vm347, %v331, 0.0
      %397 = vadd.xlane.f32.xlu0 %v396
      %v398 = vpop.xlane.xlu0 %397
      %v399 = vsel %vm347, %v332, 0.0
      %400 = vadd.xlane.f32.xlu0 %v399
      %v401 = vpop.xlane.xlu0 %400
      %v402 = vsel %vm347, %v333, 0.0
      %403 = vadd.xlane.f32.xlu0 %v402
      %v404 = vpop.xlane.xlu0 %403
      %v405 = vsel %vm347, %v334, 0.0
      %406 = vadd.xlane.f32.xlu0 %v405
      %v407 = vpop.xlane.xlu0 %406
      %v408 = vsel %vm347, %v335, 0.0
      %409 = vadd.xlane.f32.xlu0 %v408
      %v410 = vpop.xlane.xlu0 %409
      %v411 = vsel %vm347, %v336, 0.0
      %412 = vadd.xlane.f32.xlu0 %v411
      %v413 = vpop.xlane.xlu0 %412
      %v414 = vsel %vm347, %v337, 0.0
      %415 = vadd.xlane.f32.xlu0 %v414
      %v416 = vpop.xlane.xlu0 %415
      %v417 = vsel %vm347, %v338, 0.0
      %418 = vadd.xlane.f32.xlu0 %v417
      %v419 = vpop.xlane.xlu0 %418
      %v420 = vsel %vm347, %v339, 0.0
      %421 = vadd.xlane.f32.xlu0 %v420
      %v422 = vpop.xlane.xlu0 %421
      %v423 = vsel %vm347, %v340, 0.0
      %424 = vadd.xlane.f32.xlu0 %v423
      %v425 = vpop.xlane.xlu0 %424
      %v426 = vsel %vm347, %v341, 0.0
      %427 = vadd.xlane.f32.xlu0 %v426
      %v428 = vpop.xlane.xlu0 %427
      %v429 = vsel %vm347, %v342, 0.0
      %430 = vadd.xlane.f32.xlu0 %v429
      %v431 = vpop.xlane.xlu0 %430
      %v432 = vsel %vm347, %v343, 0.0
      %433 = vadd.xlane.f32.xlu0 %v432
      %v434 = vpop.xlane.xlu0 %433
      %v435 = vsel %vm347, %v344, 0.0
      %436 = vadd.xlane.f32.xlu0 %v435
      %v437 = vpop.xlane.xlu0 %436
      %v438 = vsel %vm347, %v345, 0.0
      %439 = vadd.xlane.f32.xlu0 %v438
      %v440 = vpop.xlane.xlu0 %439
      %v441 = vsel %vm347, %v346, 0.0
      %442 = vadd.xlane.f32.xlu0 %v441
      %v443 = vpop.xlane.xlu0 %442
      %v444 = vrcp.pop 32.0
      %v445 = vmul.f32 %v350, %v444
      %v446 = vmul.f32 %v353, %v444
      %v447 = vmul.f32 %v356, %v444
      %v448 = vmul.f32 %v359, %v444
      %v449 = vmul.f32 %v362, %v444
      %v450 = vmul.f32 %v365, %v444
      %v451 = vmul.f32 %v368, %v444
      %v452 = vmul.f32 %v371, %v444
      %v453 = vmul.f32 %v374, %v444
      %v454 = vmul.f32 %v377, %v444
      %v455 = vmul.f32 %v380, %v444
      %v456 = vmul.f32 %v383, %v444
      %v457 = vmul.f32 %v386, %v444
      %v458 = vmul.f32 %v389, %v444
      %v459 = vmul.f32 %v392, %v444
      %v460 = vmul.f32 %v395, %v444
      %v461 = vmul.f32 %v398, %v444
      %v462 = vmul.f32 %v401, %v444
      %v463 = vmul.f32 %v404, %v444
      %v464 = vmul.f32 %v407, %v444
      %v465 = vmul.f32 %v410, %v444
      %v466 = vmul.f32 %v413, %v444
      %v467 = vmul.f32 %v416, %v444
      %v468 = vmul.f32 %v419, %v444
      %v469 = vmul.f32 %v422, %v444
      %v470 = vmul.f32 %v425, %v444
      %v471 = vmul.f32 %v428, %v444
      %v472 = vmul.f32 %v431, %v444
      %v473 = vmul.f32 %v434, %v444
      %v474 = vmul.f32 %v437, %v444
      %v475 = vmul.f32 %v440, %v444
      %v476 = vmul.f32 %v443, %v444
      %v477 = vsub.f32 %v315, %v445
      %v478 = vsub.f32 %v316, %v446
      %v479 = vsub.f32 %v317, %v447
      %v480 = vsub.f32 %v318, %v448
      %v481 = vsub.f32 %v319, %v449
      %v482 = vsub.f32 %v320, %v450
      %v483 = vsub.f32 %v321, %v451
      %v484 = vsub.f32 %v322, %v452
      %v485 = vsub.f32 %v323, %v453
      %v486 = vsub.f32 %v324, %v454
      %v487 = vsub.f32 %v325, %v455
      %v488 = vsub.f32 %v326, %v456
      %v489 = vsub.f32 %v327, %v457
      %v490 = vsub.f32 %v328, %v458
      %v491 = vsub.f32 %v329, %v459
      %v492 = vsub.f32 %v330, %v460
      %v493 = vsub.f32 %v331, %v461
      %v494 = vsub.f32 %v332, %v462
      %v495 = vsub.f32 %v333, %v463
      %v496 = vsub.f32 %v334, %v464
      %v497 = vsub.f32 %v335, %v465
      %v498 = vsub.f32 %v336, %v466
      %v499 = vsub.f32 %v337, %v467
      %v500 = vsub.f32 %v338, %v468
      %v501 = vsub.f32 %v339, %v469
      %v502 = vsub.f32 %v340, %v470
      %v503 = vsub.f32 %v341, %v471
      %v504 = vsub.f32 %v342, %v472
      %v505 = vsub.f32 %v343, %v473
      %v506 = vsub.f32 %v344, %v474
      %v507 = vsub.f32 %v345, %v475
      %v508 = vsub.f32 %v346, %v476
      %v509 = vmul.f32 %v477, %v477
      %v510 = vmul.f32 %v478, %v478
      %v511 = vmul.f32 %v479, %v479
      %v512 = vmul.f32 %v480, %v480
      %v513 = vmul.f32 %v481, %v481
      %v514 = vmul.f32 %v482, %v482
      %v515 = vmul.f32 %v483, %v483
      %v516 = vmul.f32 %v484, %v484
      %v517 = vmul.f32 %v485, %v485
      %v518 = vmul.f32 %v486, %v486
      %v519 = vmul.f32 %v487, %v487
      %v520 = vmul.f32 %v488, %v488
      %v521 = vmul.f32 %v489, %v489
      %v522 = vmul.f32 %v490, %v490
      %v523 = vmul.f32 %v491, %v491
      %v524 = vmul.f32 %v492, %v492
      %v525 = vmul.f32 %v493, %v493
      %v526 = vmul.f32 %v494, %v494
      %v527 = vmul.f32 %v495, %v495
      %v528 = vmul.f32 %v496, %v496
      %v529 = vmul.f32 %v497, %v497
      %v530 = vmul.f32 %v498, %v498
      %v531 = vmul.f32 %v499, %v499
      %v532 = vmul.f32 %v500, %v500
      %v533 = vmul.f32 %v501, %v501
      %v534 = vmul.f32 %v502, %v502
      %v535 = vmul.f32 %v503, %v503
      %v536 = vmul.f32 %v504, %v504
      %v537 = vmul.f32 %v505, %v505
      %v538 = vmul.f32 %v506, %v506
      %v539 = vmul.f32 %v507, %v507
      %v540 = vmul.f32 %v508, %v508
      %v541 = vsel %vm347, %v509, 0.0
      %542 = vadd.xlane.f32.xlu0 %v541
      %v543 = vpop.xlane.xlu0 %542
      %v544 = vsel %vm347, %v510, 0.0
      %545 = vadd.xlane.f32.xlu0 %v544
      %v546 = vpop.xlane.xlu0 %545
      %v547 = vsel %vm347, %v511, 0.0
      %548 = vadd.xlane.f32.xlu0 %v547
      %v549 = vpop.xlane.xlu0 %548
      %v550 = vsel %vm347, %v512, 0.0
      %551 = vadd.xlane.f32.xlu0 %v550
      %v552 = vpop.xlane.xlu0 %551
      %v553 = vsel %vm347, %v513, 0.0
      %554 = vadd.xlane.f32.xlu0 %v553
      %v555 = vpop.xlane.xlu0 %554
      %v556 = vsel %vm347, %v514, 0.0
      %557 = vadd.xlane.f32.xlu0 %v556
      %v558 = vpop.xlane.xlu0 %557
      %v559 = vsel %vm347, %v515, 0.0
      %560 = vadd.xlane.f32.xlu0 %v559
      %v561 = vpop.xlane.xlu0 %560
      %v562 = vsel %vm347, %v516, 0.0
      %563 = vadd.xlane.f32.xlu0 %v562
      %v564 = vpop.xlane.xlu0 %563
      %v565 = vsel %vm347, %v517, 0.0
      %566 = vadd.xlane.f32.xlu0 %v565
      %v567 = vpop.xlane.xlu0 %566
      %v568 = vsel %vm347, %v518, 0.0
      %569 = vadd.xlane.f32.xlu0 %v568
      %v570 = vpop.xlane.xlu0 %569
      %v571 = vsel %vm347, %v519, 0.0
      %572 = vadd.xlane.f32.xlu0 %v571
      %v573 = vpop.xlane.xlu0 %572
      %v574 = vsel %vm347, %v520, 0.0
      %575 = vadd.xlane.f32.xlu0 %v574
      %v576 = vpop.xlane.xlu0 %575
      %v577 = vsel %vm347, %v521, 0.0
      %578 = vadd.xlane.f32.xlu0 %v577
      %v579 = vpop.xlane.xlu0 %578
      %v580 = vsel %vm347, %v522, 0.0
      %581 = vadd.xlane.f32.xlu0 %v580
      %v582 = vpop.xlane.xlu0 %581
      %v583 = vsel %vm347, %v523, 0.0
      %584 = vadd.xlane.f32.xlu0 %v583
      %v585 = vpop.xlane.xlu0 %584
      %v586 = vsel %vm347, %v524, 0.0
      %587 = vadd.xlane.f32.xlu0 %v586
      %v588 = vpop.xlane.xlu0 %587
      %v589 = vsel %vm347, %v525, 0.0
      %590 = vadd.xlane.f32.xlu0 %v589
      %v591 = vpop.xlane.xlu0 %590
      %v592 = vsel %vm347, %v526, 0.0
      %593 = vadd.xlane.f32.xlu0 %v592
      %v594 = vpop.xlane.xlu0 %593
      %v595 = vsel %vm347, %v527, 0.0
      %596 = vadd.xlane.f32.xlu0 %v595
      %v597 = vpop.xlane.xlu0 %596
      %v598 = vsel %vm347, %v528, 0.0
      %599 = vadd.xlane.f32.xlu0 %v598
      %v600 = vpop.xlane.xlu0 %599
      %v601 = vsel %vm347, %v529, 0.0
      %602 = vadd.xlane.f32.xlu0 %v601
      %v603 = vpop.xlane.xlu0 %602
      %v604 = vsel %vm347, %v530, 0.0
      %605 = vadd.xlane.f32.xlu0 %v604
      %v606 = vpop.xlane.xlu0 %605
      %v607 = vsel %vm347, %v531, 0.0
      %608 = vadd.xlane.f32.xlu0 %v607
      %v609 = vpop.xlane.xlu0 %608
      %v610 = vsel %vm347, %v532, 0.0
      %611 = vadd.xlane.f32.xlu0 %v610
      %v612 = vpop.xlane.xlu0 %611
      %v613 = vsel %vm347, %v533, 0.0
      %614 = vadd.xlane.f32.xlu0 %v613
      %v615 = vpop.xlane.xlu0 %614
      %v616 = vsel %vm347, %v534, 0.0
      %617 = vadd.xlane.f32.xlu0 %v616
      %v618 = vpop.xlane.xlu0 %617
      %v619 = vsel %vm347, %v535, 0.0
      %620 = vadd.xlane.f32.xlu0 %v619
      %v621 = vpop.xlane.xlu0 %620
      %v622 = vsel %vm347, %v536, 0.0
      %623 = vadd.xlane.f32.xlu0 %v622
      %v624 = vpop.xlane.xlu0 %623
      %v625 = vsel %vm347, %v537, 0.0
      %626 = vadd.xlane.f32.xlu0 %v625
      %v627 = vpop.xlane.xlu0 %626
      %v628 = vsel %vm347, %v538, 0.0
      %629 = vadd.xlane.f32.xlu0 %v628
      %v630 = vpop.xlane.xlu0 %629
      %v631 = vsel %vm347, %v539, 0.0
      %632 = vadd.xlane.f32.xlu0 %v631
      %v633 = vpop.xlane.xlu0 %632
      %v634 = vsel %vm347, %v540, 0.0
      %635 = vadd.xlane.f32.xlu0 %v634
      %v636 = vpop.xlane.xlu0 %635
      %v637 = vmul.f32 %v543, %v444
      %v638 = vmul.f32 %v546, %v444
      %v639 = vmul.f32 %v549, %v444
      %v640 = vmul.f32 %v552, %v444
      %v641 = vmul.f32 %v555, %v444
      %v642 = vmul.f32 %v558, %v444
      %v643 = vmul.f32 %v561, %v444
      %v644 = vmul.f32 %v564, %v444
      %v645 = vmul.f32 %v567, %v444
      %v646 = vmul.f32 %v570, %v444
      %v647 = vmul.f32 %v573, %v444
      %v648 = vmul.f32 %v576, %v444
      %v649 = vmul.f32 %v579, %v444
      %v650 = vmul.f32 %v582, %v444
      %v651 = vmul.f32 %v585, %v444
      %v652 = vmul.f32 %v588, %v444
      %v653 = vmul.f32 %v591, %v444
      %v654 = vmul.f32 %v594, %v444
      %v655 = vmul.f32 %v597, %v444
      %v656 = vmul.f32 %v600, %v444
      %v657 = vmul.f32 %v603, %v444
      %v658 = vmul.f32 %v606, %v444
      %v659 = vmul.f32 %v609, %v444
      %v660 = vmul.f32 %v612, %v444
      %v661 = vmul.f32 %v615, %v444
      %v662 = vmul.f32 %v618, %v444
      %v663 = vmul.f32 %v621, %v444
      %v664 = vmul.f32 %v624, %v444
      %v665 = vmul.f32 %v627, %v444
      %v666 = vmul.f32 %v630, %v444
      %v667 = vmul.f32 %v633, %v444
      %v668 = vmul.f32 %v636, %v444
      %v669 = vadd.f32 %v637, 1e-05
      %v670 = vadd.f32 %v638, 1e-05
      %v671 = vadd.f32 %v639, 1e-05
      %v672 = vadd.f32 %v640, 1e-05
      %v673 = vadd.f32 %v641, 1e-05
      %v674 = vadd.f32 %v642, 1e-05
      %v675 = vadd.f32 %v643, 1e-05
      %v676 = vadd.f32 %v644, 1e-05
      %v677 = vadd.f32 %v645, 1e-05
      %v678 = vadd.f32 %v646, 1e-05
      %v679 = vadd.f32 %v647, 1e-05
      %v680 = vadd.f32 %v648, 1e-05
      %v681 = vadd.f32 %v649, 1e-05
      %v682 = vadd.f32 %v650, 1e-05
      %v683 = vadd.f32 %v651, 1e-05
      %v684 = vadd.f32 %v652, 1e-05
      %v685 = vadd.f32 %v653, 1e-05
      %v686 = vadd.f32 %v654, 1e-05
      %v687 = vadd.f32 %v655, 1e-05
      %v688 = vadd.f32 %v656, 1e-05
      %v689 = vadd.f32 %v657, 1e-05
      %v690 = vadd.f32 %v658, 1e-05
      %v691 = vadd.f32 %v659, 1e-05
      %v692 = vadd.f32 %v660, 1e-05
      %v693 = vadd.f32 %v661, 1e-05
      %v694 = vadd.f32 %v662, 1e-05
      %v695 = vadd.f32 %v663, 1e-05
      %v696 = vadd.f32 %v664, 1e-05
      %v697 = vadd.f32 %v665, 1e-05
      %v698 = vadd.f32 %v666, 1e-05
      %v699 = vadd.f32 %v667, 1e-05
      %v700 = vadd.f32 %v668, 1e-05
      %v701 = vrsqrt.pop %v669
      %v702 = vrsqrt.pop %v670
      %v703 = vrsqrt.pop %v671
      %v704 = vrsqrt.pop %v672
      %v705 = vrsqrt.pop %v673
      %v706 = vrsqrt.pop %v674
      %v707 = vrsqrt.pop %v675
      %v708 = vrsqrt.pop %v676
      %v709 = vrsqrt.pop %v677
      %v710 = vrsqrt.pop %v678
      %v711 = vrsqrt.pop %v679
      %v712 = vrsqrt.pop %v680
      %v713 = vrsqrt.pop %v681
      %v714 = vrsqrt.pop %v682
      %v715 = vrsqrt.pop %v683
      %v716 = vrsqrt.pop %v684
      %v717 = vrsqrt.pop %v685
      %v718 = vrsqrt.pop %v686
      %v719 = vrsqrt.pop %v687
      %v720 = vrsqrt.pop %v688
      %v721 = vrsqrt.pop %v689
      %v722 = vrsqrt.pop %v690
      %v723 = vrsqrt.pop %v691
      %v724 = vrsqrt.pop %v692
      %v725 = vrsqrt.pop %v693
      %v726 = vrsqrt.pop %v694
      %v727 = vrsqrt.pop %v695
      %v728 = vrsqrt.pop %v696
      %v729 = vrsqrt.pop %v697
      %v730 = vrsqrt.pop %v698
      %v731 = vrsqrt.pop %v699
      %v732 = vrsqrt.pop %v700
      %v733 = vmul.f32 %v477, %v701
      %v734 = vmul.f32 %v478, %v702
      %v735 = vmul.f32 %v479, %v703
      %v736 = vmul.f32 %v480, %v704
      %v737 = vmul.f32 %v481, %v705
      %v738 = vmul.f32 %v482, %v706
      %v739 = vmul.f32 %v483, %v707
      %v740 = vmul.f32 %v484, %v708
      %v741 = vmul.f32 %v485, %v709
      %v742 = vmul.f32 %v486, %v710
      %v743 = vmul.f32 %v487, %v711
      %v744 = vmul.f32 %v488, %v712
      %v745 = vmul.f32 %v489, %v713
      %v746 = vmul.f32 %v490, %v714
      %v747 = vmul.f32 %v491, %v715
      %v748 = vmul.f32 %v492, %v716
      %v749 = vmul.f32 %v493, %v717
      %v750 = vmul.f32 %v494, %v718
      %v751 = vmul.f32 %v495, %v719
      %v752 = vmul.f32 %v496, %v720
      %v753 = vmul.f32 %v497, %v721
      %v754 = vmul.f32 %v498, %v722
      %v755 = vmul.f32 %v499, %v723
      %v756 = vmul.f32 %v500, %v724
      %v757 = vmul.f32 %v501, %v725
      %v758 = vmul.f32 %v502, %v726
      %v759 = vmul.f32 %v503, %v727
      %v760 = vmul.f32 %v504, %v728
      %v761 = vmul.f32 %v505, %v729
      %v762 = vmul.f32 %v506, %v730
      %v763 = vmul.f32 %v507, %v731
      %v764 = vmul.f32 %v508, %v732
      %v765 = vld [vmem:[%s1] sm:$0x1]
      %v767 = vlaneseq
      %v768 = vshrl.u32 %v767, 7
      %v769 = vsub.s32 0, %v768
      %v770 = vrot.slane %v765, %v769
      %v772 = vmul.f32 %v733, %v770
      %v773 = vmul.f32 %v734, %v770
      %v774 = vmul.f32 %v735, %v770
      %v775 = vmul.f32 %v736, %v770
      %v776 = vmul.f32 %v737, %v770
      %v777 = vmul.f32 %v738, %v770
      %v778 = vmul.f32 %v739, %v770
      %v779 = vmul.f32 %v740, %v770
      %v780 = vmul.f32 %v741, %v770
      %v781 = vmul.f32 %v742, %v770
      %v782 = vmul.f32 %v743, %v770
      %v783 = vmul.f32 %v744, %v770
      %v784 = vmul.f32 %v745, %v770
      %v785 = vmul.f32 %v746, %v770
      %v786 = vmul.f32 %v747, %v770
      %v787 = vmul.f32 %v748, %v770
      %v788 = vmul.f32 %v749, %v770
      %v789 = vmul.f32 %v750, %v770
      %v790 = vmul.f32 %v751, %v770
      %v791 = vmul.f32 %v752, %v770
      %v792 = vmul.f32 %v753, %v770
      %v793 = vmul.f32 %v754, %v770
      %v794 = vmul.f32 %v755, %v770
      %v795 = vmul.f32 %v756, %v770
      %v796 = vmul.f32 %v757, %v770
      %v797 = vmul.f32 %v758, %v770
      %v798 = vmul.f32 %v759, %v770
      %v799 = vmul.f32 %v760, %v770
      %v800 = vmul.f32 %v761, %v770
      %v801 = vmul.f32 %v762, %v770
      %v802 = vmul.f32 %v763, %v770
      %v803 = vmul.f32 %v764, %v770
      %v804 = vld [vmem:[%s2] sm:$0x1]
      %v806 = vlaneseq
      %v807 = vshrl.u32 %v806, 7
      %v808 = vsub.s32 0, %v807
      %v809 = vrot.slane %v804, %v808
      %v811 = vadd.f32 %v772, %v809
      %v812 = vadd.f32 %v773, %v809
      %v813 = vadd.f32 %v774, %v809
      %v814 = vadd.f32 %v775, %v809
      %v815 = vadd.f32 %v776, %v809
      %v816 = vadd.f32 %v777, %v809
      %v817 = vadd.f32 %v778, %v809
      %v818 = vadd.f32 %v779, %v809
      %v819 = vadd.f32 %v780, %v809
      %v820 = vadd.f32 %v781, %v809
      %v821 = vadd.f32 %v782, %v809
      %v822 = vadd.f32 %v783, %v809
      %v823 = vadd.f32 %v784, %v809
      %v824 = vadd.f32 %v785, %v809
      %v825 = vadd.f32 %v786, %v809
      %v826 = vadd.f32 %v787, %v809
      %v827 = vadd.f32 %v788, %v809
      %v828 = vadd.f32 %v789, %v809
      %v829 = vadd.f32 %v790, %v809
      %v830 = vadd.f32 %v791, %v809
      %v831 = vadd.f32 %v792, %v809
      %v832 = vadd.f32 %v793, %v809
      %v833 = vadd.f32 %v794, %v809
      %v834 = vadd.f32 %v795, %v809
      %v835 = vadd.f32 %v796, %v809
      %v836 = vadd.f32 %v797, %v809
      %v837 = vadd.f32 %v798, %v809
      %v838 = vadd.f32 %v799, %v809
      %v839 = vadd.f32 %v800, %v809
      %v840 = vadd.f32 %v801, %v809
      %v841 = vadd.f32 %v802, %v809
      %v842 = vadd.f32 %v803, %v809
      %v843 = vpack.c.bf16 %v812, %v811
      %v844 = vpack.c.bf16 %v814, %v813
      %v845 = vpack.c.bf16 %v816, %v815
      %v846 = vpack.c.bf16 %v818, %v817
      %v847 = vpack.c.bf16 %v820, %v819
      %v848 = vpack.c.bf16 %v822, %v821
      %v849 = vpack.c.bf16 %v824, %v823
      %v850 = vpack.c.bf16 %v826, %v825
      %v851 = vpack.c.bf16 %v828, %v827
      %v852 = vpack.c.bf16 %v830, %v829
      %v853 = vpack.c.bf16 %v832, %v831
      %v854 = vpack.c.bf16 %v834, %v833
      %v855 = vpack.c.bf16 %v836, %v835
      %v856 = vpack.c.bf16 %v838, %v837
      %v857 = vpack.c.bf16 %v840, %v839
      %v858 = vpack.c.bf16 %v842, %v841
      %v859 = vld [vmem:[%s3] sm:$0xf]
      %v860 = vld [vmem:[%s3 + $0x4] sm:$0xf]
      %v861 = vld [vmem:[%s3 + $0x8] sm:$0xf]
      %v862 = vld [vmem:[%s3 + $0xc] sm:$0xf]
      %v863 = vld [vmem:[%s4] sm:$0x1]
      %v865 = vlaneseq
      %v866 = vshrl.u32 %v865, 7
      %v867 = vsub.s32 0, %v866
      %v868 = vrot.slane %v863, %v867
      %v874 = vunpack.c.l.b16 %v859
      %v875 = vunpack.c.l.b16 %v860
      %v876 = vunpack.c.l.b16 %v861
      %v877 = vunpack.c.l.b16 %v862
      %v878 = vpack.c.b16 %v875, %v874
      %v879 = vpack.c.b16 %v877, %v876
      %v883 = vsel %vm347, %v843, 0
      %v886 = vsel %vm347, %v844, 0
      %v889 = vsel %vm347, %v845, 0
      %v892 = vsel %vm347, %v846, 0
      %v895 = vsel %vm347, %v847, 0
      %v898 = vsel %vm347, %v848, 0
      %v901 = vsel %vm347, %v849, 0
      %v904 = vsel %vm347, %v850, 0
      %v907 = vsel %vm347, %v851, 0
      %v910 = vsel %vm347, %v852, 0
      %v913 = vsel %vm347, %v853, 0
      %v916 = vsel %vm347, %v854, 0
      %v919 = vsel %vm347, %v855, 0
      %v922 = vsel %vm347, %v856, 0
      %v925 = vsel %vm347, %v857, 0
      %v928 = vsel %vm347, %v858, 0
      %930 = vmatprep.subr.bf16.mxu0 0
      %931 = vmatpush1.bf16.msra.mxu0 0
      %932 = vmatprep.subr.bf16.mxu0 0
      %933 = vmatpush1.bf16.msra.mxu0 0
      %934 = vmatprep.subr.bf16.mxu0 0
      %935 = vmatpush1.bf16.msra.mxu0 0
      %936 = vmatprep.subr.bf16.mxu0 0
      %937 = vmatpush1.bf16.msra.mxu0 0
      %938 = vmatprep.subr.bf16.mxu0 0
      %939 = vmatpush1.bf16.msra.mxu0 0
      %940 = vmatprep.subr.bf16.mxu0 0
      %941 = vmatpush1.bf16.msra.mxu0 0
      %942 = vmatprep.subr.bf16.mxu0 0
      %943 = vmatpush1.bf16.msra.mxu0 %v879
      %944 = vmatprep.subr.bf16.mxu0 0
      %945 = vmatpush1.bf16.msra.mxu0 %v878
      %946 = vmatprep.subr.bf16.mxu0 0
      %947 = vmatpush2.bf16.msra.mxu0 0
      %948 = vmatprep.subr.bf16.mxu0 0
      %949 = vmatpush2.bf16.msra.mxu0 0
      %950 = vmatprep.subr.bf16.mxu0 0
      %951 = vmatpush2.bf16.msra.mxu0 0
      %952 = vmatprep.subr.bf16.mxu0 0
      %953 = vmatpush2.bf16.msra.mxu0 0
      %954 = vmatprep.subr.bf16.mxu0 0
      %955 = vmatpush2.bf16.msra.mxu0 0
      %956 = vmatprep.subr.bf16.mxu0 0
      %957 = vmatpush2.bf16.msra.mxu0 0
      %958 = vmatprep.subr.bf16.mxu0 0
      %959 = vmatpush2.bf16.msra.mxu0 0
      %960 = vmatprep.subr.bf16.mxu0 0
      %961 = vmatpush2.bf16.msra.mxu0 0
      %962 = vmatprep.mubr.bf16.mxu0 0
      %963 = vmatmul.mubr.bf16.gmra.mxu0 %v883
      %v964 = vpop.f32.mrf.mxu0
      %v965 = vadd.f32 %v868, %v964
      %v966 = vpop.f32.mrf.mxu0
      %v967 = vpop.f32.mrf.mxu0
      %v968 = vadd.f32 %v868, %v967
      %v969 = vpop.f32.mrf.mxu0
      %970 = vmatprep.mubr.bf16.mxu0 0
      %971 = vmatmul.mubr.bf16.gmra.mxu0 %v886
      %v972 = vpop.f32.mrf.mxu0
      %v973 = vadd.f32 %v868, %v972
      %v974 = vpop.f32.mrf.mxu0
      %v975 = vpop.f32.mrf.mxu0
      %v976 = vadd.f32 %v868, %v975
      %v977 = vpop.f32.mrf.mxu0
      %978 = vmatprep.mubr.bf16.mxu0 0
      %979 = vmatmul.mubr.bf16.gmra.mxu0 %v889
      %v980 = vpop.f32.mrf.mxu0
      %v981 = vadd.f32 %v868, %v980
      %v982 = vpop.f32.mrf.mxu0
      %v983 = vpop.f32.mrf.mxu0
      %v984 = vadd.f32 %v868, %v983
      %v985 = vpop.f32.mrf.mxu0
      %986 = vmatprep.mubr.bf16.mxu0 0
      %987 = vmatmul.mubr.bf16.gmra.mxu0 %v892
      %v988 = vpop.f32.mrf.mxu0
      %v989 = vadd.f32 %v868, %v988
      %v990 = vpop.f32.mrf.mxu0
      %v991 = vpop.f32.mrf.mxu0
      %v992 = vadd.f32 %v868, %v991
      %v993 = vpop.f32.mrf.mxu0
      %994 = vmatprep.mubr.bf16.mxu0 0
      %995 = vmatmul.mubr.bf16.gmra.mxu0 %v895
      %v996 = vpop.f32.mrf.mxu0
      %v997 = vadd.f32 %v868, %v996
      %v998 = vpop.f32.mrf.mxu0
      %v999 = vpop.f32.mrf.mxu0
      %v1000 = vadd.f32 %v868, %v999
      %v1001 = vpop.f32.mrf.mxu0
      %1002 = vmatprep.mubr.bf16.mxu0 0
      %1003 = vmatmul.mubr.bf16.gmra.mxu0 %v898
      %v1004 = vpop.f32.mrf.mxu0
      %v1005 = vadd.f32 %v868, %v1004
      %v1006 = vpop.f32.mrf.mxu0
      %v1007 = vpop.f32.mrf.mxu0
      %v1008 = vadd.f32 %v868, %v1007
      %v1009 = vpop.f32.mrf.mxu0
      %1010 = vmatprep.mubr.bf16.mxu0 0
      %1011 = vmatmul.mubr.bf16.gmra.mxu0 %v901
      %v1012 = vpop.f32.mrf.mxu0
      %v1013 = vadd.f32 %v868, %v1012
      %v1014 = vpop.f32.mrf.mxu0
      %v1015 = vpop.f32.mrf.mxu0
      %v1016 = vadd.f32 %v868, %v1015
      %v1017 = vpop.f32.mrf.mxu0
      %1018 = vmatprep.mubr.bf16.mxu0 0
      %1019 = vmatmul.mubr.bf16.gmra.mxu0 %v904
      %v1020 = vpop.f32.mrf.mxu0
      %v1021 = vadd.f32 %v868, %v1020
      %v1022 = vpop.f32.mrf.mxu0
      %v1023 = vpop.f32.mrf.mxu0
      %v1024 = vadd.f32 %v868, %v1023
      %v1025 = vpop.f32.mrf.mxu0
      %1026 = vmatprep.mubr.bf16.mxu0 0
      %1027 = vmatmul.mubr.bf16.gmra.mxu0 %v907
      %v1028 = vpop.f32.mrf.mxu0
      %v1029 = vadd.f32 %v868, %v1028
      %v1030 = vpop.f32.mrf.mxu0
      %v1031 = vpop.f32.mrf.mxu0
      %v1032 = vadd.f32 %v868, %v1031
      %v1033 = vpop.f32.mrf.mxu0
      %1034 = vmatprep.mubr.bf16.mxu0 0
      %1035 = vmatmul.mubr.bf16.gmra.mxu0 %v910
      %v1036 = vpop.f32.mrf.mxu0
      %v1037 = vadd.f32 %v868, %v1036
      %v1038 = vpop.f32.mrf.mxu0
      %v1039 = vpop.f32.mrf.mxu0
      %v1040 = vadd.f32 %v868, %v1039
      %v1041 = vpop.f32.mrf.mxu0
      %1042 = vmatprep.mubr.bf16.mxu0 0
      %1043 = vmatmul.mubr.bf16.gmra.mxu0 %v913
      %v1044 = vpop.f32.mrf.mxu0
      %v1045 = vadd.f32 %v868, %v1044
      %v1046 = vpop.f32.mrf.mxu0
      %v1047 = vpop.f32.mrf.mxu0
      %v1048 = vadd.f32 %v868, %v1047
      %v1049 = vpop.f32.mrf.mxu0
      %1050 = vmatprep.mubr.bf16.mxu0 0
      %1051 = vmatmul.mubr.bf16.gmra.mxu0 %v916
      %v1052 = vpop.f32.mrf.mxu0
      %v1053 = vadd.f32 %v868, %v1052
      %v1054 = vpop.f32.mrf.mxu0
      %v1055 = vpop.f32.mrf.mxu0
      %v1056 = vadd.f32 %v868, %v1055
      %v1057 = vpop.f32.mrf.mxu0
      %1058 = vmatprep.mubr.bf16.mxu0 0
      %1059 = vmatmul.mubr.bf16.gmra.mxu0 %v919
      %v1060 = vpop.f32.mrf.mxu0
      %v1061 = vadd.f32 %v868, %v1060
      %v1062 = vpop.f32.mrf.mxu0
      %v1063 = vpop.f32.mrf.mxu0
      %v1064 = vadd.f32 %v868, %v1063
      %v1065 = vpop.f32.mrf.mxu0
      %1066 = vmatprep.mubr.bf16.mxu0 0
      %1067 = vmatmul.mubr.bf16.gmra.mxu0 %v922
      %v1068 = vpop.f32.mrf.mxu0
      %v1069 = vadd.f32 %v868, %v1068
      %v1070 = vpop.f32.mrf.mxu0
      %v1071 = vpop.f32.mrf.mxu0
      %v1072 = vadd.f32 %v868, %v1071
      %v1073 = vpop.f32.mrf.mxu0
      %1074 = vmatprep.mubr.bf16.mxu0 0
      %1075 = vmatmul.mubr.bf16.gmra.mxu0 %v925
      %v1076 = vpop.f32.mrf.mxu0
      %v1077 = vadd.f32 %v868, %v1076
      %v1078 = vpop.f32.mrf.mxu0
      %v1079 = vpop.f32.mrf.mxu0
      %v1080 = vadd.f32 %v868, %v1079
      %v1081 = vpop.f32.mrf.mxu0
      %1082 = vmatprep.mubr.bf16.mxu0 0
      %1083 = vmatmul.mubr.bf16.gmra.mxu0 %v928
      %v1084 = vpop.f32.mrf.mxu0
      %v1085 = vadd.f32 %v868, %v1084
      %v1086 = vpop.f32.mrf.mxu0
      %v1087 = vpop.f32.mrf.mxu0
      %v1088 = vadd.f32 %v868, %v1087
      %v1089 = vpop.f32.mrf.mxu0
      %1090 = vdwg.mxu0
      %v1091 = vpack.c.bf16 %v968, %v965
      %v1092 = vpack.c.bf16 %v976, %v973
      %v1093 = vpack.c.bf16 %v984, %v981
      %v1094 = vpack.c.bf16 %v992, %v989
      %v1095 = vpack.c.bf16 %v1000, %v997
      %v1096 = vpack.c.bf16 %v1008, %v1005
      %v1097 = vpack.c.bf16 %v1016, %v1013
      %v1098 = vpack.c.bf16 %v1024, %v1021
      %v1099 = vpack.c.bf16 %v1032, %v1029
      %v1100 = vpack.c.bf16 %v1040, %v1037
      %v1101 = vpack.c.bf16 %v1048, %v1045
      %v1102 = vpack.c.bf16 %v1056, %v1053
      %v1103 = vpack.c.bf16 %v1064, %v1061
      %v1104 = vpack.c.bf16 %v1072, %v1069
      %v1105 = vpack.c.bf16 %v1080, %v1077
      %v1106 = vpack.c.bf16 %v1088, %v1085
      %1108 = vrot.lane.b32.xlu0 %v1091, 96
      %v1109 = vpop.permute.xlu0 %1108
      %vm1110 = vcmask 64512
      %v1112 = vsel %vm1110, %v1091, 0
      %v1115 = vsel %vm1110, %v1109, 0
      %1117 = vmatprep.subr.bf16.mxu0 0
      %1118 = vmatpush1.bf16.xpose.msra.mxu0 0
      %1119 = vmatprep.subr.bf16.mxu0 0
      %1120 = vmatpush1.bf16.xpose.msra.mxu0 0
      %1121 = vmatprep.subr.bf16.mxu0 0
      %1122 = vmatpush1.bf16.xpose.msra.mxu0 0
      %1123 = vmatprep.subr.bf16.mxu0 0
      %1124 = vmatpush1.bf16.xpose.msra.mxu0 0
      %1125 = vmatprep.subr.bf16.mxu0 0
      %1126 = vmatpush1.bf16.xpose.msra.mxu0 0
      %1127 = vmatprep.subr.bf16.mxu0 0
      %1128 = vmatpush1.bf16.xpose.msra.mxu0 0
      %1129 = vmatprep.subr.bf16.mxu0 0
      %1130 = vmatpush1.bf16.xpose.msra.mxu0 0
      %1131 = vmatprep.subr.bf16.mxu0 0
      %1132 = vmatpush1.bf16.xpose.msra.mxu0 %v1115
      %1133 = vmatprep.subr.bf16.mxu0 0
      %1134 = vmatpush2.bf16.xpose.msra.mxu0 0
      %1135 = vmatprep.subr.bf16.mxu0 0
      %1136 = vmatpush2.bf16.xpose.msra.mxu0 0
      %1137 = vmatprep.subr.bf16.mxu0 0
      %1138 = vmatpush2.bf16.xpose.msra.mxu0 0
      %1139 = vmatprep.subr.bf16.mxu0 0
      %1140 = vmatpush2.bf16.xpose.msra.mxu0 0
      %1141 = vmatprep.subr.bf16.mxu0 0
      %1142 = vmatpush2.bf16.xpose.msra.mxu0 0
      %1143 = vmatprep.subr.bf16.mxu0 0
      %1144 = vmatpush2.bf16.xpose.msra.mxu0 0
      %1145 = vmatprep.subr.bf16.mxu0 0
      %1146 = vmatpush2.bf16.xpose.msra.mxu0 0
      %1147 = vmatprep.subr.bf16.mxu0 0
      %1148 = vmatpush2.bf16.xpose.msra.mxu0 0
      %1149 = vmatprep.mubr.bf16.mxu0 0
      %1150 = vmatmul.mubr.bf16.gmra.mxu0 %v1112
      %v1151 = vpop.f32.mrf.mxu0
      %v1152 = vadd.f32 0.0, %v1151
      %v1153 = vpop.f32.mrf.mxu0
      %v1154 = vpop.f32.mrf.mxu0
      %v1155 = vadd.f32 0.0, %v1154
      %v1156 = vpop.f32.mrf.mxu0
      %1157 = vdwg.mxu0
      %1159 = vrot.lane.b32.xlu0 %v1092, 96
      %v1160 = vpop.permute.xlu0 %1159
      %v1162 = vsel %vm1110, %v1092, 0
      %v1165 = vsel %vm1110, %v1160, 0
      %1167 = vmatprep.subr.bf16.mxu0 0
      %1168 = vmatpush1.bf16.xpose.msra.mxu0 0
      %1169 = vmatprep.subr.bf16.mxu0 0
      %1170 = vmatpush1.bf16.xpose.msra.mxu0 0
      %1171 = vmatprep.subr.bf16.mxu0 0
      %1172 = vmatpush1.bf16.xpose.msra.mxu0 0
      %1173 = vmatprep.subr.bf16.mxu0 0
      %1174 = vmatpush1.bf16.xpose.msra.mxu0 0
      %1175 = vmatprep.subr.bf16.mxu0 0
      %1176 = vmatpush1.bf16.xpose.msra.mxu0 0
      %1177 = vmatprep.subr.bf16.mxu0 0
      %1178 = vmatpush1.bf16.xpose.msra.mxu0 0
      %1179 = vmatprep.subr.bf16.mxu0 0
      %1180 = vmatpush1.bf16.xpose.msra.mxu0 0
      %1181 = vmatprep.subr.bf16.mxu0 0
      %1182 = vmatpush1.bf16.xpose.msra.mxu0 %v1165
      %1183 = vmatprep.subr.bf16.mxu0 0
      %1184 = vmatpush2.bf16.xpose.msra.mxu0 0
      %1185 = vmatprep.subr.bf16.mxu0 0
      %1186 = vmatpush2.bf16.xpose.msra.mxu0 0
      %1187 = vmatprep.subr.bf16.mxu0 0
      %1188 = vmatpush2.bf16.xpose.msra.mxu0 0
      %1189 = vmatprep.subr.bf16.mxu0 0
      %1190 = vmatpush2.bf16.xpose.msra.mxu0 0
      %1191 = vmatprep.subr.bf16.mxu0 0
      %1192 = vmatpush2.bf16.xpose.msra.mxu0 0
      %1193 = vmatprep.subr.bf16.mxu0 0
      %1194 = vmatpush2.bf16.xpose.msra.mxu0 0
      %1195 = vmatprep.subr.bf16.mxu0 0
      %1196 = vmatpush2.bf16.xpose.msra.mxu0 0
      %1197 = vmatprep.subr.bf16.mxu0 0
      %1198 = vmatpush2.bf16.xpose.msra.mxu0 0
      %1199 = vmatprep.mubr.bf16.mxu0 0
      %1200 = vmatmul.mubr.bf16.gmra.mxu0 %v1162
      %v1201 = vpop.f32.mrf.mxu0
      %v1202 = vadd.f32 0.0, %v1201
      %v1203 = vpop.f32.mrf.mxu0
      %v1204 = vpop.f32.mrf.mxu0
      %v1205 = vadd.f32 0.0, %v1204
      %v1206 = vpop.f32.mrf.mxu0
      %1207 = vdwg.mxu0
      %1209 = vrot.lane.b32.xlu0 %v1093, 96
      %v1210 = vpop.permute.xlu0 %1209
      %v1212 = vsel %vm1110, %v1093, 0
      %v1215 = vsel %vm1110, %v1210, 0
      %1217 = vmatprep.subr.bf16.mxu0 0
      %1218 = vmatpush1.bf16.xpose.msra.mxu0 0
      %1219 = vmatprep.subr.bf16.mxu0 0
      %1220 = vmatpush1.bf16.xpose.msra.mxu0 0
      %1221 = vmatprep.subr.bf16.mxu0 0
      %1222 = vmatpush1.bf16.xpose.msra.mxu0 0
      %1223 = vmatprep.subr.bf16.mxu0 0
      %1224 = vmatpush1.bf16.xpose.msra.mxu0 0
      %1225 = vmatprep.subr.bf16.mxu0 0
      %1226 = vmatpush1.bf16.xpose.msra.mxu0 0
      %1227 = vmatprep.subr.bf16.mxu0 0
      %1228 = vmatpush1.bf16.xpose.msra.mxu0 0
      %1229 = vmatprep.subr.bf16.mxu0 0
      %1230 = vmatpush1.bf16.xpose.msra.mxu0 0
      %1231 = vmatprep.subr.bf16.mxu0 0
      %1232 = vmatpush1.bf16.xpose.msra.mxu0 %v1215
      %1233 = vmatprep.subr.bf16.mxu0 0
      %1234 = vmatpush2.bf16.xpose.msra.mxu0 0
      %1235 = vmatprep.subr.bf16.mxu0 0
      %1236 = vmatpush2.bf16.xpose.msra.mxu0 0
      %1237 = vmatprep.subr.bf16.mxu0 0
      %1238 = vmatpush2.bf16.xpose.msra.mxu0 0
      %1239 = vmatprep.subr.bf16.mxu0 0
      %1240 = vmatpush2.bf16.xpose.msra.mxu0 0
      %1241 = vmatprep.subr.bf16.mxu0 0
      %1242 = vmatpush2.bf16.xpose.msra.mxu0 0
      %1243 = vmatprep.subr.bf16.mxu0 0
      %1244 = vmatpush2.bf16.xpose.msra.mxu0 0
      %1245 = vmatprep.subr.bf16.mxu0 0
      %1246 = vmatpush2.bf16.xpose.msra.mxu0 0
      %1247 = vmatprep.subr.bf16.mxu0 0
      %1248 = vmatpush2.bf16.xpose.msra.mxu0 0
      %1249 = vmatprep.mubr.bf16.mxu0 0
      %1250 = vmatmul.mubr.bf16.gmra.mxu0 %v1212
      %v1251 = vpop.f32.mrf.mxu0
      %v1252 = vadd.f32 0.0, %v1251
      %v1253 = vpop.f32.mrf.mxu0
      %v1254 = vpop.f32.mrf.mxu0
      %v1255 = vadd.f32 0.0, %v1254
      %v1256 = vpop.f32.mrf.mxu0
      %1257 = vdwg.mxu0
      %1259 = vrot.lane.b32.xlu0 %v1094, 96
      %v1260 = vpop.permute.xlu0 %1259
      %v1262 = vsel %vm1110, %v1094, 0
      %v1265 = vsel %vm1110, %v1260, 0
      %1267 = vmatprep.subr.bf16.mxu0 0
      %1268 = vmatpush1.bf16.xpose.msra.mxu0 0
      %1269 = vmatprep.subr.bf16.mxu0 0
      %1270 = vmatpush1.bf16.xpose.msra.mxu0 0
      %1271 = vmatprep.subr.bf16.mxu0 0
      %1272 = vmatpush1.bf16.xpose.msra.mxu0 0
      %1273 = vmatprep.subr.bf16.mxu0 0
      %1274 = vmatpush1.bf16.xpose.msra.mxu0 0
      %1275 = vmatprep.subr.bf16.mxu0 0
      %1276 = vmatpush1.bf16.xpose.msra.mxu0 0
      %1277 = vmatprep.subr.bf16.mxu0 0
      %1278 = vmatpush1.bf16.xpose.msra.mxu0 0
      %1279 = vmatprep.subr.bf16.mxu0 0
      %1280 = vmatpush1.bf16.xpose.msra.mxu0 0
      %1281 = vmatprep.subr.bf16.mxu0 0
      %1282 = vmatpush1.bf16.xpose.msra.mxu0 %v1265
      %1283 = vmatprep.subr.bf16.mxu0 0
      %1284 = vmatpush2.bf16.xpose.msra.mxu0 0
      %1285 = vmatprep.subr.bf16.mxu0 0
      %1286 = vmatpush2.bf16.xpose.msra.mxu0 0
      %1287 = vmatprep.subr.bf16.mxu0 0
      %1288 = vmatpush2.bf16.xpose.msra.mxu0 0
      %1289 = vmatprep.subr.bf16.mxu0 0
      %1290 = vmatpush2.bf16.xpose.msra.mxu0 0
      %1291 = vmatprep.subr.bf16.mxu0 0
      %1292 = vmatpush2.bf16.xpose.msra.mxu0 0
      %1293 = vmatprep.subr.bf16.mxu0 0
      %1294 = vmatpush2.bf16.xpose.msra.mxu0 0
      %1295 = vmatprep.subr.bf16.mxu0 0
      %1296 = vmatpush2.bf16.xpose.msra.mxu0 0
      %1297 = vmatprep.subr.bf16.mxu0 0
      %1298 = vmatpush2.bf16.xpose.msra.mxu0 0
      %1299 = vmatprep.mubr.bf16.mxu0 0
      %1300 = vmatmul.mubr.bf16.gmra.mxu0 %v1262
      %v1301 = vpop.f32.mrf.mxu0
      %v1302 = vadd.f32 0.0, %v1301
      %v1303 = vpop.f32.mrf.mxu0
      %v1304 = vpop.f32.mrf.mxu0
      %v1305 = vadd.f32 0.0, %v1304
      %v1306 = vpop.f32.mrf.mxu0
      %1307 = vdwg.mxu0
      %1309 = vrot.lane.b32.xlu0 %v1095, 96
      %v1310 = vpop.permute.xlu0 %1309
      %v1312 = vsel %vm1110, %v1095, 0
      %v1315 = vsel %vm1110, %v1310, 0
      %1317 = vmatprep.subr.bf16.mxu0 0
      %1318 = vmatpush1.bf16.xpose.msra.mxu0 0
      %1319 = vmatprep.subr.bf16.mxu0 0
      %1320 = vmatpush1.bf16.xpose.msra.mxu0 0
      %1321 = vmatprep.subr.bf16.mxu0 0
      %1322 = vmatpush1.bf16.xpose.msra.mxu0 0
      %1323 = vmatprep.subr.bf16.mxu0 0
      %1324 = vmatpush1.bf16.xpose.msra.mxu0 0
      %1325 = vmatprep.subr.bf16.mxu0 0
      %1326 = vmatpush1.bf16.xpose.msra.mxu0 0
      %1327 = vmatprep.subr.bf16.mxu0 0
      %1328 = vmatpush1.bf16.xpose.msra.mxu0 0
      %1329 = vmatprep.subr.bf16.mxu0 0
      %1330 = vmatpush1.bf16.xpose.msra.mxu0 0
      %1331 = vmatprep.subr.bf16.mxu0 0
      %1332 = vmatpush1.bf16.xpose.msra.mxu0 %v1315
      %1333 = vmatprep.subr.bf16.mxu0 0
      %1334 = vmatpush2.bf16.xpose.msra.mxu0 0
      %1335 = vmatprep.subr.bf16.mxu0 0
      %1336 = vmatpush2.bf16.xpose.msra.mxu0 0
      %1337 = vmatprep.subr.bf16.mxu0 0
      %1338 = vmatpush2.bf16.xpose.msra.mxu0 0
      %1339 = vmatprep.subr.bf16.mxu0 0
      %1340 = vmatpush2.bf16.xpose.msra.mxu0 0
      %1341 = vmatprep.subr.bf16.mxu0 0
      %1342 = vmatpush2.bf16.xpose.msra.mxu0 0
      %1343 = vmatprep.subr.bf16.mxu0 0
      %1344 = vmatpush2.bf16.xpose.msra.mxu0 0
      %1345 = vmatprep.subr.bf16.mxu0 0
      %1346 = vmatpush2.bf16.xpose.msra.mxu0 0
      %1347 = vmatprep.subr.bf16.mxu0 0
      %1348 = vmatpush2.bf16.xpose.msra.mxu0 0
      %1349 = vmatprep.mubr.bf16.mxu0 0
      %1350 = vmatmul.mubr.bf16.gmra.mxu0 %v1312
      %v1351 = vpop.f32.mrf.mxu0
      %v1352 = vadd.f32 0.0, %v1351
      %v1353 = vpop.f32.mrf.mxu0
      %v1354 = vpop.f32.mrf.mxu0
      %v1355 = vadd.f32 0.0, %v1354
      %v1356 = vpop.f32.mrf.mxu0
      %1357 = vdwg.mxu0
      %1359 = vrot.lane.b32.xlu0 %v1096, 96
      %v1360 = vpop.permute.xlu0 %1359
      %v1362 = vsel %vm1110, %v1096, 0
      %v1365 = vsel %vm1110, %v1360, 0
      %1367 = vmatprep.subr.bf16.mxu0 0
      %1368 = vmatpush1.bf16.xpose.msra.mxu0 0
      %1369 = vmatprep.subr.bf16.mxu0 0
      %1370 = vmatpush1.bf16.xpose.msra.mxu0 0
      %1371 = vmatprep.subr.bf16.mxu0 0
      %1372 = vmatpush1.bf16.xpose.msra.mxu0 0
      %1373 = vmatprep.subr.bf16.mxu0 0
      %1374 = vmatpush1.bf16.xpose.msra.mxu0 0
      %1375 = vmatprep.subr.bf16.mxu0 0
      %1376 = vmatpush1.bf16.xpose.msra.mxu0 0
      %1377 = vmatprep.subr.bf16.mxu0 0
      %1378 = vmatpush1.bf16.xpose.msra.mxu0 0
      %1379 = vmatprep.subr.bf16.mxu0 0
      %1380 = vmatpush1.bf16.xpose.msra.mxu0 0
      %1381 = vmatprep.subr.bf16.mxu0 0
      %1382 = vmatpush1.bf16.xpose.msra.mxu0 %v1365
      %1383 = vmatprep.subr.bf16.mxu0 0
      %1384 = vmatpush2.bf16.xpose.msra.mxu0 0
      %1385 = vmatprep.subr.bf16.mxu0 0
      %1386 = vmatpush2.bf16.xpose.msra.mxu0 0
      %1387 = vmatprep.subr.bf16.mxu0 0
      %1388 = vmatpush2.bf16.xpose.msra.mxu0 0
      %1389 = vmatprep.subr.bf16.mxu0 0
      %1390 = vmatpush2.bf16.xpose.msra.mxu0 0
      %1391 = vmatprep.subr.bf16.mxu0 0
      %1392 = vmatpush2.bf16.xpose.msra.mxu0 0
      %1393 = vmatprep.subr.bf16.mxu0 0
      %1394 = vmatpush2.bf16.xpose.msra.mxu0 0
      %1395 = vmatprep.subr.bf16.mxu0 0
      %1396 = vmatpush2.bf16.xpose.msra.mxu0 0
      %1397 = vmatprep.subr.bf16.mxu0 0
      %1398 = vmatpush2.bf16.xpose.msra.mxu0 0
      %1399 = vmatprep.mubr.bf16.mxu0 0
      %1400 = vmatmul.mubr.bf16.gmra.mxu0 %v1362
      %v1401 = vpop.f32.mrf.mxu0
      %v1402 = vadd.f32 0.0, %v1401
      %v1403 = vpop.f32.mrf.mxu0
      %v1404 = vpop.f32.mrf.mxu0
      %v1405 = vadd.f32 0.0, %v1404
      %v1406 = vpop.f32.mrf.mxu0
      %1407 = vdwg.mxu0
      %1409 = vrot.lane.b32.xlu0 %v1097, 96
      %v1410 = vpop.permute.xlu0 %1409
      %v1412 = vsel %vm1110, %v1097, 0
      %v1415 = vsel %vm1110, %v1410, 0
      %1417 = vmatprep.subr.bf16.mxu0 0
      %1418 = vmatpush1.bf16.xpose.msra.mxu0 0
      %1419 = vmatprep.subr.bf16.mxu0 0
      %1420 = vmatpush1.bf16.xpose.msra.mxu0 0
      %1421 = vmatprep.subr.bf16.mxu0 0
      %1422 = vmatpush1.bf16.xpose.msra.mxu0 0
      %1423 = vmatprep.subr.bf16.mxu0 0
      %1424 = vmatpush1.bf16.xpose.msra.mxu0 0
      %1425 = vmatprep.subr.bf16.mxu0 0
      %1426 = vmatpush1.bf16.xpose.msra.mxu0 0
      %1427 = vmatprep.subr.bf16.mxu0 0
      %1428 = vmatpush1.bf16.xpose.msra.mxu0 0
      %1429 = vmatprep.subr.bf16.mxu0 0
      %1430 = vmatpush1.bf16.xpose.msra.mxu0 0
      %1431 = vmatprep.subr.bf16.mxu0 0
      %1432 = vmatpush1.bf16.xpose.msra.mxu0 %v1415
      %1433 = vmatprep.subr.bf16.mxu0 0
      %1434 = vmatpush2.bf16.xpose.msra.mxu0 0
      %1435 = vmatprep.subr.bf16.mxu0 0
      %1436 = vmatpush2.bf16.xpose.msra.mxu0 0
      %1437 = vmatprep.subr.bf16.mxu0 0
      %1438 = vmatpush2.bf16.xpose.msra.mxu0 0
      %1439 = vmatprep.subr.bf16.mxu0 0
      %1440 = vmatpush2.bf16.xpose.msra.mxu0 0
      %1441 = vmatprep.subr.bf16.mxu0 0
      %1442 = vmatpush2.bf16.xpose.msra.mxu0 0
      %1443 = vmatprep.subr.bf16.mxu0 0
      %1444 = vmatpush2.bf16.xpose.msra.mxu0 0
      %1445 = vmatprep.subr.bf16.mxu0 0
      %1446 = vmatpush2.bf16.xpose.msra.mxu0 0
      %1447 = vmatprep.subr.bf16.mxu0 0
      %1448 = vmatpush2.bf16.xpose.msra.mxu0 0
      %1449 = vmatprep.mubr.bf16.mxu0 0
      %1450 = vmatmul.mubr.bf16.gmra.mxu0 %v1412
      %v1451 = vpop.f32.mrf.mxu0
      %v1452 = vadd.f32 0.0, %v1451
      %v1453 = vpop.f32.mrf.mxu0
      %v1454 = vpop.f32.mrf.mxu0
      %v1455 = vadd.f32 0.0, %v1454
      %v1456 = vpop.f32.mrf.mxu0
      %1457 = vdwg.mxu0
      %1459 = vrot.lane.b32.xlu0 %v1098, 96
      %v1460 = vpop.permute.xlu0 %1459
      %v1462 = vsel %vm1110, %v1098, 0
      %v1465 = vsel %vm1110, %v1460, 0
      %1467 = vmatprep.subr.bf16.mxu0 0
      %1468 = vmatpush1.bf16.xpose.msra.mxu0 0
      %1469 = vmatprep.subr.bf16.mxu0 0
      %1470 = vmatpush1.bf16.xpose.msra.mxu0 0
      %1471 = vmatprep.subr.bf16.mxu0 0
      %1472 = vmatpush1.bf16.xpose.msra.mxu0 0
      %1473 = vmatprep.subr.bf16.mxu0 0
      %1474 = vmatpush1.bf16.xpose.msra.mxu0 0
      %1475 = vmatprep.subr.bf16.mxu0 0
      %1476 = vmatpush1.bf16.xpose.msra.mxu0 0
      %1477 = vmatprep.subr.bf16.mxu0 0
      %1478 = vmatpush1.bf16.xpose.msra.mxu0 0
      %1479 = vmatprep.subr.bf16.mxu0 0
      %1480 = vmatpush1.bf16.xpose.msra.mxu0 0
      %1481 = vmatprep.subr.bf16.mxu0 0
      %1482 = vmatpush1.bf16.xpose.msra.mxu0 %v1465
      %1483 = vmatprep.subr.bf16.mxu0 0
      %1484 = vmatpush2.bf16.xpose.msra.mxu0 0
      %1485 = vmatprep.subr.bf16.mxu0 0
      %1486 = vmatpush2.bf16.xpose.msra.mxu0 0
      %1487 = vmatprep.subr.bf16.mxu0 0
      %1488 = vmatpush2.bf16.xpose.msra.mxu0 0
      %1489 = vmatprep.subr.bf16.mxu0 0
      %1490 = vmatpush2.bf16.xpose.msra.mxu0 0
      %1491 = vmatprep.subr.bf16.mxu0 0
      %1492 = vmatpush2.bf16.xpose.msra.mxu0 0
      %1493 = vmatprep.subr.bf16.mxu0 0
      %1494 = vmatpush2.bf16.xpose.msra.mxu0 0
      %1495 = vmatprep.subr.bf16.mxu0 0
      %1496 = vmatpush2.bf16.xpose.msra.mxu0 0
      %1497 = vmatprep.subr.bf16.mxu0 0
      %1498 = vmatpush2.bf16.xpose.msra.mxu0 0
      %1499 = vmatprep.mubr.bf16.mxu0 0
      %1500 = vmatmul.mubr.bf16.gmra.mxu0 %v1462
      %v1501 = vpop.f32.mrf.mxu0
      %v1502 = vadd.f32 0.0, %v1501
      %v1503 = vpop.f32.mrf.mxu0
      %v1504 = vpop.f32.mrf.mxu0
      %v1505 = vadd.f32 0.0, %v1504
      %v1506 = vpop.f32.mrf.mxu0
      %1507 = vdwg.mxu0
      %1509 = vrot.lane.b32.xlu0 %v1099, 96
      %v1510 = vpop.permute.xlu0 %1509
      %v1512 = vsel %vm1110, %v1099, 0
      %v1515 = vsel %vm1110, %v1510, 0
      %1517 = vmatprep.subr.bf16.mxu0 0
      %1518 = vmatpush1.bf16.xpose.msra.mxu0 0
      %1519 = vmatprep.subr.bf16.mxu0 0
      %1520 = vmatpush1.bf16.xpose.msra.mxu0 0
      %1521 = vmatprep.subr.bf16.mxu0 0
      %1522 = vmatpush1.bf16.xpose.msra.mxu0 0
      %1523 = vmatprep.subr.bf16.mxu0 0
      %1524 = vmatpush1.bf16.xpose.msra.mxu0 0
      %1525 = vmatprep.subr.bf16.mxu0 0
      %1526 = vmatpush1.bf16.xpose.msra.mxu0 0
      %1527 = vmatprep.subr.bf16.mxu0 0
      %1528 = vmatpush1.bf16.xpose.msra.mxu0 0
      %1529 = vmatprep.subr.bf16.mxu0 0
      %1530 = vmatpush1.bf16.xpose.msra.mxu0 0
      %1531 = vmatprep.subr.bf16.mxu0 0
      %1532 = vmatpush1.bf16.xpose.msra.mxu0 %v1515
      %1533 = vmatprep.subr.bf16.mxu0 0
      %1534 = vmatpush2.bf16.xpose.msra.mxu0 0
      %1535 = vmatprep.subr.bf16.mxu0 0
      %1536 = vmatpush2.bf16.xpose.msra.mxu0 0
      %1537 = vmatprep.subr.bf16.mxu0 0
      %1538 = vmatpush2.bf16.xpose.msra.mxu0 0
      %1539 = vmatprep.subr.bf16.mxu0 0
      %1540 = vmatpush2.bf16.xpose.msra.mxu0 0
      %1541 = vmatprep.subr.bf16.mxu0 0
      %1542 = vmatpush2.bf16.xpose.msra.mxu0 0
      %1543 = vmatprep.subr.bf16.mxu0 0
      %1544 = vmatpush2.bf16.xpose.msra.mxu0 0
      %1545 = vmatprep.subr.bf16.mxu0 0
      %1546 = vmatpush2.bf16.xpose.msra.mxu0 0
      %1547 = vmatprep.subr.bf16.mxu0 0
      %1548 = vmatpush2.bf16.xpose.msra.mxu0 0
      %1549 = vmatprep.mubr.bf16.mxu0 0
      %1550 = vmatmul.mubr.bf16.gmra.mxu0 %v1512
      %v1551 = vpop.f32.mrf.mxu0
      %v1552 = vadd.f32 0.0, %v1551
      %v1553 = vpop.f32.mrf.mxu0
      %v1554 = vpop.f32.mrf.mxu0
      %v1555 = vadd.f32 0.0, %v1554
      %v1556 = vpop.f32.mrf.mxu0
      %1557 = vdwg.mxu0
      %1559 = vrot.lane.b32.xlu0 %v1100, 96
      %v1560 = vpop.permute.xlu0 %1559
      %v1562 = vsel %vm1110, %v1100, 0
      %v1565 = vsel %vm1110, %v1560, 0
      %1567 = vmatprep.subr.bf16.mxu0 0
      %1568 = vmatpush1.bf16.xpose.msra.mxu0 0
      %1569 = vmatprep.subr.bf16.mxu0 0
      %1570 = vmatpush1.bf16.xpose.msra.mxu0 0
      %1571 = vmatprep.subr.bf16.mxu0 0
      %1572 = vmatpush1.bf16.xpose.msra.mxu0 0
      %1573 = vmatprep.subr.bf16.mxu0 0
      %1574 = vmatpush1.bf16.xpose.msra.mxu0 0
      %1575 = vmatprep.subr.bf16.mxu0 0
      %1576 = vmatpush1.bf16.xpose.msra.mxu0 0
      %1577 = vmatprep.subr.bf16.mxu0 0
      %1578 = vmatpush1.bf16.xpose.msra.mxu0 0
      %1579 = vmatprep.subr.bf16.mxu0 0
      %1580 = vmatpush1.bf16.xpose.msra.mxu0 0
      %1581 = vmatprep.subr.bf16.mxu0 0
      %1582 = vmatpush1.bf16.xpose.msra.mxu0 %v1565
      %1583 = vmatprep.subr.bf16.mxu0 0
      %1584 = vmatpush2.bf16.xpose.msra.mxu0 0
      %1585 = vmatprep.subr.bf16.mxu0 0
      %1586 = vmatpush2.bf16.xpose.msra.mxu0 0
      %1587 = vmatprep.subr.bf16.mxu0 0
      %1588 = vmatpush2.bf16.xpose.msra.mxu0 0
      %1589 = vmatprep.subr.bf16.mxu0 0
      %1590 = vmatpush2.bf16.xpose.msra.mxu0 0
      %1591 = vmatprep.subr.bf16.mxu0 0
      %1592 = vmatpush2.bf16.xpose.msra.mxu0 0
      %1593 = vmatprep.subr.bf16.mxu0 0
      %1594 = vmatpush2.bf16.xpose.msra.mxu0 0
      %1595 = vmatprep.subr.bf16.mxu0 0
      %1596 = vmatpush2.bf16.xpose.msra.mxu0 0
      %1597 = vmatprep.subr.bf16.mxu0 0
      %1598 = vmatpush2.bf16.xpose.msra.mxu0 0
      %1599 = vmatprep.mubr.bf16.mxu0 0
      %1600 = vmatmul.mubr.bf16.gmra.mxu0 %v1562
      %v1601 = vpop.f32.mrf.mxu0
      %v1602 = vadd.f32 0.0, %v1601
      %v1603 = vpop.f32.mrf.mxu0
      %v1604 = vpop.f32.mrf.mxu0
      %v1605 = vadd.f32 0.0, %v1604
      %v1606 = vpop.f32.mrf.mxu0
      %1607 = vdwg.mxu0
      %1609 = vrot.lane.b32.xlu0 %v1101, 96
      %v1610 = vpop.permute.xlu0 %1609
      %v1612 = vsel %vm1110, %v1101, 0
      %v1615 = vsel %vm1110, %v1610, 0
      %1617 = vmatprep.subr.bf16.mxu0 0
      %1618 = vmatpush1.bf16.xpose.msra.mxu0 0
      %1619 = vmatprep.subr.bf16.mxu0 0
      %1620 = vmatpush1.bf16.xpose.msra.mxu0 0
      %1621 = vmatprep.subr.bf16.mxu0 0
      %1622 = vmatpush1.bf16.xpose.msra.mxu0 0
      %1623 = vmatprep.subr.bf16.mxu0 0
      %1624 = vmatpush1.bf16.xpose.msra.mxu0 0
      %1625 = vmatprep.subr.bf16.mxu0 0
      %1626 = vmatpush1.bf16.xpose.msra.mxu0 0
      %1627 = vmatprep.subr.bf16.mxu0 0
      %1628 = vmatpush1.bf16.xpose.msra.mxu0 0
      %1629 = vmatprep.subr.bf16.mxu0 0
      %1630 = vmatpush1.bf16.xpose.msra.mxu0 0
      %1631 = vmatprep.subr.bf16.mxu0 0
      %1632 = vmatpush1.bf16.xpose.msra.mxu0 %v1615
      %1633 = vmatprep.subr.bf16.mxu0 0
      %1634 = vmatpush2.bf16.xpose.msra.mxu0 0
      %1635 = vmatprep.subr.bf16.mxu0 0
      %1636 = vmatpush2.bf16.xpose.msra.mxu0 0
      %1637 = vmatprep.subr.bf16.mxu0 0
      %1638 = vmatpush2.bf16.xpose.msra.mxu0 0
      %1639 = vmatprep.subr.bf16.mxu0 0
      %1640 = vmatpush2.bf16.xpose.msra.mxu0 0
      %1641 = vmatprep.subr.bf16.mxu0 0
      %1642 = vmatpush2.bf16.xpose.msra.mxu0 0
      %1643 = vmatprep.subr.bf16.mxu0 0
      %1644 = vmatpush2.bf16.xpose.msra.mxu0 0
      %1645 = vmatprep.subr.bf16.mxu0 0
      %1646 = vmatpush2.bf16.xpose.msra.mxu0 0
      %1647 = vmatprep.subr.bf16.mxu0 0
      %1648 = vmatpush2.bf16.xpose.msra.mxu0 0
      %1649 = vmatprep.mubr.bf16.mxu0 0
      %1650 = vmatmul.mubr.bf16.gmra.mxu0 %v1612
      %v1651 = vpop.f32.mrf.mxu0
      %v1652 = vadd.f32 0.0, %v1651
      %v1653 = vpop.f32.mrf.mxu0
      %v1654 = vpop.f32.mrf.mxu0
      %v1655 = vadd.f32 0.0, %v1654
      %v1656 = vpop.f32.mrf.mxu0
      %1657 = vdwg.mxu0
      %1659 = vrot.lane.b32.xlu0 %v1102, 96
      %v1660 = vpop.permute.xlu0 %1659
      %v1662 = vsel %vm1110, %v1102, 0
      %v1665 = vsel %vm1110, %v1660, 0
      %1667 = vmatprep.subr.bf16.mxu0 0
      %1668 = vmatpush1.bf16.xpose.msra.mxu0 0
      %1669 = vmatprep.subr.bf16.mxu0 0
      %1670 = vmatpush1.bf16.xpose.msra.mxu0 0
      %1671 = vmatprep.subr.bf16.mxu0 0
      %1672 = vmatpush1.bf16.xpose.msra.mxu0 0
      %1673 = vmatprep.subr.bf16.mxu0 0
      %1674 = vmatpush1.bf16.xpose.msra.mxu0 0
      %1675 = vmatprep.subr.bf16.mxu0 0
      %1676 = vmatpush1.bf16.xpose.msra.mxu0 0
      %1677 = vmatprep.subr.bf16.mxu0 0
      %1678 = vmatpush1.bf16.xpose.msra.mxu0 0
      %1679 = vmatprep.subr.bf16.mxu0 0
      %1680 = vmatpush1.bf16.xpose.msra.mxu0 0
      %1681 = vmatprep.subr.bf16.mxu0 0
      %1682 = vmatpush1.bf16.xpose.msra.mxu0 %v1665
      %1683 = vmatprep.subr.bf16.mxu0 0
      %1684 = vmatpush2.bf16.xpose.msra.mxu0 0
      %1685 = vmatprep.subr.bf16.mxu0 0
      %1686 = vmatpush2.bf16.xpose.msra.mxu0 0
      %1687 = vmatprep.subr.bf16.mxu0 0
      %1688 = vmatpush2.bf16.xpose.msra.mxu0 0
      %1689 = vmatprep.subr.bf16.mxu0 0
      %1690 = vmatpush2.bf16.xpose.msra.mxu0 0
      %1691 = vmatprep.subr.bf16.mxu0 0
      %1692 = vmatpush2.bf16.xpose.msra.mxu0 0
      %1693 = vmatprep.subr.bf16.mxu0 0
      %1694 = vmatpush2.bf16.xpose.msra.mxu0 0
      %1695 = vmatprep.subr.bf16.mxu0 0
      %1696 = vmatpush2.bf16.xpose.msra.mxu0 0
      %1697 = vmatprep.subr.bf16.mxu0 0
      %1698 = vmatpush2.bf16.xpose.msra.mxu0 0
      %1699 = vmatprep.mubr.bf16.mxu0 0
      %1700 = vmatmul.mubr.bf16.gmra.mxu0 %v1662
      %v1701 = vpop.f32.mrf.mxu0
      %v1702 = vadd.f32 0.0, %v1701
      %v1703 = vpop.f32.mrf.mxu0
      %v1704 = vpop.f32.mrf.mxu0
      %v1705 = vadd.f32 0.0, %v1704
      %v1706 = vpop.f32.mrf.mxu0
      %1707 = vdwg.mxu0
      %1709 = vrot.lane.b32.xlu0 %v1103, 96
      %v1710 = vpop.permute.xlu0 %1709
      %v1712 = vsel %vm1110, %v1103, 0
      %v1715 = vsel %vm1110, %v1710, 0
      %1717 = vmatprep.subr.bf16.mxu0 0
      %1718 = vmatpush1.bf16.xpose.msra.mxu0 0
      %1719 = vmatprep.subr.bf16.mxu0 0
      %1720 = vmatpush1.bf16.xpose.msra.mxu0 0
      %1721 = vmatprep.subr.bf16.mxu0 0
      %1722 = vmatpush1.bf16.xpose.msra.mxu0 0
      %1723 = vmatprep.subr.bf16.mxu0 0
      %1724 = vmatpush1.bf16.xpose.msra.mxu0 0
      %1725 = vmatprep.subr.bf16.mxu0 0
      %1726 = vmatpush1.bf16.xpose.msra.mxu0 0
      %1727 = vmatprep.subr.bf16.mxu0 0
      %1728 = vmatpush1.bf16.xpose.msra.mxu0 0
      %1729 = vmatprep.subr.bf16.mxu0 0
      %1730 = vmatpush1.bf16.xpose.msra.mxu0 0
      %1731 = vmatprep.subr.bf16.mxu0 0
      %1732 = vmatpush1.bf16.xpose.msra.mxu0 %v1715
      %1733 = vmatprep.subr.bf16.mxu0 0
      %1734 = vmatpush2.bf16.xpose.msra.mxu0 0
      %1735 = vmatprep.subr.bf16.mxu0 0
      %1736 = vmatpush2.bf16.xpose.msra.mxu0 0
      %1737 = vmatprep.subr.bf16.mxu0 0
      %1738 = vmatpush2.bf16.xpose.msra.mxu0 0
      %1739 = vmatprep.subr.bf16.mxu0 0
      %1740 = vmatpush2.bf16.xpose.msra.mxu0 0
      %1741 = vmatprep.subr.bf16.mxu0 0
      %1742 = vmatpush2.bf16.xpose.msra.mxu0 0
      %1743 = vmatprep.subr.bf16.mxu0 0
      %1744 = vmatpush2.bf16.xpose.msra.mxu0 0
      %1745 = vmatprep.subr.bf16.mxu0 0
      %1746 = vmatpush2.bf16.xpose.msra.mxu0 0
      %1747 = vmatprep.subr.bf16.mxu0 0
      %1748 = vmatpush2.bf16.xpose.msra.mxu0 0
      %1749 = vmatprep.mubr.bf16.mxu0 0
      %1750 = vmatmul.mubr.bf16.gmra.mxu0 %v1712
      %v1751 = vpop.f32.mrf.mxu0
      %v1752 = vadd.f32 0.0, %v1751
      %v1753 = vpop.f32.mrf.mxu0
      %v1754 = vpop.f32.mrf.mxu0
      %v1755 = vadd.f32 0.0, %v1754
      %v1756 = vpop.f32.mrf.mxu0
      %1757 = vdwg.mxu0
      %1759 = vrot.lane.b32.xlu0 %v1104, 96
      %v1760 = vpop.permute.xlu0 %1759
      %v1762 = vsel %vm1110, %v1104, 0
      %v1765 = vsel %vm1110, %v1760, 0
      %1767 = vmatprep.subr.bf16.mxu0 0
      %1768 = vmatpush1.bf16.xpose.msra.mxu0 0
      %1769 = vmatprep.subr.bf16.mxu0 0
      %1770 = vmatpush1.bf16.xpose.msra.mxu0 0
      %1771 = vmatprep.subr.bf16.mxu0 0
      %1772 = vmatpush1.bf16.xpose.msra.mxu0 0
      %1773 = vmatprep.subr.bf16.mxu0 0
      %1774 = vmatpush1.bf16.xpose.msra.mxu0 0
      %1775 = vmatprep.subr.bf16.mxu0 0
      %1776 = vmatpush1.bf16.xpose.msra.mxu0 0
      %1777 = vmatprep.subr.bf16.mxu0 0
      %1778 = vmatpush1.bf16.xpose.msra.mxu0 0
      %1779 = vmatprep.subr.bf16.mxu0 0
      %1780 = vmatpush1.bf16.xpose.msra.mxu0 0
      %1781 = vmatprep.subr.bf16.mxu0 0
      %1782 = vmatpush1.bf16.xpose.msra.mxu0 %v1765
      %1783 = vmatprep.subr.bf16.mxu0 0
      %1784 = vmatpush2.bf16.xpose.msra.mxu0 0
      %1785 = vmatprep.subr.bf16.mxu0 0
      %1786 = vmatpush2.bf16.xpose.msra.mxu0 0
      %1787 = vmatprep.subr.bf16.mxu0 0
      %1788 = vmatpush2.bf16.xpose.msra.mxu0 0
      %1789 = vmatprep.subr.bf16.mxu0 0
      %1790 = vmatpush2.bf16.xpose.msra.mxu0 0
      %1791 = vmatprep.subr.bf16.mxu0 0
      %1792 = vmatpush2.bf16.xpose.msra.mxu0 0
      %1793 = vmatprep.subr.bf16.mxu0 0
      %1794 = vmatpush2.bf16.xpose.msra.mxu0 0
      %1795 = vmatprep.subr.bf16.mxu0 0
      %1796 = vmatpush2.bf16.xpose.msra.mxu0 0
      %1797 = vmatprep.subr.bf16.mxu0 0
      %1798 = vmatpush2.bf16.xpose.msra.mxu0 0
      %1799 = vmatprep.mubr.bf16.mxu0 0
      %1800 = vmatmul.mubr.bf16.gmra.mxu0 %v1762
      %v1801 = vpop.f32.mrf.mxu0
      %v1802 = vadd.f32 0.0, %v1801
      %v1803 = vpop.f32.mrf.mxu0
      %v1804 = vpop.f32.mrf.mxu0
      %v1805 = vadd.f32 0.0, %v1804
      %v1806 = vpop.f32.mrf.mxu0
      %1807 = vdwg.mxu0
      %1809 = vrot.lane.b32.xlu0 %v1105, 96
      %v1810 = vpop.permute.xlu0 %1809
      %v1812 = vsel %vm1110, %v1105, 0
      %v1815 = vsel %vm1110, %v1810, 0
      %1817 = vmatprep.subr.bf16.mxu0 0
      %1818 = vmatpush1.bf16.xpose.msra.mxu0 0
      %1819 = vmatprep.subr.bf16.mxu0 0
      %1820 = vmatpush1.bf16.xpose.msra.mxu0 0
      %1821 = vmatprep.subr.bf16.mxu0 0
      %1822 = vmatpush1.bf16.xpose.msra.mxu0 0
      %1823 = vmatprep.subr.bf16.mxu0 0
      %1824 = vmatpush1.bf16.xpose.msra.mxu0 0
      %1825 = vmatprep.subr.bf16.mxu0 0
      %1826 = vmatpush1.bf16.xpose.msra.mxu0 0
      %1827 = vmatprep.subr.bf16.mxu0 0
      %1828 = vmatpush1.bf16.xpose.msra.mxu0 0
      %1829 = vmatprep.subr.bf16.mxu0 0
      %1830 = vmatpush1.bf16.xpose.msra.mxu0 0
      %1831 = vmatprep.subr.bf16.mxu0 0
      %1832 = vmatpush1.bf16.xpose.msra.mxu0 %v1815
      %1833 = vmatprep.subr.bf16.mxu0 0
      %1834 = vmatpush2.bf16.xpose.msra.mxu0 0
      %1835 = vmatprep.subr.bf16.mxu0 0
      %1836 = vmatpush2.bf16.xpose.msra.mxu0 0
      %1837 = vmatprep.subr.bf16.mxu0 0
      %1838 = vmatpush2.bf16.xpose.msra.mxu0 0
      %1839 = vmatprep.subr.bf16.mxu0 0
      %1840 = vmatpush2.bf16.xpose.msra.mxu0 0
      %1841 = vmatprep.subr.bf16.mxu0 0
      %1842 = vmatpush2.bf16.xpose.msra.mxu0 0
      %1843 = vmatprep.subr.bf16.mxu0 0
      %1844 = vmatpush2.bf16.xpose.msra.mxu0 0
      %1845 = vmatprep.subr.bf16.mxu0 0
      %1846 = vmatpush2.bf16.xpose.msra.mxu0 0
      %1847 = vmatprep.subr.bf16.mxu0 0
      %1848 = vmatpush2.bf16.xpose.msra.mxu0 0
      %1849 = vmatprep.mubr.bf16.mxu0 0
      %1850 = vmatmul.mubr.bf16.gmra.mxu0 %v1812
      %v1851 = vpop.f32.mrf.mxu0
      %v1852 = vadd.f32 0.0, %v1851
      %v1853 = vpop.f32.mrf.mxu0
      %v1854 = vpop.f32.mrf.mxu0
      %v1855 = vadd.f32 0.0, %v1854
      %v1856 = vpop.f32.mrf.mxu0
      %1857 = vdwg.mxu0
      %1859 = vrot.lane.b32.xlu0 %v1106, 96
      %v1860 = vpop.permute.xlu0 %1859
      %v1862 = vsel %vm1110, %v1106, 0
      %v1865 = vsel %vm1110, %v1860, 0
      %1867 = vmatprep.subr.bf16.mxu0 0
      %1868 = vmatpush1.bf16.xpose.msra.mxu0 0
      %1869 = vmatprep.subr.bf16.mxu0 0
      %1870 = vmatpush1.bf16.xpose.msra.mxu0 0
      %1871 = vmatprep.subr.bf16.mxu0 0
      %1872 = vmatpush1.bf16.xpose.msra.mxu0 0
      %1873 = vmatprep.subr.bf16.mxu0 0
      %1874 = vmatpush1.bf16.xpose.msra.mxu0 0
      %1875 = vmatprep.subr.bf16.mxu0 0
      %1876 = vmatpush1.bf16.xpose.msra.mxu0 0
      %1877 = vmatprep.subr.bf16.mxu0 0
      %1878 = vmatpush1.bf16.xpose.msra.mxu0 0
      %1879 = vmatprep.subr.bf16.mxu0 0
      %1880 = vmatpush1.bf16.xpose.msra.mxu0 0
      %1881 = vmatprep.subr.bf16.mxu0 0
      %1882 = vmatpush1.bf16.xpose.msra.mxu0 %v1865
      %1883 = vmatprep.subr.bf16.mxu0 0
      %1884 = vmatpush2.bf16.xpose.msra.mxu0 0
      %1885 = vmatprep.subr.bf16.mxu0 0
      %1886 = vmatpush2.bf16.xpose.msra.mxu0 0
      %1887 = vmatprep.subr.bf16.mxu0 0
      %1888 = vmatpush2.bf16.xpose.msra.mxu0 0
      %1889 = vmatprep.subr.bf16.mxu0 0
      %1890 = vmatpush2.bf16.xpose.msra.mxu0 0
      %1891 = vmatprep.subr.bf16.mxu0 0
      %1892 = vmatpush2.bf16.xpose.msra.mxu0 0
      %1893 = vmatprep.subr.bf16.mxu0 0
      %1894 = vmatpush2.bf16.xpose.msra.mxu0 0
      %1895 = vmatprep.subr.bf16.mxu0 0
      %1896 = vmatpush2.bf16.xpose.msra.mxu0 0
      %1897 = vmatprep.subr.bf16.mxu0 0
      %1898 = vmatpush2.bf16.xpose.msra.mxu0 0
      %1899 = vmatprep.mubr.bf16.mxu0 0
      %1900 = vmatmul.mubr.bf16.gmra.mxu0 %v1862
      %v1901 = vpop.f32.mrf.mxu0
      %v1902 = vadd.f32 0.0, %v1901
      %v1903 = vpop.f32.mrf.mxu0
      %v1904 = vpop.f32.mrf.mxu0
      %v1905 = vadd.f32 0.0, %v1904
      %v1906 = vpop.f32.mrf.mxu0
      %1907 = vdwg.mxu0
      %v1908 = vmul.f32 %v1152, 0.5
      %v1909 = vmul.f32 %v1155, 0.5
      %v1910 = vmul.f32 %v1202, 0.5
      %v1911 = vmul.f32 %v1205, 0.5
      %v1912 = vmul.f32 %v1252, 0.5
      %v1913 = vmul.f32 %v1255, 0.5
      %v1914 = vmul.f32 %v1302, 0.5
      %v1915 = vmul.f32 %v1305, 0.5
      %v1916 = vmul.f32 %v1352, 0.5
      %v1917 = vmul.f32 %v1355, 0.5
      %v1918 = vmul.f32 %v1402, 0.5
      %v1919 = vmul.f32 %v1405, 0.5
      %v1920 = vmul.f32 %v1452, 0.5
      %v1921 = vmul.f32 %v1455, 0.5
      %v1922 = vmul.f32 %v1502, 0.5
      %v1923 = vmul.f32 %v1505, 0.5
      %v1924 = vmul.f32 %v1552, 0.5
      %v1925 = vmul.f32 %v1555, 0.5
      %v1926 = vmul.f32 %v1602, 0.5
      %v1927 = vmul.f32 %v1605, 0.5
      %v1928 = vmul.f32 %v1652, 0.5
      %v1929 = vmul.f32 %v1655, 0.5
      %v1930 = vmul.f32 %v1702, 0.5
      %v1931 = vmul.f32 %v1705, 0.5
      %v1932 = vmul.f32 %v1752, 0.5
      %v1933 = vmul.f32 %v1755, 0.5
      %v1934 = vmul.f32 %v1802, 0.5
      %v1935 = vmul.f32 %v1805, 0.5
      %v1936 = vmul.f32 %v1852, 0.5
      %v1937 = vmul.f32 %v1855, 0.5
      %v1938 = vmul.f32 %v1902, 0.5
      %v1939 = vmul.f32 %v1905, 0.5
      %v1940 = vld [vmem:[%s7] sm:$0xff]
      %v1941 = vld [vmem:[%s7 + $0x8] sm:$0xff]
      %v1942 = vadd.f32 %v1908, %v1940
      %v1943 = vadd.f32 %v1909, %v1941
      %v1944 = vadd.f32 %v1910, %v1940
      %v1945 = vadd.f32 %v1911, %v1941
      %v1946 = vadd.f32 %v1912, %v1940
      %v1947 = vadd.f32 %v1913, %v1941
      %v1948 = vadd.f32 %v1914, %v1940
      %v1949 = vadd.f32 %v1915, %v1941
      %v1950 = vadd.f32 %v1916, %v1940
      %v1951 = vadd.f32 %v1917, %v1941
      %v1952 = vadd.f32 %v1918, %v1940
      %v1953 = vadd.f32 %v1919, %v1941
      %v1954 = vadd.f32 %v1920, %v1940
      %v1955 = vadd.f32 %v1921, %v1941
      %v1956 = vadd.f32 %v1922, %v1940
      %v1957 = vadd.f32 %v1923, %v1941
      %v1958 = vadd.f32 %v1924, %v1940
      %v1959 = vadd.f32 %v1925, %v1941
      %v1960 = vadd.f32 %v1926, %v1940
      %v1961 = vadd.f32 %v1927, %v1941
      %v1962 = vadd.f32 %v1928, %v1940
      %v1963 = vadd.f32 %v1929, %v1941
      %v1964 = vadd.f32 %v1930, %v1940
      %v1965 = vadd.f32 %v1931, %v1941
      %v1966 = vadd.f32 %v1932, %v1940
      %v1967 = vadd.f32 %v1933, %v1941
      %v1968 = vadd.f32 %v1934, %v1940
      %v1969 = vadd.f32 %v1935, %v1941
      %v1970 = vadd.f32 %v1936, %v1940
      %v1971 = vadd.f32 %v1937, %v1941
      %v1972 = vadd.f32 %v1938, %v1940
      %v1973 = vadd.f32 %v1939, %v1941
      %vm1974 = vcmask 130048
      %v1975 = vsel %vm1974, %v1942, -inf
      %1976 = vmax.xlane.f32.xlu0 %v1975
      %v1977 = vpop.xlane.xlu0 %1976
      %v1978 = vsel %vm1974, %v1943, -inf
      %1979 = vmax.xlane.f32.xlu0 %v1978
      %v1980 = vpop.xlane.xlu0 %1979
      %v1981 = vsel %vm1974, %v1944, -inf
      %1982 = vmax.xlane.f32.xlu0 %v1981
      %v1983 = vpop.xlane.xlu0 %1982
      %v1984 = vsel %vm1974, %v1945, -inf
      %1985 = vmax.xlane.f32.xlu0 %v1984
      %v1986 = vpop.xlane.xlu0 %1985
      %v1987 = vsel %vm1974, %v1946, -inf
      %1988 = vmax.xlane.f32.xlu0 %v1987
      %v1989 = vpop.xlane.xlu0 %1988
      %v1990 = vsel %vm1974, %v1947, -inf
      %1991 = vmax.xlane.f32.xlu0 %v1990
      %v1992 = vpop.xlane.xlu0 %1991
      %v1993 = vsel %vm1974, %v1948, -inf
      %1994 = vmax.xlane.f32.xlu0 %v1993
      %v1995 = vpop.xlane.xlu0 %1994
      %v1996 = vsel %vm1974, %v1949, -inf
      %1997 = vmax.xlane.f32.xlu0 %v1996
      %v1998 = vpop.xlane.xlu0 %1997
      %v1999 = vsel %vm1974, %v1950, -inf
      %2000 = vmax.xlane.f32.xlu0 %v1999
      %v2001 = vpop.xlane.xlu0 %2000
      %v2002 = vsel %vm1974, %v1951, -inf
      %2003 = vmax.xlane.f32.xlu0 %v2002
      %v2004 = vpop.xlane.xlu0 %2003
      %v2005 = vsel %vm1974, %v1952, -inf
      %2006 = vmax.xlane.f32.xlu0 %v2005
      %v2007 = vpop.xlane.xlu0 %2006
      %v2008 = vsel %vm1974, %v1953, -inf
      %2009 = vmax.xlane.f32.xlu0 %v2008
      %v2010 = vpop.xlane.xlu0 %2009
      %v2011 = vsel %vm1974, %v1954, -inf
      %2012 = vmax.xlane.f32.xlu0 %v2011
      %v2013 = vpop.xlane.xlu0 %2012
      %v2014 = vsel %vm1974, %v1955, -inf
      %2015 = vmax.xlane.f32.xlu0 %v2014
      %v2016 = vpop.xlane.xlu0 %2015
      %v2017 = vsel %vm1974, %v1956, -inf
      %2018 = vmax.xlane.f32.xlu0 %v2017
      %v2019 = vpop.xlane.xlu0 %2018
      %v2020 = vsel %vm1974, %v1957, -inf
      %2021 = vmax.xlane.f32.xlu0 %v2020
      %v2022 = vpop.xlane.xlu0 %2021
      %v2023 = vsel %vm1974, %v1958, -inf
      %2024 = vmax.xlane.f32.xlu0 %v2023
      %v2025 = vpop.xlane.xlu0 %2024
      %v2026 = vsel %vm1974, %v1959, -inf
      %2027 = vmax.xlane.f32.xlu0 %v2026
      %v2028 = vpop.xlane.xlu0 %2027
      %v2029 = vsel %vm1974, %v1960, -inf
      %2030 = vmax.xlane.f32.xlu0 %v2029
      %v2031 = vpop.xlane.xlu0 %2030
      %v2032 = vsel %vm1974, %v1961, -inf
      %2033 = vmax.xlane.f32.xlu0 %v2032
      %v2034 = vpop.xlane.xlu0 %2033
      %v2035 = vsel %vm1974, %v1962, -inf
      %2036 = vmax.xlane.f32.xlu0 %v2035
      %v2037 = vpop.xlane.xlu0 %2036
      %v2038 = vsel %vm1974, %v1963, -inf
      %2039 = vmax.xlane.f32.xlu0 %v2038
      %v2040 = vpop.xlane.xlu0 %2039
      %v2041 = vsel %vm1974, %v1964, -inf
      %2042 = vmax.xlane.f32.xlu0 %v2041
      %v2043 = vpop.xlane.xlu0 %2042
      %v2044 = vsel %vm1974, %v1965, -inf
      %2045 = vmax.xlane.f32.xlu0 %v2044
      %v2046 = vpop.xlane.xlu0 %2045
      %v2047 = vsel %vm1974, %v1966, -inf
      %2048 = vmax.xlane.f32.xlu0 %v2047
      %v2049 = vpop.xlane.xlu0 %2048
      %v2050 = vsel %vm1974, %v1967, -inf
      %2051 = vmax.xlane.f32.xlu0 %v2050
      %v2052 = vpop.xlane.xlu0 %2051
      %v2053 = vsel %vm1974, %v1968, -inf
      %2054 = vmax.xlane.f32.xlu0 %v2053
      %v2055 = vpop.xlane.xlu0 %2054
      %v2056 = vsel %vm1974, %v1969, -inf
      %2057 = vmax.xlane.f32.xlu0 %v2056
      %v2058 = vpop.xlane.xlu0 %2057
      %v2059 = vsel %vm1974, %v1970, -inf
      %2060 = vmax.xlane.f32.xlu0 %v2059
      %v2061 = vpop.xlane.xlu0 %2060
      %v2062 = vsel %vm1974, %v1971, -inf
      %2063 = vmax.xlane.f32.xlu0 %v2062
      %v2064 = vpop.xlane.xlu0 %2063
      %v2065 = vsel %vm1974, %v1972, -inf
      %2066 = vmax.xlane.f32.xlu0 %v2065
      %v2067 = vpop.xlane.xlu0 %2066
      %v2068 = vsel %vm1974, %v1973, -inf
      %2069 = vmax.xlane.f32.xlu0 %v2068
      %v2070 = vpop.xlane.xlu0 %2069
      %v2071 = vsub.f32 %v1942, %v1977
      %v2072 = vsub.f32 %v1943, %v1980
      %v2073 = vsub.f32 %v1944, %v1983
      %v2074 = vsub.f32 %v1945, %v1986
      %v2075 = vsub.f32 %v1946, %v1989
      %v2076 = vsub.f32 %v1947, %v1992
      %v2077 = vsub.f32 %v1948, %v1995
      %v2078 = vsub.f32 %v1949, %v1998
      %v2079 = vsub.f32 %v1950, %v2001
      %v2080 = vsub.f32 %v1951, %v2004
      %v2081 = vsub.f32 %v1952, %v2007
      %v2082 = vsub.f32 %v1953, %v2010
      %v2083 = vsub.f32 %v1954, %v2013
      %v2084 = vsub.f32 %v1955, %v2016
      %v2085 = vsub.f32 %v1956, %v2019
      %v2086 = vsub.f32 %v1957, %v2022
      %v2087 = vsub.f32 %v1958, %v2025
      %v2088 = vsub.f32 %v1959, %v2028
      %v2089 = vsub.f32 %v1960, %v2031
      %v2090 = vsub.f32 %v1961, %v2034
      %v2091 = vsub.f32 %v1962, %v2037
      %v2092 = vsub.f32 %v1963, %v2040
      %v2093 = vsub.f32 %v1964, %v2043
      %v2094 = vsub.f32 %v1965, %v2046
      %v2095 = vsub.f32 %v1966, %v2049
      %v2096 = vsub.f32 %v1967, %v2052
      %v2097 = vsub.f32 %v1968, %v2055
      %v2098 = vsub.f32 %v1969, %v2058
      %v2099 = vsub.f32 %v1970, %v2061
      %v2100 = vsub.f32 %v1971, %v2064
      %v2101 = vsub.f32 %v1972, %v2067
      %v2102 = vsub.f32 %v1973, %v2070
      %v2103 = vmul.f32 %v2071, 1.442695
      %v2104 = vpow.pop %v2103
      %v2105 = vmul.f32 %v2072, 1.442695
      %v2106 = vpow.pop %v2105
      %v2107 = vmul.f32 %v2073, 1.442695
      %v2108 = vpow.pop %v2107
      %v2109 = vmul.f32 %v2074, 1.442695
      %v2110 = vpow.pop %v2109
      %v2111 = vmul.f32 %v2075, 1.442695
      %v2112 = vpow.pop %v2111
      %v2113 = vmul.f32 %v2076, 1.442695
      %v2114 = vpow.pop %v2113
      %v2115 = vmul.f32 %v2077, 1.442695
      %v2116 = vpow.pop %v2115
      %v2117 = vmul.f32 %v2078, 1.442695
      %v2118 = vpow.pop %v2117
      %v2119 = vmul.f32 %v2079, 1.442695
      %v2120 = vpow.pop %v2119
      %v2121 = vmul.f32 %v2080, 1.442695
      %v2122 = vpow.pop %v2121
      %v2123 = vmul.f32 %v2081, 1.442695
      %v2124 = vpow.pop %v2123
      %v2125 = vmul.f32 %v2082, 1.442695
      %v2126 = vpow.pop %v2125
      %v2127 = vmul.f32 %v2083, 1.442695
      %v2128 = vpow.pop %v2127
      %v2129 = vmul.f32 %v2084, 1.442695
      %v2130 = vpow.pop %v2129
      %v2131 = vmul.f32 %v2085, 1.442695
      %v2132 = vpow.pop %v2131
      %v2133 = vmul.f32 %v2086, 1.442695
      %v2134 = vpow.pop %v2133
      %v2135 = vmul.f32 %v2087, 1.442695
      %v2136 = vpow.pop %v2135
      %v2137 = vmul.f32 %v2088, 1.442695
      %v2138 = vpow.pop %v2137
      %v2139 = vmul.f32 %v2089, 1.442695
      %v2140 = vpow.pop %v2139
      %v2141 = vmul.f32 %v2090, 1.442695
      %v2142 = vpow.pop %v2141
      %v2143 = vmul.f32 %v2091, 1.442695
      %v2144 = vpow.pop %v2143
      %v2145 = vmul.f32 %v2092, 1.442695
      %v2146 = vpow.pop %v2145
      %v2147 = vmul.f32 %v2093, 1.442695
      %v2148 = vpow.pop %v2147
      %v2149 = vmul.f32 %v2094, 1.442695
      %v2150 = vpow.pop %v2149
      %v2151 = vmul.f32 %v2095, 1.442695
      %v2152 = vpow.pop %v2151
      %v2153 = vmul.f32 %v2096, 1.442695
      %v2154 = vpow.pop %v2153
      %v2155 = vmul.f32 %v2097, 1.442695
      %v2156 = vpow.pop %v2155
      %v2157 = vmul.f32 %v2098, 1.442695
      %v2158 = vpow.pop %v2157
      %v2159 = vmul.f32 %v2099, 1.442695
      %v2160 = vpow.pop %v2159
      %v2161 = vmul.f32 %v2100, 1.442695
      %v2162 = vpow.pop %v2161
      %v2163 = vmul.f32 %v2101, 1.442695
      %v2164 = vpow.pop %v2163
      %v2165 = vmul.f32 %v2102, 1.442695
      %v2166 = vpow.pop %v2165
      %v2167 = vsel %vm1974, %v2104, 0.0
      %2168 = vadd.xlane.f32.xlu0 %v2167
      %v2169 = vpop.xlane.xlu0 %2168
      %v2170 = vsel %vm1974, %v2106, 0.0
      %2171 = vadd.xlane.f32.xlu0 %v2170
      %v2172 = vpop.xlane.xlu0 %2171
      %v2173 = vsel %vm1974, %v2108, 0.0
      %2174 = vadd.xlane.f32.xlu0 %v2173
      %v2175 = vpop.xlane.xlu0 %2174
      %v2176 = vsel %vm1974, %v2110, 0.0
      %2177 = vadd.xlane.f32.xlu0 %v2176
      %v2178 = vpop.xlane.xlu0 %2177
      %v2179 = vsel %vm1974, %v2112, 0.0
      %2180 = vadd.xlane.f32.xlu0 %v2179
      %v2181 = vpop.xlane.xlu0 %2180
      %v2182 = vsel %vm1974, %v2114, 0.0
      %2183 = vadd.xlane.f32.xlu0 %v2182
      %v2184 = vpop.xlane.xlu0 %2183
      %v2185 = vsel %vm1974, %v2116, 0.0
      %2186 = vadd.xlane.f32.xlu0 %v2185
      %v2187 = vpop.xlane.xlu0 %2186
      %v2188 = vsel %vm1974, %v2118, 0.0
      %2189 = vadd.xlane.f32.xlu0 %v2188
      %v2190 = vpop.xlane.xlu0 %2189
      %v2191 = vsel %vm1974, %v2120, 0.0
      %2192 = vadd.xlane.f32.xlu0 %v2191
      %v2193 = vpop.xlane.xlu0 %2192
      %v2194 = vsel %vm1974, %v2122, 0.0
      %2195 = vadd.xlane.f32.xlu0 %v2194
      %v2196 = vpop.xlane.xlu0 %2195
      %v2197 = vsel %vm1974, %v2124, 0.0
      %2198 = vadd.xlane.f32.xlu0 %v2197
      %v2199 = vpop.xlane.xlu0 %2198
      %v2200 = vsel %vm1974, %v2126, 0.0
      %2201 = vadd.xlane.f32.xlu0 %v2200
      %v2202 = vpop.xlane.xlu0 %2201
      %v2203 = vsel %vm1974, %v2128, 0.0
      %2204 = vadd.xlane.f32.xlu0 %v2203
      %v2205 = vpop.xlane.xlu0 %2204
      %v2206 = vsel %vm1974, %v2130, 0.0
      %2207 = vadd.xlane.f32.xlu0 %v2206
      %v2208 = vpop.xlane.xlu0 %2207
      %v2209 = vsel %vm1974, %v2132, 0.0
      %2210 = vadd.xlane.f32.xlu0 %v2209
      %v2211 = vpop.xlane.xlu0 %2210
      %v2212 = vsel %vm1974, %v2134, 0.0
      %2213 = vadd.xlane.f32.xlu0 %v2212
      %v2214 = vpop.xlane.xlu0 %2213
      %v2215 = vsel %vm1974, %v2136, 0.0
      %2216 = vadd.xlane.f32.xlu0 %v2215
      %v2217 = vpop.xlane.xlu0 %2216
      %v2218 = vsel %vm1974, %v2138, 0.0
      %2219 = vadd.xlane.f32.xlu0 %v2218
      %v2220 = vpop.xlane.xlu0 %2219
      %v2221 = vsel %vm1974, %v2140, 0.0
      %2222 = vadd.xlane.f32.xlu0 %v2221
      %v2223 = vpop.xlane.xlu0 %2222
      %v2224 = vsel %vm1974, %v2142, 0.0
      %2225 = vadd.xlane.f32.xlu0 %v2224
      %v2226 = vpop.xlane.xlu0 %2225
      %v2227 = vsel %vm1974, %v2144, 0.0
      %2228 = vadd.xlane.f32.xlu0 %v2227
      %v2229 = vpop.xlane.xlu0 %2228
      %v2230 = vsel %vm1974, %v2146, 0.0
      %2231 = vadd.xlane.f32.xlu0 %v2230
      %v2232 = vpop.xlane.xlu0 %2231
      %v2233 = vsel %vm1974, %v2148, 0.0
      %2234 = vadd.xlane.f32.xlu0 %v2233
      %v2235 = vpop.xlane.xlu0 %2234
      %v2236 = vsel %vm1974, %v2150, 0.0
      %2237 = vadd.xlane.f32.xlu0 %v2236
      %v2238 = vpop.xlane.xlu0 %2237
      %v2239 = vsel %vm1974, %v2152, 0.0
      %2240 = vadd.xlane.f32.xlu0 %v2239
      %v2241 = vpop.xlane.xlu0 %2240
      %v2242 = vsel %vm1974, %v2154, 0.0
      %2243 = vadd.xlane.f32.xlu0 %v2242
      %v2244 = vpop.xlane.xlu0 %2243
      %v2245 = vsel %vm1974, %v2156, 0.0
      %2246 = vadd.xlane.f32.xlu0 %v2245
      %v2247 = vpop.xlane.xlu0 %2246
      %v2248 = vsel %vm1974, %v2158, 0.0
      %2249 = vadd.xlane.f32.xlu0 %v2248
      %v2250 = vpop.xlane.xlu0 %2249
      %v2251 = vsel %vm1974, %v2160, 0.0
      %2252 = vadd.xlane.f32.xlu0 %v2251
      %v2253 = vpop.xlane.xlu0 %2252
      %v2254 = vsel %vm1974, %v2162, 0.0
      %2255 = vadd.xlane.f32.xlu0 %v2254
      %v2256 = vpop.xlane.xlu0 %2255
      %v2257 = vsel %vm1974, %v2164, 0.0
      %2258 = vadd.xlane.f32.xlu0 %v2257
      %v2259 = vpop.xlane.xlu0 %2258
      %v2260 = vsel %vm1974, %v2166, 0.0
      %2261 = vadd.xlane.f32.xlu0 %v2260
      %v2262 = vpop.xlane.xlu0 %2261
      %v2263 = vrcp.pop %v2169
      %v2264 = vrcp.pop %v2172
      %v2265 = vrcp.pop %v2175
      %v2266 = vrcp.pop %v2178
      %v2267 = vrcp.pop %v2181
      %v2268 = vrcp.pop %v2184
      %v2269 = vrcp.pop %v2187
      %v2270 = vrcp.pop %v2190
      %v2271 = vrcp.pop %v2193
      %v2272 = vrcp.pop %v2196
      %v2273 = vrcp.pop %v2199
      %v2274 = vrcp.pop %v2202
      %v2275 = vrcp.pop %v2205
      %v2276 = vrcp.pop %v2208
      %v2277 = vrcp.pop %v2211
      %v2278 = vrcp.pop %v2214
      %v2279 = vrcp.pop %v2217
      %v2280 = vrcp.pop %v2220
      %v2281 = vrcp.pop %v2223
      %v2282 = vrcp.pop %v2226
      %v2283 = vrcp.pop %v2229
      %v2284 = vrcp.pop %v2232
      %v2285 = vrcp.pop %v2235
      %v2286 = vrcp.pop %v2238
      %v2287 = vrcp.pop %v2241
      %v2288 = vrcp.pop %v2244
      %v2289 = vrcp.pop %v2247
      %v2290 = vrcp.pop %v2250
      %v2291 = vrcp.pop %v2253
      %v2292 = vrcp.pop %v2256
      %v2293 = vrcp.pop %v2259
      %v2294 = vrcp.pop %v2262
      %v2295 = vmul.f32 %v2104, %v2263
      %v2296 = vmul.f32 %v2106, %v2264
      %v2297 = vmul.f32 %v2108, %v2265
      %v2298 = vmul.f32 %v2110, %v2266
      %v2299 = vmul.f32 %v2112, %v2267
      %v2300 = vmul.f32 %v2114, %v2268
      %v2301 = vmul.f32 %v2116, %v2269
      %v2302 = vmul.f32 %v2118, %v2270
      %v2303 = vmul.f32 %v2120, %v2271
      %v2304 = vmul.f32 %v2122, %v2272
      %v2305 = vmul.f32 %v2124, %v2273
      %v2306 = vmul.f32 %v2126, %v2274
      %v2307 = vmul.f32 %v2128, %v2275
      %v2308 = vmul.f32 %v2130, %v2276
      %v2309 = vmul.f32 %v2132, %v2277
      %v2310 = vmul.f32 %v2134, %v2278
      %v2311 = vmul.f32 %v2136, %v2279
      %v2312 = vmul.f32 %v2138, %v2280
      %v2313 = vmul.f32 %v2140, %v2281
      %v2314 = vmul.f32 %v2142, %v2282
      %v2315 = vmul.f32 %v2144, %v2283
      %v2316 = vmul.f32 %v2146, %v2284
      %v2317 = vmul.f32 %v2148, %v2285
      %v2318 = vmul.f32 %v2150, %v2286
      %v2319 = vmul.f32 %v2152, %v2287
      %v2320 = vmul.f32 %v2154, %v2288
      %v2321 = vmul.f32 %v2156, %v2289
      %v2322 = vmul.f32 %v2158, %v2290
      %v2323 = vmul.f32 %v2160, %v2291
      %v2324 = vmul.f32 %v2162, %v2292
      %v2325 = vmul.f32 %v2164, %v2293
      %v2326 = vmul.f32 %v2166, %v2294
      %v2327 = vpack.c.bf16 %v2296, %v2295
      %v2328 = vpack.c.bf16 %v2298, %v2297
      %v2329 = vpack.c.bf16 %v2300, %v2299
      %v2330 = vpack.c.bf16 %v2302, %v2301
      %v2331 = vpack.c.bf16 %v2304, %v2303
      %v2332 = vpack.c.bf16 %v2306, %v2305
      %v2333 = vpack.c.bf16 %v2308, %v2307
      %v2334 = vpack.c.bf16 %v2310, %v2309
      %v2335 = vpack.c.bf16 %v2312, %v2311
      %v2336 = vpack.c.bf16 %v2314, %v2313
      %v2337 = vpack.c.bf16 %v2316, %v2315
      %v2338 = vpack.c.bf16 %v2318, %v2317
      %v2339 = vpack.c.bf16 %v2320, %v2319
      %v2340 = vpack.c.bf16 %v2322, %v2321
      %v2341 = vpack.c.bf16 %v2324, %v2323
      %v2342 = vpack.c.bf16 %v2326, %v2325
      %2343 = vrot.lane.b32.xlu0 %v1091, 64
      %v2344 = vpop.permute.xlu0 %2343
      %v2347 = vsel %vm1974, %v2327, 0
      %2349 = vmatprep.subr.bf16.mxu0 0
      %2350 = vmatpush1.bf16.msra.mxu0 0
      %2351 = vmatprep.subr.bf16.mxu0 0
      %2352 = vmatpush1.bf16.msra.mxu0 0
      %2353 = vmatprep.subr.bf16.mxu0 0
      %2354 = vmatpush1.bf16.msra.mxu0 0
      %2355 = vmatprep.subr.bf16.mxu0 0
      %2356 = vmatpush1.bf16.msra.mxu0 0
      %2357 = vmatprep.subr.bf16.mxu0 0
      %2358 = vmatpush1.bf16.msra.mxu0 0
      %2359 = vmatprep.subr.bf16.mxu0 0
      %2360 = vmatpush1.bf16.msra.mxu0 0
      %2361 = vmatprep.subr.bf16.mxu0 0
      %2362 = vmatpush1.bf16.msra.mxu0 0
      %2363 = vmatprep.subr.bf16.mxu0 0
      %2364 = vmatpush1.bf16.msra.mxu0 %v2344
      %2365 = vmatprep.subr.bf16.mxu0 0
      %2366 = vmatpush2.bf16.msra.mxu0 0
      %2367 = vmatprep.subr.bf16.mxu0 0
      %2368 = vmatpush2.bf16.msra.mxu0 0
      %2369 = vmatprep.subr.bf16.mxu0 0
      %2370 = vmatpush2.bf16.msra.mxu0 0
      %2371 = vmatprep.subr.bf16.mxu0 0
      %2372 = vmatpush2.bf16.msra.mxu0 0
      %2373 = vmatprep.subr.bf16.mxu0 0
      %2374 = vmatpush2.bf16.msra.mxu0 0
      %2375 = vmatprep.subr.bf16.mxu0 0
      %2376 = vmatpush2.bf16.msra.mxu0 0
      %2377 = vmatprep.subr.bf16.mxu0 0
      %2378 = vmatpush2.bf16.msra.mxu0 0
      %2379 = vmatprep.subr.bf16.mxu0 0
      %2380 = vmatpush2.bf16.msra.mxu0 0
      %2381 = vmatprep.mubr.bf16.mxu0 0
      %2382 = vmatmul.mubr.bf16.gmra.mxu0 %v2347
      %v2383 = vpop.f32.mrf.mxu0
      %v2384 = vadd.f32 0.0, %v2383
      %v2385 = vpop.f32.mrf.mxu0
      %v2386 = vpop.f32.mrf.mxu0
      %v2387 = vadd.f32 0.0, %v2386
      %v2388 = vpop.f32.mrf.mxu0
      %2389 = vdwg.mxu0
      %2390 = vrot.lane.b32.xlu0 %v1092, 64
      %v2391 = vpop.permute.xlu0 %2390
      %v2394 = vsel %vm1974, %v2328, 0
      %2396 = vmatprep.subr.bf16.mxu0 0
      %2397 = vmatpush1.bf16.msra.mxu0 0
      %2398 = vmatprep.subr.bf16.mxu0 0
      %2399 = vmatpush1.bf16.msra.mxu0 0
      %2400 = vmatprep.subr.bf16.mxu0 0
      %2401 = vmatpush1.bf16.msra.mxu0 0
      %2402 = vmatprep.subr.bf16.mxu0 0
      %2403 = vmatpush1.bf16.msra.mxu0 0
      %2404 = vmatprep.subr.bf16.mxu0 0
      %2405 = vmatpush1.bf16.msra.mxu0 0
      %2406 = vmatprep.subr.bf16.mxu0 0
      %2407 = vmatpush1.bf16.msra.mxu0 0
      %2408 = vmatprep.subr.bf16.mxu0 0
      %2409 = vmatpush1.bf16.msra.mxu0 0
      %2410 = vmatprep.subr.bf16.mxu0 0
      %2411 = vmatpush1.bf16.msra.mxu0 %v2391
      %2412 = vmatprep.subr.bf16.mxu0 0
      %2413 = vmatpush2.bf16.msra.mxu0 0
      %2414 = vmatprep.subr.bf16.mxu0 0
      %2415 = vmatpush2.bf16.msra.mxu0 0
      %2416 = vmatprep.subr.bf16.mxu0 0
      %2417 = vmatpush2.bf16.msra.mxu0 0
      %2418 = vmatprep.subr.bf16.mxu0 0
      %2419 = vmatpush2.bf16.msra.mxu0 0
      %2420 = vmatprep.subr.bf16.mxu0 0
      %2421 = vmatpush2.bf16.msra.mxu0 0
      %2422 = vmatprep.subr.bf16.mxu0 0
      %2423 = vmatpush2.bf16.msra.mxu0 0
      %2424 = vmatprep.subr.bf16.mxu0 0
      %2425 = vmatpush2.bf16.msra.mxu0 0
      %2426 = vmatprep.subr.bf16.mxu0 0
      %2427 = vmatpush2.bf16.msra.mxu0 0
      %2428 = vmatprep.mubr.bf16.mxu0 0
      %2429 = vmatmul.mubr.bf16.gmra.mxu0 %v2394
      %v2430 = vpop.f32.mrf.mxu0
      %v2431 = vadd.f32 0.0, %v2430
      %v2432 = vpop.f32.mrf.mxu0
      %v2433 = vpop.f32.mrf.mxu0
      %v2434 = vadd.f32 0.0, %v2433
      %v2435 = vpop.f32.mrf.mxu0
      %2436 = vdwg.mxu0
      %2437 = vrot.lane.b32.xlu0 %v1093, 64
      %v2438 = vpop.permute.xlu0 %2437
      %v2441 = vsel %vm1974, %v2329, 0
      %2443 = vmatprep.subr.bf16.mxu0 0
      %2444 = vmatpush1.bf16.msra.mxu0 0
      %2445 = vmatprep.subr.bf16.mxu0 0
      %2446 = vmatpush1.bf16.msra.mxu0 0
      %2447 = vmatprep.subr.bf16.mxu0 0
      %2448 = vmatpush1.bf16.msra.mxu0 0
      %2449 = vmatprep.subr.bf16.mxu0 0
      %2450 = vmatpush1.bf16.msra.mxu0 0
      %2451 = vmatprep.subr.bf16.mxu0 0
      %2452 = vmatpush1.bf16.msra.mxu0 0
      %2453 = vmatprep.subr.bf16.mxu0 0
      %2454 = vmatpush1.bf16.msra.mxu0 0
      %2455 = vmatprep.subr.bf16.mxu0 0
      %2456 = vmatpush1.bf16.msra.mxu0 0
      %2457 = vmatprep.subr.bf16.mxu0 0
      %2458 = vmatpush1.bf16.msra.mxu0 %v2438
      %2459 = vmatprep.subr.bf16.mxu0 0
      %2460 = vmatpush2.bf16.msra.mxu0 0
      %2461 = vmatprep.subr.bf16.mxu0 0
      %2462 = vmatpush2.bf16.msra.mxu0 0
      %2463 = vmatprep.subr.bf16.mxu0 0
      %2464 = vmatpush2.bf16.msra.mxu0 0
      %2465 = vmatprep.subr.bf16.mxu0 0
      %2466 = vmatpush2.bf16.msra.mxu0 0
      %2467 = vmatprep.subr.bf16.mxu0 0
      %2468 = vmatpush2.bf16.msra.mxu0 0
      %2469 = vmatprep.subr.bf16.mxu0 0
      %2470 = vmatpush2.bf16.msra.mxu0 0
      %2471 = vmatprep.subr.bf16.mxu0 0
      %2472 = vmatpush2.bf16.msra.mxu0 0
      %2473 = vmatprep.subr.bf16.mxu0 0
      %2474 = vmatpush2.bf16.msra.mxu0 0
      %2475 = vmatprep.mubr.bf16.mxu0 0
      %2476 = vmatmul.mubr.bf16.gmra.mxu0 %v2441
      %v2477 = vpop.f32.mrf.mxu0
      %v2478 = vadd.f32 0.0, %v2477
      %v2479 = vpop.f32.mrf.mxu0
      %v2480 = vpop.f32.mrf.mxu0
      %v2481 = vadd.f32 0.0, %v2480
      %v2482 = vpop.f32.mrf.mxu0
      %2483 = vdwg.mxu0
      %2484 = vrot.lane.b32.xlu0 %v1094, 64
      %v2485 = vpop.permute.xlu0 %2484
      %v2488 = vsel %vm1974, %v2330, 0
      %2490 = vmatprep.subr.bf16.mxu0 0
      %2491 = vmatpush1.bf16.msra.mxu0 0
      %2492 = vmatprep.subr.bf16.mxu0 0
      %2493 = vmatpush1.bf16.msra.mxu0 0
      %2494 = vmatprep.subr.bf16.mxu0 0
      %2495 = vmatpush1.bf16.msra.mxu0 0
      %2496 = vmatprep.subr.bf16.mxu0 0
      %2497 = vmatpush1.bf16.msra.mxu0 0
      %2498 = vmatprep.subr.bf16.mxu0 0
      %2499 = vmatpush1.bf16.msra.mxu0 0
      %2500 = vmatprep.subr.bf16.mxu0 0
      %2501 = vmatpush1.bf16.msra.mxu0 0
      %2502 = vmatprep.subr.bf16.mxu0 0
      %2503 = vmatpush1.bf16.msra.mxu0 0
      %2504 = vmatprep.subr.bf16.mxu0 0
      %2505 = vmatpush1.bf16.msra.mxu0 %v2485
      %2506 = vmatprep.subr.bf16.mxu0 0
      %2507 = vmatpush2.bf16.msra.mxu0 0
      %2508 = vmatprep.subr.bf16.mxu0 0
      %2509 = vmatpush2.bf16.msra.mxu0 0
      %2510 = vmatprep.subr.bf16.mxu0 0
      %2511 = vmatpush2.bf16.msra.mxu0 0
      %2512 = vmatprep.subr.bf16.mxu0 0
      %2513 = vmatpush2.bf16.msra.mxu0 0
      %2514 = vmatprep.subr.bf16.mxu0 0
      %2515 = vmatpush2.bf16.msra.mxu0 0
      %2516 = vmatprep.subr.bf16.mxu0 0
      %2517 = vmatpush2.bf16.msra.mxu0 0
      %2518 = vmatprep.subr.bf16.mxu0 0
      %2519 = vmatpush2.bf16.msra.mxu0 0
      %2520 = vmatprep.subr.bf16.mxu0 0
      %2521 = vmatpush2.bf16.msra.mxu0 0
      %2522 = vmatprep.mubr.bf16.mxu0 0
      %2523 = vmatmul.mubr.bf16.gmra.mxu0 %v2488
      %v2524 = vpop.f32.mrf.mxu0
      %v2525 = vadd.f32 0.0, %v2524
      %v2526 = vpop.f32.mrf.mxu0
      %v2527 = vpop.f32.mrf.mxu0
      %v2528 = vadd.f32 0.0, %v2527
      %v2529 = vpop.f32.mrf.mxu0
      %2530 = vdwg.mxu0
      %2531 = vrot.lane.b32.xlu0 %v1095, 64
      %v2532 = vpop.permute.xlu0 %2531
      %v2535 = vsel %vm1974, %v2331, 0
      %2537 = vmatprep.subr.bf16.mxu0 0
      %2538 = vmatpush1.bf16.msra.mxu0 0
      %2539 = vmatprep.subr.bf16.mxu0 0
      %2540 = vmatpush1.bf16.msra.mxu0 0
      %2541 = vmatprep.subr.bf16.mxu0 0
      %2542 = vmatpush1.bf16.msra.mxu0 0
      %2543 = vmatprep.subr.bf16.mxu0 0
      %2544 = vmatpush1.bf16.msra.mxu0 0
      %2545 = vmatprep.subr.bf16.mxu0 0
      %2546 = vmatpush1.bf16.msra.mxu0 0
      %2547 = vmatprep.subr.bf16.mxu0 0
      %2548 = vmatpush1.bf16.msra.mxu0 0
      %2549 = vmatprep.subr.bf16.mxu0 0
      %2550 = vmatpush1.bf16.msra.mxu0 0
      %2551 = vmatprep.subr.bf16.mxu0 0
      %2552 = vmatpush1.bf16.msra.mxu0 %v2532
      %2553 = vmatprep.subr.bf16.mxu0 0
      %2554 = vmatpush2.bf16.msra.mxu0 0
      %2555 = vmatprep.subr.bf16.mxu0 0
      %2556 = vmatpush2.bf16.msra.mxu0 0
      %2557 = vmatprep.subr.bf16.mxu0 0
      %2558 = vmatpush2.bf16.msra.mxu0 0
      %2559 = vmatprep.subr.bf16.mxu0 0
      %2560 = vmatpush2.bf16.msra.mxu0 0
      %2561 = vmatprep.subr.bf16.mxu0 0
      %2562 = vmatpush2.bf16.msra.mxu0 0
      %2563 = vmatprep.subr.bf16.mxu0 0
      %2564 = vmatpush2.bf16.msra.mxu0 0
      %2565 = vmatprep.subr.bf16.mxu0 0
      %2566 = vmatpush2.bf16.msra.mxu0 0
      %2567 = vmatprep.subr.bf16.mxu0 0
      %2568 = vmatpush2.bf16.msra.mxu0 0
      %2569 = vmatprep.mubr.bf16.mxu0 0
      %2570 = vmatmul.mubr.bf16.gmra.mxu0 %v2535
      %v2571 = vpop.f32.mrf.mxu0
      %v2572 = vadd.f32 0.0, %v2571
      %v2573 = vpop.f32.mrf.mxu0
      %v2574 = vpop.f32.mrf.mxu0
      %v2575 = vadd.f32 0.0, %v2574
      %v2576 = vpop.f32.mrf.mxu0
      %2577 = vdwg.mxu0
      %2578 = vrot.lane.b32.xlu0 %v1096, 64
      %v2579 = vpop.permute.xlu0 %2578
      %v2582 = vsel %vm1974, %v2332, 0
      %2584 = vmatprep.subr.bf16.mxu0 0
      %2585 = vmatpush1.bf16.msra.mxu0 0
      %2586 = vmatprep.subr.bf16.mxu0 0
      %2587 = vmatpush1.bf16.msra.mxu0 0
      %2588 = vmatprep.subr.bf16.mxu0 0
      %2589 = vmatpush1.bf16.msra.mxu0 0
      %2590 = vmatprep.subr.bf16.mxu0 0
      %2591 = vmatpush1.bf16.msra.mxu0 0
      %2592 = vmatprep.subr.bf16.mxu0 0
      %2593 = vmatpush1.bf16.msra.mxu0 0
      %2594 = vmatprep.subr.bf16.mxu0 0
      %2595 = vmatpush1.bf16.msra.mxu0 0
      %2596 = vmatprep.subr.bf16.mxu0 0
      %2597 = vmatpush1.bf16.msra.mxu0 0
      %2598 = vmatprep.subr.bf16.mxu0 0
      %2599 = vmatpush1.bf16.msra.mxu0 %v2579
      %2600 = vmatprep.subr.bf16.mxu0 0
      %2601 = vmatpush2.bf16.msra.mxu0 0
      %2602 = vmatprep.subr.bf16.mxu0 0
      %2603 = vmatpush2.bf16.msra.mxu0 0
      %2604 = vmatprep.subr.bf16.mxu0 0
      %2605 = vmatpush2.bf16.msra.mxu0 0
      %2606 = vmatprep.subr.bf16.mxu0 0
      %2607 = vmatpush2.bf16.msra.mxu0 0
      %2608 = vmatprep.subr.bf16.mxu0 0
      %2609 = vmatpush2.bf16.msra.mxu0 0
      %2610 = vmatprep.subr.bf16.mxu0 0
      %2611 = vmatpush2.bf16.msra.mxu0 0
      %2612 = vmatprep.subr.bf16.mxu0 0
      %2613 = vmatpush2.bf16.msra.mxu0 0
      %2614 = vmatprep.subr.bf16.mxu0 0
      %2615 = vmatpush2.bf16.msra.mxu0 0
      %2616 = vmatprep.mubr.bf16.mxu0 0
      %2617 = vmatmul.mubr.bf16.gmra.mxu0 %v2582
      %v2618 = vpop.f32.mrf.mxu0
      %v2619 = vadd.f32 0.0, %v2618
      %v2620 = vpop.f32.mrf.mxu0
      %v2621 = vpop.f32.mrf.mxu0
      %v2622 = vadd.f32 0.0, %v2621
      %v2623 = vpop.f32.mrf.mxu0
      %2624 = vdwg.mxu0
      %2625 = vrot.lane.b32.xlu0 %v1097, 64
      %v2626 = vpop.permute.xlu0 %2625
      %v2629 = vsel %vm1974, %v2333, 0
      %2631 = vmatprep.subr.bf16.mxu0 0
      %2632 = vmatpush1.bf16.msra.mxu0 0
      %2633 = vmatprep.subr.bf16.mxu0 0
      %2634 = vmatpush1.bf16.msra.mxu0 0
      %2635 = vmatprep.subr.bf16.mxu0 0
      %2636 = vmatpush1.bf16.msra.mxu0 0
      %2637 = vmatprep.subr.bf16.mxu0 0
      %2638 = vmatpush1.bf16.msra.mxu0 0
      %2639 = vmatprep.subr.bf16.mxu0 0
      %2640 = vmatpush1.bf16.msra.mxu0 0
      %2641 = vmatprep.subr.bf16.mxu0 0
      %2642 = vmatpush1.bf16.msra.mxu0 0
      %2643 = vmatprep.subr.bf16.mxu0 0
      %2644 = vmatpush1.bf16.msra.mxu0 0
      %2645 = vmatprep.subr.bf16.mxu0 0
      %2646 = vmatpush1.bf16.msra.mxu0 %v2626
      %2647 = vmatprep.subr.bf16.mxu0 0
      %2648 = vmatpush2.bf16.msra.mxu0 0
      %2649 = vmatprep.subr.bf16.mxu0 0
      %2650 = vmatpush2.bf16.msra.mxu0 0
      %2651 = vmatprep.subr.bf16.mxu0 0
      %2652 = vmatpush2.bf16.msra.mxu0 0
      %2653 = vmatprep.subr.bf16.mxu0 0
      %2654 = vmatpush2.bf16.msra.mxu0 0
      %2655 = vmatprep.subr.bf16.mxu0 0
      %2656 = vmatpush2.bf16.msra.mxu0 0
      %2657 = vmatprep.subr.bf16.mxu0 0
      %2658 = vmatpush2.bf16.msra.mxu0 0
      %2659 = vmatprep.subr.bf16.mxu0 0
      %2660 = vmatpush2.bf16.msra.mxu0 0
      %2661 = vmatprep.subr.bf16.mxu0 0
      %2662 = vmatpush2.bf16.msra.mxu0 0
      %2663 = vmatprep.mubr.bf16.mxu0 0
      %2664 = vmatmul.mubr.bf16.gmra.mxu0 %v2629
      %v2665 = vpop.f32.mrf.mxu0
      %v2666 = vadd.f32 0.0, %v2665
      %v2667 = vpop.f32.mrf.mxu0
      %v2668 = vpop.f32.mrf.mxu0
      %v2669 = vadd.f32 0.0, %v2668
      %v2670 = vpop.f32.mrf.mxu0
      %2671 = vdwg.mxu0
      %2672 = vrot.lane.b32.xlu0 %v1098, 64
      %v2673 = vpop.permute.xlu0 %2672
      %v2676 = vsel %vm1974, %v2334, 0
      %2678 = vmatprep.subr.bf16.mxu0 0
      %2679 = vmatpush1.bf16.msra.mxu0 0
      %2680 = vmatprep.subr.bf16.mxu0 0
      %2681 = vmatpush1.bf16.msra.mxu0 0
      %2682 = vmatprep.subr.bf16.mxu0 0
      %2683 = vmatpush1.bf16.msra.mxu0 0
      %2684 = vmatprep.subr.bf16.mxu0 0
      %2685 = vmatpush1.bf16.msra.mxu0 0
      %2686 = vmatprep.subr.bf16.mxu0 0
      %2687 = vmatpush1.bf16.msra.mxu0 0
      %2688 = vmatprep.subr.bf16.mxu0 0
      %2689 = vmatpush1.bf16.msra.mxu0 0
      %2690 = vmatprep.subr.bf16.mxu0 0
      %2691 = vmatpush1.bf16.msra.mxu0 0
      %2692 = vmatprep.subr.bf16.mxu0 0
      %2693 = vmatpush1.bf16.msra.mxu0 %v2673
      %2694 = vmatprep.subr.bf16.mxu0 0
      %2695 = vmatpush2.bf16.msra.mxu0 0
      %2696 = vmatprep.subr.bf16.mxu0 0
      %2697 = vmatpush2.bf16.msra.mxu0 0
      %2698 = vmatprep.subr.bf16.mxu0 0
      %2699 = vmatpush2.bf16.msra.mxu0 0
      %2700 = vmatprep.subr.bf16.mxu0 0
      %2701 = vmatpush2.bf16.msra.mxu0 0
      %2702 = vmatprep.subr.bf16.mxu0 0
      %2703 = vmatpush2.bf16.msra.mxu0 0
      %2704 = vmatprep.subr.bf16.mxu0 0
      %2705 = vmatpush2.bf16.msra.mxu0 0
      %2706 = vmatprep.subr.bf16.mxu0 0
      %2707 = vmatpush2.bf16.msra.mxu0 0
      %2708 = vmatprep.subr.bf16.mxu0 0
      %2709 = vmatpush2.bf16.msra.mxu0 0
      %2710 = vmatprep.mubr.bf16.mxu0 0
      %2711 = vmatmul.mubr.bf16.gmra.mxu0 %v2676
      %v2712 = vpop.f32.mrf.mxu0
      %v2713 = vadd.f32 0.0, %v2712
      %v2714 = vpop.f32.mrf.mxu0
      %v2715 = vpop.f32.mrf.mxu0
      %v2716 = vadd.f32 0.0, %v2715
      %v2717 = vpop.f32.mrf.mxu0
      %2718 = vdwg.mxu0
      %2719 = vrot.lane.b32.xlu0 %v1099, 64
      %v2720 = vpop.permute.xlu0 %2719
      %v2723 = vsel %vm1974, %v2335, 0
      %2725 = vmatprep.subr.bf16.mxu0 0
      %2726 = vmatpush1.bf16.msra.mxu0 0
      %2727 = vmatprep.subr.bf16.mxu0 0
      %2728 = vmatpush1.bf16.msra.mxu0 0
      %2729 = vmatprep.subr.bf16.mxu0 0
      %2730 = vmatpush1.bf16.msra.mxu0 0
      %2731 = vmatprep.subr.bf16.mxu0 0
      %2732 = vmatpush1.bf16.msra.mxu0 0
      %2733 = vmatprep.subr.bf16.mxu0 0
      %2734 = vmatpush1.bf16.msra.mxu0 0
      %2735 = vmatprep.subr.bf16.mxu0 0
      %2736 = vmatpush1.bf16.msra.mxu0 0
      %2737 = vmatprep.subr.bf16.mxu0 0
      %2738 = vmatpush1.bf16.msra.mxu0 0
      %2739 = vmatprep.subr.bf16.mxu0 0
      %2740 = vmatpush1.bf16.msra.mxu0 %v2720
      %2741 = vmatprep.subr.bf16.mxu0 0
      %2742 = vmatpush2.bf16.msra.mxu0 0
      %2743 = vmatprep.subr.bf16.mxu0 0
      %2744 = vmatpush2.bf16.msra.mxu0 0
      %2745 = vmatprep.subr.bf16.mxu0 0
      %2746 = vmatpush2.bf16.msra.mxu0 0
      %2747 = vmatprep.subr.bf16.mxu0 0
      %2748 = vmatpush2.bf16.msra.mxu0 0
      %2749 = vmatprep.subr.bf16.mxu0 0
      %2750 = vmatpush2.bf16.msra.mxu0 0
      %2751 = vmatprep.subr.bf16.mxu0 0
      %2752 = vmatpush2.bf16.msra.mxu0 0
      %2753 = vmatprep.subr.bf16.mxu0 0
      %2754 = vmatpush2.bf16.msra.mxu0 0
      %2755 = vmatprep.subr.bf16.mxu0 0
      %2756 = vmatpush2.bf16.msra.mxu0 0
      %2757 = vmatprep.mubr.bf16.mxu0 0
      %2758 = vmatmul.mubr.bf16.gmra.mxu0 %v2723
      %v2759 = vpop.f32.mrf.mxu0
      %v2760 = vadd.f32 0.0, %v2759
      %v2761 = vpop.f32.mrf.mxu0
      %v2762 = vpop.f32.mrf.mxu0
      %v2763 = vadd.f32 0.0, %v2762
      %v2764 = vpop.f32.mrf.mxu0
      %2765 = vdwg.mxu0
      %2766 = vrot.lane.b32.xlu0 %v1100, 64
      %v2767 = vpop.permute.xlu0 %2766
      %v2770 = vsel %vm1974, %v2336, 0
      %2772 = vmatprep.subr.bf16.mxu0 0
      %2773 = vmatpush1.bf16.msra.mxu0 0
      %2774 = vmatprep.subr.bf16.mxu0 0
      %2775 = vmatpush1.bf16.msra.mxu0 0
      %2776 = vmatprep.subr.bf16.mxu0 0
      %2777 = vmatpush1.bf16.msra.mxu0 0
      %2778 = vmatprep.subr.bf16.mxu0 0
      %2779 = vmatpush1.bf16.msra.mxu0 0
      %2780 = vmatprep.subr.bf16.mxu0 0
      %2781 = vmatpush1.bf16.msra.mxu0 0
      %2782 = vmatprep.subr.bf16.mxu0 0
      %2783 = vmatpush1.bf16.msra.mxu0 0
      %2784 = vmatprep.subr.bf16.mxu0 0
      %2785 = vmatpush1.bf16.msra.mxu0 0
      %2786 = vmatprep.subr.bf16.mxu0 0
      %2787 = vmatpush1.bf16.msra.mxu0 %v2767
      %2788 = vmatprep.subr.bf16.mxu0 0
      %2789 = vmatpush2.bf16.msra.mxu0 0
      %2790 = vmatprep.subr.bf16.mxu0 0
      %2791 = vmatpush2.bf16.msra.mxu0 0
      %2792 = vmatprep.subr.bf16.mxu0 0
      %2793 = vmatpush2.bf16.msra.mxu0 0
      %2794 = vmatprep.subr.bf16.mxu0 0
      %2795 = vmatpush2.bf16.msra.mxu0 0
      %2796 = vmatprep.subr.bf16.mxu0 0
      %2797 = vmatpush2.bf16.msra.mxu0 0
      %2798 = vmatprep.subr.bf16.mxu0 0
      %2799 = vmatpush2.bf16.msra.mxu0 0
      %2800 = vmatprep.subr.bf16.mxu0 0
      %2801 = vmatpush2.bf16.msra.mxu0 0
      %2802 = vmatprep.subr.bf16.mxu0 0
      %2803 = vmatpush2.bf16.msra.mxu0 0
      %2804 = vmatprep.mubr.bf16.mxu0 0
      %2805 = vmatmul.mubr.bf16.gmra.mxu0 %v2770
      %v2806 = vpop.f32.mrf.mxu0
      %v2807 = vadd.f32 0.0, %v2806
      %v2808 = vpop.f32.mrf.mxu0
      %v2809 = vpop.f32.mrf.mxu0
      %v2810 = vadd.f32 0.0, %v2809
      %v2811 = vpop.f32.mrf.mxu0
      %2812 = vdwg.mxu0
      %2813 = vrot.lane.b32.xlu0 %v1101, 64
      %v2814 = vpop.permute.xlu0 %2813
      %v2817 = vsel %vm1974, %v2337, 0
      %2819 = vmatprep.subr.bf16.mxu0 0
      %2820 = vmatpush1.bf16.msra.mxu0 0
      %2821 = vmatprep.subr.bf16.mxu0 0
      %2822 = vmatpush1.bf16.msra.mxu0 0
      %2823 = vmatprep.subr.bf16.mxu0 0
      %2824 = vmatpush1.bf16.msra.mxu0 0
      %2825 = vmatprep.subr.bf16.mxu0 0
      %2826 = vmatpush1.bf16.msra.mxu0 0
      %2827 = vmatprep.subr.bf16.mxu0 0
      %2828 = vmatpush1.bf16.msra.mxu0 0
      %2829 = vmatprep.subr.bf16.mxu0 0
      %2830 = vmatpush1.bf16.msra.mxu0 0
      %2831 = vmatprep.subr.bf16.mxu0 0
      %2832 = vmatpush1.bf16.msra.mxu0 0
      %2833 = vmatprep.subr.bf16.mxu0 0
      %2834 = vmatpush1.bf16.msra.mxu0 %v2814
      %2835 = vmatprep.subr.bf16.mxu0 0
      %2836 = vmatpush2.bf16.msra.mxu0 0
      %2837 = vmatprep.subr.bf16.mxu0 0
      %2838 = vmatpush2.bf16.msra.mxu0 0
      %2839 = vmatprep.subr.bf16.mxu0 0
      %2840 = vmatpush2.bf16.msra.mxu0 0
      %2841 = vmatprep.subr.bf16.mxu0 0
      %2842 = vmatpush2.bf16.msra.mxu0 0
      %2843 = vmatprep.subr.bf16.mxu0 0
      %2844 = vmatpush2.bf16.msra.mxu0 0
      %2845 = vmatprep.subr.bf16.mxu0 0
      %2846 = vmatpush2.bf16.msra.mxu0 0
      %2847 = vmatprep.subr.bf16.mxu0 0
      %2848 = vmatpush2.bf16.msra.mxu0 0
      %2849 = vmatprep.subr.bf16.mxu0 0
      %2850 = vmatpush2.bf16.msra.mxu0 0
      %2851 = vmatprep.mubr.bf16.mxu0 0
      %2852 = vmatmul.mubr.bf16.gmra.mxu0 %v2817
      %v2853 = vpop.f32.mrf.mxu0
      %v2854 = vadd.f32 0.0, %v2853
      %v2855 = vpop.f32.mrf.mxu0
      %v2856 = vpop.f32.mrf.mxu0
      %v2857 = vadd.f32 0.0, %v2856
      %v2858 = vpop.f32.mrf.mxu0
      %2859 = vdwg.mxu0
      %2860 = vrot.lane.b32.xlu0 %v1102, 64
      %v2861 = vpop.permute.xlu0 %2860
      %v2864 = vsel %vm1974, %v2338, 0
      %2866 = vmatprep.subr.bf16.mxu0 0
      %2867 = vmatpush1.bf16.msra.mxu0 0
      %2868 = vmatprep.subr.bf16.mxu0 0
      %2869 = vmatpush1.bf16.msra.mxu0 0
      %2870 = vmatprep.subr.bf16.mxu0 0
      %2871 = vmatpush1.bf16.msra.mxu0 0
      %2872 = vmatprep.subr.bf16.mxu0 0
      %2873 = vmatpush1.bf16.msra.mxu0 0
      %2874 = vmatprep.subr.bf16.mxu0 0
      %2875 = vmatpush1.bf16.msra.mxu0 0
      %2876 = vmatprep.subr.bf16.mxu0 0
      %2877 = vmatpush1.bf16.msra.mxu0 0
      %2878 = vmatprep.subr.bf16.mxu0 0
      %2879 = vmatpush1.bf16.msra.mxu0 0
      %2880 = vmatprep.subr.bf16.mxu0 0
      %2881 = vmatpush1.bf16.msra.mxu0 %v2861
      %2882 = vmatprep.subr.bf16.mxu0 0
      %2883 = vmatpush2.bf16.msra.mxu0 0
      %2884 = vmatprep.subr.bf16.mxu0 0
      %2885 = vmatpush2.bf16.msra.mxu0 0
      %2886 = vmatprep.subr.bf16.mxu0 0
      %2887 = vmatpush2.bf16.msra.mxu0 0
      %2888 = vmatprep.subr.bf16.mxu0 0
      %2889 = vmatpush2.bf16.msra.mxu0 0
      %2890 = vmatprep.subr.bf16.mxu0 0
      %2891 = vmatpush2.bf16.msra.mxu0 0
      %2892 = vmatprep.subr.bf16.mxu0 0
      %2893 = vmatpush2.bf16.msra.mxu0 0
      %2894 = vmatprep.subr.bf16.mxu0 0
      %2895 = vmatpush2.bf16.msra.mxu0 0
      %2896 = vmatprep.subr.bf16.mxu0 0
      %2897 = vmatpush2.bf16.msra.mxu0 0
      %2898 = vmatprep.mubr.bf16.mxu0 0
      %2899 = vmatmul.mubr.bf16.gmra.mxu0 %v2864
      %v2900 = vpop.f32.mrf.mxu0
      %v2901 = vadd.f32 0.0, %v2900
      %v2902 = vpop.f32.mrf.mxu0
      %v2903 = vpop.f32.mrf.mxu0
      %v2904 = vadd.f32 0.0, %v2903
      %v2905 = vpop.f32.mrf.mxu0
      %2906 = vdwg.mxu0
      %2907 = vrot.lane.b32.xlu0 %v1103, 64
      %v2908 = vpop.permute.xlu0 %2907
      %v2911 = vsel %vm1974, %v2339, 0
      %2913 = vmatprep.subr.bf16.mxu0 0
      %2914 = vmatpush1.bf16.msra.mxu0 0
      %2915 = vmatprep.subr.bf16.mxu0 0
      %2916 = vmatpush1.bf16.msra.mxu0 0
      %2917 = vmatprep.subr.bf16.mxu0 0
      %2918 = vmatpush1.bf16.msra.mxu0 0
      %2919 = vmatprep.subr.bf16.mxu0 0
      %2920 = vmatpush1.bf16.msra.mxu0 0
      %2921 = vmatprep.subr.bf16.mxu0 0
      %2922 = vmatpush1.bf16.msra.mxu0 0
      %2923 = vmatprep.subr.bf16.mxu0 0
      %2924 = vmatpush1.bf16.msra.mxu0 0
      %2925 = vmatprep.subr.bf16.mxu0 0
      %2926 = vmatpush1.bf16.msra.mxu0 0
      %2927 = vmatprep.subr.bf16.mxu0 0
      %2928 = vmatpush1.bf16.msra.mxu0 %v2908
      %2929 = vmatprep.subr.bf16.mxu0 0
      %2930 = vmatpush2.bf16.msra.mxu0 0
      %2931 = vmatprep.subr.bf16.mxu0 0
      %2932 = vmatpush2.bf16.msra.mxu0 0
      %2933 = vmatprep.subr.bf16.mxu0 0
      %2934 = vmatpush2.bf16.msra.mxu0 0
      %2935 = vmatprep.subr.bf16.mxu0 0
      %2936 = vmatpush2.bf16.msra.mxu0 0
      %2937 = vmatprep.subr.bf16.mxu0 0
      %2938 = vmatpush2.bf16.msra.mxu0 0
      %2939 = vmatprep.subr.bf16.mxu0 0
      %2940 = vmatpush2.bf16.msra.mxu0 0
      %2941 = vmatprep.subr.bf16.mxu0 0
      %2942 = vmatpush2.bf16.msra.mxu0 0
      %2943 = vmatprep.subr.bf16.mxu0 0
      %2944 = vmatpush2.bf16.msra.mxu0 0
      %2945 = vmatprep.mubr.bf16.mxu0 0
      %2946 = vmatmul.mubr.bf16.gmra.mxu0 %v2911
      %v2947 = vpop.f32.mrf.mxu0
      %v2948 = vadd.f32 0.0, %v2947
      %v2949 = vpop.f32.mrf.mxu0
      %v2950 = vpop.f32.mrf.mxu0
      %v2951 = vadd.f32 0.0, %v2950
      %v2952 = vpop.f32.mrf.mxu0
      %2953 = vdwg.mxu0
      %2954 = vrot.lane.b32.xlu0 %v1104, 64
      %v2955 = vpop.permute.xlu0 %2954
      %v2958 = vsel %vm1974, %v2340, 0
      %2960 = vmatprep.subr.bf16.mxu0 0
      %2961 = vmatpush1.bf16.msra.mxu0 0
      %2962 = vmatprep.subr.bf16.mxu0 0
      %2963 = vmatpush1.bf16.msra.mxu0 0
      %2964 = vmatprep.subr.bf16.mxu0 0
      %2965 = vmatpush1.bf16.msra.mxu0 0
      %2966 = vmatprep.subr.bf16.mxu0 0
      %2967 = vmatpush1.bf16.msra.mxu0 0
      %2968 = vmatprep.subr.bf16.mxu0 0
      %2969 = vmatpush1.bf16.msra.mxu0 0
      %2970 = vmatprep.subr.bf16.mxu0 0
      %2971 = vmatpush1.bf16.msra.mxu0 0
      %2972 = vmatprep.subr.bf16.mxu0 0
      %2973 = vmatpush1.bf16.msra.mxu0 0
      %2974 = vmatprep.subr.bf16.mxu0 0
      %2975 = vmatpush1.bf16.msra.mxu0 %v2955
      %2976 = vmatprep.subr.bf16.mxu0 0
      %2977 = vmatpush2.bf16.msra.mxu0 0
      %2978 = vmatprep.subr.bf16.mxu0 0
      %2979 = vmatpush2.bf16.msra.mxu0 0
      %2980 = vmatprep.subr.bf16.mxu0 0
      %2981 = vmatpush2.bf16.msra.mxu0 0
      %2982 = vmatprep.subr.bf16.mxu0 0
      %2983 = vmatpush2.bf16.msra.mxu0 0
      %2984 = vmatprep.subr.bf16.mxu0 0
      %2985 = vmatpush2.bf16.msra.mxu0 0
      %2986 = vmatprep.subr.bf16.mxu0 0
      %2987 = vmatpush2.bf16.msra.mxu0 0
      %2988 = vmatprep.subr.bf16.mxu0 0
      %2989 = vmatpush2.bf16.msra.mxu0 0
      %2990 = vmatprep.subr.bf16.mxu0 0
      %2991 = vmatpush2.bf16.msra.mxu0 0
      %2992 = vmatprep.mubr.bf16.mxu0 0
      %2993 = vmatmul.mubr.bf16.gmra.mxu0 %v2958
      %v2994 = vpop.f32.mrf.mxu0
      %v2995 = vadd.f32 0.0, %v2994
      %v2996 = vpop.f32.mrf.mxu0
      %v2997 = vpop.f32.mrf.mxu0
      %v2998 = vadd.f32 0.0, %v2997
      %v2999 = vpop.f32.mrf.mxu0
      %3000 = vdwg.mxu0
      %3001 = vrot.lane.b32.xlu0 %v1105, 64
      %v3002 = vpop.permute.xlu0 %3001
      %v3005 = vsel %vm1974, %v2341, 0
      %3007 = vmatprep.subr.bf16.mxu0 0
      %3008 = vmatpush1.bf16.msra.mxu0 0
      %3009 = vmatprep.subr.bf16.mxu0 0
      %3010 = vmatpush1.bf16.msra.mxu0 0
      %3011 = vmatprep.subr.bf16.mxu0 0
      %3012 = vmatpush1.bf16.msra.mxu0 0
      %3013 = vmatprep.subr.bf16.mxu0 0
      %3014 = vmatpush1.bf16.msra.mxu0 0
      %3015 = vmatprep.subr.bf16.mxu0 0
      %3016 = vmatpush1.bf16.msra.mxu0 0
      %3017 = vmatprep.subr.bf16.mxu0 0
      %3018 = vmatpush1.bf16.msra.mxu0 0
      %3019 = vmatprep.subr.bf16.mxu0 0
      %3020 = vmatpush1.bf16.msra.mxu0 0
      %3021 = vmatprep.subr.bf16.mxu0 0
      %3022 = vmatpush1.bf16.msra.mxu0 %v3002
      %3023 = vmatprep.subr.bf16.mxu0 0
      %3024 = vmatpush2.bf16.msra.mxu0 0
      %3025 = vmatprep.subr.bf16.mxu0 0
      %3026 = vmatpush2.bf16.msra.mxu0 0
      %3027 = vmatprep.subr.bf16.mxu0 0
      %3028 = vmatpush2.bf16.msra.mxu0 0
      %3029 = vmatprep.subr.bf16.mxu0 0
      %3030 = vmatpush2.bf16.msra.mxu0 0
      %3031 = vmatprep.subr.bf16.mxu0 0
      %3032 = vmatpush2.bf16.msra.mxu0 0
      %3033 = vmatprep.subr.bf16.mxu0 0
      %3034 = vmatpush2.bf16.msra.mxu0 0
      %3035 = vmatprep.subr.bf16.mxu0 0
      %3036 = vmatpush2.bf16.msra.mxu0 0
      %3037 = vmatprep.subr.bf16.mxu0 0
      %3038 = vmatpush2.bf16.msra.mxu0 0
      %3039 = vmatprep.mubr.bf16.mxu0 0
      %3040 = vmatmul.mubr.bf16.gmra.mxu0 %v3005
      %v3041 = vpop.f32.mrf.mxu0
      %v3042 = vadd.f32 0.0, %v3041
      %v3043 = vpop.f32.mrf.mxu0
      %v3044 = vpop.f32.mrf.mxu0
      %v3045 = vadd.f32 0.0, %v3044
      %v3046 = vpop.f32.mrf.mxu0
      %3047 = vdwg.mxu0
      %3048 = vrot.lane.b32.xlu0 %v1106, 64
      %v3049 = vpop.permute.xlu0 %3048
      %v3052 = vsel %vm1974, %v2342, 0
      %3054 = vmatprep.subr.bf16.mxu0 0
      %3055 = vmatpush1.bf16.msra.mxu0 0
      %3056 = vmatprep.subr.bf16.mxu0 0
      %3057 = vmatpush1.bf16.msra.mxu0 0
      %3058 = vmatprep.subr.bf16.mxu0 0
      %3059 = vmatpush1.bf16.msra.mxu0 0
      %3060 = vmatprep.subr.bf16.mxu0 0
      %3061 = vmatpush1.bf16.msra.mxu0 0
      %3062 = vmatprep.subr.bf16.mxu0 0
      %3063 = vmatpush1.bf16.msra.mxu0 0
      %3064 = vmatprep.subr.bf16.mxu0 0
      %3065 = vmatpush1.bf16.msra.mxu0 0
      %3066 = vmatprep.subr.bf16.mxu0 0
      %3067 = vmatpush1.bf16.msra.mxu0 0
      %3068 = vmatprep.subr.bf16.mxu0 0
      %3069 = vmatpush1.bf16.msra.mxu0 %v3049
      %3070 = vmatprep.subr.bf16.mxu0 0
      %3071 = vmatpush2.bf16.msra.mxu0 0
      %3072 = vmatprep.subr.bf16.mxu0 0
      %3073 = vmatpush2.bf16.msra.mxu0 0
      %3074 = vmatprep.subr.bf16.mxu0 0
      %3075 = vmatpush2.bf16.msra.mxu0 0
      %3076 = vmatprep.subr.bf16.mxu0 0
      %3077 = vmatpush2.bf16.msra.mxu0 0
      %3078 = vmatprep.subr.bf16.mxu0 0
      %3079 = vmatpush2.bf16.msra.mxu0 0
      %3080 = vmatprep.subr.bf16.mxu0 0
      %3081 = vmatpush2.bf16.msra.mxu0 0
      %3082 = vmatprep.subr.bf16.mxu0 0
      %3083 = vmatpush2.bf16.msra.mxu0 0
      %3084 = vmatprep.subr.bf16.mxu0 0
      %3085 = vmatpush2.bf16.msra.mxu0 0
      %3086 = vmatprep.mubr.bf16.mxu0 0
      %3087 = vmatmul.mubr.bf16.gmra.mxu0 %v3052
      %v3088 = vpop.f32.mrf.mxu0
      %v3089 = vadd.f32 0.0, %v3088
      %v3090 = vpop.f32.mrf.mxu0
      %v3091 = vpop.f32.mrf.mxu0
      %v3092 = vadd.f32 0.0, %v3091
      %v3093 = vpop.f32.mrf.mxu0
      %3094 = vdwg.mxu0
      %3095 = vrot.lane.b32.xlu0 %v1091, 120
      %v3096 = vpop.permute.xlu0 %3095
      %3097 = vrot.lane.b32.xlu0 %v1091, 88
      %v3098 = vpop.permute.xlu0 %3097
      %v3100 = vsel %vm1110, %v3096, 0
      %v3103 = vsel %vm1110, %v3098, 0
      %3105 = vmatprep.subr.bf16.mxu0 0
      %3106 = vmatpush1.bf16.xpose.msra.mxu0 0
      %3107 = vmatprep.subr.bf16.mxu0 0
      %3108 = vmatpush1.bf16.xpose.msra.mxu0 0
      %3109 = vmatprep.subr.bf16.mxu0 0
      %3110 = vmatpush1.bf16.xpose.msra.mxu0 0
      %3111 = vmatprep.subr.bf16.mxu0 0
      %3112 = vmatpush1.bf16.xpose.msra.mxu0 0
      %3113 = vmatprep.subr.bf16.mxu0 0
      %3114 = vmatpush1.bf16.xpose.msra.mxu0 0
      %3115 = vmatprep.subr.bf16.mxu0 0
      %3116 = vmatpush1.bf16.xpose.msra.mxu0 0
      %3117 = vmatprep.subr.bf16.mxu0 0
      %3118 = vmatpush1.bf16.xpose.msra.mxu0 0
      %3119 = vmatprep.subr.bf16.mxu0 0
      %3120 = vmatpush1.bf16.xpose.msra.mxu0 %v3103
      %3121 = vmatprep.subr.bf16.mxu0 0
      %3122 = vmatpush2.bf16.xpose.msra.mxu0 0
      %3123 = vmatprep.subr.bf16.mxu0 0
      %3124 = vmatpush2.bf16.xpose.msra.mxu0 0
      %3125 = vmatprep.subr.bf16.mxu0 0
      %3126 = vmatpush2.bf16.xpose.msra.mxu0 0
      %3127 = vmatprep.subr.bf16.mxu0 0
      %3128 = vmatpush2.bf16.xpose.msra.mxu0 0
      %3129 = vmatprep.subr.bf16.mxu0 0
      %3130 = vmatpush2.bf16.xpose.msra.mxu0 0
      %3131 = vmatprep.subr.bf16.mxu0 0
      %3132 = vmatpush2.bf16.xpose.msra.mxu0 0
      %3133 = vmatprep.subr.bf16.mxu0 0
      %3134 = vmatpush2.bf16.xpose.msra.mxu0 0
      %3135 = vmatprep.subr.bf16.mxu0 0
      %3136 = vmatpush2.bf16.xpose.msra.mxu0 0
      %3137 = vmatprep.mubr.bf16.mxu0 0
      %3138 = vmatmul.mubr.bf16.gmra.mxu0 %v3100
      %v3139 = vpop.f32.mrf.mxu0
      %v3140 = vadd.f32 0.0, %v3139
      %v3141 = vpop.f32.mrf.mxu0
      %v3142 = vpop.f32.mrf.mxu0
      %v3143 = vadd.f32 0.0, %v3142
      %v3144 = vpop.f32.mrf.mxu0
      %3145 = vdwg.mxu0
      %3146 = vrot.lane.b32.xlu0 %v1092, 120
      %v3147 = vpop.permute.xlu0 %3146
      %3148 = vrot.lane.b32.xlu0 %v1092, 88
      %v3149 = vpop.permute.xlu0 %3148
      %v3151 = vsel %vm1110, %v3147, 0
      %v3154 = vsel %vm1110, %v3149, 0
      %3156 = vmatprep.subr.bf16.mxu0 0
      %3157 = vmatpush1.bf16.xpose.msra.mxu0 0
      %3158 = vmatprep.subr.bf16.mxu0 0
      %3159 = vmatpush1.bf16.xpose.msra.mxu0 0
      %3160 = vmatprep.subr.bf16.mxu0 0
      %3161 = vmatpush1.bf16.xpose.msra.mxu0 0
      %3162 = vmatprep.subr.bf16.mxu0 0
      %3163 = vmatpush1.bf16.xpose.msra.mxu0 0
      %3164 = vmatprep.subr.bf16.mxu0 0
      %3165 = vmatpush1.bf16.xpose.msra.mxu0 0
      %3166 = vmatprep.subr.bf16.mxu0 0
      %3167 = vmatpush1.bf16.xpose.msra.mxu0 0
      %3168 = vmatprep.subr.bf16.mxu0 0
      %3169 = vmatpush1.bf16.xpose.msra.mxu0 0
      %3170 = vmatprep.subr.bf16.mxu0 0
      %3171 = vmatpush1.bf16.xpose.msra.mxu0 %v3154
      %3172 = vmatprep.subr.bf16.mxu0 0
      %3173 = vmatpush2.bf16.xpose.msra.mxu0 0
      %3174 = vmatprep.subr.bf16.mxu0 0
      %3175 = vmatpush2.bf16.xpose.msra.mxu0 0
      %3176 = vmatprep.subr.bf16.mxu0 0
      %3177 = vmatpush2.bf16.xpose.msra.mxu0 0
      %3178 = vmatprep.subr.bf16.mxu0 0
      %3179 = vmatpush2.bf16.xpose.msra.mxu0 0
      %3180 = vmatprep.subr.bf16.mxu0 0
      %3181 = vmatpush2.bf16.xpose.msra.mxu0 0
      %3182 = vmatprep.subr.bf16.mxu0 0
      %3183 = vmatpush2.bf16.xpose.msra.mxu0 0
      %3184 = vmatprep.subr.bf16.mxu0 0
      %3185 = vmatpush2.bf16.xpose.msra.mxu0 0
      %3186 = vmatprep.subr.bf16.mxu0 0
      %3187 = vmatpush2.bf16.xpose.msra.mxu0 0
      %3188 = vmatprep.mubr.bf16.mxu0 0
      %3189 = vmatmul.mubr.bf16.gmra.mxu0 %v3151
      %v3190 = vpop.f32.mrf.mxu0
      %v3191 = vadd.f32 0.0, %v3190
      %v3192 = vpop.f32.mrf.mxu0
      %v3193 = vpop.f32.mrf.mxu0
      %v3194 = vadd.f32 0.0, %v3193
      %v3195 = vpop.f32.mrf.mxu0
      %3196 = vdwg.mxu0
      %3197 = vrot.lane.b32.xlu0 %v1093, 120
      %v3198 = vpop.permute.xlu0 %3197
      %3199 = vrot.lane.b32.xlu0 %v1093, 88
      %v3200 = vpop.permute.xlu0 %3199
      %v3202 = vsel %vm1110, %v3198, 0
      %v3205 = vsel %vm1110, %v3200, 0
      %3207 = vmatprep.subr.bf16.mxu0 0
      %3208 = vmatpush1.bf16.xpose.msra.mxu0 0
      %3209 = vmatprep.subr.bf16.mxu0 0
      %3210 = vmatpush1.bf16.xpose.msra.mxu0 0
      %3211 = vmatprep.subr.bf16.mxu0 0
      %3212 = vmatpush1.bf16.xpose.msra.mxu0 0
      %3213 = vmatprep.subr.bf16.mxu0 0
      %3214 = vmatpush1.bf16.xpose.msra.mxu0 0
      %3215 = vmatprep.subr.bf16.mxu0 0
      %3216 = vmatpush1.bf16.xpose.msra.mxu0 0
      %3217 = vmatprep.subr.bf16.mxu0 0
      %3218 = vmatpush1.bf16.xpose.msra.mxu0 0
      %3219 = vmatprep.subr.bf16.mxu0 0
      %3220 = vmatpush1.bf16.xpose.msra.mxu0 0
      %3221 = vmatprep.subr.bf16.mxu0 0
      %3222 = vmatpush1.bf16.xpose.msra.mxu0 %v3205
      %3223 = vmatprep.subr.bf16.mxu0 0
      %3224 = vmatpush2.bf16.xpose.msra.mxu0 0
      %3225 = vmatprep.subr.bf16.mxu0 0
      %3226 = vmatpush2.bf16.xpose.msra.mxu0 0
      %3227 = vmatprep.subr.bf16.mxu0 0
      %3228 = vmatpush2.bf16.xpose.msra.mxu0 0
      %3229 = vmatprep.subr.bf16.mxu0 0
      %3230 = vmatpush2.bf16.xpose.msra.mxu0 0
      %3231 = vmatprep.subr.bf16.mxu0 0
      %3232 = vmatpush2.bf16.xpose.msra.mxu0 0
      %3233 = vmatprep.subr.bf16.mxu0 0
      %3234 = vmatpush2.bf16.xpose.msra.mxu0 0
      %3235 = vmatprep.subr.bf16.mxu0 0
      %3236 = vmatpush2.bf16.xpose.msra.mxu0 0
      %3237 = vmatprep.subr.bf16.mxu0 0
      %3238 = vmatpush2.bf16.xpose.msra.mxu0 0
      %3239 = vmatprep.mubr.bf16.mxu0 0
      %3240 = vmatmul.mubr.bf16.gmra.mxu0 %v3202
      %v3241 = vpop.f32.mrf.mxu0
      %v3242 = vadd.f32 0.0, %v3241
      %v3243 = vpop.f32.mrf.mxu0
      %v3244 = vpop.f32.mrf.mxu0
      %v3245 = vadd.f32 0.0, %v3244
      %v3246 = vpop.f32.mrf.mxu0
      %3247 = vdwg.mxu0
      %3248 = vrot.lane.b32.xlu0 %v1094, 120
      %v3249 = vpop.permute.xlu0 %3248
      %3250 = vrot.lane.b32.xlu0 %v1094, 88
      %v3251 = vpop.permute.xlu0 %3250
      %v3253 = vsel %vm1110, %v3249, 0
      %v3256 = vsel %vm1110, %v3251, 0
      %3258 = vmatprep.subr.bf16.mxu0 0
      %3259 = vmatpush1.bf16.xpose.msra.mxu0 0
      %3260 = vmatprep.subr.bf16.mxu0 0
      %3261 = vmatpush1.bf16.xpose.msra.mxu0 0
      %3262 = vmatprep.subr.bf16.mxu0 0
      %3263 = vmatpush1.bf16.xpose.msra.mxu0 0
      %3264 = vmatprep.subr.bf16.mxu0 0
      %3265 = vmatpush1.bf16.xpose.msra.mxu0 0
      %3266 = vmatprep.subr.bf16.mxu0 0
      %3267 = vmatpush1.bf16.xpose.msra.mxu0 0
      %3268 = vmatprep.subr.bf16.mxu0 0
      %3269 = vmatpush1.bf16.xpose.msra.mxu0 0
      %3270 = vmatprep.subr.bf16.mxu0 0
      %3271 = vmatpush1.bf16.xpose.msra.mxu0 0
      %3272 = vmatprep.subr.bf16.mxu0 0
      %3273 = vmatpush1.bf16.xpose.msra.mxu0 %v3256
      %3274 = vmatprep.subr.bf16.mxu0 0
      %3275 = vmatpush2.bf16.xpose.msra.mxu0 0
      %3276 = vmatprep.subr.bf16.mxu0 0
      %3277 = vmatpush2.bf16.xpose.msra.mxu0 0
      %3278 = vmatprep.subr.bf16.mxu0 0
      %3279 = vmatpush2.bf16.xpose.msra.mxu0 0
      %3280 = vmatprep.subr.bf16.mxu0 0
      %3281 = vmatpush2.bf16.xpose.msra.mxu0 0
      %3282 = vmatprep.subr.bf16.mxu0 0
      %3283 = vmatpush2.bf16.xpose.msra.mxu0 0
      %3284 = vmatprep.subr.bf16.mxu0 0
      %3285 = vmatpush2.bf16.xpose.msra.mxu0 0
      %3286 = vmatprep.subr.bf16.mxu0 0
      %3287 = vmatpush2.bf16.xpose.msra.mxu0 0
      %3288 = vmatprep.subr.bf16.mxu0 0
      %3289 = vmatpush2.bf16.xpose.msra.mxu0 0
      %3290 = vmatprep.mubr.bf16.mxu0 0
      %3291 = vmatmul.mubr.bf16.gmra.mxu0 %v3253
      %v3292 = vpop.f32.mrf.mxu0
      %v3293 = vadd.f32 0.0, %v3292
      %v3294 = vpop.f32.mrf.mxu0
      %v3295 = vpop.f32.mrf.mxu0
      %v3296 = vadd.f32 0.0, %v3295
      %v3297 = vpop.f32.mrf.mxu0
      %3298 = vdwg.mxu0
      %3299 = vrot.lane.b32.xlu0 %v1095, 120
      %v3300 = vpop.permute.xlu0 %3299
      %3301 = vrot.lane.b32.xlu0 %v1095, 88
      %v3302 = vpop.permute.xlu0 %3301
      %v3304 = vsel %vm1110, %v3300, 0
      %v3307 = vsel %vm1110, %v3302, 0
      %3309 = vmatprep.subr.bf16.mxu0 0
      %3310 = vmatpush1.bf16.xpose.msra.mxu0 0
      %3311 = vmatprep.subr.bf16.mxu0 0
      %3312 = vmatpush1.bf16.xpose.msra.mxu0 0
      %3313 = vmatprep.subr.bf16.mxu0 0
      %3314 = vmatpush1.bf16.xpose.msra.mxu0 0
      %3315 = vmatprep.subr.bf16.mxu0 0
      %3316 = vmatpush1.bf16.xpose.msra.mxu0 0
      %3317 = vmatprep.subr.bf16.mxu0 0
      %3318 = vmatpush1.bf16.xpose.msra.mxu0 0
      %3319 = vmatprep.subr.bf16.mxu0 0
      %3320 = vmatpush1.bf16.xpose.msra.mxu0 0
      %3321 = vmatprep.subr.bf16.mxu0 0
      %3322 = vmatpush1.bf16.xpose.msra.mxu0 0
      %3323 = vmatprep.subr.bf16.mxu0 0
      %3324 = vmatpush1.bf16.xpose.msra.mxu0 %v3307
      %3325 = vmatprep.subr.bf16.mxu0 0
      %3326 = vmatpush2.bf16.xpose.msra.mxu0 0
      %3327 = vmatprep.subr.bf16.mxu0 0
      %3328 = vmatpush2.bf16.xpose.msra.mxu0 0
      %3329 = vmatprep.subr.bf16.mxu0 0
      %3330 = vmatpush2.bf16.xpose.msra.mxu0 0
      %3331 = vmatprep.subr.bf16.mxu0 0
      %3332 = vmatpush2.bf16.xpose.msra.mxu0 0
      %3333 = vmatprep.subr.bf16.mxu0 0
      %3334 = vmatpush2.bf16.xpose.msra.mxu0 0
      %3335 = vmatprep.subr.bf16.mxu0 0
      %3336 = vmatpush2.bf16.xpose.msra.mxu0 0
      %3337 = vmatprep.subr.bf16.mxu0 0
      %3338 = vmatpush2.bf16.xpose.msra.mxu0 0
      %3339 = vmatprep.subr.bf16.mxu0 0
      %3340 = vmatpush2.bf16.xpose.msra.mxu0 0
      %3341 = vmatprep.mubr.bf16.mxu0 0
      %3342 = vmatmul.mubr.bf16.gmra.mxu0 %v3304
      %v3343 = vpop.f32.mrf.mxu0
      %v3344 = vadd.f32 0.0, %v3343
      %v3345 = vpop.f32.mrf.mxu0
      %v3346 = vpop.f32.mrf.mxu0
      %v3347 = vadd.f32 0.0, %v3346
      %v3348 = vpop.f32.mrf.mxu0
      %3349 = vdwg.mxu0
      %3350 = vrot.lane.b32.xlu0 %v1096, 120
      %v3351 = vpop.permute.xlu0 %3350
      %3352 = vrot.lane.b32.xlu0 %v1096, 88
      %v3353 = vpop.permute.xlu0 %3352
      %v3355 = vsel %vm1110, %v3351, 0
      %v3358 = vsel %vm1110, %v3353, 0
      %3360 = vmatprep.subr.bf16.mxu0 0
      %3361 = vmatpush1.bf16.xpose.msra.mxu0 0
      %3362 = vmatprep.subr.bf16.mxu0 0
      %3363 = vmatpush1.bf16.xpose.msra.mxu0 0
      %3364 = vmatprep.subr.bf16.mxu0 0
      %3365 = vmatpush1.bf16.xpose.msra.mxu0 0
      %3366 = vmatprep.subr.bf16.mxu0 0
      %3367 = vmatpush1.bf16.xpose.msra.mxu0 0
      %3368 = vmatprep.subr.bf16.mxu0 0
      %3369 = vmatpush1.bf16.xpose.msra.mxu0 0
      %3370 = vmatprep.subr.bf16.mxu0 0
      %3371 = vmatpush1.bf16.xpose.msra.mxu0 0
      %3372 = vmatprep.subr.bf16.mxu0 0
      %3373 = vmatpush1.bf16.xpose.msra.mxu0 0
      %3374 = vmatprep.subr.bf16.mxu0 0
      %3375 = vmatpush1.bf16.xpose.msra.mxu0 %v3358
      %3376 = vmatprep.subr.bf16.mxu0 0
      %3377 = vmatpush2.bf16.xpose.msra.mxu0 0
      %3378 = vmatprep.subr.bf16.mxu0 0
      %3379 = vmatpush2.bf16.xpose.msra.mxu0 0
      %3380 = vmatprep.subr.bf16.mxu0 0
      %3381 = vmatpush2.bf16.xpose.msra.mxu0 0
      %3382 = vmatprep.subr.bf16.mxu0 0
      %3383 = vmatpush2.bf16.xpose.msra.mxu0 0
      %3384 = vmatprep.subr.bf16.mxu0 0
      %3385 = vmatpush2.bf16.xpose.msra.mxu0 0
      %3386 = vmatprep.subr.bf16.mxu0 0
      %3387 = vmatpush2.bf16.xpose.msra.mxu0 0
      %3388 = vmatprep.subr.bf16.mxu0 0
      %3389 = vmatpush2.bf16.xpose.msra.mxu0 0
      %3390 = vmatprep.subr.bf16.mxu0 0
      %3391 = vmatpush2.bf16.xpose.msra.mxu0 0
      %3392 = vmatprep.mubr.bf16.mxu0 0
      %3393 = vmatmul.mubr.bf16.gmra.mxu0 %v3355
      %v3394 = vpop.f32.mrf.mxu0
      %v3395 = vadd.f32 0.0, %v3394
      %v3396 = vpop.f32.mrf.mxu0
      %v3397 = vpop.f32.mrf.mxu0
      %v3398 = vadd.f32 0.0, %v3397
      %v3399 = vpop.f32.mrf.mxu0
      %3400 = vdwg.mxu0
      %3401 = vrot.lane.b32.xlu0 %v1097, 120
      %v3402 = vpop.permute.xlu0 %3401
      %3403 = vrot.lane.b32.xlu0 %v1097, 88
      %v3404 = vpop.permute.xlu0 %3403
      %v3406 = vsel %vm1110, %v3402, 0
      %v3409 = vsel %vm1110, %v3404, 0
      %3411 = vmatprep.subr.bf16.mxu0 0
      %3412 = vmatpush1.bf16.xpose.msra.mxu0 0
      %3413 = vmatprep.subr.bf16.mxu0 0
      %3414 = vmatpush1.bf16.xpose.msra.mxu0 0
      %3415 = vmatprep.subr.bf16.mxu0 0
      %3416 = vmatpush1.bf16.xpose.msra.mxu0 0
      %3417 = vmatprep.subr.bf16.mxu0 0
      %3418 = vmatpush1.bf16.xpose.msra.mxu0 0
      %3419 = vmatprep.subr.bf16.mxu0 0
      %3420 = vmatpush1.bf16.xpose.msra.mxu0 0
      %3421 = vmatprep.subr.bf16.mxu0 0
      %3422 = vmatpush1.bf16.xpose.msra.mxu0 0
      %3423 = vmatprep.subr.bf16.mxu0 0
      %3424 = vmatpush1.bf16.xpose.msra.mxu0 0
      %3425 = vmatprep.subr.bf16.mxu0 0
      %3426 = vmatpush1.bf16.xpose.msra.mxu0 %v3409
      %3427 = vmatprep.subr.bf16.mxu0 0
      %3428 = vmatpush2.bf16.xpose.msra.mxu0 0
      %3429 = vmatprep.subr.bf16.mxu0 0
      %3430 = vmatpush2.bf16.xpose.msra.mxu0 0
      %3431 = vmatprep.subr.bf16.mxu0 0
      %3432 = vmatpush2.bf16.xpose.msra.mxu0 0
      %3433 = vmatprep.subr.bf16.mxu0 0
      %3434 = vmatpush2.bf16.xpose.msra.mxu0 0
      %3435 = vmatprep.subr.bf16.mxu0 0
      %3436 = vmatpush2.bf16.xpose.msra.mxu0 0
      %3437 = vmatprep.subr.bf16.mxu0 0
      %3438 = vmatpush2.bf16.xpose.msra.mxu0 0
      %3439 = vmatprep.subr.bf16.mxu0 0
      %3440 = vmatpush2.bf16.xpose.msra.mxu0 0
      %3441 = vmatprep.subr.bf16.mxu0 0
      %3442 = vmatpush2.bf16.xpose.msra.mxu0 0
      %3443 = vmatprep.mubr.bf16.mxu0 0
      %3444 = vmatmul.mubr.bf16.gmra.mxu0 %v3406
      %v3445 = vpop.f32.mrf.mxu0
      %v3446 = vadd.f32 0.0, %v3445
      %v3447 = vpop.f32.mrf.mxu0
      %v3448 = vpop.f32.mrf.mxu0
      %v3449 = vadd.f32 0.0, %v3448
      %v3450 = vpop.f32.mrf.mxu0
      %3451 = vdwg.mxu0
      %3452 = vrot.lane.b32.xlu0 %v1098, 120
      %v3453 = vpop.permute.xlu0 %3452
      %3454 = vrot.lane.b32.xlu0 %v1098, 88
      %v3455 = vpop.permute.xlu0 %3454
      %v3457 = vsel %vm1110, %v3453, 0
      %v3460 = vsel %vm1110, %v3455, 0
      %3462 = vmatprep.subr.bf16.mxu0 0
      %3463 = vmatpush1.bf16.xpose.msra.mxu0 0
      %3464 = vmatprep.subr.bf16.mxu0 0
      %3465 = vmatpush1.bf16.xpose.msra.mxu0 0
      %3466 = vmatprep.subr.bf16.mxu0 0
      %3467 = vmatpush1.bf16.xpose.msra.mxu0 0
      %3468 = vmatprep.subr.bf16.mxu0 0
      %3469 = vmatpush1.bf16.xpose.msra.mxu0 0
      %3470 = vmatprep.subr.bf16.mxu0 0
      %3471 = vmatpush1.bf16.xpose.msra.mxu0 0
      %3472 = vmatprep.subr.bf16.mxu0 0
      %3473 = vmatpush1.bf16.xpose.msra.mxu0 0
      %3474 = vmatprep.subr.bf16.mxu0 0
      %3475 = vmatpush1.bf16.xpose.msra.mxu0 0
      %3476 = vmatprep.subr.bf16.mxu0 0
      %3477 = vmatpush1.bf16.xpose.msra.mxu0 %v3460
      %3478 = vmatprep.subr.bf16.mxu0 0
      %3479 = vmatpush2.bf16.xpose.msra.mxu0 0
      %3480 = vmatprep.subr.bf16.mxu0 0
      %3481 = vmatpush2.bf16.xpose.msra.mxu0 0
      %3482 = vmatprep.subr.bf16.mxu0 0
      %3483 = vmatpush2.bf16.xpose.msra.mxu0 0
      %3484 = vmatprep.subr.bf16.mxu0 0
      %3485 = vmatpush2.bf16.xpose.msra.mxu0 0
      %3486 = vmatprep.subr.bf16.mxu0 0
      %3487 = vmatpush2.bf16.xpose.msra.mxu0 0
      %3488 = vmatprep.subr.bf16.mxu0 0
      %3489 = vmatpush2.bf16.xpose.msra.mxu0 0
      %3490 = vmatprep.subr.bf16.mxu0 0
      %3491 = vmatpush2.bf16.xpose.msra.mxu0 0
      %3492 = vmatprep.subr.bf16.mxu0 0
      %3493 = vmatpush2.bf16.xpose.msra.mxu0 0
      %3494 = vmatprep.mubr.bf16.mxu0 0
      %3495 = vmatmul.mubr.bf16.gmra.mxu0 %v3457
      %v3496 = vpop.f32.mrf.mxu0
      %v3497 = vadd.f32 0.0, %v3496
      %v3498 = vpop.f32.mrf.mxu0
      %v3499 = vpop.f32.mrf.mxu0
      %v3500 = vadd.f32 0.0, %v3499
      %v3501 = vpop.f32.mrf.mxu0
      %3502 = vdwg.mxu0
      %3503 = vrot.lane.b32.xlu0 %v1099, 120
      %v3504 = vpop.permute.xlu0 %3503
      %3505 = vrot.lane.b32.xlu0 %v1099, 88
      %v3506 = vpop.permute.xlu0 %3505
      %v3508 = vsel %vm1110, %v3504, 0
      %v3511 = vsel %vm1110, %v3506, 0
      %3513 = vmatprep.subr.bf16.mxu0 0
      %3514 = vmatpush1.bf16.xpose.msra.mxu0 0
      %3515 = vmatprep.subr.bf16.mxu0 0
      %3516 = vmatpush1.bf16.xpose.msra.mxu0 0
      %3517 = vmatprep.subr.bf16.mxu0 0
      %3518 = vmatpush1.bf16.xpose.msra.mxu0 0
      %3519 = vmatprep.subr.bf16.mxu0 0
      %3520 = vmatpush1.bf16.xpose.msra.mxu0 0
      %3521 = vmatprep.subr.bf16.mxu0 0
      %3522 = vmatpush1.bf16.xpose.msra.mxu0 0
      %3523 = vmatprep.subr.bf16.mxu0 0
      %3524 = vmatpush1.bf16.xpose.msra.mxu0 0
      %3525 = vmatprep.subr.bf16.mxu0 0
      %3526 = vmatpush1.bf16.xpose.msra.mxu0 0
      %3527 = vmatprep.subr.bf16.mxu0 0
      %3528 = vmatpush1.bf16.xpose.msra.mxu0 %v3511
      %3529 = vmatprep.subr.bf16.mxu0 0
      %3530 = vmatpush2.bf16.xpose.msra.mxu0 0
      %3531 = vmatprep.subr.bf16.mxu0 0
      %3532 = vmatpush2.bf16.xpose.msra.mxu0 0
      %3533 = vmatprep.subr.bf16.mxu0 0
      %3534 = vmatpush2.bf16.xpose.msra.mxu0 0
      %3535 = vmatprep.subr.bf16.mxu0 0
      %3536 = vmatpush2.bf16.xpose.msra.mxu0 0
      %3537 = vmatprep.subr.bf16.mxu0 0
      %3538 = vmatpush2.bf16.xpose.msra.mxu0 0
      %3539 = vmatprep.subr.bf16.mxu0 0
      %3540 = vmatpush2.bf16.xpose.msra.mxu0 0
      %3541 = vmatprep.subr.bf16.mxu0 0
      %3542 = vmatpush2.bf16.xpose.msra.mxu0 0
      %3543 = vmatprep.subr.bf16.mxu0 0
      %3544 = vmatpush2.bf16.xpose.msra.mxu0 0
      %3545 = vmatprep.mubr.bf16.mxu0 0
      %3546 = vmatmul.mubr.bf16.gmra.mxu0 %v3508
      %v3547 = vpop.f32.mrf.mxu0
      %v3548 = vadd.f32 0.0, %v3547
      %v3549 = vpop.f32.mrf.mxu0
      %v3550 = vpop.f32.mrf.mxu0
      %v3551 = vadd.f32 0.0, %v3550
      %v3552 = vpop.f32.mrf.mxu0
      %3553 = vdwg.mxu0
      %3554 = vrot.lane.b32.xlu0 %v1100, 120
      %v3555 = vpop.permute.xlu0 %3554
      %3556 = vrot.lane.b32.xlu0 %v1100, 88
      %v3557 = vpop.permute.xlu0 %3556
      %v3559 = vsel %vm1110, %v3555, 0
      %v3562 = vsel %vm1110, %v3557, 0
      %3564 = vmatprep.subr.bf16.mxu0 0
      %3565 = vmatpush1.bf16.xpose.msra.mxu0 0
      %3566 = vmatprep.subr.bf16.mxu0 0
      %3567 = vmatpush1.bf16.xpose.msra.mxu0 0
      %3568 = vmatprep.subr.bf16.mxu0 0
      %3569 = vmatpush1.bf16.xpose.msra.mxu0 0
      %3570 = vmatprep.subr.bf16.mxu0 0
      %3571 = vmatpush1.bf16.xpose.msra.mxu0 0
      %3572 = vmatprep.subr.bf16.mxu0 0
      %3573 = vmatpush1.bf16.xpose.msra.mxu0 0
      %3574 = vmatprep.subr.bf16.mxu0 0
      %3575 = vmatpush1.bf16.xpose.msra.mxu0 0
      %3576 = vmatprep.subr.bf16.mxu0 0
      %3577 = vmatpush1.bf16.xpose.msra.mxu0 0
      %3578 = vmatprep.subr.bf16.mxu0 0
      %3579 = vmatpush1.bf16.xpose.msra.mxu0 %v3562
      %3580 = vmatprep.subr.bf16.mxu0 0
      %3581 = vmatpush2.bf16.xpose.msra.mxu0 0
      %3582 = vmatprep.subr.bf16.mxu0 0
      %3583 = vmatpush2.bf16.xpose.msra.mxu0 0
      %3584 = vmatprep.subr.bf16.mxu0 0
      %3585 = vmatpush2.bf16.xpose.msra.mxu0 0
      %3586 = vmatprep.subr.bf16.mxu0 0
      %3587 = vmatpush2.bf16.xpose.msra.mxu0 0
      %3588 = vmatprep.subr.bf16.mxu0 0
      %3589 = vmatpush2.bf16.xpose.msra.mxu0 0
      %3590 = vmatprep.subr.bf16.mxu0 0
      %3591 = vmatpush2.bf16.xpose.msra.mxu0 0
      %3592 = vmatprep.subr.bf16.mxu0 0
      %3593 = vmatpush2.bf16.xpose.msra.mxu0 0
      %3594 = vmatprep.subr.bf16.mxu0 0
      %3595 = vmatpush2.bf16.xpose.msra.mxu0 0
      %3596 = vmatprep.mubr.bf16.mxu0 0
      %3597 = vmatmul.mubr.bf16.gmra.mxu0 %v3559
      %v3598 = vpop.f32.mrf.mxu0
      %v3599 = vadd.f32 0.0, %v3598
      %v3600 = vpop.f32.mrf.mxu0
      %v3601 = vpop.f32.mrf.mxu0
      %v3602 = vadd.f32 0.0, %v3601
      %v3603 = vpop.f32.mrf.mxu0
      %3604 = vdwg.mxu0
      %3605 = vrot.lane.b32.xlu0 %v1101, 120
      %v3606 = vpop.permute.xlu0 %3605
      %3607 = vrot.lane.b32.xlu0 %v1101, 88
      %v3608 = vpop.permute.xlu0 %3607
      %v3610 = vsel %vm1110, %v3606, 0
      %v3613 = vsel %vm1110, %v3608, 0
      %3615 = vmatprep.subr.bf16.mxu0 0
      %3616 = vmatpush1.bf16.xpose.msra.mxu0 0
      %3617 = vmatprep.subr.bf16.mxu0 0
      %3618 = vmatpush1.bf16.xpose.msra.mxu0 0
      %3619 = vmatprep.subr.bf16.mxu0 0
      %3620 = vmatpush1.bf16.xpose.msra.mxu0 0
      %3621 = vmatprep.subr.bf16.mxu0 0
      %3622 = vmatpush1.bf16.xpose.msra.mxu0 0
      %3623 = vmatprep.subr.bf16.mxu0 0
      %3624 = vmatpush1.bf16.xpose.msra.mxu0 0
      %3625 = vmatprep.subr.bf16.mxu0 0
      %3626 = vmatpush1.bf16.xpose.msra.mxu0 0
      %3627 = vmatprep.subr.bf16.mxu0 0
      %3628 = vmatpush1.bf16.xpose.msra.mxu0 0
      %3629 = vmatprep.subr.bf16.mxu0 0
      %3630 = vmatpush1.bf16.xpose.msra.mxu0 %v3613
      %3631 = vmatprep.subr.bf16.mxu0 0
      %3632 = vmatpush2.bf16.xpose.msra.mxu0 0
      %3633 = vmatprep.subr.bf16.mxu0 0
      %3634 = vmatpush2.bf16.xpose.msra.mxu0 0
      %3635 = vmatprep.subr.bf16.mxu0 0
      %3636 = vmatpush2.bf16.xpose.msra.mxu0 0
      %3637 = vmatprep.subr.bf16.mxu0 0
      %3638 = vmatpush2.bf16.xpose.msra.mxu0 0
      %3639 = vmatprep.subr.bf16.mxu0 0
      %3640 = vmatpush2.bf16.xpose.msra.mxu0 0
      %3641 = vmatprep.subr.bf16.mxu0 0
      %3642 = vmatpush2.bf16.xpose.msra.mxu0 0
      %3643 = vmatprep.subr.bf16.mxu0 0
      %3644 = vmatpush2.bf16.xpose.msra.mxu0 0
      %3645 = vmatprep.subr.bf16.mxu0 0
      %3646 = vmatpush2.bf16.xpose.msra.mxu0 0
      %3647 = vmatprep.mubr.bf16.mxu0 0
      %3648 = vmatmul.mubr.bf16.gmra.mxu0 %v3610
      %v3649 = vpop.f32.mrf.mxu0
      %v3650 = vadd.f32 0.0, %v3649
      %v3651 = vpop.f32.mrf.mxu0
      %v3652 = vpop.f32.mrf.mxu0
      %v3653 = vadd.f32 0.0, %v3652
      %v3654 = vpop.f32.mrf.mxu0
      %3655 = vdwg.mxu0
      %3656 = vrot.lane.b32.xlu0 %v1102, 120
      %v3657 = vpop.permute.xlu0 %3656
      %3658 = vrot.lane.b32.xlu0 %v1102, 88
      %v3659 = vpop.permute.xlu0 %3658
      %v3661 = vsel %vm1110, %v3657, 0
      %v3664 = vsel %vm1110, %v3659, 0
      %3666 = vmatprep.subr.bf16.mxu0 0
      %3667 = vmatpush1.bf16.xpose.msra.mxu0 0
      %3668 = vmatprep.subr.bf16.mxu0 0
      %3669 = vmatpush1.bf16.xpose.msra.mxu0 0
      %3670 = vmatprep.subr.bf16.mxu0 0
      %3671 = vmatpush1.bf16.xpose.msra.mxu0 0
      %3672 = vmatprep.subr.bf16.mxu0 0
      %3673 = vmatpush1.bf16.xpose.msra.mxu0 0
      %3674 = vmatprep.subr.bf16.mxu0 0
      %3675 = vmatpush1.bf16.xpose.msra.mxu0 0
      %3676 = vmatprep.subr.bf16.mxu0 0
      %3677 = vmatpush1.bf16.xpose.msra.mxu0 0
      %3678 = vmatprep.subr.bf16.mxu0 0
      %3679 = vmatpush1.bf16.xpose.msra.mxu0 0
      %3680 = vmatprep.subr.bf16.mxu0 0
      %3681 = vmatpush1.bf16.xpose.msra.mxu0 %v3664
      %3682 = vmatprep.subr.bf16.mxu0 0
      %3683 = vmatpush2.bf16.xpose.msra.mxu0 0
      %3684 = vmatprep.subr.bf16.mxu0 0
      %3685 = vmatpush2.bf16.xpose.msra.mxu0 0
      %3686 = vmatprep.subr.bf16.mxu0 0
      %3687 = vmatpush2.bf16.xpose.msra.mxu0 0
      %3688 = vmatprep.subr.bf16.mxu0 0
      %3689 = vmatpush2.bf16.xpose.msra.mxu0 0
      %3690 = vmatprep.subr.bf16.mxu0 0
      %3691 = vmatpush2.bf16.xpose.msra.mxu0 0
      %3692 = vmatprep.subr.bf16.mxu0 0
      %3693 = vmatpush2.bf16.xpose.msra.mxu0 0
      %3694 = vmatprep.subr.bf16.mxu0 0
      %3695 = vmatpush2.bf16.xpose.msra.mxu0 0
      %3696 = vmatprep.subr.bf16.mxu0 0
      %3697 = vmatpush2.bf16.xpose.msra.mxu0 0
      %3698 = vmatprep.mubr.bf16.mxu0 0
      %3699 = vmatmul.mubr.bf16.gmra.mxu0 %v3661
      %v3700 = vpop.f32.mrf.mxu0
      %v3701 = vadd.f32 0.0, %v3700
      %v3702 = vpop.f32.mrf.mxu0
      %v3703 = vpop.f32.mrf.mxu0
      %v3704 = vadd.f32 0.0, %v3703
      %v3705 = vpop.f32.mrf.mxu0
      %3706 = vdwg.mxu0
      %3707 = vrot.lane.b32.xlu0 %v1103, 120
      %v3708 = vpop.permute.xlu0 %3707
      %3709 = vrot.lane.b32.xlu0 %v1103, 88
      %v3710 = vpop.permute.xlu0 %3709
      %v3712 = vsel %vm1110, %v3708, 0
      %v3715 = vsel %vm1110, %v3710, 0
      %3717 = vmatprep.subr.bf16.mxu0 0
      %3718 = vmatpush1.bf16.xpose.msra.mxu0 0
      %3719 = vmatprep.subr.bf16.mxu0 0
      %3720 = vmatpush1.bf16.xpose.msra.mxu0 0
      %3721 = vmatprep.subr.bf16.mxu0 0
      %3722 = vmatpush1.bf16.xpose.msra.mxu0 0
      %3723 = vmatprep.subr.bf16.mxu0 0
      %3724 = vmatpush1.bf16.xpose.msra.mxu0 0
      %3725 = vmatprep.subr.bf16.mxu0 0
      %3726 = vmatpush1.bf16.xpose.msra.mxu0 0
      %3727 = vmatprep.subr.bf16.mxu0 0
      %3728 = vmatpush1.bf16.xpose.msra.mxu0 0
      %3729 = vmatprep.subr.bf16.mxu0 0
      %3730 = vmatpush1.bf16.xpose.msra.mxu0 0
      %3731 = vmatprep.subr.bf16.mxu0 0
      %3732 = vmatpush1.bf16.xpose.msra.mxu0 %v3715
      %3733 = vmatprep.subr.bf16.mxu0 0
      %3734 = vmatpush2.bf16.xpose.msra.mxu0 0
      %3735 = vmatprep.subr.bf16.mxu0 0
      %3736 = vmatpush2.bf16.xpose.msra.mxu0 0
      %3737 = vmatprep.subr.bf16.mxu0 0
      %3738 = vmatpush2.bf16.xpose.msra.mxu0 0
      %3739 = vmatprep.subr.bf16.mxu0 0
      %3740 = vmatpush2.bf16.xpose.msra.mxu0 0
      %3741 = vmatprep.subr.bf16.mxu0 0
      %3742 = vmatpush2.bf16.xpose.msra.mxu0 0
      %3743 = vmatprep.subr.bf16.mxu0 0
      %3744 = vmatpush2.bf16.xpose.msra.mxu0 0
      %3745 = vmatprep.subr.bf16.mxu0 0
      %3746 = vmatpush2.bf16.xpose.msra.mxu0 0
      %3747 = vmatprep.subr.bf16.mxu0 0
      %3748 = vmatpush2.bf16.xpose.msra.mxu0 0
      %3749 = vmatprep.mubr.bf16.mxu0 0
      %3750 = vmatmul.mubr.bf16.gmra.mxu0 %v3712
      %v3751 = vpop.f32.mrf.mxu0
      %v3752 = vadd.f32 0.0, %v3751
      %v3753 = vpop.f32.mrf.mxu0
      %v3754 = vpop.f32.mrf.mxu0
      %v3755 = vadd.f32 0.0, %v3754
      %v3756 = vpop.f32.mrf.mxu0
      %3757 = vdwg.mxu0
      %3758 = vrot.lane.b32.xlu0 %v1104, 120
      %v3759 = vpop.permute.xlu0 %3758
      %3760 = vrot.lane.b32.xlu0 %v1104, 88
      %v3761 = vpop.permute.xlu0 %3760
      %v3763 = vsel %vm1110, %v3759, 0
      %v3766 = vsel %vm1110, %v3761, 0
      %3768 = vmatprep.subr.bf16.mxu0 0
      %3769 = vmatpush1.bf16.xpose.msra.mxu0 0
      %3770 = vmatprep.subr.bf16.mxu0 0
      %3771 = vmatpush1.bf16.xpose.msra.mxu0 0
      %3772 = vmatprep.subr.bf16.mxu0 0
      %3773 = vmatpush1.bf16.xpose.msra.mxu0 0
      %3774 = vmatprep.subr.bf16.mxu0 0
      %3775 = vmatpush1.bf16.xpose.msra.mxu0 0
      %3776 = vmatprep.subr.bf16.mxu0 0
      %3777 = vmatpush1.bf16.xpose.msra.mxu0 0
      %3778 = vmatprep.subr.bf16.mxu0 0
      %3779 = vmatpush1.bf16.xpose.msra.mxu0 0
      %3780 = vmatprep.subr.bf16.mxu0 0
      %3781 = vmatpush1.bf16.xpose.msra.mxu0 0
      %3782 = vmatprep.subr.bf16.mxu0 0
      %3783 = vmatpush1.bf16.xpose.msra.mxu0 %v3766
      %3784 = vmatprep.subr.bf16.mxu0 0
      %3785 = vmatpush2.bf16.xpose.msra.mxu0 0
      %3786 = vmatprep.subr.bf16.mxu0 0
      %3787 = vmatpush2.bf16.xpose.msra.mxu0 0
      %3788 = vmatprep.subr.bf16.mxu0 0
      %3789 = vmatpush2.bf16.xpose.msra.mxu0 0
      %3790 = vmatprep.subr.bf16.mxu0 0
      %3791 = vmatpush2.bf16.xpose.msra.mxu0 0
      %3792 = vmatprep.subr.bf16.mxu0 0
      %3793 = vmatpush2.bf16.xpose.msra.mxu0 0
      %3794 = vmatprep.subr.bf16.mxu0 0
      %3795 = vmatpush2.bf16.xpose.msra.mxu0 0
      %3796 = vmatprep.subr.bf16.mxu0 0
      %3797 = vmatpush2.bf16.xpose.msra.mxu0 0
      %3798 = vmatprep.subr.bf16.mxu0 0
      %3799 = vmatpush2.bf16.xpose.msra.mxu0 0
      %3800 = vmatprep.mubr.bf16.mxu0 0
      %3801 = vmatmul.mubr.bf16.gmra.mxu0 %v3763
      %v3802 = vpop.f32.mrf.mxu0
      %v3803 = vadd.f32 0.0, %v3802
      %v3804 = vpop.f32.mrf.mxu0
      %v3805 = vpop.f32.mrf.mxu0
      %v3806 = vadd.f32 0.0, %v3805
      %v3807 = vpop.f32.mrf.mxu0
      %3808 = vdwg.mxu0
      %3809 = vrot.lane.b32.xlu0 %v1105, 120
      %v3810 = vpop.permute.xlu0 %3809
      %3811 = vrot.lane.b32.xlu0 %v1105, 88
      %v3812 = vpop.permute.xlu0 %3811
      %v3814 = vsel %vm1110, %v3810, 0
      %v3817 = vsel %vm1110, %v3812, 0
      %3819 = vmatprep.subr.bf16.mxu0 0
      %3820 = vmatpush1.bf16.xpose.msra.mxu0 0
      %3821 = vmatprep.subr.bf16.mxu0 0
      %3822 = vmatpush1.bf16.xpose.msra.mxu0 0
      %3823 = vmatprep.subr.bf16.mxu0 0
      %3824 = vmatpush1.bf16.xpose.msra.mxu0 0
      %3825 = vmatprep.subr.bf16.mxu0 0
      %3826 = vmatpush1.bf16.xpose.msra.mxu0 0
      %3827 = vmatprep.subr.bf16.mxu0 0
      %3828 = vmatpush1.bf16.xpose.msra.mxu0 0
      %3829 = vmatprep.subr.bf16.mxu0 0
      %3830 = vmatpush1.bf16.xpose.msra.mxu0 0
      %3831 = vmatprep.subr.bf16.mxu0 0
      %3832 = vmatpush1.bf16.xpose.msra.mxu0 0
      %3833 = vmatprep.subr.bf16.mxu0 0
      %3834 = vmatpush1.bf16.xpose.msra.mxu0 %v3817
      %3835 = vmatprep.subr.bf16.mxu0 0
      %3836 = vmatpush2.bf16.xpose.msra.mxu0 0
      %3837 = vmatprep.subr.bf16.mxu0 0
      %3838 = vmatpush2.bf16.xpose.msra.mxu0 0
      %3839 = vmatprep.subr.bf16.mxu0 0
      %3840 = vmatpush2.bf16.xpose.msra.mxu0 0
      %3841 = vmatprep.subr.bf16.mxu0 0
      %3842 = vmatpush2.bf16.xpose.msra.mxu0 0
      %3843 = vmatprep.subr.bf16.mxu0 0
      %3844 = vmatpush2.bf16.xpose.msra.mxu0 0
      %3845 = vmatprep.subr.bf16.mxu0 0
      %3846 = vmatpush2.bf16.xpose.msra.mxu0 0
      %3847 = vmatprep.subr.bf16.mxu0 0
      %3848 = vmatpush2.bf16.xpose.msra.mxu0 0
      %3849 = vmatprep.subr.bf16.mxu0 0
      %3850 = vmatpush2.bf16.xpose.msra.mxu0 0
      %3851 = vmatprep.mubr.bf16.mxu0 0
      %3852 = vmatmul.mubr.bf16.gmra.mxu0 %v3814
      %v3853 = vpop.f32.mrf.mxu0
      %v3854 = vadd.f32 0.0, %v3853
      %v3855 = vpop.f32.mrf.mxu0
      %v3856 = vpop.f32.mrf.mxu0
      %v3857 = vadd.f32 0.0, %v3856
      %v3858 = vpop.f32.mrf.mxu0
      %3859 = vdwg.mxu0
      %3860 = vrot.lane.b32.xlu0 %v1106, 120
      %v3861 = vpop.permute.xlu0 %3860
      %3862 = vrot.lane.b32.xlu0 %v1106, 88
      %v3863 = vpop.permute.xlu0 %3862
      %v3865 = vsel %vm1110, %v3861, 0
      %v3868 = vsel %vm1110, %v3863, 0
      %3870 = vmatprep.subr.bf16.mxu0 0
      %3871 = vmatpush1.bf16.xpose.msra.mxu0 0
      %3872 = vmatprep.subr.bf16.mxu0 0
      %3873 = vmatpush1.bf16.xpose.msra.mxu0 0
      %3874 = vmatprep.subr.bf16.mxu0 0
      %3875 = vmatpush1.bf16.xpose.msra.mxu0 0
      %3876 = vmatprep.subr.bf16.mxu0 0
      %3877 = vmatpush1.bf16.xpose.msra.mxu0 0
      %3878 = vmatprep.subr.bf16.mxu0 0
      %3879 = vmatpush1.bf16.xpose.msra.mxu0 0
      %3880 = vmatprep.subr.bf16.mxu0 0
      %3881 = vmatpush1.bf16.xpose.msra.mxu0 0
      %3882 = vmatprep.subr.bf16.mxu0 0
      %3883 = vmatpush1.bf16.xpose.msra.mxu0 0
      %3884 = vmatprep.subr.bf16.mxu0 0
      %3885 = vmatpush1.bf16.xpose.msra.mxu0 %v3868
      %3886 = vmatprep.subr.bf16.mxu0 0
      %3887 = vmatpush2.bf16.xpose.msra.mxu0 0
      %3888 = vmatprep.subr.bf16.mxu0 0
      %3889 = vmatpush2.bf16.xpose.msra.mxu0 0
      %3890 = vmatprep.subr.bf16.mxu0 0
      %3891 = vmatpush2.bf16.xpose.msra.mxu0 0
      %3892 = vmatprep.subr.bf16.mxu0 0
      %3893 = vmatpush2.bf16.xpose.msra.mxu0 0
      %3894 = vmatprep.subr.bf16.mxu0 0
      %3895 = vmatpush2.bf16.xpose.msra.mxu0 0
      %3896 = vmatprep.subr.bf16.mxu0 0
      %3897 = vmatpush2.bf16.xpose.msra.mxu0 0
      %3898 = vmatprep.subr.bf16.mxu0 0
      %3899 = vmatpush2.bf16.xpose.msra.mxu0 0
      %3900 = vmatprep.subr.bf16.mxu0 0
      %3901 = vmatpush2.bf16.xpose.msra.mxu0 0
      %3902 = vmatprep.mubr.bf16.mxu0 0
      %3903 = vmatmul.mubr.bf16.gmra.mxu0 %v3865
      %v3904 = vpop.f32.mrf.mxu0
      %v3905 = vadd.f32 0.0, %v3904
      %v3906 = vpop.f32.mrf.mxu0
      %v3907 = vpop.f32.mrf.mxu0
      %v3908 = vadd.f32 0.0, %v3907
      %v3909 = vpop.f32.mrf.mxu0
      %3910 = vdwg.mxu0
      %v3911 = vmul.f32 %v3140, 0.5
      %v3912 = vmul.f32 %v3143, 0.5
      %v3913 = vmul.f32 %v3191, 0.5
      %v3914 = vmul.f32 %v3194, 0.5
      %v3915 = vmul.f32 %v3242, 0.5
      %v3916 = vmul.f32 %v3245, 0.5
      %v3917 = vmul.f32 %v3293, 0.5
      %v3918 = vmul.f32 %v3296, 0.5
      %v3919 = vmul.f32 %v3344, 0.5
      %v3920 = vmul.f32 %v3347, 0.5
      %v3921 = vmul.f32 %v3395, 0.5
      %v3922 = vmul.f32 %v3398, 0.5
      %v3923 = vmul.f32 %v3446, 0.5
      %v3924 = vmul.f32 %v3449, 0.5
      %v3925 = vmul.f32 %v3497, 0.5
      %v3926 = vmul.f32 %v3500, 0.5
      %v3927 = vmul.f32 %v3548, 0.5
      %v3928 = vmul.f32 %v3551, 0.5
      %v3929 = vmul.f32 %v3599, 0.5
      %v3930 = vmul.f32 %v3602, 0.5
      %v3931 = vmul.f32 %v3650, 0.5
      %v3932 = vmul.f32 %v3653, 0.5
      %v3933 = vmul.f32 %v3701, 0.5
      %v3934 = vmul.f32 %v3704, 0.5
      %v3935 = vmul.f32 %v3752, 0.5
      %v3936 = vmul.f32 %v3755, 0.5
      %v3937 = vmul.f32 %v3803, 0.5
      %v3938 = vmul.f32 %v3806, 0.5
      %v3939 = vmul.f32 %v3854, 0.5
      %v3940 = vmul.f32 %v3857, 0.5
      %v3941 = vmul.f32 %v3905, 0.5
      %v3942 = vmul.f32 %v3908, 0.5
      %s3943 = scalar_lea.vmem %s7, 16
      %v3944 = vld [vmem:[%s3943] sm:$0xff]
      %v3945 = vld [vmem:[%s3943 + $0x8] sm:$0xff]
      %v3946 = vadd.f32 %v3911, %v3944
      %v3947 = vadd.f32 %v3912, %v3945
      %v3948 = vadd.f32 %v3913, %v3944
      %v3949 = vadd.f32 %v3914, %v3945
      %v3950 = vadd.f32 %v3915, %v3944
      %v3951 = vadd.f32 %v3916, %v3945
      %v3952 = vadd.f32 %v3917, %v3944
      %v3953 = vadd.f32 %v3918, %v3945
      %v3954 = vadd.f32 %v3919, %v3944
      %v3955 = vadd.f32 %v3920, %v3945
      %v3956 = vadd.f32 %v3921, %v3944
      %v3957 = vadd.f32 %v3922, %v3945
      %v3958 = vadd.f32 %v3923, %v3944
      %v3959 = vadd.f32 %v3924, %v3945
      %v3960 = vadd.f32 %v3925, %v3944
      %v3961 = vadd.f32 %v3926, %v3945
      %v3962 = vadd.f32 %v3927, %v3944
      %v3963 = vadd.f32 %v3928, %v3945
      %v3964 = vadd.f32 %v3929, %v3944
      %v3965 = vadd.f32 %v3930, %v3945
      %v3966 = vadd.f32 %v3931, %v3944
      %v3967 = vadd.f32 %v3932, %v3945
      %v3968 = vadd.f32 %v3933, %v3944
      %v3969 = vadd.f32 %v3934, %v3945
      %v3970 = vadd.f32 %v3935, %v3944
      %v3971 = vadd.f32 %v3936, %v3945
      %v3972 = vadd.f32 %v3937, %v3944
      %v3973 = vadd.f32 %v3938, %v3945
      %v3974 = vadd.f32 %v3939, %v3944
      %v3975 = vadd.f32 %v3940, %v3945
      %v3976 = vadd.f32 %v3941, %v3944
      %v3977 = vadd.f32 %v3942, %v3945
      %v3978 = vsel %vm1974, %v3946, -inf
      %3979 = vmax.xlane.f32.xlu0 %v3978
      %v3980 = vpop.xlane.xlu0 %3979
      %v3981 = vsel %vm1974, %v3947, -inf
      %3982 = vmax.xlane.f32.xlu0 %v3981
      %v3983 = vpop.xlane.xlu0 %3982
      %v3984 = vsel %vm1974, %v3948, -inf
      %3985 = vmax.xlane.f32.xlu0 %v3984
      %v3986 = vpop.xlane.xlu0 %3985
      %v3987 = vsel %vm1974, %v3949, -inf
      %3988 = vmax.xlane.f32.xlu0 %v3987
      %v3989 = vpop.xlane.xlu0 %3988
      %v3990 = vsel %vm1974, %v3950, -inf
      %3991 = vmax.xlane.f32.xlu0 %v3990
      %v3992 = vpop.xlane.xlu0 %3991
      %v3993 = vsel %vm1974, %v3951, -inf
      %3994 = vmax.xlane.f32.xlu0 %v3993
      %v3995 = vpop.xlane.xlu0 %3994
      %v3996 = vsel %vm1974, %v3952, -inf
      %3997 = vmax.xlane.f32.xlu0 %v3996
      %v3998 = vpop.xlane.xlu0 %3997
      %v3999 = vsel %vm1974, %v3953, -inf
      %4000 = vmax.xlane.f32.xlu0 %v3999
      %v4001 = vpop.xlane.xlu0 %4000
      %v4002 = vsel %vm1974, %v3954, -inf
      %4003 = vmax.xlane.f32.xlu0 %v4002
      %v4004 = vpop.xlane.xlu0 %4003
      %v4005 = vsel %vm1974, %v3955, -inf
      %4006 = vmax.xlane.f32.xlu0 %v4005
      %v4007 = vpop.xlane.xlu0 %4006
      %v4008 = vsel %vm1974, %v3956, -inf
      %4009 = vmax.xlane.f32.xlu0 %v4008
      %v4010 = vpop.xlane.xlu0 %4009
      %v4011 = vsel %vm1974, %v3957, -inf
      %4012 = vmax.xlane.f32.xlu0 %v4011
      %v4013 = vpop.xlane.xlu0 %4012
      %v4014 = vsel %vm1974, %v3958, -inf
      %4015 = vmax.xlane.f32.xlu0 %v4014
      %v4016 = vpop.xlane.xlu0 %4015
      %v4017 = vsel %vm1974, %v3959, -inf
      %4018 = vmax.xlane.f32.xlu0 %v4017
      %v4019 = vpop.xlane.xlu0 %4018
      %v4020 = vsel %vm1974, %v3960, -inf
      %4021 = vmax.xlane.f32.xlu0 %v4020
      %v4022 = vpop.xlane.xlu0 %4021
      %v4023 = vsel %vm1974, %v3961, -inf
      %4024 = vmax.xlane.f32.xlu0 %v4023
      %v4025 = vpop.xlane.xlu0 %4024
      %v4026 = vsel %vm1974, %v3962, -inf
      %4027 = vmax.xlane.f32.xlu0 %v4026
      %v4028 = vpop.xlane.xlu0 %4027
      %v4029 = vsel %vm1974, %v3963, -inf
      %4030 = vmax.xlane.f32.xlu0 %v4029
      %v4031 = vpop.xlane.xlu0 %4030
      %v4032 = vsel %vm1974, %v3964, -inf
      %4033 = vmax.xlane.f32.xlu0 %v4032
      %v4034 = vpop.xlane.xlu0 %4033
      %v4035 = vsel %vm1974, %v3965, -inf
      %4036 = vmax.xlane.f32.xlu0 %v4035
      %v4037 = vpop.xlane.xlu0 %4036
      %v4038 = vsel %vm1974, %v3966, -inf
      %4039 = vmax.xlane.f32.xlu0 %v4038
      %v4040 = vpop.xlane.xlu0 %4039
      %v4041 = vsel %vm1974, %v3967, -inf
      %4042 = vmax.xlane.f32.xlu0 %v4041
      %v4043 = vpop.xlane.xlu0 %4042
      %v4044 = vsel %vm1974, %v3968, -inf
      %4045 = vmax.xlane.f32.xlu0 %v4044
      %v4046 = vpop.xlane.xlu0 %4045
      %v4047 = vsel %vm1974, %v3969, -inf
      %4048 = vmax.xlane.f32.xlu0 %v4047
      %v4049 = vpop.xlane.xlu0 %4048
      %v4050 = vsel %vm1974, %v3970, -inf
      %4051 = vmax.xlane.f32.xlu0 %v4050
      %v4052 = vpop.xlane.xlu0 %4051
      %v4053 = vsel %vm1974, %v3971, -inf
      %4054 = vmax.xlane.f32.xlu0 %v4053
      %v4055 = vpop.xlane.xlu0 %4054
      %v4056 = vsel %vm1974, %v3972, -inf
      %4057 = vmax.xlane.f32.xlu0 %v4056
      %v4058 = vpop.xlane.xlu0 %4057
      %v4059 = vsel %vm1974, %v3973, -inf
      %4060 = vmax.xlane.f32.xlu0 %v4059
      %v4061 = vpop.xlane.xlu0 %4060
      %v4062 = vsel %vm1974, %v3974, -inf
      %4063 = vmax.xlane.f32.xlu0 %v4062
      %v4064 = vpop.xlane.xlu0 %4063
      %v4065 = vsel %vm1974, %v3975, -inf
      %4066 = vmax.xlane.f32.xlu0 %v4065
      %v4067 = vpop.xlane.xlu0 %4066
      %v4068 = vsel %vm1974, %v3976, -inf
      %4069 = vmax.xlane.f32.xlu0 %v4068
      %v4070 = vpop.xlane.xlu0 %4069
      %v4071 = vsel %vm1974, %v3977, -inf
      %4072 = vmax.xlane.f32.xlu0 %v4071
      %v4073 = vpop.xlane.xlu0 %4072
      %v4074 = vsub.f32 %v3946, %v3980
      %v4075 = vsub.f32 %v3947, %v3983
      %v4076 = vsub.f32 %v3948, %v3986
      %v4077 = vsub.f32 %v3949, %v3989
      %v4078 = vsub.f32 %v3950, %v3992
      %v4079 = vsub.f32 %v3951, %v3995
      %v4080 = vsub.f32 %v3952, %v3998
      %v4081 = vsub.f32 %v3953, %v4001
      %v4082 = vsub.f32 %v3954, %v4004
      %v4083 = vsub.f32 %v3955, %v4007
      %v4084 = vsub.f32 %v3956, %v4010
      %v4085 = vsub.f32 %v3957, %v4013
      %v4086 = vsub.f32 %v3958, %v4016
      %v4087 = vsub.f32 %v3959, %v4019
      %v4088 = vsub.f32 %v3960, %v4022
      %v4089 = vsub.f32 %v3961, %v4025
      %v4090 = vsub.f32 %v3962, %v4028
      %v4091 = vsub.f32 %v3963, %v4031
      %v4092 = vsub.f32 %v3964, %v4034
      %v4093 = vsub.f32 %v3965, %v4037
      %v4094 = vsub.f32 %v3966, %v4040
      %v4095 = vsub.f32 %v3967, %v4043
      %v4096 = vsub.f32 %v3968, %v4046
      %v4097 = vsub.f32 %v3969, %v4049
      %v4098 = vsub.f32 %v3970, %v4052
      %v4099 = vsub.f32 %v3971, %v4055
      %v4100 = vsub.f32 %v3972, %v4058
      %v4101 = vsub.f32 %v3973, %v4061
      %v4102 = vsub.f32 %v3974, %v4064
      %v4103 = vsub.f32 %v3975, %v4067
      %v4104 = vsub.f32 %v3976, %v4070
      %v4105 = vsub.f32 %v3977, %v4073
      %v4106 = vmul.f32 %v4074, 1.442695
      %v4107 = vpow.pop %v4106
      %v4108 = vmul.f32 %v4075, 1.442695
      %v4109 = vpow.pop %v4108
      %v4110 = vmul.f32 %v4076, 1.442695
      %v4111 = vpow.pop %v4110
      %v4112 = vmul.f32 %v4077, 1.442695
      %v4113 = vpow.pop %v4112
      %v4114 = vmul.f32 %v4078, 1.442695
      %v4115 = vpow.pop %v4114
      %v4116 = vmul.f32 %v4079, 1.442695
      %v4117 = vpow.pop %v4116
      %v4118 = vmul.f32 %v4080, 1.442695
      %v4119 = vpow.pop %v4118
      %v4120 = vmul.f32 %v4081, 1.442695
      %v4121 = vpow.pop %v4120
      %v4122 = vmul.f32 %v4082, 1.442695
      %v4123 = vpow.pop %v4122
      %v4124 = vmul.f32 %v4083, 1.442695
      %v4125 = vpow.pop %v4124
      %v4126 = vmul.f32 %v4084, 1.442695
      %v4127 = vpow.pop %v4126
      %v4128 = vmul.f32 %v4085, 1.442695
      %v4129 = vpow.pop %v4128
      %v4130 = vmul.f32 %v4086, 1.442695
      %v4131 = vpow.pop %v4130
      %v4132 = vmul.f32 %v4087, 1.442695
      %v4133 = vpow.pop %v4132
      %v4134 = vmul.f32 %v4088, 1.442695
      %v4135 = vpow.pop %v4134
      %v4136 = vmul.f32 %v4089, 1.442695
      %v4137 = vpow.pop %v4136
      %v4138 = vmul.f32 %v4090, 1.442695
      %v4139 = vpow.pop %v4138
      %v4140 = vmul.f32 %v4091, 1.442695
      %v4141 = vpow.pop %v4140
      %v4142 = vmul.f32 %v4092, 1.442695
      %v4143 = vpow.pop %v4142
      %v4144 = vmul.f32 %v4093, 1.442695
      %v4145 = vpow.pop %v4144
      %v4146 = vmul.f32 %v4094, 1.442695
      %v4147 = vpow.pop %v4146
      %v4148 = vmul.f32 %v4095, 1.442695
      %v4149 = vpow.pop %v4148
      %v4150 = vmul.f32 %v4096, 1.442695
      %v4151 = vpow.pop %v4150
      %v4152 = vmul.f32 %v4097, 1.442695
      %v4153 = vpow.pop %v4152
      %v4154 = vmul.f32 %v4098, 1.442695
      %v4155 = vpow.pop %v4154
      %v4156 = vmul.f32 %v4099, 1.442695
      %v4157 = vpow.pop %v4156
      %v4158 = vmul.f32 %v4100, 1.442695
      %v4159 = vpow.pop %v4158
      %v4160 = vmul.f32 %v4101, 1.442695
      %v4161 = vpow.pop %v4160
      %v4162 = vmul.f32 %v4102, 1.442695
      %v4163 = vpow.pop %v4162
      %v4164 = vmul.f32 %v4103, 1.442695
      %v4165 = vpow.pop %v4164
      %v4166 = vmul.f32 %v4104, 1.442695
      %v4167 = vpow.pop %v4166
      %v4168 = vmul.f32 %v4105, 1.442695
      %v4169 = vpow.pop %v4168
      %v4170 = vsel %vm1974, %v4107, 0.0
      %4171 = vadd.xlane.f32.xlu0 %v4170
      %v4172 = vpop.xlane.xlu0 %4171
      %v4173 = vsel %vm1974, %v4109, 0.0
      %4174 = vadd.xlane.f32.xlu0 %v4173
      %v4175 = vpop.xlane.xlu0 %4174
      %v4176 = vsel %vm1974, %v4111, 0.0
      %4177 = vadd.xlane.f32.xlu0 %v4176
      %v4178 = vpop.xlane.xlu0 %4177
      %v4179 = vsel %vm1974, %v4113, 0.0
      %4180 = vadd.xlane.f32.xlu0 %v4179
      %v4181 = vpop.xlane.xlu0 %4180
      %v4182 = vsel %vm1974, %v4115, 0.0
      %4183 = vadd.xlane.f32.xlu0 %v4182
      %v4184 = vpop.xlane.xlu0 %4183
      %v4185 = vsel %vm1974, %v4117, 0.0
      %4186 = vadd.xlane.f32.xlu0 %v4185
      %v4187 = vpop.xlane.xlu0 %4186
      %v4188 = vsel %vm1974, %v4119, 0.0
      %4189 = vadd.xlane.f32.xlu0 %v4188
      %v4190 = vpop.xlane.xlu0 %4189
      %v4191 = vsel %vm1974, %v4121, 0.0
      %4192 = vadd.xlane.f32.xlu0 %v4191
      %v4193 = vpop.xlane.xlu0 %4192
      %v4194 = vsel %vm1974, %v4123, 0.0
      %4195 = vadd.xlane.f32.xlu0 %v4194
      %v4196 = vpop.xlane.xlu0 %4195
      %v4197 = vsel %vm1974, %v4125, 0.0
      %4198 = vadd.xlane.f32.xlu0 %v4197
      %v4199 = vpop.xlane.xlu0 %4198
      %v4200 = vsel %vm1974, %v4127, 0.0
      %4201 = vadd.xlane.f32.xlu0 %v4200
      %v4202 = vpop.xlane.xlu0 %4201
      %v4203 = vsel %vm1974, %v4129, 0.0
      %4204 = vadd.xlane.f32.xlu0 %v4203
      %v4205 = vpop.xlane.xlu0 %4204
      %v4206 = vsel %vm1974, %v4131, 0.0
      %4207 = vadd.xlane.f32.xlu0 %v4206
      %v4208 = vpop.xlane.xlu0 %4207
      %v4209 = vsel %vm1974, %v4133, 0.0
      %4210 = vadd.xlane.f32.xlu0 %v4209
      %v4211 = vpop.xlane.xlu0 %4210
      %v4212 = vsel %vm1974, %v4135, 0.0
      %4213 = vadd.xlane.f32.xlu0 %v4212
      %v4214 = vpop.xlane.xlu0 %4213
      %v4215 = vsel %vm1974, %v4137, 0.0
      %4216 = vadd.xlane.f32.xlu0 %v4215
      %v4217 = vpop.xlane.xlu0 %4216
      %v4218 = vsel %vm1974, %v4139, 0.0
      %4219 = vadd.xlane.f32.xlu0 %v4218
      %v4220 = vpop.xlane.xlu0 %4219
      %v4221 = vsel %vm1974, %v4141, 0.0
      %4222 = vadd.xlane.f32.xlu0 %v4221
      %v4223 = vpop.xlane.xlu0 %4222
      %v4224 = vsel %vm1974, %v4143, 0.0
      %4225 = vadd.xlane.f32.xlu0 %v4224
      %v4226 = vpop.xlane.xlu0 %4225
      %v4227 = vsel %vm1974, %v4145, 0.0
      %4228 = vadd.xlane.f32.xlu0 %v4227
      %v4229 = vpop.xlane.xlu0 %4228
      %v4230 = vsel %vm1974, %v4147, 0.0
      %4231 = vadd.xlane.f32.xlu0 %v4230
      %v4232 = vpop.xlane.xlu0 %4231
      %v4233 = vsel %vm1974, %v4149, 0.0
      %4234 = vadd.xlane.f32.xlu0 %v4233
      %v4235 = vpop.xlane.xlu0 %4234
      %v4236 = vsel %vm1974, %v4151, 0.0
      %4237 = vadd.xlane.f32.xlu0 %v4236
      %v4238 = vpop.xlane.xlu0 %4237
      %v4239 = vsel %vm1974, %v4153, 0.0
      %4240 = vadd.xlane.f32.xlu0 %v4239
      %v4241 = vpop.xlane.xlu0 %4240
      %v4242 = vsel %vm1974, %v4155, 0.0
      %4243 = vadd.xlane.f32.xlu0 %v4242
      %v4244 = vpop.xlane.xlu0 %4243
      %v4245 = vsel %vm1974, %v4157, 0.0
      %4246 = vadd.xlane.f32.xlu0 %v4245
      %v4247 = vpop.xlane.xlu0 %4246
      %v4248 = vsel %vm1974, %v4159, 0.0
      %4249 = vadd.xlane.f32.xlu0 %v4248
      %v4250 = vpop.xlane.xlu0 %4249
      %v4251 = vsel %vm1974, %v4161, 0.0
      %4252 = vadd.xlane.f32.xlu0 %v4251
      %v4253 = vpop.xlane.xlu0 %4252
      %v4254 = vsel %vm1974, %v4163, 0.0
      %4255 = vadd.xlane.f32.xlu0 %v4254
      %v4256 = vpop.xlane.xlu0 %4255
      %v4257 = vsel %vm1974, %v4165, 0.0
      %4258 = vadd.xlane.f32.xlu0 %v4257
      %v4259 = vpop.xlane.xlu0 %4258
      %v4260 = vsel %vm1974, %v4167, 0.0
      %4261 = vadd.xlane.f32.xlu0 %v4260
      %v4262 = vpop.xlane.xlu0 %4261
      %v4263 = vsel %vm1974, %v4169, 0.0
      %4264 = vadd.xlane.f32.xlu0 %v4263
      %v4265 = vpop.xlane.xlu0 %4264
      %v4266 = vrcp.pop %v4172
      %v4267 = vrcp.pop %v4175
      %v4268 = vrcp.pop %v4178
      %v4269 = vrcp.pop %v4181
      %v4270 = vrcp.pop %v4184
      %v4271 = vrcp.pop %v4187
      %v4272 = vrcp.pop %v4190
      %v4273 = vrcp.pop %v4193
      %v4274 = vrcp.pop %v4196
      %v4275 = vrcp.pop %v4199
      %v4276 = vrcp.pop %v4202
      %v4277 = vrcp.pop %v4205
      %v4278 = vrcp.pop %v4208
      %v4279 = vrcp.pop %v4211
      %v4280 = vrcp.pop %v4214
      %v4281 = vrcp.pop %v4217
      %v4282 = vrcp.pop %v4220
      %v4283 = vrcp.pop %v4223
      %v4284 = vrcp.pop %v4226
      %v4285 = vrcp.pop %v4229
      %v4286 = vrcp.pop %v4232
      %v4287 = vrcp.pop %v4235
      %v4288 = vrcp.pop %v4238
      %v4289 = vrcp.pop %v4241
      %v4290 = vrcp.pop %v4244
      %v4291 = vrcp.pop %v4247
      %v4292 = vrcp.pop %v4250
      %v4293 = vrcp.pop %v4253
      %v4294 = vrcp.pop %v4256
      %v4295 = vrcp.pop %v4259
      %v4296 = vrcp.pop %v4262
      %v4297 = vrcp.pop %v4265
      %v4298 = vmul.f32 %v4107, %v4266
      %v4299 = vmul.f32 %v4109, %v4267
      %v4300 = vmul.f32 %v4111, %v4268
      %v4301 = vmul.f32 %v4113, %v4269
      %v4302 = vmul.f32 %v4115, %v4270
      %v4303 = vmul.f32 %v4117, %v4271
      %v4304 = vmul.f32 %v4119, %v4272
      %v4305 = vmul.f32 %v4121, %v4273
      %v4306 = vmul.f32 %v4123, %v4274
      %v4307 = vmul.f32 %v4125, %v4275
      %v4308 = vmul.f32 %v4127, %v4276
      %v4309 = vmul.f32 %v4129, %v4277
      %v4310 = vmul.f32 %v4131, %v4278
      %v4311 = vmul.f32 %v4133, %v4279
      %v4312 = vmul.f32 %v4135, %v4280
      %v4313 = vmul.f32 %v4137, %v4281
      %v4314 = vmul.f32 %v4139, %v4282
      %v4315 = vmul.f32 %v4141, %v4283
      %v4316 = vmul.f32 %v4143, %v4284
      %v4317 = vmul.f32 %v4145, %v4285
      %v4318 = vmul.f32 %v4147, %v4286
      %v4319 = vmul.f32 %v4149, %v4287
      %v4320 = vmul.f32 %v4151, %v4288
      %v4321 = vmul.f32 %v4153, %v4289
      %v4322 = vmul.f32 %v4155, %v4290
      %v4323 = vmul.f32 %v4157, %v4291
      %v4324 = vmul.f32 %v4159, %v4292
      %v4325 = vmul.f32 %v4161, %v4293
      %v4326 = vmul.f32 %v4163, %v4294
      %v4327 = vmul.f32 %v4165, %v4295
      %v4328 = vmul.f32 %v4167, %v4296
      %v4329 = vmul.f32 %v4169, %v4297
      %v4330 = vpack.c.bf16 %v4299, %v4298
      %v4331 = vpack.c.bf16 %v4301, %v4300
      %v4332 = vpack.c.bf16 %v4303, %v4302
      %v4333 = vpack.c.bf16 %v4305, %v4304
      %v4334 = vpack.c.bf16 %v4307, %v4306
      %v4335 = vpack.c.bf16 %v4309, %v4308
      %v4336 = vpack.c.bf16 %v4311, %v4310
      %v4337 = vpack.c.bf16 %v4313, %v4312
      %v4338 = vpack.c.bf16 %v4315, %v4314
      %v4339 = vpack.c.bf16 %v4317, %v4316
      %v4340 = vpack.c.bf16 %v4319, %v4318
      %v4341 = vpack.c.bf16 %v4321, %v4320
      %v4342 = vpack.c.bf16 %v4323, %v4322
      %v4343 = vpack.c.bf16 %v4325, %v4324
      %v4344 = vpack.c.bf16 %v4327, %v4326
      %v4345 = vpack.c.bf16 %v4329, %v4328
      %4346 = vrot.lane.b32.xlu0 %v1091, 56
      %v4347 = vpop.permute.xlu0 %4346
      %v4350 = vsel %vm1974, %v4330, 0
      %4352 = vmatprep.subr.bf16.mxu0 0
      %4353 = vmatpush1.bf16.msra.mxu0 0
      %4354 = vmatprep.subr.bf16.mxu0 0
      %4355 = vmatpush1.bf16.msra.mxu0 0
      %4356 = vmatprep.subr.bf16.mxu0 0
      %4357 = vmatpush1.bf16.msra.mxu0 0
      %4358 = vmatprep.subr.bf16.mxu0 0
      %4359 = vmatpush1.bf16.msra.mxu0 0
      %4360 = vmatprep.subr.bf16.mxu0 0
      %4361 = vmatpush1.bf16.msra.mxu0 0
      %4362 = vmatprep.subr.bf16.mxu0 0
      %4363 = vmatpush1.bf16.msra.mxu0 0
      %4364 = vmatprep.subr.bf16.mxu0 0
      %4365 = vmatpush1.bf16.msra.mxu0 0
      %4366 = vmatprep.subr.bf16.mxu0 0
      %4367 = vmatpush1.bf16.msra.mxu0 %v4347
      %4368 = vmatprep.subr.bf16.mxu0 0
      %4369 = vmatpush2.bf16.msra.mxu0 0
      %4370 = vmatprep.subr.bf16.mxu0 0
      %4371 = vmatpush2.bf16.msra.mxu0 0
      %4372 = vmatprep.subr.bf16.mxu0 0
      %4373 = vmatpush2.bf16.msra.mxu0 0
      %4374 = vmatprep.subr.bf16.mxu0 0
      %4375 = vmatpush2.bf16.msra.mxu0 0
      %4376 = vmatprep.subr.bf16.mxu0 0
      %4377 = vmatpush2.bf16.msra.mxu0 0
      %4378 = vmatprep.subr.bf16.mxu0 0
      %4379 = vmatpush2.bf16.msra.mxu0 0
      %4380 = vmatprep.subr.bf16.mxu0 0
      %4381 = vmatpush2.bf16.msra.mxu0 0
      %4382 = vmatprep.subr.bf16.mxu0 0
      %4383 = vmatpush2.bf16.msra.mxu0 0
      %4384 = vmatprep.mubr.bf16.mxu0 0
      %4385 = vmatmul.mubr.bf16.gmra.mxu0 %v4350
      %v4386 = vpop.f32.mrf.mxu0
      %v4387 = vadd.f32 0.0, %v4386
      %v4388 = vpop.f32.mrf.mxu0
      %v4389 = vpop.f32.mrf.mxu0
      %v4390 = vadd.f32 0.0, %v4389
      %v4391 = vpop.f32.mrf.mxu0
      %4392 = vdwg.mxu0
      %4393 = vrot.lane.b32.xlu0 %v1092, 56
      %v4394 = vpop.permute.xlu0 %4393
      %v4397 = vsel %vm1974, %v4331, 0
      %4399 = vmatprep.subr.bf16.mxu0 0
      %4400 = vmatpush1.bf16.msra.mxu0 0
      %4401 = vmatprep.subr.bf16.mxu0 0
      %4402 = vmatpush1.bf16.msra.mxu0 0
      %4403 = vmatprep.subr.bf16.mxu0 0
      %4404 = vmatpush1.bf16.msra.mxu0 0
      %4405 = vmatprep.subr.bf16.mxu0 0
      %4406 = vmatpush1.bf16.msra.mxu0 0
      %4407 = vmatprep.subr.bf16.mxu0 0
      %4408 = vmatpush1.bf16.msra.mxu0 0
      %4409 = vmatprep.subr.bf16.mxu0 0
      %4410 = vmatpush1.bf16.msra.mxu0 0
      %4411 = vmatprep.subr.bf16.mxu0 0
      %4412 = vmatpush1.bf16.msra.mxu0 0
      %4413 = vmatprep.subr.bf16.mxu0 0
      %4414 = vmatpush1.bf16.msra.mxu0 %v4394
      %4415 = vmatprep.subr.bf16.mxu0 0
      %4416 = vmatpush2.bf16.msra.mxu0 0
      %4417 = vmatprep.subr.bf16.mxu0 0
      %4418 = vmatpush2.bf16.msra.mxu0 0
      %4419 = vmatprep.subr.bf16.mxu0 0
      %4420 = vmatpush2.bf16.msra.mxu0 0
      %4421 = vmatprep.subr.bf16.mxu0 0
      %4422 = vmatpush2.bf16.msra.mxu0 0
      %4423 = vmatprep.subr.bf16.mxu0 0
      %4424 = vmatpush2.bf16.msra.mxu0 0
      %4425 = vmatprep.subr.bf16.mxu0 0
      %4426 = vmatpush2.bf16.msra.mxu0 0
      %4427 = vmatprep.subr.bf16.mxu0 0
      %4428 = vmatpush2.bf16.msra.mxu0 0
      %4429 = vmatprep.subr.bf16.mxu0 0
      %4430 = vmatpush2.bf16.msra.mxu0 0
      %4431 = vmatprep.mubr.bf16.mxu0 0
      %4432 = vmatmul.mubr.bf16.gmra.mxu0 %v4397
      %v4433 = vpop.f32.mrf.mxu0
      %v4434 = vadd.f32 0.0, %v4433
      %v4435 = vpop.f32.mrf.mxu0
      %v4436 = vpop.f32.mrf.mxu0
      %v4437 = vadd.f32 0.0, %v4436
      %v4438 = vpop.f32.mrf.mxu0
      %4439 = vdwg.mxu0
      %4440 = vrot.lane.b32.xlu0 %v1093, 56
      %v4441 = vpop.permute.xlu0 %4440
      %v4444 = vsel %vm1974, %v4332, 0
      %4446 = vmatprep.subr.bf16.mxu0 0
      %4447 = vmatpush1.bf16.msra.mxu0 0
      %4448 = vmatprep.subr.bf16.mxu0 0
      %4449 = vmatpush1.bf16.msra.mxu0 0
      %4450 = vmatprep.subr.bf16.mxu0 0
      %4451 = vmatpush1.bf16.msra.mxu0 0
      %4452 = vmatprep.subr.bf16.mxu0 0
      %4453 = vmatpush1.bf16.msra.mxu0 0
      %4454 = vmatprep.subr.bf16.mxu0 0
      %4455 = vmatpush1.bf16.msra.mxu0 0
      %4456 = vmatprep.subr.bf16.mxu0 0
      %4457 = vmatpush1.bf16.msra.mxu0 0
      %4458 = vmatprep.subr.bf16.mxu0 0
      %4459 = vmatpush1.bf16.msra.mxu0 0
      %4460 = vmatprep.subr.bf16.mxu0 0
      %4461 = vmatpush1.bf16.msra.mxu0 %v4441
      %4462 = vmatprep.subr.bf16.mxu0 0
      %4463 = vmatpush2.bf16.msra.mxu0 0
      %4464 = vmatprep.subr.bf16.mxu0 0
      %4465 = vmatpush2.bf16.msra.mxu0 0
      %4466 = vmatprep.subr.bf16.mxu0 0
      %4467 = vmatpush2.bf16.msra.mxu0 0
      %4468 = vmatprep.subr.bf16.mxu0 0
      %4469 = vmatpush2.bf16.msra.mxu0 0
      %4470 = vmatprep.subr.bf16.mxu0 0
      %4471 = vmatpush2.bf16.msra.mxu0 0
      %4472 = vmatprep.subr.bf16.mxu0 0
      %4473 = vmatpush2.bf16.msra.mxu0 0
      %4474 = vmatprep.subr.bf16.mxu0 0
      %4475 = vmatpush2.bf16.msra.mxu0 0
      %4476 = vmatprep.subr.bf16.mxu0 0
      %4477 = vmatpush2.bf16.msra.mxu0 0
      %4478 = vmatprep.mubr.bf16.mxu0 0
      %4479 = vmatmul.mubr.bf16.gmra.mxu0 %v4444
      %v4480 = vpop.f32.mrf.mxu0
      %v4481 = vadd.f32 0.0, %v4480
      %v4482 = vpop.f32.mrf.mxu0
      %v4483 = vpop.f32.mrf.mxu0
      %v4484 = vadd.f32 0.0, %v4483
      %v4485 = vpop.f32.mrf.mxu0
      %4486 = vdwg.mxu0
      %4487 = vrot.lane.b32.xlu0 %v1094, 56
      %v4488 = vpop.permute.xlu0 %4487
      %v4491 = vsel %vm1974, %v4333, 0
      %4493 = vmatprep.subr.bf16.mxu0 0
      %4494 = vmatpush1.bf16.msra.mxu0 0
      %4495 = vmatprep.subr.bf16.mxu0 0
      %4496 = vmatpush1.bf16.msra.mxu0 0
      %4497 = vmatprep.subr.bf16.mxu0 0
      %4498 = vmatpush1.bf16.msra.mxu0 0
      %4499 = vmatprep.subr.bf16.mxu0 0
      %4500 = vmatpush1.bf16.msra.mxu0 0
      %4501 = vmatprep.subr.bf16.mxu0 0
      %4502 = vmatpush1.bf16.msra.mxu0 0
      %4503 = vmatprep.subr.bf16.mxu0 0
      %4504 = vmatpush1.bf16.msra.mxu0 0
      %4505 = vmatprep.subr.bf16.mxu0 0
      %4506 = vmatpush1.bf16.msra.mxu0 0
      %4507 = vmatprep.subr.bf16.mxu0 0
      %4508 = vmatpush1.bf16.msra.mxu0 %v4488
      %4509 = vmatprep.subr.bf16.mxu0 0
      %4510 = vmatpush2.bf16.msra.mxu0 0
      %4511 = vmatprep.subr.bf16.mxu0 0
      %4512 = vmatpush2.bf16.msra.mxu0 0
      %4513 = vmatprep.subr.bf16.mxu0 0
      %4514 = vmatpush2.bf16.msra.mxu0 0
      %4515 = vmatprep.subr.bf16.mxu0 0
      %4516 = vmatpush2.bf16.msra.mxu0 0
      %4517 = vmatprep.subr.bf16.mxu0 0
      %4518 = vmatpush2.bf16.msra.mxu0 0
      %4519 = vmatprep.subr.bf16.mxu0 0
      %4520 = vmatpush2.bf16.msra.mxu0 0
      %4521 = vmatprep.subr.bf16.mxu0 0
      %4522 = vmatpush2.bf16.msra.mxu0 0
      %4523 = vmatprep.subr.bf16.mxu0 0
      %4524 = vmatpush2.bf16.msra.mxu0 0
      %4525 = vmatprep.mubr.bf16.mxu0 0
      %4526 = vmatmul.mubr.bf16.gmra.mxu0 %v4491
      %v4527 = vpop.f32.mrf.mxu0
      %v4528 = vadd.f32 0.0, %v4527
      %v4529 = vpop.f32.mrf.mxu0
      %v4530 = vpop.f32.mrf.mxu0
      %v4531 = vadd.f32 0.0, %v4530
      %v4532 = vpop.f32.mrf.mxu0
      %4533 = vdwg.mxu0
      %4534 = vrot.lane.b32.xlu0 %v1095, 56
      %v4535 = vpop.permute.xlu0 %4534
      %v4538 = vsel %vm1974, %v4334, 0
      %4540 = vmatprep.subr.bf16.mxu0 0
      %4541 = vmatpush1.bf16.msra.mxu0 0
      %4542 = vmatprep.subr.bf16.mxu0 0
      %4543 = vmatpush1.bf16.msra.mxu0 0
      %4544 = vmatprep.subr.bf16.mxu0 0
      %4545 = vmatpush1.bf16.msra.mxu0 0
      %4546 = vmatprep.subr.bf16.mxu0 0
      %4547 = vmatpush1.bf16.msra.mxu0 0
      %4548 = vmatprep.subr.bf16.mxu0 0
      %4549 = vmatpush1.bf16.msra.mxu0 0
      %4550 = vmatprep.subr.bf16.mxu0 0
      %4551 = vmatpush1.bf16.msra.mxu0 0
      %4552 = vmatprep.subr.bf16.mxu0 0
      %4553 = vmatpush1.bf16.msra.mxu0 0
      %4554 = vmatprep.subr.bf16.mxu0 0
      %4555 = vmatpush1.bf16.msra.mxu0 %v4535
      %4556 = vmatprep.subr.bf16.mxu0 0
      %4557 = vmatpush2.bf16.msra.mxu0 0
      %4558 = vmatprep.subr.bf16.mxu0 0
      %4559 = vmatpush2.bf16.msra.mxu0 0
      %4560 = vmatprep.subr.bf16.mxu0 0
      %4561 = vmatpush2.bf16.msra.mxu0 0
      %4562 = vmatprep.subr.bf16.mxu0 0
      %4563 = vmatpush2.bf16.msra.mxu0 0
      %4564 = vmatprep.subr.bf16.mxu0 0
      %4565 = vmatpush2.bf16.msra.mxu0 0
      %4566 = vmatprep.subr.bf16.mxu0 0
      %4567 = vmatpush2.bf16.msra.mxu0 0
      %4568 = vmatprep.subr.bf16.mxu0 0
      %4569 = vmatpush2.bf16.msra.mxu0 0
      %4570 = vmatprep.subr.bf16.mxu0 0
      %4571 = vmatpush2.bf16.msra.mxu0 0
      %4572 = vmatprep.mubr.bf16.mxu0 0
      %4573 = vmatmul.mubr.bf16.gmra.mxu0 %v4538
      %v4574 = vpop.f32.mrf.mxu0
      %v4575 = vadd.f32 0.0, %v4574
      %v4576 = vpop.f32.mrf.mxu0
      %v4577 = vpop.f32.mrf.mxu0
      %v4578 = vadd.f32 0.0, %v4577
      %v4579 = vpop.f32.mrf.mxu0
      %4580 = vdwg.mxu0
      %4581 = vrot.lane.b32.xlu0 %v1096, 56
      %v4582 = vpop.permute.xlu0 %4581
      %v4585 = vsel %vm1974, %v4335, 0
      %4587 = vmatprep.subr.bf16.mxu0 0
      %4588 = vmatpush1.bf16.msra.mxu0 0
      %4589 = vmatprep.subr.bf16.mxu0 0
      %4590 = vmatpush1.bf16.msra.mxu0 0
      %4591 = vmatprep.subr.bf16.mxu0 0
      %4592 = vmatpush1.bf16.msra.mxu0 0
      %4593 = vmatprep.subr.bf16.mxu0 0
      %4594 = vmatpush1.bf16.msra.mxu0 0
      %4595 = vmatprep.subr.bf16.mxu0 0
      %4596 = vmatpush1.bf16.msra.mxu0 0
      %4597 = vmatprep.subr.bf16.mxu0 0
      %4598 = vmatpush1.bf16.msra.mxu0 0
      %4599 = vmatprep.subr.bf16.mxu0 0
      %4600 = vmatpush1.bf16.msra.mxu0 0
      %4601 = vmatprep.subr.bf16.mxu0 0
      %4602 = vmatpush1.bf16.msra.mxu0 %v4582
      %4603 = vmatprep.subr.bf16.mxu0 0
      %4604 = vmatpush2.bf16.msra.mxu0 0
      %4605 = vmatprep.subr.bf16.mxu0 0
      %4606 = vmatpush2.bf16.msra.mxu0 0
      %4607 = vmatprep.subr.bf16.mxu0 0
      %4608 = vmatpush2.bf16.msra.mxu0 0
      %4609 = vmatprep.subr.bf16.mxu0 0
      %4610 = vmatpush2.bf16.msra.mxu0 0
      %4611 = vmatprep.subr.bf16.mxu0 0
      %4612 = vmatpush2.bf16.msra.mxu0 0
      %4613 = vmatprep.subr.bf16.mxu0 0
      %4614 = vmatpush2.bf16.msra.mxu0 0
      %4615 = vmatprep.subr.bf16.mxu0 0
      %4616 = vmatpush2.bf16.msra.mxu0 0
      %4617 = vmatprep.subr.bf16.mxu0 0
      %4618 = vmatpush2.bf16.msra.mxu0 0
      %4619 = vmatprep.mubr.bf16.mxu0 0
      %4620 = vmatmul.mubr.bf16.gmra.mxu0 %v4585
      %v4621 = vpop.f32.mrf.mxu0
      %v4622 = vadd.f32 0.0, %v4621
      %v4623 = vpop.f32.mrf.mxu0
      %v4624 = vpop.f32.mrf.mxu0
      %v4625 = vadd.f32 0.0, %v4624
      %v4626 = vpop.f32.mrf.mxu0
      %4627 = vdwg.mxu0
      %4628 = vrot.lane.b32.xlu0 %v1097, 56
      %v4629 = vpop.permute.xlu0 %4628
      %v4632 = vsel %vm1974, %v4336, 0
      %4634 = vmatprep.subr.bf16.mxu0 0
      %4635 = vmatpush1.bf16.msra.mxu0 0
      %4636 = vmatprep.subr.bf16.mxu0 0
      %4637 = vmatpush1.bf16.msra.mxu0 0
      %4638 = vmatprep.subr.bf16.mxu0 0
      %4639 = vmatpush1.bf16.msra.mxu0 0
      %4640 = vmatprep.subr.bf16.mxu0 0
      %4641 = vmatpush1.bf16.msra.mxu0 0
      %4642 = vmatprep.subr.bf16.mxu0 0
      %4643 = vmatpush1.bf16.msra.mxu0 0
      %4644 = vmatprep.subr.bf16.mxu0 0
      %4645 = vmatpush1.bf16.msra.mxu0 0
      %4646 = vmatprep.subr.bf16.mxu0 0
      %4647 = vmatpush1.bf16.msra.mxu0 0
      %4648 = vmatprep.subr.bf16.mxu0 0
      %4649 = vmatpush1.bf16.msra.mxu0 %v4629
      %4650 = vmatprep.subr.bf16.mxu0 0
      %4651 = vmatpush2.bf16.msra.mxu0 0
      %4652 = vmatprep.subr.bf16.mxu0 0
      %4653 = vmatpush2.bf16.msra.mxu0 0
      %4654 = vmatprep.subr.bf16.mxu0 0
      %4655 = vmatpush2.bf16.msra.mxu0 0
      %4656 = vmatprep.subr.bf16.mxu0 0
      %4657 = vmatpush2.bf16.msra.mxu0 0
      %4658 = vmatprep.subr.bf16.mxu0 0
      %4659 = vmatpush2.bf16.msra.mxu0 0
      %4660 = vmatprep.subr.bf16.mxu0 0
      %4661 = vmatpush2.bf16.msra.mxu0 0
      %4662 = vmatprep.subr.bf16.mxu0 0
      %4663 = vmatpush2.bf16.msra.mxu0 0
      %4664 = vmatprep.subr.bf16.mxu0 0
      %4665 = vmatpush2.bf16.msra.mxu0 0
      %4666 = vmatprep.mubr.bf16.mxu0 0
      %4667 = vmatmul.mubr.bf16.gmra.mxu0 %v4632
      %v4668 = vpop.f32.mrf.mxu0
      %v4669 = vadd.f32 0.0, %v4668
      %v4670 = vpop.f32.mrf.mxu0
      %v4671 = vpop.f32.mrf.mxu0
      %v4672 = vadd.f32 0.0, %v4671
      %v4673 = vpop.f32.mrf.mxu0
      %4674 = vdwg.mxu0
      %4675 = vrot.lane.b32.xlu0 %v1098, 56
      %v4676 = vpop.permute.xlu0 %4675
      %v4679 = vsel %vm1974, %v4337, 0
      %4681 = vmatprep.subr.bf16.mxu0 0
      %4682 = vmatpush1.bf16.msra.mxu0 0
      %4683 = vmatprep.subr.bf16.mxu0 0
      %4684 = vmatpush1.bf16.msra.mxu0 0
      %4685 = vmatprep.subr.bf16.mxu0 0
      %4686 = vmatpush1.bf16.msra.mxu0 0
      %4687 = vmatprep.subr.bf16.mxu0 0
      %4688 = vmatpush1.bf16.msra.mxu0 0
      %4689 = vmatprep.subr.bf16.mxu0 0
      %4690 = vmatpush1.bf16.msra.mxu0 0
      %4691 = vmatprep.subr.bf16.mxu0 0
      %4692 = vmatpush1.bf16.msra.mxu0 0
      %4693 = vmatprep.subr.bf16.mxu0 0
      %4694 = vmatpush1.bf16.msra.mxu0 0
      %4695 = vmatprep.subr.bf16.mxu0 0
      %4696 = vmatpush1.bf16.msra.mxu0 %v4676
      %4697 = vmatprep.subr.bf16.mxu0 0
      %4698 = vmatpush2.bf16.msra.mxu0 0
      %4699 = vmatprep.subr.bf16.mxu0 0
      %4700 = vmatpush2.bf16.msra.mxu0 0
      %4701 = vmatprep.subr.bf16.mxu0 0
      %4702 = vmatpush2.bf16.msra.mxu0 0
      %4703 = vmatprep.subr.bf16.mxu0 0
      %4704 = vmatpush2.bf16.msra.mxu0 0
      %4705 = vmatprep.subr.bf16.mxu0 0
      %4706 = vmatpush2.bf16.msra.mxu0 0
      %4707 = vmatprep.subr.bf16.mxu0 0
      %4708 = vmatpush2.bf16.msra.mxu0 0
      %4709 = vmatprep.subr.bf16.mxu0 0
      %4710 = vmatpush2.bf16.msra.mxu0 0
      %4711 = vmatprep.subr.bf16.mxu0 0
      %4712 = vmatpush2.bf16.msra.mxu0 0
      %4713 = vmatprep.mubr.bf16.mxu0 0
      %4714 = vmatmul.mubr.bf16.gmra.mxu0 %v4679
      %v4715 = vpop.f32.mrf.mxu0
      %v4716 = vadd.f32 0.0, %v4715
      %v4717 = vpop.f32.mrf.mxu0
      %v4718 = vpop.f32.mrf.mxu0
      %v4719 = vadd.f32 0.0, %v4718
      %v4720 = vpop.f32.mrf.mxu0
      %4721 = vdwg.mxu0
      %4722 = vrot.lane.b32.xlu0 %v1099, 56
      %v4723 = vpop.permute.xlu0 %4722
      %v4726 = vsel %vm1974, %v4338, 0
      %4728 = vmatprep.subr.bf16.mxu0 0
      %4729 = vmatpush1.bf16.msra.mxu0 0
      %4730 = vmatprep.subr.bf16.mxu0 0
      %4731 = vmatpush1.bf16.msra.mxu0 0
      %4732 = vmatprep.subr.bf16.mxu0 0
      %4733 = vmatpush1.bf16.msra.mxu0 0
      %4734 = vmatprep.subr.bf16.mxu0 0
      %4735 = vmatpush1.bf16.msra.mxu0 0
      %4736 = vmatprep.subr.bf16.mxu0 0
      %4737 = vmatpush1.bf16.msra.mxu0 0
      %4738 = vmatprep.subr.bf16.mxu0 0
      %4739 = vmatpush1.bf16.msra.mxu0 0
      %4740 = vmatprep.subr.bf16.mxu0 0
      %4741 = vmatpush1.bf16.msra.mxu0 0
      %4742 = vmatprep.subr.bf16.mxu0 0
      %4743 = vmatpush1.bf16.msra.mxu0 %v4723
      %4744 = vmatprep.subr.bf16.mxu0 0
      %4745 = vmatpush2.bf16.msra.mxu0 0
      %4746 = vmatprep.subr.bf16.mxu0 0
      %4747 = vmatpush2.bf16.msra.mxu0 0
      %4748 = vmatprep.subr.bf16.mxu0 0
      %4749 = vmatpush2.bf16.msra.mxu0 0
      %4750 = vmatprep.subr.bf16.mxu0 0
      %4751 = vmatpush2.bf16.msra.mxu0 0
      %4752 = vmatprep.subr.bf16.mxu0 0
      %4753 = vmatpush2.bf16.msra.mxu0 0
      %4754 = vmatprep.subr.bf16.mxu0 0
      %4755 = vmatpush2.bf16.msra.mxu0 0
      %4756 = vmatprep.subr.bf16.mxu0 0
      %4757 = vmatpush2.bf16.msra.mxu0 0
      %4758 = vmatprep.subr.bf16.mxu0 0
      %4759 = vmatpush2.bf16.msra.mxu0 0
      %4760 = vmatprep.mubr.bf16.mxu0 0
      %4761 = vmatmul.mubr.bf16.gmra.mxu0 %v4726
      %v4762 = vpop.f32.mrf.mxu0
      %v4763 = vadd.f32 0.0, %v4762
      %v4764 = vpop.f32.mrf.mxu0
      %v4765 = vpop.f32.mrf.mxu0
      %v4766 = vadd.f32 0.0, %v4765
      %v4767 = vpop.f32.mrf.mxu0
      %4768 = vdwg.mxu0
      %4769 = vrot.lane.b32.xlu0 %v1100, 56
      %v4770 = vpop.permute.xlu0 %4769
      %v4773 = vsel %vm1974, %v4339, 0
      %4775 = vmatprep.subr.bf16.mxu0 0
      %4776 = vmatpush1.bf16.msra.mxu0 0
      %4777 = vmatprep.subr.bf16.mxu0 0
      %4778 = vmatpush1.bf16.msra.mxu0 0
      %4779 = vmatprep.subr.bf16.mxu0 0
      %4780 = vmatpush1.bf16.msra.mxu0 0
      %4781 = vmatprep.subr.bf16.mxu0 0
      %4782 = vmatpush1.bf16.msra.mxu0 0
      %4783 = vmatprep.subr.bf16.mxu0 0
      %4784 = vmatpush1.bf16.msra.mxu0 0
      %4785 = vmatprep.subr.bf16.mxu0 0
      %4786 = vmatpush1.bf16.msra.mxu0 0
      %4787 = vmatprep.subr.bf16.mxu0 0
      %4788 = vmatpush1.bf16.msra.mxu0 0
      %4789 = vmatprep.subr.bf16.mxu0 0
      %4790 = vmatpush1.bf16.msra.mxu0 %v4770
      %4791 = vmatprep.subr.bf16.mxu0 0
      %4792 = vmatpush2.bf16.msra.mxu0 0
      %4793 = vmatprep.subr.bf16.mxu0 0
      %4794 = vmatpush2.bf16.msra.mxu0 0
      %4795 = vmatprep.subr.bf16.mxu0 0
      %4796 = vmatpush2.bf16.msra.mxu0 0
      %4797 = vmatprep.subr.bf16.mxu0 0
      %4798 = vmatpush2.bf16.msra.mxu0 0
      %4799 = vmatprep.subr.bf16.mxu0 0
      %4800 = vmatpush2.bf16.msra.mxu0 0
      %4801 = vmatprep.subr.bf16.mxu0 0
      %4802 = vmatpush2.bf16.msra.mxu0 0
      %4803 = vmatprep.subr.bf16.mxu0 0
      %4804 = vmatpush2.bf16.msra.mxu0 0
      %4805 = vmatprep.subr.bf16.mxu0 0
      %4806 = vmatpush2.bf16.msra.mxu0 0
      %4807 = vmatprep.mubr.bf16.mxu0 0
      %4808 = vmatmul.mubr.bf16.gmra.mxu0 %v4773
      %v4809 = vpop.f32.mrf.mxu0
      %v4810 = vadd.f32 0.0, %v4809
      %v4811 = vpop.f32.mrf.mxu0
      %v4812 = vpop.f32.mrf.mxu0
      %v4813 = vadd.f32 0.0, %v4812
      %v4814 = vpop.f32.mrf.mxu0
      %4815 = vdwg.mxu0
      %4816 = vrot.lane.b32.xlu0 %v1101, 56
      %v4817 = vpop.permute.xlu0 %4816
      %v4820 = vsel %vm1974, %v4340, 0
      %4822 = vmatprep.subr.bf16.mxu0 0
      %4823 = vmatpush1.bf16.msra.mxu0 0
      %4824 = vmatprep.subr.bf16.mxu0 0
      %4825 = vmatpush1.bf16.msra.mxu0 0
      %4826 = vmatprep.subr.bf16.mxu0 0
      %4827 = vmatpush1.bf16.msra.mxu0 0
      %4828 = vmatprep.subr.bf16.mxu0 0
      %4829 = vmatpush1.bf16.msra.mxu0 0
      %4830 = vmatprep.subr.bf16.mxu0 0
      %4831 = vmatpush1.bf16.msra.mxu0 0
      %4832 = vmatprep.subr.bf16.mxu0 0
      %4833 = vmatpush1.bf16.msra.mxu0 0
      %4834 = vmatprep.subr.bf16.mxu0 0
      %4835 = vmatpush1.bf16.msra.mxu0 0
      %4836 = vmatprep.subr.bf16.mxu0 0
      %4837 = vmatpush1.bf16.msra.mxu0 %v4817
      %4838 = vmatprep.subr.bf16.mxu0 0
      %4839 = vmatpush2.bf16.msra.mxu0 0
      %4840 = vmatprep.subr.bf16.mxu0 0
      %4841 = vmatpush2.bf16.msra.mxu0 0
      %4842 = vmatprep.subr.bf16.mxu0 0
      %4843 = vmatpush2.bf16.msra.mxu0 0
      %4844 = vmatprep.subr.bf16.mxu0 0
      %4845 = vmatpush2.bf16.msra.mxu0 0
      %4846 = vmatprep.subr.bf16.mxu0 0
      %4847 = vmatpush2.bf16.msra.mxu0 0
      %4848 = vmatprep.subr.bf16.mxu0 0
      %4849 = vmatpush2.bf16.msra.mxu0 0
      %4850 = vmatprep.subr.bf16.mxu0 0
      %4851 = vmatpush2.bf16.msra.mxu0 0
      %4852 = vmatprep.subr.bf16.mxu0 0
      %4853 = vmatpush2.bf16.msra.mxu0 0
      %4854 = vmatprep.mubr.bf16.mxu0 0
      %4855 = vmatmul.mubr.bf16.gmra.mxu0 %v4820
      %v4856 = vpop.f32.mrf.mxu0
      %v4857 = vadd.f32 0.0, %v4856
      %v4858 = vpop.f32.mrf.mxu0
      %v4859 = vpop.f32.mrf.mxu0
      %v4860 = vadd.f32 0.0, %v4859
      %v4861 = vpop.f32.mrf.mxu0
      %4862 = vdwg.mxu0
      %4863 = vrot.lane.b32.xlu0 %v1102, 56
      %v4864 = vpop.permute.xlu0 %4863
      %v4867 = vsel %vm1974, %v4341, 0
      %4869 = vmatprep.subr.bf16.mxu0 0
      %4870 = vmatpush1.bf16.msra.mxu0 0
      %4871 = vmatprep.subr.bf16.mxu0 0
      %4872 = vmatpush1.bf16.msra.mxu0 0
      %4873 = vmatprep.subr.bf16.mxu0 0
      %4874 = vmatpush1.bf16.msra.mxu0 0
      %4875 = vmatprep.subr.bf16.mxu0 0
      %4876 = vmatpush1.bf16.msra.mxu0 0
      %4877 = vmatprep.subr.bf16.mxu0 0
      %4878 = vmatpush1.bf16.msra.mxu0 0
      %4879 = vmatprep.subr.bf16.mxu0 0
      %4880 = vmatpush1.bf16.msra.mxu0 0
      %4881 = vmatprep.subr.bf16.mxu0 0
      %4882 = vmatpush1.bf16.msra.mxu0 0
      %4883 = vmatprep.subr.bf16.mxu0 0
      %4884 = vmatpush1.bf16.msra.mxu0 %v4864
      %4885 = vmatprep.subr.bf16.mxu0 0
      %4886 = vmatpush2.bf16.msra.mxu0 0
      %4887 = vmatprep.subr.bf16.mxu0 0
      %4888 = vmatpush2.bf16.msra.mxu0 0
      %4889 = vmatprep.subr.bf16.mxu0 0
      %4890 = vmatpush2.bf16.msra.mxu0 0
      %4891 = vmatprep.subr.bf16.mxu0 0
      %4892 = vmatpush2.bf16.msra.mxu0 0
      %4893 = vmatprep.subr.bf16.mxu0 0
      %4894 = vmatpush2.bf16.msra.mxu0 0
      %4895 = vmatprep.subr.bf16.mxu0 0
      %4896 = vmatpush2.bf16.msra.mxu0 0
      %4897 = vmatprep.subr.bf16.mxu0 0
      %4898 = vmatpush2.bf16.msra.mxu0 0
      %4899 = vmatprep.subr.bf16.mxu0 0
      %4900 = vmatpush2.bf16.msra.mxu0 0
      %4901 = vmatprep.mubr.bf16.mxu0 0
      %4902 = vmatmul.mubr.bf16.gmra.mxu0 %v4867
      %v4903 = vpop.f32.mrf.mxu0
      %v4904 = vadd.f32 0.0, %v4903
      %v4905 = vpop.f32.mrf.mxu0
      %v4906 = vpop.f32.mrf.mxu0
      %v4907 = vadd.f32 0.0, %v4906
      %v4908 = vpop.f32.mrf.mxu0
      %4909 = vdwg.mxu0
      %4910 = vrot.lane.b32.xlu0 %v1103, 56
      %v4911 = vpop.permute.xlu0 %4910
      %v4914 = vsel %vm1974, %v4342, 0
      %4916 = vmatprep.subr.bf16.mxu0 0
      %4917 = vmatpush1.bf16.msra.mxu0 0
      %4918 = vmatprep.subr.bf16.mxu0 0
      %4919 = vmatpush1.bf16.msra.mxu0 0
      %4920 = vmatprep.subr.bf16.mxu0 0
      %4921 = vmatpush1.bf16.msra.mxu0 0
      %4922 = vmatprep.subr.bf16.mxu0 0
      %4923 = vmatpush1.bf16.msra.mxu0 0
      %4924 = vmatprep.subr.bf16.mxu0 0
      %4925 = vmatpush1.bf16.msra.mxu0 0
      %4926 = vmatprep.subr.bf16.mxu0 0
      %4927 = vmatpush1.bf16.msra.mxu0 0
      %4928 = vmatprep.subr.bf16.mxu0 0
      %4929 = vmatpush1.bf16.msra.mxu0 0
      %4930 = vmatprep.subr.bf16.mxu0 0
      %4931 = vmatpush1.bf16.msra.mxu0 %v4911
      %4932 = vmatprep.subr.bf16.mxu0 0
      %4933 = vmatpush2.bf16.msra.mxu0 0
      %4934 = vmatprep.subr.bf16.mxu0 0
      %4935 = vmatpush2.bf16.msra.mxu0 0
      %4936 = vmatprep.subr.bf16.mxu0 0
      %4937 = vmatpush2.bf16.msra.mxu0 0
      %4938 = vmatprep.subr.bf16.mxu0 0
      %4939 = vmatpush2.bf16.msra.mxu0 0
      %4940 = vmatprep.subr.bf16.mxu0 0
      %4941 = vmatpush2.bf16.msra.mxu0 0
      %4942 = vmatprep.subr.bf16.mxu0 0
      %4943 = vmatpush2.bf16.msra.mxu0 0
      %4944 = vmatprep.subr.bf16.mxu0 0
      %4945 = vmatpush2.bf16.msra.mxu0 0
      %4946 = vmatprep.subr.bf16.mxu0 0
      %4947 = vmatpush2.bf16.msra.mxu0 0
      %4948 = vmatprep.mubr.bf16.mxu0 0
      %4949 = vmatmul.mubr.bf16.gmra.mxu0 %v4914
      %v4950 = vpop.f32.mrf.mxu0
      %v4951 = vadd.f32 0.0, %v4950
      %v4952 = vpop.f32.mrf.mxu0
      %v4953 = vpop.f32.mrf.mxu0
      %v4954 = vadd.f32 0.0, %v4953
      %v4955 = vpop.f32.mrf.mxu0
      %4956 = vdwg.mxu0
      %4957 = vrot.lane.b32.xlu0 %v1104, 56
      %v4958 = vpop.permute.xlu0 %4957
      %v4961 = vsel %vm1974, %v4343, 0
      %4963 = vmatprep.subr.bf16.mxu0 0
      %4964 = vmatpush1.bf16.msra.mxu0 0
      %4965 = vmatprep.subr.bf16.mxu0 0
      %4966 = vmatpush1.bf16.msra.mxu0 0
      %4967 = vmatprep.subr.bf16.mxu0 0
      %4968 = vmatpush1.bf16.msra.mxu0 0
      %4969 = vmatprep.subr.bf16.mxu0 0
      %4970 = vmatpush1.bf16.msra.mxu0 0
      %4971 = vmatprep.subr.bf16.mxu0 0
      %4972 = vmatpush1.bf16.msra.mxu0 0
      %4973 = vmatprep.subr.bf16.mxu0 0
      %4974 = vmatpush1.bf16.msra.mxu0 0
      %4975 = vmatprep.subr.bf16.mxu0 0
      %4976 = vmatpush1.bf16.msra.mxu0 0
      %4977 = vmatprep.subr.bf16.mxu0 0
      %4978 = vmatpush1.bf16.msra.mxu0 %v4958
      %4979 = vmatprep.subr.bf16.mxu0 0
      %4980 = vmatpush2.bf16.msra.mxu0 0
      %4981 = vmatprep.subr.bf16.mxu0 0
      %4982 = vmatpush2.bf16.msra.mxu0 0
      %4983 = vmatprep.subr.bf16.mxu0 0
      %4984 = vmatpush2.bf16.msra.mxu0 0
      %4985 = vmatprep.subr.bf16.mxu0 0
      %4986 = vmatpush2.bf16.msra.mxu0 0
      %4987 = vmatprep.subr.bf16.mxu0 0
      %4988 = vmatpush2.bf16.msra.mxu0 0
      %4989 = vmatprep.subr.bf16.mxu0 0
      %4990 = vmatpush2.bf16.msra.mxu0 0
      %4991 = vmatprep.subr.bf16.mxu0 0
      %4992 = vmatpush2.bf16.msra.mxu0 0
      %4993 = vmatprep.subr.bf16.mxu0 0
      %4994 = vmatpush2.bf16.msra.mxu0 0
      %4995 = vmatprep.mubr.bf16.mxu0 0
      %4996 = vmatmul.mubr.bf16.gmra.mxu0 %v4961
      %v4997 = vpop.f32.mrf.mxu0
      %v4998 = vadd.f32 0.0, %v4997
      %v4999 = vpop.f32.mrf.mxu0
      %v5000 = vpop.f32.mrf.mxu0
      %v5001 = vadd.f32 0.0, %v5000
      %v5002 = vpop.f32.mrf.mxu0
      %5003 = vdwg.mxu0
      %5004 = vrot.lane.b32.xlu0 %v1105, 56
      %v5005 = vpop.permute.xlu0 %5004
      %v5008 = vsel %vm1974, %v4344, 0
      %5010 = vmatprep.subr.bf16.mxu0 0
      %5011 = vmatpush1.bf16.msra.mxu0 0
      %5012 = vmatprep.subr.bf16.mxu0 0
      %5013 = vmatpush1.bf16.msra.mxu0 0
      %5014 = vmatprep.subr.bf16.mxu0 0
      %5015 = vmatpush1.bf16.msra.mxu0 0
      %5016 = vmatprep.subr.bf16.mxu0 0
      %5017 = vmatpush1.bf16.msra.mxu0 0
      %5018 = vmatprep.subr.bf16.mxu0 0
      %5019 = vmatpush1.bf16.msra.mxu0 0
      %5020 = vmatprep.subr.bf16.mxu0 0
      %5021 = vmatpush1.bf16.msra.mxu0 0
      %5022 = vmatprep.subr.bf16.mxu0 0
      %5023 = vmatpush1.bf16.msra.mxu0 0
      %5024 = vmatprep.subr.bf16.mxu0 0
      %5025 = vmatpush1.bf16.msra.mxu0 %v5005
      %5026 = vmatprep.subr.bf16.mxu0 0
      %5027 = vmatpush2.bf16.msra.mxu0 0
      %5028 = vmatprep.subr.bf16.mxu0 0
      %5029 = vmatpush2.bf16.msra.mxu0 0
      %5030 = vmatprep.subr.bf16.mxu0 0
      %5031 = vmatpush2.bf16.msra.mxu0 0
      %5032 = vmatprep.subr.bf16.mxu0 0
      %5033 = vmatpush2.bf16.msra.mxu0 0
      %5034 = vmatprep.subr.bf16.mxu0 0
      %5035 = vmatpush2.bf16.msra.mxu0 0
      %5036 = vmatprep.subr.bf16.mxu0 0
      %5037 = vmatpush2.bf16.msra.mxu0 0
      %5038 = vmatprep.subr.bf16.mxu0 0
      %5039 = vmatpush2.bf16.msra.mxu0 0
      %5040 = vmatprep.subr.bf16.mxu0 0
      %5041 = vmatpush2.bf16.msra.mxu0 0
      %5042 = vmatprep.mubr.bf16.mxu0 0
      %5043 = vmatmul.mubr.bf16.gmra.mxu0 %v5008
      %v5044 = vpop.f32.mrf.mxu0
      %v5045 = vadd.f32 0.0, %v5044
      %v5046 = vpop.f32.mrf.mxu0
      %v5047 = vpop.f32.mrf.mxu0
      %v5048 = vadd.f32 0.0, %v5047
      %v5049 = vpop.f32.mrf.mxu0
      %5050 = vdwg.mxu0
      %5051 = vrot.lane.b32.xlu0 %v1106, 56
      %v5052 = vpop.permute.xlu0 %5051
      %v5055 = vsel %vm1974, %v4345, 0
      %5057 = vmatprep.subr.bf16.mxu0 0
      %5058 = vmatpush1.bf16.msra.mxu0 0
      %5059 = vmatprep.subr.bf16.mxu0 0
      %5060 = vmatpush1.bf16.msra.mxu0 0
      %5061 = vmatprep.subr.bf16.mxu0 0
      %5062 = vmatpush1.bf16.msra.mxu0 0
      %5063 = vmatprep.subr.bf16.mxu0 0
      %5064 = vmatpush1.bf16.msra.mxu0 0
      %5065 = vmatprep.subr.bf16.mxu0 0
      %5066 = vmatpush1.bf16.msra.mxu0 0
      %5067 = vmatprep.subr.bf16.mxu0 0
      %5068 = vmatpush1.bf16.msra.mxu0 0
      %5069 = vmatprep.subr.bf16.mxu0 0
      %5070 = vmatpush1.bf16.msra.mxu0 0
      %5071 = vmatprep.subr.bf16.mxu0 0
      %5072 = vmatpush1.bf16.msra.mxu0 %v5052
      %5073 = vmatprep.subr.bf16.mxu0 0
      %5074 = vmatpush2.bf16.msra.mxu0 0
      %5075 = vmatprep.subr.bf16.mxu0 0
      %5076 = vmatpush2.bf16.msra.mxu0 0
      %5077 = vmatprep.subr.bf16.mxu0 0
      %5078 = vmatpush2.bf16.msra.mxu0 0
      %5079 = vmatprep.subr.bf16.mxu0 0
      %5080 = vmatpush2.bf16.msra.mxu0 0
      %5081 = vmatprep.subr.bf16.mxu0 0
      %5082 = vmatpush2.bf16.msra.mxu0 0
      %5083 = vmatprep.subr.bf16.mxu0 0
      %5084 = vmatpush2.bf16.msra.mxu0 0
      %5085 = vmatprep.subr.bf16.mxu0 0
      %5086 = vmatpush2.bf16.msra.mxu0 0
      %5087 = vmatprep.subr.bf16.mxu0 0
      %5088 = vmatpush2.bf16.msra.mxu0 0
      %5089 = vmatprep.mubr.bf16.mxu0 0
      %5090 = vmatmul.mubr.bf16.gmra.mxu0 %v5055
      %v5091 = vpop.f32.mrf.mxu0
      %v5092 = vadd.f32 0.0, %v5091
      %v5093 = vpop.f32.mrf.mxu0
      %v5094 = vpop.f32.mrf.mxu0
      %v5095 = vadd.f32 0.0, %v5094
      %v5096 = vpop.f32.mrf.mxu0
      %5097 = vdwg.mxu0
      %5098 = vrot.lane.b32.xlu0 %v1091, 112
      %v5099 = vpop.permute.xlu0 %5098
      %5100 = vrot.lane.b32.xlu0 %v1091, 80
      %v5101 = vpop.permute.xlu0 %5100
      %v5103 = vsel %vm1110, %v5099, 0
      %v5106 = vsel %vm1110, %v5101, 0
      %5108 = vmatprep.subr.bf16.mxu0 0
      %5109 = vmatpush1.bf16.xpose.msra.mxu0 0
      %5110 = vmatprep.subr.bf16.mxu0 0
      %5111 = vmatpush1.bf16.xpose.msra.mxu0 0
      %5112 = vmatprep.subr.bf16.mxu0 0
      %5113 = vmatpush1.bf16.xpose.msra.mxu0 0
      %5114 = vmatprep.subr.bf16.mxu0 0
      %5115 = vmatpush1.bf16.xpose.msra.mxu0 0
      %5116 = vmatprep.subr.bf16.mxu0 0
      %5117 = vmatpush1.bf16.xpose.msra.mxu0 0
      %5118 = vmatprep.subr.bf16.mxu0 0
      %5119 = vmatpush1.bf16.xpose.msra.mxu0 0
      %5120 = vmatprep.subr.bf16.mxu0 0
      %5121 = vmatpush1.bf16.xpose.msra.mxu0 0
      %5122 = vmatprep.subr.bf16.mxu0 0
      %5123 = vmatpush1.bf16.xpose.msra.mxu0 %v5106
      %5124 = vmatprep.subr.bf16.mxu0 0
      %5125 = vmatpush2.bf16.xpose.msra.mxu0 0
      %5126 = vmatprep.subr.bf16.mxu0 0
      %5127 = vmatpush2.bf16.xpose.msra.mxu0 0
      %5128 = vmatprep.subr.bf16.mxu0 0
      %5129 = vmatpush2.bf16.xpose.msra.mxu0 0
      %5130 = vmatprep.subr.bf16.mxu0 0
      %5131 = vmatpush2.bf16.xpose.msra.mxu0 0
      %5132 = vmatprep.subr.bf16.mxu0 0
      %5133 = vmatpush2.bf16.xpose.msra.mxu0 0
      %5134 = vmatprep.subr.bf16.mxu0 0
      %5135 = vmatpush2.bf16.xpose.msra.mxu0 0
      %5136 = vmatprep.subr.bf16.mxu0 0
      %5137 = vmatpush2.bf16.xpose.msra.mxu0 0
      %5138 = vmatprep.subr.bf16.mxu0 0
      %5139 = vmatpush2.bf16.xpose.msra.mxu0 0
      %5140 = vmatprep.mubr.bf16.mxu0 0
      %5141 = vmatmul.mubr.bf16.gmra.mxu0 %v5103
      %v5142 = vpop.f32.mrf.mxu0
      %v5143 = vadd.f32 0.0, %v5142
      %v5144 = vpop.f32.mrf.mxu0
      %v5145 = vpop.f32.mrf.mxu0
      %v5146 = vadd.f32 0.0, %v5145
      %v5147 = vpop.f32.mrf.mxu0
      %5148 = vdwg.mxu0
      %5149 = vrot.lane.b32.xlu0 %v1092, 112
      %v5150 = vpop.permute.xlu0 %5149
      %5151 = vrot.lane.b32.xlu0 %v1092, 80
      %v5152 = vpop.permute.xlu0 %5151
      %v5154 = vsel %vm1110, %v5150, 0
      %v5157 = vsel %vm1110, %v5152, 0
      %5159 = vmatprep.subr.bf16.mxu0 0
      %5160 = vmatpush1.bf16.xpose.msra.mxu0 0
      %5161 = vmatprep.subr.bf16.mxu0 0
      %5162 = vmatpush1.bf16.xpose.msra.mxu0 0
      %5163 = vmatprep.subr.bf16.mxu0 0
      %5164 = vmatpush1.bf16.xpose.msra.mxu0 0
      %5165 = vmatprep.subr.bf16.mxu0 0
      %5166 = vmatpush1.bf16.xpose.msra.mxu0 0
      %5167 = vmatprep.subr.bf16.mxu0 0
      %5168 = vmatpush1.bf16.xpose.msra.mxu0 0
      %5169 = vmatprep.subr.bf16.mxu0 0
      %5170 = vmatpush1.bf16.xpose.msra.mxu0 0
      %5171 = vmatprep.subr.bf16.mxu0 0
      %5172 = vmatpush1.bf16.xpose.msra.mxu0 0
      %5173 = vmatprep.subr.bf16.mxu0 0
      %5174 = vmatpush1.bf16.xpose.msra.mxu0 %v5157
      %5175 = vmatprep.subr.bf16.mxu0 0
      %5176 = vmatpush2.bf16.xpose.msra.mxu0 0
      %5177 = vmatprep.subr.bf16.mxu0 0
      %5178 = vmatpush2.bf16.xpose.msra.mxu0 0
      %5179 = vmatprep.subr.bf16.mxu0 0
      %5180 = vmatpush2.bf16.xpose.msra.mxu0 0
      %5181 = vmatprep.subr.bf16.mxu0 0
      %5182 = vmatpush2.bf16.xpose.msra.mxu0 0
      %5183 = vmatprep.subr.bf16.mxu0 0
      %5184 = vmatpush2.bf16.xpose.msra.mxu0 0
      %5185 = vmatprep.subr.bf16.mxu0 0
      %5186 = vmatpush2.bf16.xpose.msra.mxu0 0
      %5187 = vmatprep.subr.bf16.mxu0 0
      %5188 = vmatpush2.bf16.xpose.msra.mxu0 0
      %5189 = vmatprep.subr.bf16.mxu0 0
      %5190 = vmatpush2.bf16.xpose.msra.mxu0 0
      %5191 = vmatprep.mubr.bf16.mxu0 0
      %5192 = vmatmul.mubr.bf16.gmra.mxu0 %v5154
      %v5193 = vpop.f32.mrf.mxu0
      %v5194 = vadd.f32 0.0, %v5193
      %v5195 = vpop.f32.mrf.mxu0
      %v5196 = vpop.f32.mrf.mxu0
      %v5197 = vadd.f32 0.0, %v5196
      %v5198 = vpop.f32.mrf.mxu0
      %5199 = vdwg.mxu0
      %5200 = vrot.lane.b32.xlu0 %v1093, 112
      %v5201 = vpop.permute.xlu0 %5200
      %5202 = vrot.lane.b32.xlu0 %v1093, 80
      %v5203 = vpop.permute.xlu0 %5202
      %v5205 = vsel %vm1110, %v5201, 0
      %v5208 = vsel %vm1110, %v5203, 0
      %5210 = vmatprep.subr.bf16.mxu0 0
      %5211 = vmatpush1.bf16.xpose.msra.mxu0 0
      %5212 = vmatprep.subr.bf16.mxu0 0
      %5213 = vmatpush1.bf16.xpose.msra.mxu0 0
      %5214 = vmatprep.subr.bf16.mxu0 0
      %5215 = vmatpush1.bf16.xpose.msra.mxu0 0
      %5216 = vmatprep.subr.bf16.mxu0 0
      %5217 = vmatpush1.bf16.xpose.msra.mxu0 0
      %5218 = vmatprep.subr.bf16.mxu0 0
      %5219 = vmatpush1.bf16.xpose.msra.mxu0 0
      %5220 = vmatprep.subr.bf16.mxu0 0
      %5221 = vmatpush1.bf16.xpose.msra.mxu0 0
      %5222 = vmatprep.subr.bf16.mxu0 0
      %5223 = vmatpush1.bf16.xpose.msra.mxu0 0
      %5224 = vmatprep.subr.bf16.mxu0 0
      %5225 = vmatpush1.bf16.xpose.msra.mxu0 %v5208
      %5226 = vmatprep.subr.bf16.mxu0 0
      %5227 = vmatpush2.bf16.xpose.msra.mxu0 0
      %5228 = vmatprep.subr.bf16.mxu0 0
      %5229 = vmatpush2.bf16.xpose.msra.mxu0 0
      %5230 = vmatprep.subr.bf16.mxu0 0
      %5231 = vmatpush2.bf16.xpose.msra.mxu0 0
      %5232 = vmatprep.subr.bf16.mxu0 0
      %5233 = vmatpush2.bf16.xpose.msra.mxu0 0
      %5234 = vmatprep.subr.bf16.mxu0 0
      %5235 = vmatpush2.bf16.xpose.msra.mxu0 0
      %5236 = vmatprep.subr.bf16.mxu0 0
      %5237 = vmatpush2.bf16.xpose.msra.mxu0 0
      %5238 = vmatprep.subr.bf16.mxu0 0
      %5239 = vmatpush2.bf16.xpose.msra.mxu0 0
      %5240 = vmatprep.subr.bf16.mxu0 0
      %5241 = vmatpush2.bf16.xpose.msra.mxu0 0
      %5242 = vmatprep.mubr.bf16.mxu0 0
      %5243 = vmatmul.mubr.bf16.gmra.mxu0 %v5205
      %v5244 = vpop.f32.mrf.mxu0
      %v5245 = vadd.f32 0.0, %v5244
      %v5246 = vpop.f32.mrf.mxu0
      %v5247 = vpop.f32.mrf.mxu0
      %v5248 = vadd.f32 0.0, %v5247
      %v5249 = vpop.f32.mrf.mxu0
      %5250 = vdwg.mxu0
      %5251 = vrot.lane.b32.xlu0 %v1094, 112
      %v5252 = vpop.permute.xlu0 %5251
      %5253 = vrot.lane.b32.xlu0 %v1094, 80
      %v5254 = vpop.permute.xlu0 %5253
      %v5256 = vsel %vm1110, %v5252, 0
      %v5259 = vsel %vm1110, %v5254, 0
      %5261 = vmatprep.subr.bf16.mxu0 0
      %5262 = vmatpush1.bf16.xpose.msra.mxu0 0
      %5263 = vmatprep.subr.bf16.mxu0 0
      %5264 = vmatpush1.bf16.xpose.msra.mxu0 0
      %5265 = vmatprep.subr.bf16.mxu0 0
      %5266 = vmatpush1.bf16.xpose.msra.mxu0 0
      %5267 = vmatprep.subr.bf16.mxu0 0
      %5268 = vmatpush1.bf16.xpose.msra.mxu0 0
      %5269 = vmatprep.subr.bf16.mxu0 0
      %5270 = vmatpush1.bf16.xpose.msra.mxu0 0
      %5271 = vmatprep.subr.bf16.mxu0 0
      %5272 = vmatpush1.bf16.xpose.msra.mxu0 0
      %5273 = vmatprep.subr.bf16.mxu0 0
      %5274 = vmatpush1.bf16.xpose.msra.mxu0 0
      %5275 = vmatprep.subr.bf16.mxu0 0
      %5276 = vmatpush1.bf16.xpose.msra.mxu0 %v5259
      %5277 = vmatprep.subr.bf16.mxu0 0
      %5278 = vmatpush2.bf16.xpose.msra.mxu0 0
      %5279 = vmatprep.subr.bf16.mxu0 0
      %5280 = vmatpush2.bf16.xpose.msra.mxu0 0
      %5281 = vmatprep.subr.bf16.mxu0 0
      %5282 = vmatpush2.bf16.xpose.msra.mxu0 0
      %5283 = vmatprep.subr.bf16.mxu0 0
      %5284 = vmatpush2.bf16.xpose.msra.mxu0 0
      %5285 = vmatprep.subr.bf16.mxu0 0
      %5286 = vmatpush2.bf16.xpose.msra.mxu0 0
      %5287 = vmatprep.subr.bf16.mxu0 0
      %5288 = vmatpush2.bf16.xpose.msra.mxu0 0
      %5289 = vmatprep.subr.bf16.mxu0 0
      %5290 = vmatpush2.bf16.xpose.msra.mxu0 0
      %5291 = vmatprep.subr.bf16.mxu0 0
      %5292 = vmatpush2.bf16.xpose.msra.mxu0 0
      %5293 = vmatprep.mubr.bf16.mxu0 0
      %5294 = vmatmul.mubr.bf16.gmra.mxu0 %v5256
      %v5295 = vpop.f32.mrf.mxu0
      %v5296 = vadd.f32 0.0, %v5295
      %v5297 = vpop.f32.mrf.mxu0
      %v5298 = vpop.f32.mrf.mxu0
      %v5299 = vadd.f32 0.0, %v5298
      %v5300 = vpop.f32.mrf.mxu0
      %5301 = vdwg.mxu0
      %5302 = vrot.lane.b32.xlu0 %v1095, 112
      %v5303 = vpop.permute.xlu0 %5302
      %5304 = vrot.lane.b32.xlu0 %v1095, 80
      %v5305 = vpop.permute.xlu0 %5304
      %v5307 = vsel %vm1110, %v5303, 0
      %v5310 = vsel %vm1110, %v5305, 0
      %5312 = vmatprep.subr.bf16.mxu0 0
      %5313 = vmatpush1.bf16.xpose.msra.mxu0 0
      %5314 = vmatprep.subr.bf16.mxu0 0
      %5315 = vmatpush1.bf16.xpose.msra.mxu0 0
      %5316 = vmatprep.subr.bf16.mxu0 0
      %5317 = vmatpush1.bf16.xpose.msra.mxu0 0
      %5318 = vmatprep.subr.bf16.mxu0 0
      %5319 = vmatpush1.bf16.xpose.msra.mxu0 0
      %5320 = vmatprep.subr.bf16.mxu0 0
      %5321 = vmatpush1.bf16.xpose.msra.mxu0 0
      %5322 = vmatprep.subr.bf16.mxu0 0
      %5323 = vmatpush1.bf16.xpose.msra.mxu0 0
      %5324 = vmatprep.subr.bf16.mxu0 0
      %5325 = vmatpush1.bf16.xpose.msra.mxu0 0
      %5326 = vmatprep.subr.bf16.mxu0 0
      %5327 = vmatpush1.bf16.xpose.msra.mxu0 %v5310
      %5328 = vmatprep.subr.bf16.mxu0 0
      %5329 = vmatpush2.bf16.xpose.msra.mxu0 0
      %5330 = vmatprep.subr.bf16.mxu0 0
      %5331 = vmatpush2.bf16.xpose.msra.mxu0 0
      %5332 = vmatprep.subr.bf16.mxu0 0
      %5333 = vmatpush2.bf16.xpose.msra.mxu0 0
      %5334 = vmatprep.subr.bf16.mxu0 0
      %5335 = vmatpush2.bf16.xpose.msra.mxu0 0
      %5336 = vmatprep.subr.bf16.mxu0 0
      %5337 = vmatpush2.bf16.xpose.msra.mxu0 0
      %5338 = vmatprep.subr.bf16.mxu0 0
      %5339 = vmatpush2.bf16.xpose.msra.mxu0 0
      %5340 = vmatprep.subr.bf16.mxu0 0
      %5341 = vmatpush2.bf16.xpose.msra.mxu0 0
      %5342 = vmatprep.subr.bf16.mxu0 0
      %5343 = vmatpush2.bf16.xpose.msra.mxu0 0
      %5344 = vmatprep.mubr.bf16.mxu0 0
      %5345 = vmatmul.mubr.bf16.gmra.mxu0 %v5307
      %v5346 = vpop.f32.mrf.mxu0
      %v5347 = vadd.f32 0.0, %v5346
      %v5348 = vpop.f32.mrf.mxu0
      %v5349 = vpop.f32.mrf.mxu0
      %v5350 = vadd.f32 0.0, %v5349
      %v5351 = vpop.f32.mrf.mxu0
      %5352 = vdwg.mxu0
      %5353 = vrot.lane.b32.xlu0 %v1096, 112
      %v5354 = vpop.permute.xlu0 %5353
      %5355 = vrot.lane.b32.xlu0 %v1096, 80
      %v5356 = vpop.permute.xlu0 %5355
      %v5358 = vsel %vm1110, %v5354, 0
      %v5361 = vsel %vm1110, %v5356, 0
      %5363 = vmatprep.subr.bf16.mxu0 0
      %5364 = vmatpush1.bf16.xpose.msra.mxu0 0
      %5365 = vmatprep.subr.bf16.mxu0 0
      %5366 = vmatpush1.bf16.xpose.msra.mxu0 0
      %5367 = vmatprep.subr.bf16.mxu0 0
      %5368 = vmatpush1.bf16.xpose.msra.mxu0 0
      %5369 = vmatprep.subr.bf16.mxu0 0
      %5370 = vmatpush1.bf16.xpose.msra.mxu0 0
      %5371 = vmatprep.subr.bf16.mxu0 0
      %5372 = vmatpush1.bf16.xpose.msra.mxu0 0
      %5373 = vmatprep.subr.bf16.mxu0 0
      %5374 = vmatpush1.bf16.xpose.msra.mxu0 0
      %5375 = vmatprep.subr.bf16.mxu0 0
      %5376 = vmatpush1.bf16.xpose.msra.mxu0 0
      %5377 = vmatprep.subr.bf16.mxu0 0
      %5378 = vmatpush1.bf16.xpose.msra.mxu0 %v5361
      %5379 = vmatprep.subr.bf16.mxu0 0
      %5380 = vmatpush2.bf16.xpose.msra.mxu0 0
      %5381 = vmatprep.subr.bf16.mxu0 0
      %5382 = vmatpush2.bf16.xpose.msra.mxu0 0
      %5383 = vmatprep.subr.bf16.mxu0 0
      %5384 = vmatpush2.bf16.xpose.msra.mxu0 0
      %5385 = vmatprep.subr.bf16.mxu0 0
      %5386 = vmatpush2.bf16.xpose.msra.mxu0 0
      %5387 = vmatprep.subr.bf16.mxu0 0
      %5388 = vmatpush2.bf16.xpose.msra.mxu0 0
      %5389 = vmatprep.subr.bf16.mxu0 0
      %5390 = vmatpush2.bf16.xpose.msra.mxu0 0
      %5391 = vmatprep.subr.bf16.mxu0 0
      %5392 = vmatpush2.bf16.xpose.msra.mxu0 0
      %5393 = vmatprep.subr.bf16.mxu0 0
      %5394 = vmatpush2.bf16.xpose.msra.mxu0 0
      %5395 = vmatprep.mubr.bf16.mxu0 0
      %5396 = vmatmul.mubr.bf16.gmra.mxu0 %v5358
      %v5397 = vpop.f32.mrf.mxu0
      %v5398 = vadd.f32 0.0, %v5397
      %v5399 = vpop.f32.mrf.mxu0
      %v5400 = vpop.f32.mrf.mxu0
      %v5401 = vadd.f32 0.0, %v5400
      %v5402 = vpop.f32.mrf.mxu0
      %5403 = vdwg.mxu0
      %5404 = vrot.lane.b32.xlu0 %v1097, 112
      %v5405 = vpop.permute.xlu0 %5404
      %5406 = vrot.lane.b32.xlu0 %v1097, 80
      %v5407 = vpop.permute.xlu0 %5406
      %v5409 = vsel %vm1110, %v5405, 0
      %v5412 = vsel %vm1110, %v5407, 0
      %5414 = vmatprep.subr.bf16.mxu0 0
      %5415 = vmatpush1.bf16.xpose.msra.mxu0 0
      %5416 = vmatprep.subr.bf16.mxu0 0
      %5417 = vmatpush1.bf16.xpose.msra.mxu0 0
      %5418 = vmatprep.subr.bf16.mxu0 0
      %5419 = vmatpush1.bf16.xpose.msra.mxu0 0
      %5420 = vmatprep.subr.bf16.mxu0 0
      %5421 = vmatpush1.bf16.xpose.msra.mxu0 0
      %5422 = vmatprep.subr.bf16.mxu0 0
      %5423 = vmatpush1.bf16.xpose.msra.mxu0 0
      %5424 = vmatprep.subr.bf16.mxu0 0
      %5425 = vmatpush1.bf16.xpose.msra.mxu0 0
      %5426 = vmatprep.subr.bf16.mxu0 0
      %5427 = vmatpush1.bf16.xpose.msra.mxu0 0
      %5428 = vmatprep.subr.bf16.mxu0 0
      %5429 = vmatpush1.bf16.xpose.msra.mxu0 %v5412
      %5430 = vmatprep.subr.bf16.mxu0 0
      %5431 = vmatpush2.bf16.xpose.msra.mxu0 0
      %5432 = vmatprep.subr.bf16.mxu0 0
      %5433 = vmatpush2.bf16.xpose.msra.mxu0 0
      %5434 = vmatprep.subr.bf16.mxu0 0
      %5435 = vmatpush2.bf16.xpose.msra.mxu0 0
      %5436 = vmatprep.subr.bf16.mxu0 0
      %5437 = vmatpush2.bf16.xpose.msra.mxu0 0
      %5438 = vmatprep.subr.bf16.mxu0 0
      %5439 = vmatpush2.bf16.xpose.msra.mxu0 0
      %5440 = vmatprep.subr.bf16.mxu0 0
      %5441 = vmatpush2.bf16.xpose.msra.mxu0 0
      %5442 = vmatprep.subr.bf16.mxu0 0
      %5443 = vmatpush2.bf16.xpose.msra.mxu0 0
      %5444 = vmatprep.subr.bf16.mxu0 0
      %5445 = vmatpush2.bf16.xpose.msra.mxu0 0
      %5446 = vmatprep.mubr.bf16.mxu0 0
      %5447 = vmatmul.mubr.bf16.gmra.mxu0 %v5409
      %v5448 = vpop.f32.mrf.mxu0
      %v5449 = vadd.f32 0.0, %v5448
      %v5450 = vpop.f32.mrf.mxu0
      %v5451 = vpop.f32.mrf.mxu0
      %v5452 = vadd.f32 0.0, %v5451
      %v5453 = vpop.f32.mrf.mxu0
      %5454 = vdwg.mxu0
      %5455 = vrot.lane.b32.xlu0 %v1098, 112
      %v5456 = vpop.permute.xlu0 %5455
      %5457 = vrot.lane.b32.xlu0 %v1098, 80
      %v5458 = vpop.permute.xlu0 %5457
      %v5460 = vsel %vm1110, %v5456, 0
      %v5463 = vsel %vm1110, %v5458, 0
      %5465 = vmatprep.subr.bf16.mxu0 0
      %5466 = vmatpush1.bf16.xpose.msra.mxu0 0
      %5467 = vmatprep.subr.bf16.mxu0 0
      %5468 = vmatpush1.bf16.xpose.msra.mxu0 0
      %5469 = vmatprep.subr.bf16.mxu0 0
      %5470 = vmatpush1.bf16.xpose.msra.mxu0 0
      %5471 = vmatprep.subr.bf16.mxu0 0
      %5472 = vmatpush1.bf16.xpose.msra.mxu0 0
      %5473 = vmatprep.subr.bf16.mxu0 0
      %5474 = vmatpush1.bf16.xpose.msra.mxu0 0
      %5475 = vmatprep.subr.bf16.mxu0 0
      %5476 = vmatpush1.bf16.xpose.msra.mxu0 0
      %5477 = vmatprep.subr.bf16.mxu0 0
      %5478 = vmatpush1.bf16.xpose.msra.mxu0 0
      %5479 = vmatprep.subr.bf16.mxu0 0
      %5480 = vmatpush1.bf16.xpose.msra.mxu0 %v5463
      %5481 = vmatprep.subr.bf16.mxu0 0
      %5482 = vmatpush2.bf16.xpose.msra.mxu0 0
      %5483 = vmatprep.subr.bf16.mxu0 0
      %5484 = vmatpush2.bf16.xpose.msra.mxu0 0
      %5485 = vmatprep.subr.bf16.mxu0 0
      %5486 = vmatpush2.bf16.xpose.msra.mxu0 0
      %5487 = vmatprep.subr.bf16.mxu0 0
      %5488 = vmatpush2.bf16.xpose.msra.mxu0 0
      %5489 = vmatprep.subr.bf16.mxu0 0
      %5490 = vmatpush2.bf16.xpose.msra.mxu0 0
      %5491 = vmatprep.subr.bf16.mxu0 0
      %5492 = vmatpush2.bf16.xpose.msra.mxu0 0
      %5493 = vmatprep.subr.bf16.mxu0 0
      %5494 = vmatpush2.bf16.xpose.msra.mxu0 0
      %5495 = vmatprep.subr.bf16.mxu0 0
      %5496 = vmatpush2.bf16.xpose.msra.mxu0 0
      %5497 = vmatprep.mubr.bf16.mxu0 0
      %5498 = vmatmul.mubr.bf16.gmra.mxu0 %v5460
      %v5499 = vpop.f32.mrf.mxu0
      %v5500 = vadd.f32 0.0, %v5499
      %v5501 = vpop.f32.mrf.mxu0
      %v5502 = vpop.f32.mrf.mxu0
      %v5503 = vadd.f32 0.0, %v5502
      %v5504 = vpop.f32.mrf.mxu0
      %5505 = vdwg.mxu0
      %5506 = vrot.lane.b32.xlu0 %v1099, 112
      %v5507 = vpop.permute.xlu0 %5506
      %5508 = vrot.lane.b32.xlu0 %v1099, 80
      %v5509 = vpop.permute.xlu0 %5508
      %v5511 = vsel %vm1110, %v5507, 0
      %v5514 = vsel %vm1110, %v5509, 0
      %5516 = vmatprep.subr.bf16.mxu0 0
      %5517 = vmatpush1.bf16.xpose.msra.mxu0 0
      %5518 = vmatprep.subr.bf16.mxu0 0
      %5519 = vmatpush1.bf16.xpose.msra.mxu0 0
      %5520 = vmatprep.subr.bf16.mxu0 0
      %5521 = vmatpush1.bf16.xpose.msra.mxu0 0
      %5522 = vmatprep.subr.bf16.mxu0 0
      %5523 = vmatpush1.bf16.xpose.msra.mxu0 0
      %5524 = vmatprep.subr.bf16.mxu0 0
      %5525 = vmatpush1.bf16.xpose.msra.mxu0 0
      %5526 = vmatprep.subr.bf16.mxu0 0
      %5527 = vmatpush1.bf16.xpose.msra.mxu0 0
      %5528 = vmatprep.subr.bf16.mxu0 0
      %5529 = vmatpush1.bf16.xpose.msra.mxu0 0
      %5530 = vmatprep.subr.bf16.mxu0 0
      %5531 = vmatpush1.bf16.xpose.msra.mxu0 %v5514
      %5532 = vmatprep.subr.bf16.mxu0 0
      %5533 = vmatpush2.bf16.xpose.msra.mxu0 0
      %5534 = vmatprep.subr.bf16.mxu0 0
      %5535 = vmatpush2.bf16.xpose.msra.mxu0 0
      %5536 = vmatprep.subr.bf16.mxu0 0
      %5537 = vmatpush2.bf16.xpose.msra.mxu0 0
      %5538 = vmatprep.subr.bf16.mxu0 0
      %5539 = vmatpush2.bf16.xpose.msra.mxu0 0
      %5540 = vmatprep.subr.bf16.mxu0 0
      %5541 = vmatpush2.bf16.xpose.msra.mxu0 0
      %5542 = vmatprep.subr.bf16.mxu0 0
      %5543 = vmatpush2.bf16.xpose.msra.mxu0 0
      %5544 = vmatprep.subr.bf16.mxu0 0
      %5545 = vmatpush2.bf16.xpose.msra.mxu0 0
      %5546 = vmatprep.subr.bf16.mxu0 0
      %5547 = vmatpush2.bf16.xpose.msra.mxu0 0
      %5548 = vmatprep.mubr.bf16.mxu0 0
      %5549 = vmatmul.mubr.bf16.gmra.mxu0 %v5511
      %v5550 = vpop.f32.mrf.mxu0
      %v5551 = vadd.f32 0.0, %v5550
      %v5552 = vpop.f32.mrf.mxu0
      %v5553 = vpop.f32.mrf.mxu0
      %v5554 = vadd.f32 0.0, %v5553
      %v5555 = vpop.f32.mrf.mxu0
      %5556 = vdwg.mxu0
      %5557 = vrot.lane.b32.xlu0 %v1100, 112
      %v5558 = vpop.permute.xlu0 %5557
      %5559 = vrot.lane.b32.xlu0 %v1100, 80
      %v5560 = vpop.permute.xlu0 %5559
      %v5562 = vsel %vm1110, %v5558, 0
      %v5565 = vsel %vm1110, %v5560, 0
      %5567 = vmatprep.subr.bf16.mxu0 0
      %5568 = vmatpush1.bf16.xpose.msra.mxu0 0
      %5569 = vmatprep.subr.bf16.mxu0 0
      %5570 = vmatpush1.bf16.xpose.msra.mxu0 0
      %5571 = vmatprep.subr.bf16.mxu0 0
      %5572 = vmatpush1.bf16.xpose.msra.mxu0 0
      %5573 = vmatprep.subr.bf16.mxu0 0
      %5574 = vmatpush1.bf16.xpose.msra.mxu0 0
      %5575 = vmatprep.subr.bf16.mxu0 0
      %5576 = vmatpush1.bf16.xpose.msra.mxu0 0
      %5577 = vmatprep.subr.bf16.mxu0 0
      %5578 = vmatpush1.bf16.xpose.msra.mxu0 0
      %5579 = vmatprep.subr.bf16.mxu0 0
      %5580 = vmatpush1.bf16.xpose.msra.mxu0 0
      %5581 = vmatprep.subr.bf16.mxu0 0
      %5582 = vmatpush1.bf16.xpose.msra.mxu0 %v5565
      %5583 = vmatprep.subr.bf16.mxu0 0
      %5584 = vmatpush2.bf16.xpose.msra.mxu0 0
      %5585 = vmatprep.subr.bf16.mxu0 0
      %5586 = vmatpush2.bf16.xpose.msra.mxu0 0
      %5587 = vmatprep.subr.bf16.mxu0 0
      %5588 = vmatpush2.bf16.xpose.msra.mxu0 0
      %5589 = vmatprep.subr.bf16.mxu0 0
      %5590 = vmatpush2.bf16.xpose.msra.mxu0 0
      %5591 = vmatprep.subr.bf16.mxu0 0
      %5592 = vmatpush2.bf16.xpose.msra.mxu0 0
      %5593 = vmatprep.subr.bf16.mxu0 0
      %5594 = vmatpush2.bf16.xpose.msra.mxu0 0
      %5595 = vmatprep.subr.bf16.mxu0 0
      %5596 = vmatpush2.bf16.xpose.msra.mxu0 0
      %5597 = vmatprep.subr.bf16.mxu0 0
      %5598 = vmatpush2.bf16.xpose.msra.mxu0 0
      %5599 = vmatprep.mubr.bf16.mxu0 0
      %5600 = vmatmul.mubr.bf16.gmra.mxu0 %v5562
      %v5601 = vpop.f32.mrf.mxu0
      %v5602 = vadd.f32 0.0, %v5601
      %v5603 = vpop.f32.mrf.mxu0
      %v5604 = vpop.f32.mrf.mxu0
      %v5605 = vadd.f32 0.0, %v5604
      %v5606 = vpop.f32.mrf.mxu0
      %5607 = vdwg.mxu0
      %5608 = vrot.lane.b32.xlu0 %v1101, 112
      %v5609 = vpop.permute.xlu0 %5608
      %5610 = vrot.lane.b32.xlu0 %v1101, 80
      %v5611 = vpop.permute.xlu0 %5610
      %v5613 = vsel %vm1110, %v5609, 0
      %v5616 = vsel %vm1110, %v5611, 0
      %5618 = vmatprep.subr.bf16.mxu0 0
      %5619 = vmatpush1.bf16.xpose.msra.mxu0 0
      %5620 = vmatprep.subr.bf16.mxu0 0
      %5621 = vmatpush1.bf16.xpose.msra.mxu0 0
      %5622 = vmatprep.subr.bf16.mxu0 0
      %5623 = vmatpush1.bf16.xpose.msra.mxu0 0
      %5624 = vmatprep.subr.bf16.mxu0 0
      %5625 = vmatpush1.bf16.xpose.msra.mxu0 0
      %5626 = vmatprep.subr.bf16.mxu0 0
      %5627 = vmatpush1.bf16.xpose.msra.mxu0 0
      %5628 = vmatprep.subr.bf16.mxu0 0
      %5629 = vmatpush1.bf16.xpose.msra.mxu0 0
      %5630 = vmatprep.subr.bf16.mxu0 0
      %5631 = vmatpush1.bf16.xpose.msra.mxu0 0
      %5632 = vmatprep.subr.bf16.mxu0 0
      %5633 = vmatpush1.bf16.xpose.msra.mxu0 %v5616
      %5634 = vmatprep.subr.bf16.mxu0 0
      %5635 = vmatpush2.bf16.xpose.msra.mxu0 0
      %5636 = vmatprep.subr.bf16.mxu0 0
      %5637 = vmatpush2.bf16.xpose.msra.mxu0 0
      %5638 = vmatprep.subr.bf16.mxu0 0
      %5639 = vmatpush2.bf16.xpose.msra.mxu0 0
      %5640 = vmatprep.subr.bf16.mxu0 0
      %5641 = vmatpush2.bf16.xpose.msra.mxu0 0
      %5642 = vmatprep.subr.bf16.mxu0 0
      %5643 = vmatpush2.bf16.xpose.msra.mxu0 0
      %5644 = vmatprep.subr.bf16.mxu0 0
      %5645 = vmatpush2.bf16.xpose.msra.mxu0 0
      %5646 = vmatprep.subr.bf16.mxu0 0
      %5647 = vmatpush2.bf16.xpose.msra.mxu0 0
      %5648 = vmatprep.subr.bf16.mxu0 0
      %5649 = vmatpush2.bf16.xpose.msra.mxu0 0
      %5650 = vmatprep.mubr.bf16.mxu0 0
      %5651 = vmatmul.mubr.bf16.gmra.mxu0 %v5613
      %v5652 = vpop.f32.mrf.mxu0
      %v5653 = vadd.f32 0.0, %v5652
      %v5654 = vpop.f32.mrf.mxu0
      %v5655 = vpop.f32.mrf.mxu0
      %v5656 = vadd.f32 0.0, %v5655
      %v5657 = vpop.f32.mrf.mxu0
      %5658 = vdwg.mxu0
      %5659 = vrot.lane.b32.xlu0 %v1102, 112
      %v5660 = vpop.permute.xlu0 %5659
      %5661 = vrot.lane.b32.xlu0 %v1102, 80
      %v5662 = vpop.permute.xlu0 %5661
      %v5664 = vsel %vm1110, %v5660, 0
      %v5667 = vsel %vm1110, %v5662, 0
      %5669 = vmatprep.subr.bf16.mxu0 0
      %5670 = vmatpush1.bf16.xpose.msra.mxu0 0
      %5671 = vmatprep.subr.bf16.mxu0 0
      %5672 = vmatpush1.bf16.xpose.msra.mxu0 0
      %5673 = vmatprep.subr.bf16.mxu0 0
      %5674 = vmatpush1.bf16.xpose.msra.mxu0 0
      %5675 = vmatprep.subr.bf16.mxu0 0
      %5676 = vmatpush1.bf16.xpose.msra.mxu0 0
      %5677 = vmatprep.subr.bf16.mxu0 0
      %5678 = vmatpush1.bf16.xpose.msra.mxu0 0
      %5679 = vmatprep.subr.bf16.mxu0 0
      %5680 = vmatpush1.bf16.xpose.msra.mxu0 0
      %5681 = vmatprep.subr.bf16.mxu0 0
      %5682 = vmatpush1.bf16.xpose.msra.mxu0 0
      %5683 = vmatprep.subr.bf16.mxu0 0
      %5684 = vmatpush1.bf16.xpose.msra.mxu0 %v5667
      %5685 = vmatprep.subr.bf16.mxu0 0
      %5686 = vmatpush2.bf16.xpose.msra.mxu0 0
      %5687 = vmatprep.subr.bf16.mxu0 0
      %5688 = vmatpush2.bf16.xpose.msra.mxu0 0
      %5689 = vmatprep.subr.bf16.mxu0 0
      %5690 = vmatpush2.bf16.xpose.msra.mxu0 0
      %5691 = vmatprep.subr.bf16.mxu0 0
      %5692 = vmatpush2.bf16.xpose.msra.mxu0 0
      %5693 = vmatprep.subr.bf16.mxu0 0
      %5694 = vmatpush2.bf16.xpose.msra.mxu0 0
      %5695 = vmatprep.subr.bf16.mxu0 0
      %5696 = vmatpush2.bf16.xpose.msra.mxu0 0
      %5697 = vmatprep.subr.bf16.mxu0 0
      %5698 = vmatpush2.bf16.xpose.msra.mxu0 0
      %5699 = vmatprep.subr.bf16.mxu0 0
      %5700 = vmatpush2.bf16.xpose.msra.mxu0 0
      %5701 = vmatprep.mubr.bf16.mxu0 0
      %5702 = vmatmul.mubr.bf16.gmra.mxu0 %v5664
      %v5703 = vpop.f32.mrf.mxu0
      %v5704 = vadd.f32 0.0, %v5703
      %v5705 = vpop.f32.mrf.mxu0
      %v5706 = vpop.f32.mrf.mxu0
      %v5707 = vadd.f32 0.0, %v5706
      %v5708 = vpop.f32.mrf.mxu0
      %5709 = vdwg.mxu0
      %5710 = vrot.lane.b32.xlu0 %v1103, 112
      %v5711 = vpop.permute.xlu0 %5710
      %5712 = vrot.lane.b32.xlu0 %v1103, 80
      %v5713 = vpop.permute.xlu0 %5712
      %v5715 = vsel %vm1110, %v5711, 0
      %v5718 = vsel %vm1110, %v5713, 0
      %5720 = vmatprep.subr.bf16.mxu0 0
      %5721 = vmatpush1.bf16.xpose.msra.mxu0 0
      %5722 = vmatprep.subr.bf16.mxu0 0
      %5723 = vmatpush1.bf16.xpose.msra.mxu0 0
      %5724 = vmatprep.subr.bf16.mxu0 0
      %5725 = vmatpush1.bf16.xpose.msra.mxu0 0
      %5726 = vmatprep.subr.bf16.mxu0 0
      %5727 = vmatpush1.bf16.xpose.msra.mxu0 0
      %5728 = vmatprep.subr.bf16.mxu0 0
      %5729 = vmatpush1.bf16.xpose.msra.mxu0 0
      %5730 = vmatprep.subr.bf16.mxu0 0
      %5731 = vmatpush1.bf16.xpose.msra.mxu0 0
      %5732 = vmatprep.subr.bf16.mxu0 0
      %5733 = vmatpush1.bf16.xpose.msra.mxu0 0
      %5734 = vmatprep.subr.bf16.mxu0 0
      %5735 = vmatpush1.bf16.xpose.msra.mxu0 %v5718
      %5736 = vmatprep.subr.bf16.mxu0 0
      %5737 = vmatpush2.bf16.xpose.msra.mxu0 0
      %5738 = vmatprep.subr.bf16.mxu0 0
      %5739 = vmatpush2.bf16.xpose.msra.mxu0 0
      %5740 = vmatprep.subr.bf16.mxu0 0
      %5741 = vmatpush2.bf16.xpose.msra.mxu0 0
      %5742 = vmatprep.subr.bf16.mxu0 0
      %5743 = vmatpush2.bf16.xpose.msra.mxu0 0
      %5744 = vmatprep.subr.bf16.mxu0 0
      %5745 = vmatpush2.bf16.xpose.msra.mxu0 0
      %5746 = vmatprep.subr.bf16.mxu0 0
      %5747 = vmatpush2.bf16.xpose.msra.mxu0 0
      %5748 = vmatprep.subr.bf16.mxu0 0
      %5749 = vmatpush2.bf16.xpose.msra.mxu0 0
      %5750 = vmatprep.subr.bf16.mxu0 0
      %5751 = vmatpush2.bf16.xpose.msra.mxu0 0
      %5752 = vmatprep.mubr.bf16.mxu0 0
      %5753 = vmatmul.mubr.bf16.gmra.mxu0 %v5715
      %v5754 = vpop.f32.mrf.mxu0
      %v5755 = vadd.f32 0.0, %v5754
      %v5756 = vpop.f32.mrf.mxu0
      %v5757 = vpop.f32.mrf.mxu0
      %v5758 = vadd.f32 0.0, %v5757
      %v5759 = vpop.f32.mrf.mxu0
      %5760 = vdwg.mxu0
      %5761 = vrot.lane.b32.xlu0 %v1104, 112
      %v5762 = vpop.permute.xlu0 %5761
      %5763 = vrot.lane.b32.xlu0 %v1104, 80
      %v5764 = vpop.permute.xlu0 %5763
      %v5766 = vsel %vm1110, %v5762, 0
      %v5769 = vsel %vm1110, %v5764, 0
      %5771 = vmatprep.subr.bf16.mxu0 0
      %5772 = vmatpush1.bf16.xpose.msra.mxu0 0
      %5773 = vmatprep.subr.bf16.mxu0 0
      %5774 = vmatpush1.bf16.xpose.msra.mxu0 0
      %5775 = vmatprep.subr.bf16.mxu0 0
      %5776 = vmatpush1.bf16.xpose.msra.mxu0 0
      %5777 = vmatprep.subr.bf16.mxu0 0
      %5778 = vmatpush1.bf16.xpose.msra.mxu0 0
      %5779 = vmatprep.subr.bf16.mxu0 0
      %5780 = vmatpush1.bf16.xpose.msra.mxu0 0
      %5781 = vmatprep.subr.bf16.mxu0 0
      %5782 = vmatpush1.bf16.xpose.msra.mxu0 0
      %5783 = vmatprep.subr.bf16.mxu0 0
      %5784 = vmatpush1.bf16.xpose.msra.mxu0 0
      %5785 = vmatprep.subr.bf16.mxu0 0
      %5786 = vmatpush1.bf16.xpose.msra.mxu0 %v5769
      %5787 = vmatprep.subr.bf16.mxu0 0
      %5788 = vmatpush2.bf16.xpose.msra.mxu0 0
      %5789 = vmatprep.subr.bf16.mxu0 0
      %5790 = vmatpush2.bf16.xpose.msra.mxu0 0
      %5791 = vmatprep.subr.bf16.mxu0 0
      %5792 = vmatpush2.bf16.xpose.msra.mxu0 0
      %5793 = vmatprep.subr.bf16.mxu0 0
      %5794 = vmatpush2.bf16.xpose.msra.mxu0 0
      %5795 = vmatprep.subr.bf16.mxu0 0
      %5796 = vmatpush2.bf16.xpose.msra.mxu0 0
      %5797 = vmatprep.subr.bf16.mxu0 0
      %5798 = vmatpush2.bf16.xpose.msra.mxu0 0
      %5799 = vmatprep.subr.bf16.mxu0 0
      %5800 = vmatpush2.bf16.xpose.msra.mxu0 0
      %5801 = vmatprep.subr.bf16.mxu0 0
      %5802 = vmatpush2.bf16.xpose.msra.mxu0 0
      %5803 = vmatprep.mubr.bf16.mxu0 0
      %5804 = vmatmul.mubr.bf16.gmra.mxu0 %v5766
      %v5805 = vpop.f32.mrf.mxu0
      %v5806 = vadd.f32 0.0, %v5805
      %v5807 = vpop.f32.mrf.mxu0
      %v5808 = vpop.f32.mrf.mxu0
      %v5809 = vadd.f32 0.0, %v5808
      %v5810 = vpop.f32.mrf.mxu0
      %5811 = vdwg.mxu0
      %5812 = vrot.lane.b32.xlu0 %v1105, 112
      %v5813 = vpop.permute.xlu0 %5812
      %5814 = vrot.lane.b32.xlu0 %v1105, 80
      %v5815 = vpop.permute.xlu0 %5814
      %v5817 = vsel %vm1110, %v5813, 0
      %v5820 = vsel %vm1110, %v5815, 0
      %5822 = vmatprep.subr.bf16.mxu0 0
      %5823 = vmatpush1.bf16.xpose.msra.mxu0 0
      %5824 = vmatprep.subr.bf16.mxu0 0
      %5825 = vmatpush1.bf16.xpose.msra.mxu0 0
      %5826 = vmatprep.subr.bf16.mxu0 0
      %5827 = vmatpush1.bf16.xpose.msra.mxu0 0
      %5828 = vmatprep.subr.bf16.mxu0 0
      %5829 = vmatpush1.bf16.xpose.msra.mxu0 0
      %5830 = vmatprep.subr.bf16.mxu0 0
      %5831 = vmatpush1.bf16.xpose.msra.mxu0 0
      %5832 = vmatprep.subr.bf16.mxu0 0
      %5833 = vmatpush1.bf16.xpose.msra.mxu0 0
      %5834 = vmatprep.subr.bf16.mxu0 0
      %5835 = vmatpush1.bf16.xpose.msra.mxu0 0
      %5836 = vmatprep.subr.bf16.mxu0 0
      %5837 = vmatpush1.bf16.xpose.msra.mxu0 %v5820
      %5838 = vmatprep.subr.bf16.mxu0 0
      %5839 = vmatpush2.bf16.xpose.msra.mxu0 0
      %5840 = vmatprep.subr.bf16.mxu0 0
      %5841 = vmatpush2.bf16.xpose.msra.mxu0 0
      %5842 = vmatprep.subr.bf16.mxu0 0
      %5843 = vmatpush2.bf16.xpose.msra.mxu0 0
      %5844 = vmatprep.subr.bf16.mxu0 0
      %5845 = vmatpush2.bf16.xpose.msra.mxu0 0
      %5846 = vmatprep.subr.bf16.mxu0 0
      %5847 = vmatpush2.bf16.xpose.msra.mxu0 0
      %5848 = vmatprep.subr.bf16.mxu0 0
      %5849 = vmatpush2.bf16.xpose.msra.mxu0 0
      %5850 = vmatprep.subr.bf16.mxu0 0
      %5851 = vmatpush2.bf16.xpose.msra.mxu0 0
      %5852 = vmatprep.subr.bf16.mxu0 0
      %5853 = vmatpush2.bf16.xpose.msra.mxu0 0
      %5854 = vmatprep.mubr.bf16.mxu0 0
      %5855 = vmatmul.mubr.bf16.gmra.mxu0 %v5817
      %v5856 = vpop.f32.mrf.mxu0
      %v5857 = vadd.f32 0.0, %v5856
      %v5858 = vpop.f32.mrf.mxu0
      %v5859 = vpop.f32.mrf.mxu0
      %v5860 = vadd.f32 0.0, %v5859
      %v5861 = vpop.f32.mrf.mxu0
      %5862 = vdwg.mxu0
      %5863 = vrot.lane.b32.xlu0 %v1106, 112
      %v5864 = vpop.permute.xlu0 %5863
      %5865 = vrot.lane.b32.xlu0 %v1106, 80
      %v5866 = vpop.permute.xlu0 %5865
      %v5868 = vsel %vm1110, %v5864, 0
      %v5871 = vsel %vm1110, %v5866, 0
      %5873 = vmatprep.subr.bf16.mxu0 0
      %5874 = vmatpush1.bf16.xpose.msra.mxu0 0
      %5875 = vmatprep.subr.bf16.mxu0 0
      %5876 = vmatpush1.bf16.xpose.msra.mxu0 0
      %5877 = vmatprep.subr.bf16.mxu0 0
      %5878 = vmatpush1.bf16.xpose.msra.mxu0 0
      %5879 = vmatprep.subr.bf16.mxu0 0
      %5880 = vmatpush1.bf16.xpose.msra.mxu0 0
      %5881 = vmatprep.subr.bf16.mxu0 0
      %5882 = vmatpush1.bf16.xpose.msra.mxu0 0
      %5883 = vmatprep.subr.bf16.mxu0 0
      %5884 = vmatpush1.bf16.xpose.msra.mxu0 0
      %5885 = vmatprep.subr.bf16.mxu0 0
      %5886 = vmatpush1.bf16.xpose.msra.mxu0 0
      %5887 = vmatprep.subr.bf16.mxu0 0
      %5888 = vmatpush1.bf16.xpose.msra.mxu0 %v5871
      %5889 = vmatprep.subr.bf16.mxu0 0
      %5890 = vmatpush2.bf16.xpose.msra.mxu0 0
      %5891 = vmatprep.subr.bf16.mxu0 0
      %5892 = vmatpush2.bf16.xpose.msra.mxu0 0
      %5893 = vmatprep.subr.bf16.mxu0 0
      %5894 = vmatpush2.bf16.xpose.msra.mxu0 0
      %5895 = vmatprep.subr.bf16.mxu0 0
      %5896 = vmatpush2.bf16.xpose.msra.mxu0 0
      %5897 = vmatprep.subr.bf16.mxu0 0
      %5898 = vmatpush2.bf16.xpose.msra.mxu0 0
      %5899 = vmatprep.subr.bf16.mxu0 0
      %5900 = vmatpush2.bf16.xpose.msra.mxu0 0
      %5901 = vmatprep.subr.bf16.mxu0 0
      %5902 = vmatpush2.bf16.xpose.msra.mxu0 0
      %5903 = vmatprep.subr.bf16.mxu0 0
      %5904 = vmatpush2.bf16.xpose.msra.mxu0 0
      %5905 = vmatprep.mubr.bf16.mxu0 0
      %5906 = vmatmul.mubr.bf16.gmra.mxu0 %v5868
      %v5907 = vpop.f32.mrf.mxu0
      %v5908 = vadd.f32 0.0, %v5907
      %v5909 = vpop.f32.mrf.mxu0
      %v5910 = vpop.f32.mrf.mxu0
      %v5911 = vadd.f32 0.0, %v5910
      %v5912 = vpop.f32.mrf.mxu0
      %5913 = vdwg.mxu0
      %v5914 = vmul.f32 %v5143, 0.5
      %v5915 = vmul.f32 %v5146, 0.5
      %v5916 = vmul.f32 %v5194, 0.5
      %v5917 = vmul.f32 %v5197, 0.5
      %v5918 = vmul.f32 %v5245, 0.5
      %v5919 = vmul.f32 %v5248, 0.5
      %v5920 = vmul.f32 %v5296, 0.5
      %v5921 = vmul.f32 %v5299, 0.5
      %v5922 = vmul.f32 %v5347, 0.5
      %v5923 = vmul.f32 %v5350, 0.5
      %v5924 = vmul.f32 %v5398, 0.5
      %v5925 = vmul.f32 %v5401, 0.5
      %v5926 = vmul.f32 %v5449, 0.5
      %v5927 = vmul.f32 %v5452, 0.5
      %v5928 = vmul.f32 %v5500, 0.5
      %v5929 = vmul.f32 %v5503, 0.5
      %v5930 = vmul.f32 %v5551, 0.5
      %v5931 = vmul.f32 %v5554, 0.5
      %v5932 = vmul.f32 %v5602, 0.5
      %v5933 = vmul.f32 %v5605, 0.5
      %v5934 = vmul.f32 %v5653, 0.5
      %v5935 = vmul.f32 %v5656, 0.5
      %v5936 = vmul.f32 %v5704, 0.5
      %v5937 = vmul.f32 %v5707, 0.5
      %v5938 = vmul.f32 %v5755, 0.5
      %v5939 = vmul.f32 %v5758, 0.5
      %v5940 = vmul.f32 %v5806, 0.5
      %v5941 = vmul.f32 %v5809, 0.5
      %v5942 = vmul.f32 %v5857, 0.5
      %v5943 = vmul.f32 %v5860, 0.5
      %v5944 = vmul.f32 %v5908, 0.5
      %v5945 = vmul.f32 %v5911, 0.5
      %s5946 = scalar_lea.vmem %s7, 32
      %v5947 = vld [vmem:[%s5946] sm:$0xff]
      %v5948 = vld [vmem:[%s5946 + $0x8] sm:$0xff]
      %v5949 = vadd.f32 %v5914, %v5947
      %v5950 = vadd.f32 %v5915, %v5948
      %v5951 = vadd.f32 %v5916, %v5947
      %v5952 = vadd.f32 %v5917, %v5948
      %v5953 = vadd.f32 %v5918, %v5947
      %v5954 = vadd.f32 %v5919, %v5948
      %v5955 = vadd.f32 %v5920, %v5947
      %v5956 = vadd.f32 %v5921, %v5948
      %v5957 = vadd.f32 %v5922, %v5947
      %v5958 = vadd.f32 %v5923, %v5948
      %v5959 = vadd.f32 %v5924, %v5947
      %v5960 = vadd.f32 %v5925, %v5948
      %v5961 = vadd.f32 %v5926, %v5947
      %v5962 = vadd.f32 %v5927, %v5948
      %v5963 = vadd.f32 %v5928, %v5947
      %v5964 = vadd.f32 %v5929, %v5948
      %v5965 = vadd.f32 %v5930, %v5947
      %v5966 = vadd.f32 %v5931, %v5948
      %v5967 = vadd.f32 %v5932, %v5947
      %v5968 = vadd.f32 %v5933, %v5948
      %v5969 = vadd.f32 %v5934, %v5947
      %v5970 = vadd.f32 %v5935, %v5948
      %v5971 = vadd.f32 %v5936, %v5947
      %v5972 = vadd.f32 %v5937, %v5948
      %v5973 = vadd.f32 %v5938, %v5947
      %v5974 = vadd.f32 %v5939, %v5948
      %v5975 = vadd.f32 %v5940, %v5947
      %v5976 = vadd.f32 %v5941, %v5948
      %v5977 = vadd.f32 %v5942, %v5947
      %v5978 = vadd.f32 %v5943, %v5948
      %v5979 = vadd.f32 %v5944, %v5947
      %v5980 = vadd.f32 %v5945, %v5948
      %v5981 = vsel %vm1974, %v5949, -inf
      %5982 = vmax.xlane.f32.xlu0 %v5981
      %v5983 = vpop.xlane.xlu0 %5982
      %v5984 = vsel %vm1974, %v5950, -inf
      %5985 = vmax.xlane.f32.xlu0 %v5984
      %v5986 = vpop.xlane.xlu0 %5985
      %v5987 = vsel %vm1974, %v5951, -inf
      %5988 = vmax.xlane.f32.xlu0 %v5987
      %v5989 = vpop.xlane.xlu0 %5988
      %v5990 = vsel %vm1974, %v5952, -inf
      %5991 = vmax.xlane.f32.xlu0 %v5990
      %v5992 = vpop.xlane.xlu0 %5991
      %v5993 = vsel %vm1974, %v5953, -inf
      %5994 = vmax.xlane.f32.xlu0 %v5993
      %v5995 = vpop.xlane.xlu0 %5994
      %v5996 = vsel %vm1974, %v5954, -inf
      %5997 = vmax.xlane.f32.xlu0 %v5996
      %v5998 = vpop.xlane.xlu0 %5997
      %v5999 = vsel %vm1974, %v5955, -inf
      %6000 = vmax.xlane.f32.xlu0 %v5999
      %v6001 = vpop.xlane.xlu0 %6000
      %v6002 = vsel %vm1974, %v5956, -inf
      %6003 = vmax.xlane.f32.xlu0 %v6002
      %v6004 = vpop.xlane.xlu0 %6003
      %v6005 = vsel %vm1974, %v5957, -inf
      %6006 = vmax.xlane.f32.xlu0 %v6005
      %v6007 = vpop.xlane.xlu0 %6006
      %v6008 = vsel %vm1974, %v5958, -inf
      %6009 = vmax.xlane.f32.xlu0 %v6008
      %v6010 = vpop.xlane.xlu0 %6009
      %v6011 = vsel %vm1974, %v5959, -inf
      %6012 = vmax.xlane.f32.xlu0 %v6011
      %v6013 = vpop.xlane.xlu0 %6012
      %v6014 = vsel %vm1974, %v5960, -inf
      %6015 = vmax.xlane.f32.xlu0 %v6014
      %v6016 = vpop.xlane.xlu0 %6015
      %v6017 = vsel %vm1974, %v5961, -inf
      %6018 = vmax.xlane.f32.xlu0 %v6017
      %v6019 = vpop.xlane.xlu0 %6018
      %v6020 = vsel %vm1974, %v5962, -inf
      %6021 = vmax.xlane.f32.xlu0 %v6020
      %v6022 = vpop.xlane.xlu0 %6021
      %v6023 = vsel %vm1974, %v5963, -inf
      %6024 = vmax.xlane.f32.xlu0 %v6023
      %v6025 = vpop.xlane.xlu0 %6024
      %v6026 = vsel %vm1974, %v5964, -inf
      %6027 = vmax.xlane.f32.xlu0 %v6026
      %v6028 = vpop.xlane.xlu0 %6027
      %v6029 = vsel %vm1974, %v5965, -inf
      %6030 = vmax.xlane.f32.xlu0 %v6029
      %v6031 = vpop.xlane.xlu0 %6030
      %v6032 = vsel %vm1974, %v5966, -inf
      %6033 = vmax.xlane.f32.xlu0 %v6032
      %v6034 = vpop.xlane.xlu0 %6033
      %v6035 = vsel %vm1974, %v5967, -inf
      %6036 = vmax.xlane.f32.xlu0 %v6035
      %v6037 = vpop.xlane.xlu0 %6036
      %v6038 = vsel %vm1974, %v5968, -inf
      %6039 = vmax.xlane.f32.xlu0 %v6038
      %v6040 = vpop.xlane.xlu0 %6039
      %v6041 = vsel %vm1974, %v5969, -inf
      %6042 = vmax.xlane.f32.xlu0 %v6041
      %v6043 = vpop.xlane.xlu0 %6042
      %v6044 = vsel %vm1974, %v5970, -inf
      %6045 = vmax.xlane.f32.xlu0 %v6044
      %v6046 = vpop.xlane.xlu0 %6045
      %v6047 = vsel %vm1974, %v5971, -inf
      %6048 = vmax.xlane.f32.xlu0 %v6047
      %v6049 = vpop.xlane.xlu0 %6048
      %v6050 = vsel %vm1974, %v5972, -inf
      %6051 = vmax.xlane.f32.xlu0 %v6050
      %v6052 = vpop.xlane.xlu0 %6051
      %v6053 = vsel %vm1974, %v5973, -inf
      %6054 = vmax.xlane.f32.xlu0 %v6053
      %v6055 = vpop.xlane.xlu0 %6054
      %v6056 = vsel %vm1974, %v5974, -inf
      %6057 = vmax.xlane.f32.xlu0 %v6056
      %v6058 = vpop.xlane.xlu0 %6057
      %v6059 = vsel %vm1974, %v5975, -inf
      %6060 = vmax.xlane.f32.xlu0 %v6059
      %v6061 = vpop.xlane.xlu0 %6060
      %v6062 = vsel %vm1974, %v5976, -inf
      %6063 = vmax.xlane.f32.xlu0 %v6062
      %v6064 = vpop.xlane.xlu0 %6063
      %v6065 = vsel %vm1974, %v5977, -inf
      %6066 = vmax.xlane.f32.xlu0 %v6065
      %v6067 = vpop.xlane.xlu0 %6066
      %v6068 = vsel %vm1974, %v5978, -inf
      %6069 = vmax.xlane.f32.xlu0 %v6068
      %v6070 = vpop.xlane.xlu0 %6069
      %v6071 = vsel %vm1974, %v5979, -inf
      %6072 = vmax.xlane.f32.xlu0 %v6071
      %v6073 = vpop.xlane.xlu0 %6072
      %v6074 = vsel %vm1974, %v5980, -inf
      %6075 = vmax.xlane.f32.xlu0 %v6074
      %v6076 = vpop.xlane.xlu0 %6075
      %v6077 = vsub.f32 %v5949, %v5983
      %v6078 = vsub.f32 %v5950, %v5986
      %v6079 = vsub.f32 %v5951, %v5989
      %v6080 = vsub.f32 %v5952, %v5992
      %v6081 = vsub.f32 %v5953, %v5995
      %v6082 = vsub.f32 %v5954, %v5998
      %v6083 = vsub.f32 %v5955, %v6001
      %v6084 = vsub.f32 %v5956, %v6004
      %v6085 = vsub.f32 %v5957, %v6007
      %v6086 = vsub.f32 %v5958, %v6010
      %v6087 = vsub.f32 %v5959, %v6013
      %v6088 = vsub.f32 %v5960, %v6016
      %v6089 = vsub.f32 %v5961, %v6019
      %v6090 = vsub.f32 %v5962, %v6022
      %v6091 = vsub.f32 %v5963, %v6025
      %v6092 = vsub.f32 %v5964, %v6028
      %v6093 = vsub.f32 %v5965, %v6031
      %v6094 = vsub.f32 %v5966, %v6034
      %v6095 = vsub.f32 %v5967, %v6037
      %v6096 = vsub.f32 %v5968, %v6040
      %v6097 = vsub.f32 %v5969, %v6043
      %v6098 = vsub.f32 %v5970, %v6046
      %v6099 = vsub.f32 %v5971, %v6049
      %v6100 = vsub.f32 %v5972, %v6052
      %v6101 = vsub.f32 %v5973, %v6055
      %v6102 = vsub.f32 %v5974, %v6058
      %v6103 = vsub.f32 %v5975, %v6061
      %v6104 = vsub.f32 %v5976, %v6064
      %v6105 = vsub.f32 %v5977, %v6067
      %v6106 = vsub.f32 %v5978, %v6070
      %v6107 = vsub.f32 %v5979, %v6073
      %v6108 = vsub.f32 %v5980, %v6076
      %v6109 = vmul.f32 %v6077, 1.442695
      %v6110 = vpow.pop %v6109
      %v6111 = vmul.f32 %v6078, 1.442695
      %v6112 = vpow.pop %v6111
      %v6113 = vmul.f32 %v6079, 1.442695
      %v6114 = vpow.pop %v6113
      %v6115 = vmul.f32 %v6080, 1.442695
      %v6116 = vpow.pop %v6115
      %v6117 = vmul.f32 %v6081, 1.442695
      %v6118 = vpow.pop %v6117
      %v6119 = vmul.f32 %v6082, 1.442695
      %v6120 = vpow.pop %v6119
      %v6121 = vmul.f32 %v6083, 1.442695
      %v6122 = vpow.pop %v6121
      %v6123 = vmul.f32 %v6084, 1.442695
      %v6124 = vpow.pop %v6123
      %v6125 = vmul.f32 %v6085, 1.442695
      %v6126 = vpow.pop %v6125
      %v6127 = vmul.f32 %v6086, 1.442695
      %v6128 = vpow.pop %v6127
      %v6129 = vmul.f32 %v6087, 1.442695
      %v6130 = vpow.pop %v6129
      %v6131 = vmul.f32 %v6088, 1.442695
      %v6132 = vpow.pop %v6131
      %v6133 = vmul.f32 %v6089, 1.442695
      %v6134 = vpow.pop %v6133
      %v6135 = vmul.f32 %v6090, 1.442695
      %v6136 = vpow.pop %v6135
      %v6137 = vmul.f32 %v6091, 1.442695
      %v6138 = vpow.pop %v6137
      %v6139 = vmul.f32 %v6092, 1.442695
      %v6140 = vpow.pop %v6139
      %v6141 = vmul.f32 %v6093, 1.442695
      %v6142 = vpow.pop %v6141
      %v6143 = vmul.f32 %v6094, 1.442695
      %v6144 = vpow.pop %v6143
      %v6145 = vmul.f32 %v6095, 1.442695
      %v6146 = vpow.pop %v6145
      %v6147 = vmul.f32 %v6096, 1.442695
      %v6148 = vpow.pop %v6147
      %v6149 = vmul.f32 %v6097, 1.442695
      %v6150 = vpow.pop %v6149
      %v6151 = vmul.f32 %v6098, 1.442695
      %v6152 = vpow.pop %v6151
      %v6153 = vmul.f32 %v6099, 1.442695
      %v6154 = vpow.pop %v6153
      %v6155 = vmul.f32 %v6100, 1.442695
      %v6156 = vpow.pop %v6155
      %v6157 = vmul.f32 %v6101, 1.442695
      %v6158 = vpow.pop %v6157
      %v6159 = vmul.f32 %v6102, 1.442695
      %v6160 = vpow.pop %v6159
      %v6161 = vmul.f32 %v6103, 1.442695
      %v6162 = vpow.pop %v6161
      %v6163 = vmul.f32 %v6104, 1.442695
      %v6164 = vpow.pop %v6163
      %v6165 = vmul.f32 %v6105, 1.442695
      %v6166 = vpow.pop %v6165
      %v6167 = vmul.f32 %v6106, 1.442695
      %v6168 = vpow.pop %v6167
      %v6169 = vmul.f32 %v6107, 1.442695
      %v6170 = vpow.pop %v6169
      %v6171 = vmul.f32 %v6108, 1.442695
      %v6172 = vpow.pop %v6171
      %v6173 = vsel %vm1974, %v6110, 0.0
      %6174 = vadd.xlane.f32.xlu0 %v6173
      %v6175 = vpop.xlane.xlu0 %6174
      %v6176 = vsel %vm1974, %v6112, 0.0
      %6177 = vadd.xlane.f32.xlu0 %v6176
      %v6178 = vpop.xlane.xlu0 %6177
      %v6179 = vsel %vm1974, %v6114, 0.0
      %6180 = vadd.xlane.f32.xlu0 %v6179
      %v6181 = vpop.xlane.xlu0 %6180
      %v6182 = vsel %vm1974, %v6116, 0.0
      %6183 = vadd.xlane.f32.xlu0 %v6182
      %v6184 = vpop.xlane.xlu0 %6183
      %v6185 = vsel %vm1974, %v6118, 0.0
      %6186 = vadd.xlane.f32.xlu0 %v6185
      %v6187 = vpop.xlane.xlu0 %6186
      %v6188 = vsel %vm1974, %v6120, 0.0
      %6189 = vadd.xlane.f32.xlu0 %v6188
      %v6190 = vpop.xlane.xlu0 %6189
      %v6191 = vsel %vm1974, %v6122, 0.0
      %6192 = vadd.xlane.f32.xlu0 %v6191
      %v6193 = vpop.xlane.xlu0 %6192
      %v6194 = vsel %vm1974, %v6124, 0.0
      %6195 = vadd.xlane.f32.xlu0 %v6194
      %v6196 = vpop.xlane.xlu0 %6195
      %v6197 = vsel %vm1974, %v6126, 0.0
      %6198 = vadd.xlane.f32.xlu0 %v6197
      %v6199 = vpop.xlane.xlu0 %6198
      %v6200 = vsel %vm1974, %v6128, 0.0
      %6201 = vadd.xlane.f32.xlu0 %v6200
      %v6202 = vpop.xlane.xlu0 %6201
      %v6203 = vsel %vm1974, %v6130, 0.0
      %6204 = vadd.xlane.f32.xlu0 %v6203
      %v6205 = vpop.xlane.xlu0 %6204
      %v6206 = vsel %vm1974, %v6132, 0.0
      %6207 = vadd.xlane.f32.xlu0 %v6206
      %v6208 = vpop.xlane.xlu0 %6207
      %v6209 = vsel %vm1974, %v6134, 0.0
      %6210 = vadd.xlane.f32.xlu0 %v6209
      %v6211 = vpop.xlane.xlu0 %6210
      %v6212 = vsel %vm1974, %v6136, 0.0
      %6213 = vadd.xlane.f32.xlu0 %v6212
      %v6214 = vpop.xlane.xlu0 %6213
      %v6215 = vsel %vm1974, %v6138, 0.0
      %6216 = vadd.xlane.f32.xlu0 %v6215
      %v6217 = vpop.xlane.xlu0 %6216
      %v6218 = vsel %vm1974, %v6140, 0.0
      %6219 = vadd.xlane.f32.xlu0 %v6218
      %v6220 = vpop.xlane.xlu0 %6219
      %v6221 = vsel %vm1974, %v6142, 0.0
      %6222 = vadd.xlane.f32.xlu0 %v6221
      %v6223 = vpop.xlane.xlu0 %6222
      %v6224 = vsel %vm1974, %v6144, 0.0
      %6225 = vadd.xlane.f32.xlu0 %v6224
      %v6226 = vpop.xlane.xlu0 %6225
      %v6227 = vsel %vm1974, %v6146, 0.0
      %6228 = vadd.xlane.f32.xlu0 %v6227
      %v6229 = vpop.xlane.xlu0 %6228
      %v6230 = vsel %vm1974, %v6148, 0.0
      %6231 = vadd.xlane.f32.xlu0 %v6230
      %v6232 = vpop.xlane.xlu0 %6231
      %v6233 = vsel %vm1974, %v6150, 0.0
      %6234 = vadd.xlane.f32.xlu0 %v6233
      %v6235 = vpop.xlane.xlu0 %6234
      %v6236 = vsel %vm1974, %v6152, 0.0
      %6237 = vadd.xlane.f32.xlu0 %v6236
      %v6238 = vpop.xlane.xlu0 %6237
      %v6239 = vsel %vm1974, %v6154, 0.0
      %6240 = vadd.xlane.f32.xlu0 %v6239
      %v6241 = vpop.xlane.xlu0 %6240
      %v6242 = vsel %vm1974, %v6156, 0.0
      %6243 = vadd.xlane.f32.xlu0 %v6242
      %v6244 = vpop.xlane.xlu0 %6243
      %v6245 = vsel %vm1974, %v6158, 0.0
      %6246 = vadd.xlane.f32.xlu0 %v6245
      %v6247 = vpop.xlane.xlu0 %6246
      %v6248 = vsel %vm1974, %v6160, 0.0
      %6249 = vadd.xlane.f32.xlu0 %v6248
      %v6250 = vpop.xlane.xlu0 %6249
      %v6251 = vsel %vm1974, %v6162, 0.0
      %6252 = vadd.xlane.f32.xlu0 %v6251
      %v6253 = vpop.xlane.xlu0 %6252
      %v6254 = vsel %vm1974, %v6164, 0.0
      %6255 = vadd.xlane.f32.xlu0 %v6254
      %v6256 = vpop.xlane.xlu0 %6255
      %v6257 = vsel %vm1974, %v6166, 0.0
      %6258 = vadd.xlane.f32.xlu0 %v6257
      %v6259 = vpop.xlane.xlu0 %6258
      %v6260 = vsel %vm1974, %v6168, 0.0
      %6261 = vadd.xlane.f32.xlu0 %v6260
      %v6262 = vpop.xlane.xlu0 %6261
      %v6263 = vsel %vm1974, %v6170, 0.0
      %6264 = vadd.xlane.f32.xlu0 %v6263
      %v6265 = vpop.xlane.xlu0 %6264
      %v6266 = vsel %vm1974, %v6172, 0.0
      %6267 = vadd.xlane.f32.xlu0 %v6266
      %v6268 = vpop.xlane.xlu0 %6267
      %v6269 = vrcp.pop %v6175
      %v6270 = vrcp.pop %v6178
      %v6271 = vrcp.pop %v6181
      %v6272 = vrcp.pop %v6184
      %v6273 = vrcp.pop %v6187
      %v6274 = vrcp.pop %v6190
      %v6275 = vrcp.pop %v6193
      %v6276 = vrcp.pop %v6196
      %v6277 = vrcp.pop %v6199
      %v6278 = vrcp.pop %v6202
      %v6279 = vrcp.pop %v6205
      %v6280 = vrcp.pop %v6208
      %v6281 = vrcp.pop %v6211
      %v6282 = vrcp.pop %v6214
      %v6283 = vrcp.pop %v6217
      %v6284 = vrcp.pop %v6220
      %v6285 = vrcp.pop %v6223
      %v6286 = vrcp.pop %v6226
      %v6287 = vrcp.pop %v6229
      %v6288 = vrcp.pop %v6232
      %v6289 = vrcp.pop %v6235
      %v6290 = vrcp.pop %v6238
      %v6291 = vrcp.pop %v6241
      %v6292 = vrcp.pop %v6244
      %v6293 = vrcp.pop %v6247
      %v6294 = vrcp.pop %v6250
      %v6295 = vrcp.pop %v6253
      %v6296 = vrcp.pop %v6256
      %v6297 = vrcp.pop %v6259
      %v6298 = vrcp.pop %v6262
      %v6299 = vrcp.pop %v6265
      %v6300 = vrcp.pop %v6268
      %v6301 = vmul.f32 %v6110, %v6269
      %v6302 = vmul.f32 %v6112, %v6270
      %v6303 = vmul.f32 %v6114, %v6271
      %v6304 = vmul.f32 %v6116, %v6272
      %v6305 = vmul.f32 %v6118, %v6273
      %v6306 = vmul.f32 %v6120, %v6274
      %v6307 = vmul.f32 %v6122, %v6275
      %v6308 = vmul.f32 %v6124, %v6276
      %v6309 = vmul.f32 %v6126, %v6277
      %v6310 = vmul.f32 %v6128, %v6278
      %v6311 = vmul.f32 %v6130, %v6279
      %v6312 = vmul.f32 %v6132, %v6280
      %v6313 = vmul.f32 %v6134, %v6281
      %v6314 = vmul.f32 %v6136, %v6282
      %v6315 = vmul.f32 %v6138, %v6283
      %v6316 = vmul.f32 %v6140, %v6284
      %v6317 = vmul.f32 %v6142, %v6285
      %v6318 = vmul.f32 %v6144, %v6286
      %v6319 = vmul.f32 %v6146, %v6287
      %v6320 = vmul.f32 %v6148, %v6288
      %v6321 = vmul.f32 %v6150, %v6289
      %v6322 = vmul.f32 %v6152, %v6290
      %v6323 = vmul.f32 %v6154, %v6291
      %v6324 = vmul.f32 %v6156, %v6292
      %v6325 = vmul.f32 %v6158, %v6293
      %v6326 = vmul.f32 %v6160, %v6294
      %v6327 = vmul.f32 %v6162, %v6295
      %v6328 = vmul.f32 %v6164, %v6296
      %v6329 = vmul.f32 %v6166, %v6297
      %v6330 = vmul.f32 %v6168, %v6298
      %v6331 = vmul.f32 %v6170, %v6299
      %v6332 = vmul.f32 %v6172, %v6300
      %v6333 = vpack.c.bf16 %v6302, %v6301
      %v6334 = vpack.c.bf16 %v6304, %v6303
      %v6335 = vpack.c.bf16 %v6306, %v6305
      %v6336 = vpack.c.bf16 %v6308, %v6307
      %v6337 = vpack.c.bf16 %v6310, %v6309
      %v6338 = vpack.c.bf16 %v6312, %v6311
      %v6339 = vpack.c.bf16 %v6314, %v6313
      %v6340 = vpack.c.bf16 %v6316, %v6315
      %v6341 = vpack.c.bf16 %v6318, %v6317
      %v6342 = vpack.c.bf16 %v6320, %v6319
      %v6343 = vpack.c.bf16 %v6322, %v6321
      %v6344 = vpack.c.bf16 %v6324, %v6323
      %v6345 = vpack.c.bf16 %v6326, %v6325
      %v6346 = vpack.c.bf16 %v6328, %v6327
      %v6347 = vpack.c.bf16 %v6330, %v6329
      %v6348 = vpack.c.bf16 %v6332, %v6331
      %6349 = vrot.lane.b32.xlu0 %v1091, 48
      %v6350 = vpop.permute.xlu0 %6349
      %v6353 = vsel %vm1974, %v6333, 0
      %6355 = vmatprep.subr.bf16.mxu0 0
      %6356 = vmatpush1.bf16.msra.mxu0 0
      %6357 = vmatprep.subr.bf16.mxu0 0
      %6358 = vmatpush1.bf16.msra.mxu0 0
      %6359 = vmatprep.subr.bf16.mxu0 0
      %6360 = vmatpush1.bf16.msra.mxu0 0
      %6361 = vmatprep.subr.bf16.mxu0 0
      %6362 = vmatpush1.bf16.msra.mxu0 0
      %6363 = vmatprep.subr.bf16.mxu0 0
      %6364 = vmatpush1.bf16.msra.mxu0 0
      %6365 = vmatprep.subr.bf16.mxu0 0
      %6366 = vmatpush1.bf16.msra.mxu0 0
      %6367 = vmatprep.subr.bf16.mxu0 0
      %6368 = vmatpush1.bf16.msra.mxu0 0
      %6369 = vmatprep.subr.bf16.mxu0 0
      %6370 = vmatpush1.bf16.msra.mxu0 %v6350
      %6371 = vmatprep.subr.bf16.mxu0 0
      %6372 = vmatpush2.bf16.msra.mxu0 0
      %6373 = vmatprep.subr.bf16.mxu0 0
      %6374 = vmatpush2.bf16.msra.mxu0 0
      %6375 = vmatprep.subr.bf16.mxu0 0
      %6376 = vmatpush2.bf16.msra.mxu0 0
      %6377 = vmatprep.subr.bf16.mxu0 0
      %6378 = vmatpush2.bf16.msra.mxu0 0
      %6379 = vmatprep.subr.bf16.mxu0 0
      %6380 = vmatpush2.bf16.msra.mxu0 0
      %6381 = vmatprep.subr.bf16.mxu0 0
      %6382 = vmatpush2.bf16.msra.mxu0 0
      %6383 = vmatprep.subr.bf16.mxu0 0
      %6384 = vmatpush2.bf16.msra.mxu0 0
      %6385 = vmatprep.subr.bf16.mxu0 0
      %6386 = vmatpush2.bf16.msra.mxu0 0
      %6387 = vmatprep.mubr.bf16.mxu0 0
      %6388 = vmatmul.mubr.bf16.gmra.mxu0 %v6353
      %v6389 = vpop.f32.mrf.mxu0
      %v6390 = vadd.f32 0.0, %v6389
      %v6391 = vpop.f32.mrf.mxu0
      %v6392 = vpop.f32.mrf.mxu0
      %v6393 = vadd.f32 0.0, %v6392
      %v6394 = vpop.f32.mrf.mxu0
      %6395 = vdwg.mxu0
      %6396 = vrot.lane.b32.xlu0 %v1092, 48
      %v6397 = vpop.permute.xlu0 %6396
      %v6400 = vsel %vm1974, %v6334, 0
      %6402 = vmatprep.subr.bf16.mxu0 0
      %6403 = vmatpush1.bf16.msra.mxu0 0
      %6404 = vmatprep.subr.bf16.mxu0 0
      %6405 = vmatpush1.bf16.msra.mxu0 0
      %6406 = vmatprep.subr.bf16.mxu0 0
      %6407 = vmatpush1.bf16.msra.mxu0 0
      %6408 = vmatprep.subr.bf16.mxu0 0
      %6409 = vmatpush1.bf16.msra.mxu0 0
      %6410 = vmatprep.subr.bf16.mxu0 0
      %6411 = vmatpush1.bf16.msra.mxu0 0
      %6412 = vmatprep.subr.bf16.mxu0 0
      %6413 = vmatpush1.bf16.msra.mxu0 0
      %6414 = vmatprep.subr.bf16.mxu0 0
      %6415 = vmatpush1.bf16.msra.mxu0 0
      %6416 = vmatprep.subr.bf16.mxu0 0
      %6417 = vmatpush1.bf16.msra.mxu0 %v6397
      %6418 = vmatprep.subr.bf16.mxu0 0
      %6419 = vmatpush2.bf16.msra.mxu0 0
      %6420 = vmatprep.subr.bf16.mxu0 0
      %6421 = vmatpush2.bf16.msra.mxu0 0
      %6422 = vmatprep.subr.bf16.mxu0 0
      %6423 = vmatpush2.bf16.msra.mxu0 0
      %6424 = vmatprep.subr.bf16.mxu0 0
      %6425 = vmatpush2.bf16.msra.mxu0 0
      %6426 = vmatprep.subr.bf16.mxu0 0
      %6427 = vmatpush2.bf16.msra.mxu0 0
      %6428 = vmatprep.subr.bf16.mxu0 0
      %6429 = vmatpush2.bf16.msra.mxu0 0
      %6430 = vmatprep.subr.bf16.mxu0 0
      %6431 = vmatpush2.bf16.msra.mxu0 0
      %6432 = vmatprep.subr.bf16.mxu0 0
      %6433 = vmatpush2.bf16.msra.mxu0 0
      %6434 = vmatprep.mubr.bf16.mxu0 0
      %6435 = vmatmul.mubr.bf16.gmra.mxu0 %v6400
      %v6436 = vpop.f32.mrf.mxu0
      %v6437 = vadd.f32 0.0, %v6436
      %v6438 = vpop.f32.mrf.mxu0
      %v6439 = vpop.f32.mrf.mxu0
      %v6440 = vadd.f32 0.0, %v6439
      %v6441 = vpop.f32.mrf.mxu0
      %6442 = vdwg.mxu0
      %6443 = vrot.lane.b32.xlu0 %v1093, 48
      %v6444 = vpop.permute.xlu0 %6443
      %v6447 = vsel %vm1974, %v6335, 0
      %6449 = vmatprep.subr.bf16.mxu0 0
      %6450 = vmatpush1.bf16.msra.mxu0 0
      %6451 = vmatprep.subr.bf16.mxu0 0
      %6452 = vmatpush1.bf16.msra.mxu0 0
      %6453 = vmatprep.subr.bf16.mxu0 0
      %6454 = vmatpush1.bf16.msra.mxu0 0
      %6455 = vmatprep.subr.bf16.mxu0 0
      %6456 = vmatpush1.bf16.msra.mxu0 0
      %6457 = vmatprep.subr.bf16.mxu0 0
      %6458 = vmatpush1.bf16.msra.mxu0 0
      %6459 = vmatprep.subr.bf16.mxu0 0
      %6460 = vmatpush1.bf16.msra.mxu0 0
      %6461 = vmatprep.subr.bf16.mxu0 0
      %6462 = vmatpush1.bf16.msra.mxu0 0
      %6463 = vmatprep.subr.bf16.mxu0 0
      %6464 = vmatpush1.bf16.msra.mxu0 %v6444
      %6465 = vmatprep.subr.bf16.mxu0 0
      %6466 = vmatpush2.bf16.msra.mxu0 0
      %6467 = vmatprep.subr.bf16.mxu0 0
      %6468 = vmatpush2.bf16.msra.mxu0 0
      %6469 = vmatprep.subr.bf16.mxu0 0
      %6470 = vmatpush2.bf16.msra.mxu0 0
      %6471 = vmatprep.subr.bf16.mxu0 0
      %6472 = vmatpush2.bf16.msra.mxu0 0
      %6473 = vmatprep.subr.bf16.mxu0 0
      %6474 = vmatpush2.bf16.msra.mxu0 0
      %6475 = vmatprep.subr.bf16.mxu0 0
      %6476 = vmatpush2.bf16.msra.mxu0 0
      %6477 = vmatprep.subr.bf16.mxu0 0
      %6478 = vmatpush2.bf16.msra.mxu0 0
      %6479 = vmatprep.subr.bf16.mxu0 0
      %6480 = vmatpush2.bf16.msra.mxu0 0
      %6481 = vmatprep.mubr.bf16.mxu0 0
      %6482 = vmatmul.mubr.bf16.gmra.mxu0 %v6447
      %v6483 = vpop.f32.mrf.mxu0
      %v6484 = vadd.f32 0.0, %v6483
      %v6485 = vpop.f32.mrf.mxu0
      %v6486 = vpop.f32.mrf.mxu0
      %v6487 = vadd.f32 0.0, %v6486
      %v6488 = vpop.f32.mrf.mxu0
      %6489 = vdwg.mxu0
      %6490 = vrot.lane.b32.xlu0 %v1094, 48
      %v6491 = vpop.permute.xlu0 %6490
      %v6494 = vsel %vm1974, %v6336, 0
      %6496 = vmatprep.subr.bf16.mxu0 0
      %6497 = vmatpush1.bf16.msra.mxu0 0
      %6498 = vmatprep.subr.bf16.mxu0 0
      %6499 = vmatpush1.bf16.msra.mxu0 0
      %6500 = vmatprep.subr.bf16.mxu0 0
      %6501 = vmatpush1.bf16.msra.mxu0 0
      %6502 = vmatprep.subr.bf16.mxu0 0
      %6503 = vmatpush1.bf16.msra.mxu0 0
      %6504 = vmatprep.subr.bf16.mxu0 0
      %6505 = vmatpush1.bf16.msra.mxu0 0
      %6506 = vmatprep.subr.bf16.mxu0 0
      %6507 = vmatpush1.bf16.msra.mxu0 0
      %6508 = vmatprep.subr.bf16.mxu0 0
      %6509 = vmatpush1.bf16.msra.mxu0 0
      %6510 = vmatprep.subr.bf16.mxu0 0
      %6511 = vmatpush1.bf16.msra.mxu0 %v6491
      %6512 = vmatprep.subr.bf16.mxu0 0
      %6513 = vmatpush2.bf16.msra.mxu0 0
      %6514 = vmatprep.subr.bf16.mxu0 0
      %6515 = vmatpush2.bf16.msra.mxu0 0
      %6516 = vmatprep.subr.bf16.mxu0 0
      %6517 = vmatpush2.bf16.msra.mxu0 0
      %6518 = vmatprep.subr.bf16.mxu0 0
      %6519 = vmatpush2.bf16.msra.mxu0 0
      %6520 = vmatprep.subr.bf16.mxu0 0
      %6521 = vmatpush2.bf16.msra.mxu0 0
      %6522 = vmatprep.subr.bf16.mxu0 0
      %6523 = vmatpush2.bf16.msra.mxu0 0
      %6524 = vmatprep.subr.bf16.mxu0 0
      %6525 = vmatpush2.bf16.msra.mxu0 0
      %6526 = vmatprep.subr.bf16.mxu0 0
      %6527 = vmatpush2.bf16.msra.mxu0 0
      %6528 = vmatprep.mubr.bf16.mxu0 0
      %6529 = vmatmul.mubr.bf16.gmra.mxu0 %v6494
      %v6530 = vpop.f32.mrf.mxu0
      %v6531 = vadd.f32 0.0, %v6530
      %v6532 = vpop.f32.mrf.mxu0
      %v6533 = vpop.f32.mrf.mxu0
      %v6534 = vadd.f32 0.0, %v6533
      %v6535 = vpop.f32.mrf.mxu0
      %6536 = vdwg.mxu0
      %6537 = vrot.lane.b32.xlu0 %v1095, 48
      %v6538 = vpop.permute.xlu0 %6537
      %v6541 = vsel %vm1974, %v6337, 0
      %6543 = vmatprep.subr.bf16.mxu0 0
      %6544 = vmatpush1.bf16.msra.mxu0 0
      %6545 = vmatprep.subr.bf16.mxu0 0
      %6546 = vmatpush1.bf16.msra.mxu0 0
      %6547 = vmatprep.subr.bf16.mxu0 0
      %6548 = vmatpush1.bf16.msra.mxu0 0
      %6549 = vmatprep.subr.bf16.mxu0 0
      %6550 = vmatpush1.bf16.msra.mxu0 0
      %6551 = vmatprep.subr.bf16.mxu0 0
      %6552 = vmatpush1.bf16.msra.mxu0 0
      %6553 = vmatprep.subr.bf16.mxu0 0
      %6554 = vmatpush1.bf16.msra.mxu0 0
      %6555 = vmatprep.subr.bf16.mxu0 0
      %6556 = vmatpush1.bf16.msra.mxu0 0
      %6557 = vmatprep.subr.bf16.mxu0 0
      %6558 = vmatpush1.bf16.msra.mxu0 %v6538
      %6559 = vmatprep.subr.bf16.mxu0 0
      %6560 = vmatpush2.bf16.msra.mxu0 0
      %6561 = vmatprep.subr.bf16.mxu0 0
      %6562 = vmatpush2.bf16.msra.mxu0 0
      %6563 = vmatprep.subr.bf16.mxu0 0
      %6564 = vmatpush2.bf16.msra.mxu0 0
      %6565 = vmatprep.subr.bf16.mxu0 0
      %6566 = vmatpush2.bf16.msra.mxu0 0
      %6567 = vmatprep.subr.bf16.mxu0 0
      %6568 = vmatpush2.bf16.msra.mxu0 0
      %6569 = vmatprep.subr.bf16.mxu0 0
      %6570 = vmatpush2.bf16.msra.mxu0 0
      %6571 = vmatprep.subr.bf16.mxu0 0
      %6572 = vmatpush2.bf16.msra.mxu0 0
      %6573 = vmatprep.subr.bf16.mxu0 0
      %6574 = vmatpush2.bf16.msra.mxu0 0
      %6575 = vmatprep.mubr.bf16.mxu0 0
      %6576 = vmatmul.mubr.bf16.gmra.mxu0 %v6541
      %v6577 = vpop.f32.mrf.mxu0
      %v6578 = vadd.f32 0.0, %v6577
      %v6579 = vpop.f32.mrf.mxu0
      %v6580 = vpop.f32.mrf.mxu0
      %v6581 = vadd.f32 0.0, %v6580
      %v6582 = vpop.f32.mrf.mxu0
      %6583 = vdwg.mxu0
      %6584 = vrot.lane.b32.xlu0 %v1096, 48
      %v6585 = vpop.permute.xlu0 %6584
      %v6588 = vsel %vm1974, %v6338, 0
      %6590 = vmatprep.subr.bf16.mxu0 0
      %6591 = vmatpush1.bf16.msra.mxu0 0
      %6592 = vmatprep.subr.bf16.mxu0 0
      %6593 = vmatpush1.bf16.msra.mxu0 0
      %6594 = vmatprep.subr.bf16.mxu0 0
      %6595 = vmatpush1.bf16.msra.mxu0 0
      %6596 = vmatprep.subr.bf16.mxu0 0
      %6597 = vmatpush1.bf16.msra.mxu0 0
      %6598 = vmatprep.subr.bf16.mxu0 0
      %6599 = vmatpush1.bf16.msra.mxu0 0
      %6600 = vmatprep.subr.bf16.mxu0 0
      %6601 = vmatpush1.bf16.msra.mxu0 0
      %6602 = vmatprep.subr.bf16.mxu0 0
      %6603 = vmatpush1.bf16.msra.mxu0 0
      %6604 = vmatprep.subr.bf16.mxu0 0
      %6605 = vmatpush1.bf16.msra.mxu0 %v6585
      %6606 = vmatprep.subr.bf16.mxu0 0
      %6607 = vmatpush2.bf16.msra.mxu0 0
      %6608 = vmatprep.subr.bf16.mxu0 0
      %6609 = vmatpush2.bf16.msra.mxu0 0
      %6610 = vmatprep.subr.bf16.mxu0 0
      %6611 = vmatpush2.bf16.msra.mxu0 0
      %6612 = vmatprep.subr.bf16.mxu0 0
      %6613 = vmatpush2.bf16.msra.mxu0 0
      %6614 = vmatprep.subr.bf16.mxu0 0
      %6615 = vmatpush2.bf16.msra.mxu0 0
      %6616 = vmatprep.subr.bf16.mxu0 0
      %6617 = vmatpush2.bf16.msra.mxu0 0
      %6618 = vmatprep.subr.bf16.mxu0 0
      %6619 = vmatpush2.bf16.msra.mxu0 0
      %6620 = vmatprep.subr.bf16.mxu0 0
      %6621 = vmatpush2.bf16.msra.mxu0 0
      %6622 = vmatprep.mubr.bf16.mxu0 0
      %6623 = vmatmul.mubr.bf16.gmra.mxu0 %v6588
      %v6624 = vpop.f32.mrf.mxu0
      %v6625 = vadd.f32 0.0, %v6624
      %v6626 = vpop.f32.mrf.mxu0
      %v6627 = vpop.f32.mrf.mxu0
      %v6628 = vadd.f32 0.0, %v6627
      %v6629 = vpop.f32.mrf.mxu0
      %6630 = vdwg.mxu0
      %6631 = vrot.lane.b32.xlu0 %v1097, 48
      %v6632 = vpop.permute.xlu0 %6631
      %v6635 = vsel %vm1974, %v6339, 0
      %6637 = vmatprep.subr.bf16.mxu0 0
      %6638 = vmatpush1.bf16.msra.mxu0 0
      %6639 = vmatprep.subr.bf16.mxu0 0
      %6640 = vmatpush1.bf16.msra.mxu0 0
      %6641 = vmatprep.subr.bf16.mxu0 0
      %6642 = vmatpush1.bf16.msra.mxu0 0
      %6643 = vmatprep.subr.bf16.mxu0 0
      %6644 = vmatpush1.bf16.msra.mxu0 0
      %6645 = vmatprep.subr.bf16.mxu0 0
      %6646 = vmatpush1.bf16.msra.mxu0 0
      %6647 = vmatprep.subr.bf16.mxu0 0
      %6648 = vmatpush1.bf16.msra.mxu0 0
      %6649 = vmatprep.subr.bf16.mxu0 0
      %6650 = vmatpush1.bf16.msra.mxu0 0
      %6651 = vmatprep.subr.bf16.mxu0 0
      %6652 = vmatpush1.bf16.msra.mxu0 %v6632
      %6653 = vmatprep.subr.bf16.mxu0 0
      %6654 = vmatpush2.bf16.msra.mxu0 0
      %6655 = vmatprep.subr.bf16.mxu0 0
      %6656 = vmatpush2.bf16.msra.mxu0 0
      %6657 = vmatprep.subr.bf16.mxu0 0
      %6658 = vmatpush2.bf16.msra.mxu0 0
      %6659 = vmatprep.subr.bf16.mxu0 0
      %6660 = vmatpush2.bf16.msra.mxu0 0
      %6661 = vmatprep.subr.bf16.mxu0 0
      %6662 = vmatpush2.bf16.msra.mxu0 0
      %6663 = vmatprep.subr.bf16.mxu0 0
      %6664 = vmatpush2.bf16.msra.mxu0 0
      %6665 = vmatprep.subr.bf16.mxu0 0
      %6666 = vmatpush2.bf16.msra.mxu0 0
      %6667 = vmatprep.subr.bf16.mxu0 0
      %6668 = vmatpush2.bf16.msra.mxu0 0
      %6669 = vmatprep.mubr.bf16.mxu0 0
      %6670 = vmatmul.mubr.bf16.gmra.mxu0 %v6635
      %v6671 = vpop.f32.mrf.mxu0
      %v6672 = vadd.f32 0.0, %v6671
      %v6673 = vpop.f32.mrf.mxu0
      %v6674 = vpop.f32.mrf.mxu0
      %v6675 = vadd.f32 0.0, %v6674
      %v6676 = vpop.f32.mrf.mxu0
      %6677 = vdwg.mxu0
      %6678 = vrot.lane.b32.xlu0 %v1098, 48
      %v6679 = vpop.permute.xlu0 %6678
      %v6682 = vsel %vm1974, %v6340, 0
      %6684 = vmatprep.subr.bf16.mxu0 0
      %6685 = vmatpush1.bf16.msra.mxu0 0
      %6686 = vmatprep.subr.bf16.mxu0 0
      %6687 = vmatpush1.bf16.msra.mxu0 0
      %6688 = vmatprep.subr.bf16.mxu0 0
      %6689 = vmatpush1.bf16.msra.mxu0 0
      %6690 = vmatprep.subr.bf16.mxu0 0
      %6691 = vmatpush1.bf16.msra.mxu0 0
      %6692 = vmatprep.subr.bf16.mxu0 0
      %6693 = vmatpush1.bf16.msra.mxu0 0
      %6694 = vmatprep.subr.bf16.mxu0 0
      %6695 = vmatpush1.bf16.msra.mxu0 0
      %6696 = vmatprep.subr.bf16.mxu0 0
      %6697 = vmatpush1.bf16.msra.mxu0 0
      %6698 = vmatprep.subr.bf16.mxu0 0
      %6699 = vmatpush1.bf16.msra.mxu0 %v6679
      %6700 = vmatprep.subr.bf16.mxu0 0
      %6701 = vmatpush2.bf16.msra.mxu0 0
      %6702 = vmatprep.subr.bf16.mxu0 0
      %6703 = vmatpush2.bf16.msra.mxu0 0
      %6704 = vmatprep.subr.bf16.mxu0 0
      %6705 = vmatpush2.bf16.msra.mxu0 0
      %6706 = vmatprep.subr.bf16.mxu0 0
      %6707 = vmatpush2.bf16.msra.mxu0 0
      %6708 = vmatprep.subr.bf16.mxu0 0
      %6709 = vmatpush2.bf16.msra.mxu0 0
      %6710 = vmatprep.subr.bf16.mxu0 0
      %6711 = vmatpush2.bf16.msra.mxu0 0
      %6712 = vmatprep.subr.bf16.mxu0 0
      %6713 = vmatpush2.bf16.msra.mxu0 0
      %6714 = vmatprep.subr.bf16.mxu0 0
      %6715 = vmatpush2.bf16.msra.mxu0 0
      %6716 = vmatprep.mubr.bf16.mxu0 0
      %6717 = vmatmul.mubr.bf16.gmra.mxu0 %v6682
      %v6718 = vpop.f32.mrf.mxu0
      %v6719 = vadd.f32 0.0, %v6718
      %v6720 = vpop.f32.mrf.mxu0
      %v6721 = vpop.f32.mrf.mxu0
      %v6722 = vadd.f32 0.0, %v6721
      %v6723 = vpop.f32.mrf.mxu0
      %6724 = vdwg.mxu0
      %6725 = vrot.lane.b32.xlu0 %v1099, 48
      %v6726 = vpop.permute.xlu0 %6725
      %v6729 = vsel %vm1974, %v6341, 0
      %6731 = vmatprep.subr.bf16.mxu0 0
      %6732 = vmatpush1.bf16.msra.mxu0 0
      %6733 = vmatprep.subr.bf16.mxu0 0
      %6734 = vmatpush1.bf16.msra.mxu0 0
      %6735 = vmatprep.subr.bf16.mxu0 0
      %6736 = vmatpush1.bf16.msra.mxu0 0
      %6737 = vmatprep.subr.bf16.mxu0 0
      %6738 = vmatpush1.bf16.msra.mxu0 0
      %6739 = vmatprep.subr.bf16.mxu0 0
      %6740 = vmatpush1.bf16.msra.mxu0 0
      %6741 = vmatprep.subr.bf16.mxu0 0
      %6742 = vmatpush1.bf16.msra.mxu0 0
      %6743 = vmatprep.subr.bf16.mxu0 0
      %6744 = vmatpush1.bf16.msra.mxu0 0
      %6745 = vmatprep.subr.bf16.mxu0 0
      %6746 = vmatpush1.bf16.msra.mxu0 %v6726
      %6747 = vmatprep.subr.bf16.mxu0 0
      %6748 = vmatpush2.bf16.msra.mxu0 0
      %6749 = vmatprep.subr.bf16.mxu0 0
      %6750 = vmatpush2.bf16.msra.mxu0 0
      %6751 = vmatprep.subr.bf16.mxu0 0
      %6752 = vmatpush2.bf16.msra.mxu0 0
      %6753 = vmatprep.subr.bf16.mxu0 0
      %6754 = vmatpush2.bf16.msra.mxu0 0
      %6755 = vmatprep.subr.bf16.mxu0 0
      %6756 = vmatpush2.bf16.msra.mxu0 0
      %6757 = vmatprep.subr.bf16.mxu0 0
      %6758 = vmatpush2.bf16.msra.mxu0 0
      %6759 = vmatprep.subr.bf16.mxu0 0
      %6760 = vmatpush2.bf16.msra.mxu0 0
      %6761 = vmatprep.subr.bf16.mxu0 0
      %6762 = vmatpush2.bf16.msra.mxu0 0
      %6763 = vmatprep.mubr.bf16.mxu0 0
      %6764 = vmatmul.mubr.bf16.gmra.mxu0 %v6729
      %v6765 = vpop.f32.mrf.mxu0
      %v6766 = vadd.f32 0.0, %v6765
      %v6767 = vpop.f32.mrf.mxu0
      %v6768 = vpop.f32.mrf.mxu0
      %v6769 = vadd.f32 0.0, %v6768
      %v6770 = vpop.f32.mrf.mxu0
      %6771 = vdwg.mxu0
      %6772 = vrot.lane.b32.xlu0 %v1100, 48
      %v6773 = vpop.permute.xlu0 %6772
      %v6776 = vsel %vm1974, %v6342, 0
      %6778 = vmatprep.subr.bf16.mxu0 0
      %6779 = vmatpush1.bf16.msra.mxu0 0
      %6780 = vmatprep.subr.bf16.mxu0 0
      %6781 = vmatpush1.bf16.msra.mxu0 0
      %6782 = vmatprep.subr.bf16.mxu0 0
      %6783 = vmatpush1.bf16.msra.mxu0 0
      %6784 = vmatprep.subr.bf16.mxu0 0
      %6785 = vmatpush1.bf16.msra.mxu0 0
      %6786 = vmatprep.subr.bf16.mxu0 0
      %6787 = vmatpush1.bf16.msra.mxu0 0
      %6788 = vmatprep.subr.bf16.mxu0 0
      %6789 = vmatpush1.bf16.msra.mxu0 0
      %6790 = vmatprep.subr.bf16.mxu0 0
      %6791 = vmatpush1.bf16.msra.mxu0 0
      %6792 = vmatprep.subr.bf16.mxu0 0
      %6793 = vmatpush1.bf16.msra.mxu0 %v6773
      %6794 = vmatprep.subr.bf16.mxu0 0
      %6795 = vmatpush2.bf16.msra.mxu0 0
      %6796 = vmatprep.subr.bf16.mxu0 0
      %6797 = vmatpush2.bf16.msra.mxu0 0
      %6798 = vmatprep.subr.bf16.mxu0 0
      %6799 = vmatpush2.bf16.msra.mxu0 0
      %6800 = vmatprep.subr.bf16.mxu0 0
      %6801 = vmatpush2.bf16.msra.mxu0 0
      %6802 = vmatprep.subr.bf16.mxu0 0
      %6803 = vmatpush2.bf16.msra.mxu0 0
      %6804 = vmatprep.subr.bf16.mxu0 0
      %6805 = vmatpush2.bf16.msra.mxu0 0
      %6806 = vmatprep.subr.bf16.mxu0 0
      %6807 = vmatpush2.bf16.msra.mxu0 0
      %6808 = vmatprep.subr.bf16.mxu0 0
      %6809 = vmatpush2.bf16.msra.mxu0 0
      %6810 = vmatprep.mubr.bf16.mxu0 0
      %6811 = vmatmul.mubr.bf16.gmra.mxu0 %v6776
      %v6812 = vpop.f32.mrf.mxu0
      %v6813 = vadd.f32 0.0, %v6812
      %v6814 = vpop.f32.mrf.mxu0
      %v6815 = vpop.f32.mrf.mxu0
      %v6816 = vadd.f32 0.0, %v6815
      %v6817 = vpop.f32.mrf.mxu0
      %6818 = vdwg.mxu0
      %6819 = vrot.lane.b32.xlu0 %v1101, 48
      %v6820 = vpop.permute.xlu0 %6819
      %v6823 = vsel %vm1974, %v6343, 0
      %6825 = vmatprep.subr.bf16.mxu0 0
      %6826 = vmatpush1.bf16.msra.mxu0 0
      %6827 = vmatprep.subr.bf16.mxu0 0
      %6828 = vmatpush1.bf16.msra.mxu0 0
      %6829 = vmatprep.subr.bf16.mxu0 0
      %6830 = vmatpush1.bf16.msra.mxu0 0
      %6831 = vmatprep.subr.bf16.mxu0 0
      %6832 = vmatpush1.bf16.msra.mxu0 0
      %6833 = vmatprep.subr.bf16.mxu0 0
      %6834 = vmatpush1.bf16.msra.mxu0 0
      %6835 = vmatprep.subr.bf16.mxu0 0
      %6836 = vmatpush1.bf16.msra.mxu0 0
      %6837 = vmatprep.subr.bf16.mxu0 0
      %6838 = vmatpush1.bf16.msra.mxu0 0
      %6839 = vmatprep.subr.bf16.mxu0 0
      %6840 = vmatpush1.bf16.msra.mxu0 %v6820
      %6841 = vmatprep.subr.bf16.mxu0 0
      %6842 = vmatpush2.bf16.msra.mxu0 0
      %6843 = vmatprep.subr.bf16.mxu0 0
      %6844 = vmatpush2.bf16.msra.mxu0 0
      %6845 = vmatprep.subr.bf16.mxu0 0
      %6846 = vmatpush2.bf16.msra.mxu0 0
      %6847 = vmatprep.subr.bf16.mxu0 0
      %6848 = vmatpush2.bf16.msra.mxu0 0
      %6849 = vmatprep.subr.bf16.mxu0 0
      %6850 = vmatpush2.bf16.msra.mxu0 0
      %6851 = vmatprep.subr.bf16.mxu0 0
      %6852 = vmatpush2.bf16.msra.mxu0 0
      %6853 = vmatprep.subr.bf16.mxu0 0
      %6854 = vmatpush2.bf16.msra.mxu0 0
      %6855 = vmatprep.subr.bf16.mxu0 0
      %6856 = vmatpush2.bf16.msra.mxu0 0
      %6857 = vmatprep.mubr.bf16.mxu0 0
      %6858 = vmatmul.mubr.bf16.gmra.mxu0 %v6823
      %v6859 = vpop.f32.mrf.mxu0
      %v6860 = vadd.f32 0.0, %v6859
      %v6861 = vpop.f32.mrf.mxu0
      %v6862 = vpop.f32.mrf.mxu0
      %v6863 = vadd.f32 0.0, %v6862
      %v6864 = vpop.f32.mrf.mxu0
      %6865 = vdwg.mxu0
      %6866 = vrot.lane.b32.xlu0 %v1102, 48
      %v6867 = vpop.permute.xlu0 %6866
      %v6870 = vsel %vm1974, %v6344, 0
      %6872 = vmatprep.subr.bf16.mxu0 0
      %6873 = vmatpush1.bf16.msra.mxu0 0
      %6874 = vmatprep.subr.bf16.mxu0 0
      %6875 = vmatpush1.bf16.msra.mxu0 0
      %6876 = vmatprep.subr.bf16.mxu0 0
      %6877 = vmatpush1.bf16.msra.mxu0 0
      %6878 = vmatprep.subr.bf16.mxu0 0
      %6879 = vmatpush1.bf16.msra.mxu0 0
      %6880 = vmatprep.subr.bf16.mxu0 0
      %6881 = vmatpush1.bf16.msra.mxu0 0
      %6882 = vmatprep.subr.bf16.mxu0 0
      %6883 = vmatpush1.bf16.msra.mxu0 0
      %6884 = vmatprep.subr.bf16.mxu0 0
      %6885 = vmatpush1.bf16.msra.mxu0 0
      %6886 = vmatprep.subr.bf16.mxu0 0
      %6887 = vmatpush1.bf16.msra.mxu0 %v6867
      %6888 = vmatprep.subr.bf16.mxu0 0
      %6889 = vmatpush2.bf16.msra.mxu0 0
      %6890 = vmatprep.subr.bf16.mxu0 0
      %6891 = vmatpush2.bf16.msra.mxu0 0
      %6892 = vmatprep.subr.bf16.mxu0 0
      %6893 = vmatpush2.bf16.msra.mxu0 0
      %6894 = vmatprep.subr.bf16.mxu0 0
      %6895 = vmatpush2.bf16.msra.mxu0 0
      %6896 = vmatprep.subr.bf16.mxu0 0
      %6897 = vmatpush2.bf16.msra.mxu0 0
      %6898 = vmatprep.subr.bf16.mxu0 0
      %6899 = vmatpush2.bf16.msra.mxu0 0
      %6900 = vmatprep.subr.bf16.mxu0 0
      %6901 = vmatpush2.bf16.msra.mxu0 0
      %6902 = vmatprep.subr.bf16.mxu0 0
      %6903 = vmatpush2.bf16.msra.mxu0 0
      %6904 = vmatprep.mubr.bf16.mxu0 0
      %6905 = vmatmul.mubr.bf16.gmra.mxu0 %v6870
      %v6906 = vpop.f32.mrf.mxu0
      %v6907 = vadd.f32 0.0, %v6906
      %v6908 = vpop.f32.mrf.mxu0
      %v6909 = vpop.f32.mrf.mxu0
      %v6910 = vadd.f32 0.0, %v6909
      %v6911 = vpop.f32.mrf.mxu0
      %6912 = vdwg.mxu0
      %6913 = vrot.lane.b32.xlu0 %v1103, 48
      %v6914 = vpop.permute.xlu0 %6913
      %v6917 = vsel %vm1974, %v6345, 0
      %6919 = vmatprep.subr.bf16.mxu0 0
      %6920 = vmatpush1.bf16.msra.mxu0 0
      %6921 = vmatprep.subr.bf16.mxu0 0
      %6922 = vmatpush1.bf16.msra.mxu0 0
      %6923 = vmatprep.subr.bf16.mxu0 0
      %6924 = vmatpush1.bf16.msra.mxu0 0
      %6925 = vmatprep.subr.bf16.mxu0 0
      %6926 = vmatpush1.bf16.msra.mxu0 0
      %6927 = vmatprep.subr.bf16.mxu0 0
      %6928 = vmatpush1.bf16.msra.mxu0 0
      %6929 = vmatprep.subr.bf16.mxu0 0
      %6930 = vmatpush1.bf16.msra.mxu0 0
      %6931 = vmatprep.subr.bf16.mxu0 0
      %6932 = vmatpush1.bf16.msra.mxu0 0
      %6933 = vmatprep.subr.bf16.mxu0 0
      %6934 = vmatpush1.bf16.msra.mxu0 %v6914
      %6935 = vmatprep.subr.bf16.mxu0 0
      %6936 = vmatpush2.bf16.msra.mxu0 0
      %6937 = vmatprep.subr.bf16.mxu0 0
      %6938 = vmatpush2.bf16.msra.mxu0 0
      %6939 = vmatprep.subr.bf16.mxu0 0
      %6940 = vmatpush2.bf16.msra.mxu0 0
      %6941 = vmatprep.subr.bf16.mxu0 0
      %6942 = vmatpush2.bf16.msra.mxu0 0
      %6943 = vmatprep.subr.bf16.mxu0 0
      %6944 = vmatpush2.bf16.msra.mxu0 0
      %6945 = vmatprep.subr.bf16.mxu0 0
      %6946 = vmatpush2.bf16.msra.mxu0 0
      %6947 = vmatprep.subr.bf16.mxu0 0
      %6948 = vmatpush2.bf16.msra.mxu0 0
      %6949 = vmatprep.subr.bf16.mxu0 0
      %6950 = vmatpush2.bf16.msra.mxu0 0
      %6951 = vmatprep.mubr.bf16.mxu0 0
      %6952 = vmatmul.mubr.bf16.gmra.mxu0 %v6917
      %v6953 = vpop.f32.mrf.mxu0
      %v6954 = vadd.f32 0.0, %v6953
      %v6955 = vpop.f32.mrf.mxu0
      %v6956 = vpop.f32.mrf.mxu0
      %v6957 = vadd.f32 0.0, %v6956
      %v6958 = vpop.f32.mrf.mxu0
      %6959 = vdwg.mxu0
      %6960 = vrot.lane.b32.xlu0 %v1104, 48
      %v6961 = vpop.permute.xlu0 %6960
      %v6964 = vsel %vm1974, %v6346, 0
      %6966 = vmatprep.subr.bf16.mxu0 0
      %6967 = vmatpush1.bf16.msra.mxu0 0
      %6968 = vmatprep.subr.bf16.mxu0 0
      %6969 = vmatpush1.bf16.msra.mxu0 0
      %6970 = vmatprep.subr.bf16.mxu0 0
      %6971 = vmatpush1.bf16.msra.mxu0 0
      %6972 = vmatprep.subr.bf16.mxu0 0
      %6973 = vmatpush1.bf16.msra.mxu0 0
      %6974 = vmatprep.subr.bf16.mxu0 0
      %6975 = vmatpush1.bf16.msra.mxu0 0
      %6976 = vmatprep.subr.bf16.mxu0 0
      %6977 = vmatpush1.bf16.msra.mxu0 0
      %6978 = vmatprep.subr.bf16.mxu0 0
      %6979 = vmatpush1.bf16.msra.mxu0 0
      %6980 = vmatprep.subr.bf16.mxu0 0
      %6981 = vmatpush1.bf16.msra.mxu0 %v6961
      %6982 = vmatprep.subr.bf16.mxu0 0
      %6983 = vmatpush2.bf16.msra.mxu0 0
      %6984 = vmatprep.subr.bf16.mxu0 0
      %6985 = vmatpush2.bf16.msra.mxu0 0
      %6986 = vmatprep.subr.bf16.mxu0 0
      %6987 = vmatpush2.bf16.msra.mxu0 0
      %6988 = vmatprep.subr.bf16.mxu0 0
      %6989 = vmatpush2.bf16.msra.mxu0 0
      %6990 = vmatprep.subr.bf16.mxu0 0
      %6991 = vmatpush2.bf16.msra.mxu0 0
      %6992 = vmatprep.subr.bf16.mxu0 0
      %6993 = vmatpush2.bf16.msra.mxu0 0
      %6994 = vmatprep.subr.bf16.mxu0 0
      %6995 = vmatpush2.bf16.msra.mxu0 0
      %6996 = vmatprep.subr.bf16.mxu0 0
      %6997 = vmatpush2.bf16.msra.mxu0 0
      %6998 = vmatprep.mubr.bf16.mxu0 0
      %6999 = vmatmul.mubr.bf16.gmra.mxu0 %v6964
      %v7000 = vpop.f32.mrf.mxu0
      %v7001 = vadd.f32 0.0, %v7000
      %v7002 = vpop.f32.mrf.mxu0
      %v7003 = vpop.f32.mrf.mxu0
      %v7004 = vadd.f32 0.0, %v7003
      %v7005 = vpop.f32.mrf.mxu0
      %7006 = vdwg.mxu0
      %7007 = vrot.lane.b32.xlu0 %v1105, 48
      %v7008 = vpop.permute.xlu0 %7007
      %v7011 = vsel %vm1974, %v6347, 0
      %7013 = vmatprep.subr.bf16.mxu0 0
      %7014 = vmatpush1.bf16.msra.mxu0 0
      %7015 = vmatprep.subr.bf16.mxu0 0
      %7016 = vmatpush1.bf16.msra.mxu0 0
      %7017 = vmatprep.subr.bf16.mxu0 0
      %7018 = vmatpush1.bf16.msra.mxu0 0
      %7019 = vmatprep.subr.bf16.mxu0 0
      %7020 = vmatpush1.bf16.msra.mxu0 0
      %7021 = vmatprep.subr.bf16.mxu0 0
      %7022 = vmatpush1.bf16.msra.mxu0 0
      %7023 = vmatprep.subr.bf16.mxu0 0
      %7024 = vmatpush1.bf16.msra.mxu0 0
      %7025 = vmatprep.subr.bf16.mxu0 0
      %7026 = vmatpush1.bf16.msra.mxu0 0
      %7027 = vmatprep.subr.bf16.mxu0 0
      %7028 = vmatpush1.bf16.msra.mxu0 %v7008
      %7029 = vmatprep.subr.bf16.mxu0 0
      %7030 = vmatpush2.bf16.msra.mxu0 0
      %7031 = vmatprep.subr.bf16.mxu0 0
      %7032 = vmatpush2.bf16.msra.mxu0 0
      %7033 = vmatprep.subr.bf16.mxu0 0
      %7034 = vmatpush2.bf16.msra.mxu0 0
      %7035 = vmatprep.subr.bf16.mxu0 0
      %7036 = vmatpush2.bf16.msra.mxu0 0
      %7037 = vmatprep.subr.bf16.mxu0 0
      %7038 = vmatpush2.bf16.msra.mxu0 0
      %7039 = vmatprep.subr.bf16.mxu0 0
      %7040 = vmatpush2.bf16.msra.mxu0 0
      %7041 = vmatprep.subr.bf16.mxu0 0
      %7042 = vmatpush2.bf16.msra.mxu0 0
      %7043 = vmatprep.subr.bf16.mxu0 0
      %7044 = vmatpush2.bf16.msra.mxu0 0
      %7045 = vmatprep.mubr.bf16.mxu0 0
      %7046 = vmatmul.mubr.bf16.gmra.mxu0 %v7011
      %v7047 = vpop.f32.mrf.mxu0
      %v7048 = vadd.f32 0.0, %v7047
      %v7049 = vpop.f32.mrf.mxu0
      %v7050 = vpop.f32.mrf.mxu0
      %v7051 = vadd.f32 0.0, %v7050
      %v7052 = vpop.f32.mrf.mxu0
      %7053 = vdwg.mxu0
      %7054 = vrot.lane.b32.xlu0 %v1106, 48
      %v7055 = vpop.permute.xlu0 %7054
      %v7058 = vsel %vm1974, %v6348, 0
      %7060 = vmatprep.subr.bf16.mxu0 0
      %7061 = vmatpush1.bf16.msra.mxu0 0
      %7062 = vmatprep.subr.bf16.mxu0 0
      %7063 = vmatpush1.bf16.msra.mxu0 0
      %7064 = vmatprep.subr.bf16.mxu0 0
      %7065 = vmatpush1.bf16.msra.mxu0 0
      %7066 = vmatprep.subr.bf16.mxu0 0
      %7067 = vmatpush1.bf16.msra.mxu0 0
      %7068 = vmatprep.subr.bf16.mxu0 0
      %7069 = vmatpush1.bf16.msra.mxu0 0
      %7070 = vmatprep.subr.bf16.mxu0 0
      %7071 = vmatpush1.bf16.msra.mxu0 0
      %7072 = vmatprep.subr.bf16.mxu0 0
      %7073 = vmatpush1.bf16.msra.mxu0 0
      %7074 = vmatprep.subr.bf16.mxu0 0
      %7075 = vmatpush1.bf16.msra.mxu0 %v7055
      %7076 = vmatprep.subr.bf16.mxu0 0
      %7077 = vmatpush2.bf16.msra.mxu0 0
      %7078 = vmatprep.subr.bf16.mxu0 0
      %7079 = vmatpush2.bf16.msra.mxu0 0
      %7080 = vmatprep.subr.bf16.mxu0 0
      %7081 = vmatpush2.bf16.msra.mxu0 0
      %7082 = vmatprep.subr.bf16.mxu0 0
      %7083 = vmatpush2.bf16.msra.mxu0 0
      %7084 = vmatprep.subr.bf16.mxu0 0
      %7085 = vmatpush2.bf16.msra.mxu0 0
      %7086 = vmatprep.subr.bf16.mxu0 0
      %7087 = vmatpush2.bf16.msra.mxu0 0
      %7088 = vmatprep.subr.bf16.mxu0 0
      %7089 = vmatpush2.bf16.msra.mxu0 0
      %7090 = vmatprep.subr.bf16.mxu0 0
      %7091 = vmatpush2.bf16.msra.mxu0 0
      %7092 = vmatprep.mubr.bf16.mxu0 0
      %7093 = vmatmul.mubr.bf16.gmra.mxu0 %v7058
      %v7094 = vpop.f32.mrf.mxu0
      %v7095 = vadd.f32 0.0, %v7094
      %v7096 = vpop.f32.mrf.mxu0
      %v7097 = vpop.f32.mrf.mxu0
      %v7098 = vadd.f32 0.0, %v7097
      %v7099 = vpop.f32.mrf.mxu0
      %7100 = vdwg.mxu0
      %7101 = vrot.lane.b32.xlu0 %v1091, 104
      %v7102 = vpop.permute.xlu0 %7101
      %7103 = vrot.lane.b32.xlu0 %v1091, 72
      %v7104 = vpop.permute.xlu0 %7103
      %v7106 = vsel %vm1110, %v7102, 0
      %v7109 = vsel %vm1110, %v7104, 0
      %7111 = vmatprep.subr.bf16.mxu0 0
      %7112 = vmatpush1.bf16.xpose.msra.mxu0 0
      %7113 = vmatprep.subr.bf16.mxu0 0
      %7114 = vmatpush1.bf16.xpose.msra.mxu0 0
      %7115 = vmatprep.subr.bf16.mxu0 0
      %7116 = vmatpush1.bf16.xpose.msra.mxu0 0
      %7117 = vmatprep.subr.bf16.mxu0 0
      %7118 = vmatpush1.bf16.xpose.msra.mxu0 0
      %7119 = vmatprep.subr.bf16.mxu0 0
      %7120 = vmatpush1.bf16.xpose.msra.mxu0 0
      %7121 = vmatprep.subr.bf16.mxu0 0
      %7122 = vmatpush1.bf16.xpose.msra.mxu0 0
      %7123 = vmatprep.subr.bf16.mxu0 0
      %7124 = vmatpush1.bf16.xpose.msra.mxu0 0
      %7125 = vmatprep.subr.bf16.mxu0 0
      %7126 = vmatpush1.bf16.xpose.msra.mxu0 %v7109
      %7127 = vmatprep.subr.bf16.mxu0 0
      %7128 = vmatpush2.bf16.xpose.msra.mxu0 0
      %7129 = vmatprep.subr.bf16.mxu0 0
      %7130 = vmatpush2.bf16.xpose.msra.mxu0 0
      %7131 = vmatprep.subr.bf16.mxu0 0
      %7132 = vmatpush2.bf16.xpose.msra.mxu0 0
      %7133 = vmatprep.subr.bf16.mxu0 0
      %7134 = vmatpush2.bf16.xpose.msra.mxu0 0
      %7135 = vmatprep.subr.bf16.mxu0 0
      %7136 = vmatpush2.bf16.xpose.msra.mxu0 0
      %7137 = vmatprep.subr.bf16.mxu0 0
      %7138 = vmatpush2.bf16.xpose.msra.mxu0 0
      %7139 = vmatprep.subr.bf16.mxu0 0
      %7140 = vmatpush2.bf16.xpose.msra.mxu0 0
      %7141 = vmatprep.subr.bf16.mxu0 0
      %7142 = vmatpush2.bf16.xpose.msra.mxu0 0
      %7143 = vmatprep.mubr.bf16.mxu0 0
      %7144 = vmatmul.mubr.bf16.gmra.mxu0 %v7106
      %v7145 = vpop.f32.mrf.mxu0
      %v7146 = vadd.f32 0.0, %v7145
      %v7147 = vpop.f32.mrf.mxu0
      %v7148 = vpop.f32.mrf.mxu0
      %v7149 = vadd.f32 0.0, %v7148
      %v7150 = vpop.f32.mrf.mxu0
      %7151 = vdwg.mxu0
      %7152 = vrot.lane.b32.xlu0 %v1092, 104
      %v7153 = vpop.permute.xlu0 %7152
      %7154 = vrot.lane.b32.xlu0 %v1092, 72
      %v7155 = vpop.permute.xlu0 %7154
      %v7157 = vsel %vm1110, %v7153, 0
      %v7160 = vsel %vm1110, %v7155, 0
      %7162 = vmatprep.subr.bf16.mxu0 0
      %7163 = vmatpush1.bf16.xpose.msra.mxu0 0
      %7164 = vmatprep.subr.bf16.mxu0 0
      %7165 = vmatpush1.bf16.xpose.msra.mxu0 0
      %7166 = vmatprep.subr.bf16.mxu0 0
      %7167 = vmatpush1.bf16.xpose.msra.mxu0 0
      %7168 = vmatprep.subr.bf16.mxu0 0
      %7169 = vmatpush1.bf16.xpose.msra.mxu0 0
      %7170 = vmatprep.subr.bf16.mxu0 0
      %7171 = vmatpush1.bf16.xpose.msra.mxu0 0
      %7172 = vmatprep.subr.bf16.mxu0 0
      %7173 = vmatpush1.bf16.xpose.msra.mxu0 0
      %7174 = vmatprep.subr.bf16.mxu0 0
      %7175 = vmatpush1.bf16.xpose.msra.mxu0 0
      %7176 = vmatprep.subr.bf16.mxu0 0
      %7177 = vmatpush1.bf16.xpose.msra.mxu0 %v7160
      %7178 = vmatprep.subr.bf16.mxu0 0
      %7179 = vmatpush2.bf16.xpose.msra.mxu0 0
      %7180 = vmatprep.subr.bf16.mxu0 0
      %7181 = vmatpush2.bf16.xpose.msra.mxu0 0
      %7182 = vmatprep.subr.bf16.mxu0 0
      %7183 = vmatpush2.bf16.xpose.msra.mxu0 0
      %7184 = vmatprep.subr.bf16.mxu0 0
      %7185 = vmatpush2.bf16.xpose.msra.mxu0 0
      %7186 = vmatprep.subr.bf16.mxu0 0
      %7187 = vmatpush2.bf16.xpose.msra.mxu0 0
      %7188 = vmatprep.subr.bf16.mxu0 0
      %7189 = vmatpush2.bf16.xpose.msra.mxu0 0
      %7190 = vmatprep.subr.bf16.mxu0 0
      %7191 = vmatpush2.bf16.xpose.msra.mxu0 0
      %7192 = vmatprep.subr.bf16.mxu0 0
      %7193 = vmatpush2.bf16.xpose.msra.mxu0 0
      %7194 = vmatprep.mubr.bf16.mxu0 0
      %7195 = vmatmul.mubr.bf16.gmra.mxu0 %v7157
      %v7196 = vpop.f32.mrf.mxu0
      %v7197 = vadd.f32 0.0, %v7196
      %v7198 = vpop.f32.mrf.mxu0
      %v7199 = vpop.f32.mrf.mxu0
      %v7200 = vadd.f32 0.0, %v7199
      %v7201 = vpop.f32.mrf.mxu0
      %7202 = vdwg.mxu0
      %7203 = vrot.lane.b32.xlu0 %v1093, 104
      %v7204 = vpop.permute.xlu0 %7203
      %7205 = vrot.lane.b32.xlu0 %v1093, 72
      %v7206 = vpop.permute.xlu0 %7205
      %v7208 = vsel %vm1110, %v7204, 0
      %v7211 = vsel %vm1110, %v7206, 0
      %7213 = vmatprep.subr.bf16.mxu0 0
      %7214 = vmatpush1.bf16.xpose.msra.mxu0 0
      %7215 = vmatprep.subr.bf16.mxu0 0
      %7216 = vmatpush1.bf16.xpose.msra.mxu0 0
      %7217 = vmatprep.subr.bf16.mxu0 0
      %7218 = vmatpush1.bf16.xpose.msra.mxu0 0
      %7219 = vmatprep.subr.bf16.mxu0 0
      %7220 = vmatpush1.bf16.xpose.msra.mxu0 0
      %7221 = vmatprep.subr.bf16.mxu0 0
      %7222 = vmatpush1.bf16.xpose.msra.mxu0 0
      %7223 = vmatprep.subr.bf16.mxu0 0
      %7224 = vmatpush1.bf16.xpose.msra.mxu0 0
      %7225 = vmatprep.subr.bf16.mxu0 0
      %7226 = vmatpush1.bf16.xpose.msra.mxu0 0
      %7227 = vmatprep.subr.bf16.mxu0 0
      %7228 = vmatpush1.bf16.xpose.msra.mxu0 %v7211
      %7229 = vmatprep.subr.bf16.mxu0 0
      %7230 = vmatpush2.bf16.xpose.msra.mxu0 0
      %7231 = vmatprep.subr.bf16.mxu0 0
      %7232 = vmatpush2.bf16.xpose.msra.mxu0 0
      %7233 = vmatprep.subr.bf16.mxu0 0
      %7234 = vmatpush2.bf16.xpose.msra.mxu0 0
      %7235 = vmatprep.subr.bf16.mxu0 0
      %7236 = vmatpush2.bf16.xpose.msra.mxu0 0
      %7237 = vmatprep.subr.bf16.mxu0 0
      %7238 = vmatpush2.bf16.xpose.msra.mxu0 0
      %7239 = vmatprep.subr.bf16.mxu0 0
      %7240 = vmatpush2.bf16.xpose.msra.mxu0 0
      %7241 = vmatprep.subr.bf16.mxu0 0
      %7242 = vmatpush2.bf16.xpose.msra.mxu0 0
      %7243 = vmatprep.subr.bf16.mxu0 0
      %7244 = vmatpush2.bf16.xpose.msra.mxu0 0
      %7245 = vmatprep.mubr.bf16.mxu0 0
      %7246 = vmatmul.mubr.bf16.gmra.mxu0 %v7208
      %v7247 = vpop.f32.mrf.mxu0
      %v7248 = vadd.f32 0.0, %v7247
      %v7249 = vpop.f32.mrf.mxu0
      %v7250 = vpop.f32.mrf.mxu0
      %v7251 = vadd.f32 0.0, %v7250
      %v7252 = vpop.f32.mrf.mxu0
      %7253 = vdwg.mxu0
      %7254 = vrot.lane.b32.xlu0 %v1094, 104
      %v7255 = vpop.permute.xlu0 %7254
      %7256 = vrot.lane.b32.xlu0 %v1094, 72
      %v7257 = vpop.permute.xlu0 %7256
      %v7259 = vsel %vm1110, %v7255, 0
      %v7262 = vsel %vm1110, %v7257, 0
      %7264 = vmatprep.subr.bf16.mxu0 0
      %7265 = vmatpush1.bf16.xpose.msra.mxu0 0
      %7266 = vmatprep.subr.bf16.mxu0 0
      %7267 = vmatpush1.bf16.xpose.msra.mxu0 0
      %7268 = vmatprep.subr.bf16.mxu0 0
      %7269 = vmatpush1.bf16.xpose.msra.mxu0 0
      %7270 = vmatprep.subr.bf16.mxu0 0
      %7271 = vmatpush1.bf16.xpose.msra.mxu0 0
      %7272 = vmatprep.subr.bf16.mxu0 0
      %7273 = vmatpush1.bf16.xpose.msra.mxu0 0
      %7274 = vmatprep.subr.bf16.mxu0 0
      %7275 = vmatpush1.bf16.xpose.msra.mxu0 0
      %7276 = vmatprep.subr.bf16.mxu0 0
      %7277 = vmatpush1.bf16.xpose.msra.mxu0 0
      %7278 = vmatprep.subr.bf16.mxu0 0
      %7279 = vmatpush1.bf16.xpose.msra.mxu0 %v7262
      %7280 = vmatprep.subr.bf16.mxu0 0
      %7281 = vmatpush2.bf16.xpose.msra.mxu0 0
      %7282 = vmatprep.subr.bf16.mxu0 0
      %7283 = vmatpush2.bf16.xpose.msra.mxu0 0
      %7284 = vmatprep.subr.bf16.mxu0 0
      %7285 = vmatpush2.bf16.xpose.msra.mxu0 0
      %7286 = vmatprep.subr.bf16.mxu0 0
      %7287 = vmatpush2.bf16.xpose.msra.mxu0 0
      %7288 = vmatprep.subr.bf16.mxu0 0
      %7289 = vmatpush2.bf16.xpose.msra.mxu0 0
      %7290 = vmatprep.subr.bf16.mxu0 0
      %7291 = vmatpush2.bf16.xpose.msra.mxu0 0
      %7292 = vmatprep.subr.bf16.mxu0 0
      %7293 = vmatpush2.bf16.xpose.msra.mxu0 0
      %7294 = vmatprep.subr.bf16.mxu0 0
      %7295 = vmatpush2.bf16.xpose.msra.mxu0 0
      %7296 = vmatprep.mubr.bf16.mxu0 0
      %7297 = vmatmul.mubr.bf16.gmra.mxu0 %v7259
      %v7298 = vpop.f32.mrf.mxu0
      %v7299 = vadd.f32 0.0, %v7298
      %v7300 = vpop.f32.mrf.mxu0
      %v7301 = vpop.f32.mrf.mxu0
      %v7302 = vadd.f32 0.0, %v7301
      %v7303 = vpop.f32.mrf.mxu0
      %7304 = vdwg.mxu0
      %7305 = vrot.lane.b32.xlu0 %v1095, 104
      %v7306 = vpop.permute.xlu0 %7305
      %7307 = vrot.lane.b32.xlu0 %v1095, 72
      %v7308 = vpop.permute.xlu0 %7307
      %v7310 = vsel %vm1110, %v7306, 0
      %v7313 = vsel %vm1110, %v7308, 0
      %7315 = vmatprep.subr.bf16.mxu0 0
      %7316 = vmatpush1.bf16.xpose.msra.mxu0 0
      %7317 = vmatprep.subr.bf16.mxu0 0
      %7318 = vmatpush1.bf16.xpose.msra.mxu0 0
      %7319 = vmatprep.subr.bf16.mxu0 0
      %7320 = vmatpush1.bf16.xpose.msra.mxu0 0
      %7321 = vmatprep.subr.bf16.mxu0 0
      %7322 = vmatpush1.bf16.xpose.msra.mxu0 0
      %7323 = vmatprep.subr.bf16.mxu0 0
      %7324 = vmatpush1.bf16.xpose.msra.mxu0 0
      %7325 = vmatprep.subr.bf16.mxu0 0
      %7326 = vmatpush1.bf16.xpose.msra.mxu0 0
      %7327 = vmatprep.subr.bf16.mxu0 0
      %7328 = vmatpush1.bf16.xpose.msra.mxu0 0
      %7329 = vmatprep.subr.bf16.mxu0 0
      %7330 = vmatpush1.bf16.xpose.msra.mxu0 %v7313
      %7331 = vmatprep.subr.bf16.mxu0 0
      %7332 = vmatpush2.bf16.xpose.msra.mxu0 0
      %7333 = vmatprep.subr.bf16.mxu0 0
      %7334 = vmatpush2.bf16.xpose.msra.mxu0 0
      %7335 = vmatprep.subr.bf16.mxu0 0
      %7336 = vmatpush2.bf16.xpose.msra.mxu0 0
      %7337 = vmatprep.subr.bf16.mxu0 0
      %7338 = vmatpush2.bf16.xpose.msra.mxu0 0
      %7339 = vmatprep.subr.bf16.mxu0 0
      %7340 = vmatpush2.bf16.xpose.msra.mxu0 0
      %7341 = vmatprep.subr.bf16.mxu0 0
      %7342 = vmatpush2.bf16.xpose.msra.mxu0 0
      %7343 = vmatprep.subr.bf16.mxu0 0
      %7344 = vmatpush2.bf16.xpose.msra.mxu0 0
      %7345 = vmatprep.subr.bf16.mxu0 0
      %7346 = vmatpush2.bf16.xpose.msra.mxu0 0
      %7347 = vmatprep.mubr.bf16.mxu0 0
      %7348 = vmatmul.mubr.bf16.gmra.mxu0 %v7310
      %v7349 = vpop.f32.mrf.mxu0
      %v7350 = vadd.f32 0.0, %v7349
      %v7351 = vpop.f32.mrf.mxu0
      %v7352 = vpop.f32.mrf.mxu0
      %v7353 = vadd.f32 0.0, %v7352
      %v7354 = vpop.f32.mrf.mxu0
      %7355 = vdwg.mxu0
      %7356 = vrot.lane.b32.xlu0 %v1096, 104
      %v7357 = vpop.permute.xlu0 %7356
      %7358 = vrot.lane.b32.xlu0 %v1096, 72
      %v7359 = vpop.permute.xlu0 %7358
      %v7361 = vsel %vm1110, %v7357, 0
      %v7364 = vsel %vm1110, %v7359, 0
      %7366 = vmatprep.subr.bf16.mxu0 0
      %7367 = vmatpush1.bf16.xpose.msra.mxu0 0
      %7368 = vmatprep.subr.bf16.mxu0 0
      %7369 = vmatpush1.bf16.xpose.msra.mxu0 0
      %7370 = vmatprep.subr.bf16.mxu0 0
      %7371 = vmatpush1.bf16.xpose.msra.mxu0 0
      %7372 = vmatprep.subr.bf16.mxu0 0
      %7373 = vmatpush1.bf16.xpose.msra.mxu0 0
      %7374 = vmatprep.subr.bf16.mxu0 0
      %7375 = vmatpush1.bf16.xpose.msra.mxu0 0
      %7376 = vmatprep.subr.bf16.mxu0 0
      %7377 = vmatpush1.bf16.xpose.msra.mxu0 0
      %7378 = vmatprep.subr.bf16.mxu0 0
      %7379 = vmatpush1.bf16.xpose.msra.mxu0 0
      %7380 = vmatprep.subr.bf16.mxu0 0
      %7381 = vmatpush1.bf16.xpose.msra.mxu0 %v7364
      %7382 = vmatprep.subr.bf16.mxu0 0
      %7383 = vmatpush2.bf16.xpose.msra.mxu0 0
      %7384 = vmatprep.subr.bf16.mxu0 0
      %7385 = vmatpush2.bf16.xpose.msra.mxu0 0
      %7386 = vmatprep.subr.bf16.mxu0 0
      %7387 = vmatpush2.bf16.xpose.msra.mxu0 0
      %7388 = vmatprep.subr.bf16.mxu0 0
      %7389 = vmatpush2.bf16.xpose.msra.mxu0 0
      %7390 = vmatprep.subr.bf16.mxu0 0
      %7391 = vmatpush2.bf16.xpose.msra.mxu0 0
      %7392 = vmatprep.subr.bf16.mxu0 0
      %7393 = vmatpush2.bf16.xpose.msra.mxu0 0
      %7394 = vmatprep.subr.bf16.mxu0 0
      %7395 = vmatpush2.bf16.xpose.msra.mxu0 0
      %7396 = vmatprep.subr.bf16.mxu0 0
      %7397 = vmatpush2.bf16.xpose.msra.mxu0 0
      %7398 = vmatprep.mubr.bf16.mxu0 0
      %7399 = vmatmul.mubr.bf16.gmra.mxu0 %v7361
      %v7400 = vpop.f32.mrf.mxu0
      %v7401 = vadd.f32 0.0, %v7400
      %v7402 = vpop.f32.mrf.mxu0
      %v7403 = vpop.f32.mrf.mxu0
      %v7404 = vadd.f32 0.0, %v7403
      %v7405 = vpop.f32.mrf.mxu0
      %7406 = vdwg.mxu0
      %7407 = vrot.lane.b32.xlu0 %v1097, 104
      %v7408 = vpop.permute.xlu0 %7407
      %7409 = vrot.lane.b32.xlu0 %v1097, 72
      %v7410 = vpop.permute.xlu0 %7409
      %v7412 = vsel %vm1110, %v7408, 0
      %v7415 = vsel %vm1110, %v7410, 0
      %7417 = vmatprep.subr.bf16.mxu0 0
      %7418 = vmatpush1.bf16.xpose.msra.mxu0 0
      %7419 = vmatprep.subr.bf16.mxu0 0
      %7420 = vmatpush1.bf16.xpose.msra.mxu0 0
      %7421 = vmatprep.subr.bf16.mxu0 0
      %7422 = vmatpush1.bf16.xpose.msra.mxu0 0
      %7423 = vmatprep.subr.bf16.mxu0 0
      %7424 = vmatpush1.bf16.xpose.msra.mxu0 0
      %7425 = vmatprep.subr.bf16.mxu0 0
      %7426 = vmatpush1.bf16.xpose.msra.mxu0 0
      %7427 = vmatprep.subr.bf16.mxu0 0
      %7428 = vmatpush1.bf16.xpose.msra.mxu0 0
      %7429 = vmatprep.subr.bf16.mxu0 0
      %7430 = vmatpush1.bf16.xpose.msra.mxu0 0
      %7431 = vmatprep.subr.bf16.mxu0 0
      %7432 = vmatpush1.bf16.xpose.msra.mxu0 %v7415
      %7433 = vmatprep.subr.bf16.mxu0 0
      %7434 = vmatpush2.bf16.xpose.msra.mxu0 0
      %7435 = vmatprep.subr.bf16.mxu0 0
      %7436 = vmatpush2.bf16.xpose.msra.mxu0 0
      %7437 = vmatprep.subr.bf16.mxu0 0
      %7438 = vmatpush2.bf16.xpose.msra.mxu0 0
      %7439 = vmatprep.subr.bf16.mxu0 0
      %7440 = vmatpush2.bf16.xpose.msra.mxu0 0
      %7441 = vmatprep.subr.bf16.mxu0 0
      %7442 = vmatpush2.bf16.xpose.msra.mxu0 0
      %7443 = vmatprep.subr.bf16.mxu0 0
      %7444 = vmatpush2.bf16.xpose.msra.mxu0 0
      %7445 = vmatprep.subr.bf16.mxu0 0
      %7446 = vmatpush2.bf16.xpose.msra.mxu0 0
      %7447 = vmatprep.subr.bf16.mxu0 0
      %7448 = vmatpush2.bf16.xpose.msra.mxu0 0
      %7449 = vmatprep.mubr.bf16.mxu0 0
      %7450 = vmatmul.mubr.bf16.gmra.mxu0 %v7412
      %v7451 = vpop.f32.mrf.mxu0
      %v7452 = vadd.f32 0.0, %v7451
      %v7453 = vpop.f32.mrf.mxu0
      %v7454 = vpop.f32.mrf.mxu0
      %v7455 = vadd.f32 0.0, %v7454
      %v7456 = vpop.f32.mrf.mxu0
      %7457 = vdwg.mxu0
      %7458 = vrot.lane.b32.xlu0 %v1098, 104
      %v7459 = vpop.permute.xlu0 %7458
      %7460 = vrot.lane.b32.xlu0 %v1098, 72
      %v7461 = vpop.permute.xlu0 %7460
      %v7463 = vsel %vm1110, %v7459, 0
      %v7466 = vsel %vm1110, %v7461, 0
      %7468 = vmatprep.subr.bf16.mxu0 0
      %7469 = vmatpush1.bf16.xpose.msra.mxu0 0
      %7470 = vmatprep.subr.bf16.mxu0 0
      %7471 = vmatpush1.bf16.xpose.msra.mxu0 0
      %7472 = vmatprep.subr.bf16.mxu0 0
      %7473 = vmatpush1.bf16.xpose.msra.mxu0 0
      %7474 = vmatprep.subr.bf16.mxu0 0
      %7475 = vmatpush1.bf16.xpose.msra.mxu0 0
      %7476 = vmatprep.subr.bf16.mxu0 0
      %7477 = vmatpush1.bf16.xpose.msra.mxu0 0
      %7478 = vmatprep.subr.bf16.mxu0 0
      %7479 = vmatpush1.bf16.xpose.msra.mxu0 0
      %7480 = vmatprep.subr.bf16.mxu0 0
      %7481 = vmatpush1.bf16.xpose.msra.mxu0 0
      %7482 = vmatprep.subr.bf16.mxu0 0
      %7483 = vmatpush1.bf16.xpose.msra.mxu0 %v7466
      %7484 = vmatprep.subr.bf16.mxu0 0
      %7485 = vmatpush2.bf16.xpose.msra.mxu0 0
      %7486 = vmatprep.subr.bf16.mxu0 0
      %7487 = vmatpush2.bf16.xpose.msra.mxu0 0
      %7488 = vmatprep.subr.bf16.mxu0 0
      %7489 = vmatpush2.bf16.xpose.msra.mxu0 0
      %7490 = vmatprep.subr.bf16.mxu0 0
      %7491 = vmatpush2.bf16.xpose.msra.mxu0 0
      %7492 = vmatprep.subr.bf16.mxu0 0
      %7493 = vmatpush2.bf16.xpose.msra.mxu0 0
      %7494 = vmatprep.subr.bf16.mxu0 0
      %7495 = vmatpush2.bf16.xpose.msra.mxu0 0
      %7496 = vmatprep.subr.bf16.mxu0 0
      %7497 = vmatpush2.bf16.xpose.msra.mxu0 0
      %7498 = vmatprep.subr.bf16.mxu0 0
      %7499 = vmatpush2.bf16.xpose.msra.mxu0 0
      %7500 = vmatprep.mubr.bf16.mxu0 0
      %7501 = vmatmul.mubr.bf16.gmra.mxu0 %v7463
      %v7502 = vpop.f32.mrf.mxu0
      %v7503 = vadd.f32 0.0, %v7502
      %v7504 = vpop.f32.mrf.mxu0
      %v7505 = vpop.f32.mrf.mxu0
      %v7506 = vadd.f32 0.0, %v7505
      %v7507 = vpop.f32.mrf.mxu0
      %7508 = vdwg.mxu0
      %7509 = vrot.lane.b32.xlu0 %v1099, 104
      %v7510 = vpop.permute.xlu0 %7509
      %7511 = vrot.lane.b32.xlu0 %v1099, 72
      %v7512 = vpop.permute.xlu0 %7511
      %v7514 = vsel %vm1110, %v7510, 0
      %v7517 = vsel %vm1110, %v7512, 0
      %7519 = vmatprep.subr.bf16.mxu0 0
      %7520 = vmatpush1.bf16.xpose.msra.mxu0 0
      %7521 = vmatprep.subr.bf16.mxu0 0
      %7522 = vmatpush1.bf16.xpose.msra.mxu0 0
      %7523 = vmatprep.subr.bf16.mxu0 0
      %7524 = vmatpush1.bf16.xpose.msra.mxu0 0
      %7525 = vmatprep.subr.bf16.mxu0 0
      %7526 = vmatpush1.bf16.xpose.msra.mxu0 0
      %7527 = vmatprep.subr.bf16.mxu0 0
      %7528 = vmatpush1.bf16.xpose.msra.mxu0 0
      %7529 = vmatprep.subr.bf16.mxu0 0
      %7530 = vmatpush1.bf16.xpose.msra.mxu0 0
      %7531 = vmatprep.subr.bf16.mxu0 0
      %7532 = vmatpush1.bf16.xpose.msra.mxu0 0
      %7533 = vmatprep.subr.bf16.mxu0 0
      %7534 = vmatpush1.bf16.xpose.msra.mxu0 %v7517
      %7535 = vmatprep.subr.bf16.mxu0 0
      %7536 = vmatpush2.bf16.xpose.msra.mxu0 0
      %7537 = vmatprep.subr.bf16.mxu0 0
      %7538 = vmatpush2.bf16.xpose.msra.mxu0 0
      %7539 = vmatprep.subr.bf16.mxu0 0
      %7540 = vmatpush2.bf16.xpose.msra.mxu0 0
      %7541 = vmatprep.subr.bf16.mxu0 0
      %7542 = vmatpush2.bf16.xpose.msra.mxu0 0
      %7543 = vmatprep.subr.bf16.mxu0 0
      %7544 = vmatpush2.bf16.xpose.msra.mxu0 0
      %7545 = vmatprep.subr.bf16.mxu0 0
      %7546 = vmatpush2.bf16.xpose.msra.mxu0 0
      %7547 = vmatprep.subr.bf16.mxu0 0
      %7548 = vmatpush2.bf16.xpose.msra.mxu0 0
      %7549 = vmatprep.subr.bf16.mxu0 0
      %7550 = vmatpush2.bf16.xpose.msra.mxu0 0
      %7551 = vmatprep.mubr.bf16.mxu0 0
      %7552 = vmatmul.mubr.bf16.gmra.mxu0 %v7514
      %v7553 = vpop.f32.mrf.mxu0
      %v7554 = vadd.f32 0.0, %v7553
      %v7555 = vpop.f32.mrf.mxu0
      %v7556 = vpop.f32.mrf.mxu0
      %v7557 = vadd.f32 0.0, %v7556
      %v7558 = vpop.f32.mrf.mxu0
      %7559 = vdwg.mxu0
      %7560 = vrot.lane.b32.xlu0 %v1100, 104
      %v7561 = vpop.permute.xlu0 %7560
      %7562 = vrot.lane.b32.xlu0 %v1100, 72
      %v7563 = vpop.permute.xlu0 %7562
      %v7565 = vsel %vm1110, %v7561, 0
      %v7568 = vsel %vm1110, %v7563, 0
      %7570 = vmatprep.subr.bf16.mxu0 0
      %7571 = vmatpush1.bf16.xpose.msra.mxu0 0
      %7572 = vmatprep.subr.bf16.mxu0 0
      %7573 = vmatpush1.bf16.xpose.msra.mxu0 0
      %7574 = vmatprep.subr.bf16.mxu0 0
      %7575 = vmatpush1.bf16.xpose.msra.mxu0 0
      %7576 = vmatprep.subr.bf16.mxu0 0
      %7577 = vmatpush1.bf16.xpose.msra.mxu0 0
      %7578 = vmatprep.subr.bf16.mxu0 0
      %7579 = vmatpush1.bf16.xpose.msra.mxu0 0
      %7580 = vmatprep.subr.bf16.mxu0 0
      %7581 = vmatpush1.bf16.xpose.msra.mxu0 0
      %7582 = vmatprep.subr.bf16.mxu0 0
      %7583 = vmatpush1.bf16.xpose.msra.mxu0 0
      %7584 = vmatprep.subr.bf16.mxu0 0
      %7585 = vmatpush1.bf16.xpose.msra.mxu0 %v7568
      %7586 = vmatprep.subr.bf16.mxu0 0
      %7587 = vmatpush2.bf16.xpose.msra.mxu0 0
      %7588 = vmatprep.subr.bf16.mxu0 0
      %7589 = vmatpush2.bf16.xpose.msra.mxu0 0
      %7590 = vmatprep.subr.bf16.mxu0 0
      %7591 = vmatpush2.bf16.xpose.msra.mxu0 0
      %7592 = vmatprep.subr.bf16.mxu0 0
      %7593 = vmatpush2.bf16.xpose.msra.mxu0 0
      %7594 = vmatprep.subr.bf16.mxu0 0
      %7595 = vmatpush2.bf16.xpose.msra.mxu0 0
      %7596 = vmatprep.subr.bf16.mxu0 0
      %7597 = vmatpush2.bf16.xpose.msra.mxu0 0
      %7598 = vmatprep.subr.bf16.mxu0 0
      %7599 = vmatpush2.bf16.xpose.msra.mxu0 0
      %7600 = vmatprep.subr.bf16.mxu0 0
      %7601 = vmatpush2.bf16.xpose.msra.mxu0 0
      %7602 = vmatprep.mubr.bf16.mxu0 0
      %7603 = vmatmul.mubr.bf16.gmra.mxu0 %v7565
      %v7604 = vpop.f32.mrf.mxu0
      %v7605 = vadd.f32 0.0, %v7604
      %v7606 = vpop.f32.mrf.mxu0
      %v7607 = vpop.f32.mrf.mxu0
      %v7608 = vadd.f32 0.0, %v7607
      %v7609 = vpop.f32.mrf.mxu0
      %7610 = vdwg.mxu0
      %7611 = vrot.lane.b32.xlu0 %v1101, 104
      %v7612 = vpop.permute.xlu0 %7611
      %7613 = vrot.lane.b32.xlu0 %v1101, 72
      %v7614 = vpop.permute.xlu0 %7613
      %v7616 = vsel %vm1110, %v7612, 0
      %v7619 = vsel %vm1110, %v7614, 0
      %7621 = vmatprep.subr.bf16.mxu0 0
      %7622 = vmatpush1.bf16.xpose.msra.mxu0 0
      %7623 = vmatprep.subr.bf16.mxu0 0
      %7624 = vmatpush1.bf16.xpose.msra.mxu0 0
      %7625 = vmatprep.subr.bf16.mxu0 0
      %7626 = vmatpush1.bf16.xpose.msra.mxu0 0
      %7627 = vmatprep.subr.bf16.mxu0 0
      %7628 = vmatpush1.bf16.xpose.msra.mxu0 0
      %7629 = vmatprep.subr.bf16.mxu0 0
      %7630 = vmatpush1.bf16.xpose.msra.mxu0 0
      %7631 = vmatprep.subr.bf16.mxu0 0
      %7632 = vmatpush1.bf16.xpose.msra.mxu0 0
      %7633 = vmatprep.subr.bf16.mxu0 0
      %7634 = vmatpush1.bf16.xpose.msra.mxu0 0
      %7635 = vmatprep.subr.bf16.mxu0 0
      %7636 = vmatpush1.bf16.xpose.msra.mxu0 %v7619
      %7637 = vmatprep.subr.bf16.mxu0 0
      %7638 = vmatpush2.bf16.xpose.msra.mxu0 0
      %7639 = vmatprep.subr.bf16.mxu0 0
      %7640 = vmatpush2.bf16.xpose.msra.mxu0 0
      %7641 = vmatprep.subr.bf16.mxu0 0
      %7642 = vmatpush2.bf16.xpose.msra.mxu0 0
      %7643 = vmatprep.subr.bf16.mxu0 0
      %7644 = vmatpush2.bf16.xpose.msra.mxu0 0
      %7645 = vmatprep.subr.bf16.mxu0 0
      %7646 = vmatpush2.bf16.xpose.msra.mxu0 0
      %7647 = vmatprep.subr.bf16.mxu0 0
      %7648 = vmatpush2.bf16.xpose.msra.mxu0 0
      %7649 = vmatprep.subr.bf16.mxu0 0
      %7650 = vmatpush2.bf16.xpose.msra.mxu0 0
      %7651 = vmatprep.subr.bf16.mxu0 0
      %7652 = vmatpush2.bf16.xpose.msra.mxu0 0
      %7653 = vmatprep.mubr.bf16.mxu0 0
      %7654 = vmatmul.mubr.bf16.gmra.mxu0 %v7616
      %v7655 = vpop.f32.mrf.mxu0
      %v7656 = vadd.f32 0.0, %v7655
      %v7657 = vpop.f32.mrf.mxu0
      %v7658 = vpop.f32.mrf.mxu0
      %v7659 = vadd.f32 0.0, %v7658
      %v7660 = vpop.f32.mrf.mxu0
      %7661 = vdwg.mxu0
      %7662 = vrot.lane.b32.xlu0 %v1102, 104
      %v7663 = vpop.permute.xlu0 %7662
      %7664 = vrot.lane.b32.xlu0 %v1102, 72
      %v7665 = vpop.permute.xlu0 %7664
      %v7667 = vsel %vm1110, %v7663, 0
      %v7670 = vsel %vm1110, %v7665, 0
      %7672 = vmatprep.subr.bf16.mxu0 0
      %7673 = vmatpush1.bf16.xpose.msra.mxu0 0
      %7674 = vmatprep.subr.bf16.mxu0 0
      %7675 = vmatpush1.bf16.xpose.msra.mxu0 0
      %7676 = vmatprep.subr.bf16.mxu0 0
      %7677 = vmatpush1.bf16.xpose.msra.mxu0 0
      %7678 = vmatprep.subr.bf16.mxu0 0
      %7679 = vmatpush1.bf16.xpose.msra.mxu0 0
      %7680 = vmatprep.subr.bf16.mxu0 0
      %7681 = vmatpush1.bf16.xpose.msra.mxu0 0
      %7682 = vmatprep.subr.bf16.mxu0 0
      %7683 = vmatpush1.bf16.xpose.msra.mxu0 0
      %7684 = vmatprep.subr.bf16.mxu0 0
      %7685 = vmatpush1.bf16.xpose.msra.mxu0 0
      %7686 = vmatprep.subr.bf16.mxu0 0
      %7687 = vmatpush1.bf16.xpose.msra.mxu0 %v7670
      %7688 = vmatprep.subr.bf16.mxu0 0
      %7689 = vmatpush2.bf16.xpose.msra.mxu0 0
      %7690 = vmatprep.subr.bf16.mxu0 0
      %7691 = vmatpush2.bf16.xpose.msra.mxu0 0
      %7692 = vmatprep.subr.bf16.mxu0 0
      %7693 = vmatpush2.bf16.xpose.msra.mxu0 0
      %7694 = vmatprep.subr.bf16.mxu0 0
      %7695 = vmatpush2.bf16.xpose.msra.mxu0 0
      %7696 = vmatprep.subr.bf16.mxu0 0
      %7697 = vmatpush2.bf16.xpose.msra.mxu0 0
      %7698 = vmatprep.subr.bf16.mxu0 0
      %7699 = vmatpush2.bf16.xpose.msra.mxu0 0
      %7700 = vmatprep.subr.bf16.mxu0 0
      %7701 = vmatpush2.bf16.xpose.msra.mxu0 0
      %7702 = vmatprep.subr.bf16.mxu0 0
      %7703 = vmatpush2.bf16.xpose.msra.mxu0 0
      %7704 = vmatprep.mubr.bf16.mxu0 0
      %7705 = vmatmul.mubr.bf16.gmra.mxu0 %v7667
      %v7706 = vpop.f32.mrf.mxu0
      %v7707 = vadd.f32 0.0, %v7706
      %v7708 = vpop.f32.mrf.mxu0
      %v7709 = vpop.f32.mrf.mxu0
      %v7710 = vadd.f32 0.0, %v7709
      %v7711 = vpop.f32.mrf.mxu0
      %7712 = vdwg.mxu0
      %7713 = vrot.lane.b32.xlu0 %v1103, 104
      %v7714 = vpop.permute.xlu0 %7713
      %7715 = vrot.lane.b32.xlu0 %v1103, 72
      %v7716 = vpop.permute.xlu0 %7715
      %v7718 = vsel %vm1110, %v7714, 0
      %v7721 = vsel %vm1110, %v7716, 0
      %7723 = vmatprep.subr.bf16.mxu0 0
      %7724 = vmatpush1.bf16.xpose.msra.mxu0 0
      %7725 = vmatprep.subr.bf16.mxu0 0
      %7726 = vmatpush1.bf16.xpose.msra.mxu0 0
      %7727 = vmatprep.subr.bf16.mxu0 0
      %7728 = vmatpush1.bf16.xpose.msra.mxu0 0
      %7729 = vmatprep.subr.bf16.mxu0 0
      %7730 = vmatpush1.bf16.xpose.msra.mxu0 0
      %7731 = vmatprep.subr.bf16.mxu0 0
      %7732 = vmatpush1.bf16.xpose.msra.mxu0 0
      %7733 = vmatprep.subr.bf16.mxu0 0
      %7734 = vmatpush1.bf16.xpose.msra.mxu0 0
      %7735 = vmatprep.subr.bf16.mxu0 0
      %7736 = vmatpush1.bf16.xpose.msra.mxu0 0
      %7737 = vmatprep.subr.bf16.mxu0 0
      %7738 = vmatpush1.bf16.xpose.msra.mxu0 %v7721
      %7739 = vmatprep.subr.bf16.mxu0 0
      %7740 = vmatpush2.bf16.xpose.msra.mxu0 0
      %7741 = vmatprep.subr.bf16.mxu0 0
      %7742 = vmatpush2.bf16.xpose.msra.mxu0 0
      %7743 = vmatprep.subr.bf16.mxu0 0
      %7744 = vmatpush2.bf16.xpose.msra.mxu0 0
      %7745 = vmatprep.subr.bf16.mxu0 0
      %7746 = vmatpush2.bf16.xpose.msra.mxu0 0
      %7747 = vmatprep.subr.bf16.mxu0 0
      %7748 = vmatpush2.bf16.xpose.msra.mxu0 0
      %7749 = vmatprep.subr.bf16.mxu0 0
      %7750 = vmatpush2.bf16.xpose.msra.mxu0 0
      %7751 = vmatprep.subr.bf16.mxu0 0
      %7752 = vmatpush2.bf16.xpose.msra.mxu0 0
      %7753 = vmatprep.subr.bf16.mxu0 0
      %7754 = vmatpush2.bf16.xpose.msra.mxu0 0
      %7755 = vmatprep.mubr.bf16.mxu0 0
      %7756 = vmatmul.mubr.bf16.gmra.mxu0 %v7718
      %v7757 = vpop.f32.mrf.mxu0
      %v7758 = vadd.f32 0.0, %v7757
      %v7759 = vpop.f32.mrf.mxu0
      %v7760 = vpop.f32.mrf.mxu0
      %v7761 = vadd.f32 0.0, %v7760
      %v7762 = vpop.f32.mrf.mxu0
      %7763 = vdwg.mxu0
      %7764 = vrot.lane.b32.xlu0 %v1104, 104
      %v7765 = vpop.permute.xlu0 %7764
      %7766 = vrot.lane.b32.xlu0 %v1104, 72
      %v7767 = vpop.permute.xlu0 %7766
      %v7769 = vsel %vm1110, %v7765, 0
      %v7772 = vsel %vm1110, %v7767, 0
      %7774 = vmatprep.subr.bf16.mxu0 0
      %7775 = vmatpush1.bf16.xpose.msra.mxu0 0
      %7776 = vmatprep.subr.bf16.mxu0 0
      %7777 = vmatpush1.bf16.xpose.msra.mxu0 0
      %7778 = vmatprep.subr.bf16.mxu0 0
      %7779 = vmatpush1.bf16.xpose.msra.mxu0 0
      %7780 = vmatprep.subr.bf16.mxu0 0
      %7781 = vmatpush1.bf16.xpose.msra.mxu0 0
      %7782 = vmatprep.subr.bf16.mxu0 0
      %7783 = vmatpush1.bf16.xpose.msra.mxu0 0
      %7784 = vmatprep.subr.bf16.mxu0 0
      %7785 = vmatpush1.bf16.xpose.msra.mxu0 0
      %7786 = vmatprep.subr.bf16.mxu0 0
      %7787 = vmatpush1.bf16.xpose.msra.mxu0 0
      %7788 = vmatprep.subr.bf16.mxu0 0
      %7789 = vmatpush1.bf16.xpose.msra.mxu0 %v7772
      %7790 = vmatprep.subr.bf16.mxu0 0
      %7791 = vmatpush2.bf16.xpose.msra.mxu0 0
      %7792 = vmatprep.subr.bf16.mxu0 0
      %7793 = vmatpush2.bf16.xpose.msra.mxu0 0
      %7794 = vmatprep.subr.bf16.mxu0 0
      %7795 = vmatpush2.bf16.xpose.msra.mxu0 0
      %7796 = vmatprep.subr.bf16.mxu0 0
      %7797 = vmatpush2.bf16.xpose.msra.mxu0 0
      %7798 = vmatprep.subr.bf16.mxu0 0
      %7799 = vmatpush2.bf16.xpose.msra.mxu0 0
      %7800 = vmatprep.subr.bf16.mxu0 0
      %7801 = vmatpush2.bf16.xpose.msra.mxu0 0
      %7802 = vmatprep.subr.bf16.mxu0 0
      %7803 = vmatpush2.bf16.xpose.msra.mxu0 0
      %7804 = vmatprep.subr.bf16.mxu0 0
      %7805 = vmatpush2.bf16.xpose.msra.mxu0 0
      %7806 = vmatprep.mubr.bf16.mxu0 0
      %7807 = vmatmul.mubr.bf16.gmra.mxu0 %v7769
      %v7808 = vpop.f32.mrf.mxu0
      %v7809 = vadd.f32 0.0, %v7808
      %v7810 = vpop.f32.mrf.mxu0
      %v7811 = vpop.f32.mrf.mxu0
      %v7812 = vadd.f32 0.0, %v7811
      %v7813 = vpop.f32.mrf.mxu0
      %7814 = vdwg.mxu0
      %7815 = vrot.lane.b32.xlu0 %v1105, 104
      %v7816 = vpop.permute.xlu0 %7815
      %7817 = vrot.lane.b32.xlu0 %v1105, 72
      %v7818 = vpop.permute.xlu0 %7817
      %v7820 = vsel %vm1110, %v7816, 0
      %v7823 = vsel %vm1110, %v7818, 0
      %7825 = vmatprep.subr.bf16.mxu0 0
      %7826 = vmatpush1.bf16.xpose.msra.mxu0 0
      %7827 = vmatprep.subr.bf16.mxu0 0
      %7828 = vmatpush1.bf16.xpose.msra.mxu0 0
      %7829 = vmatprep.subr.bf16.mxu0 0
      %7830 = vmatpush1.bf16.xpose.msra.mxu0 0
      %7831 = vmatprep.subr.bf16.mxu0 0
      %7832 = vmatpush1.bf16.xpose.msra.mxu0 0
      %7833 = vmatprep.subr.bf16.mxu0 0
      %7834 = vmatpush1.bf16.xpose.msra.mxu0 0
      %7835 = vmatprep.subr.bf16.mxu0 0
      %7836 = vmatpush1.bf16.xpose.msra.mxu0 0
      %7837 = vmatprep.subr.bf16.mxu0 0
      %7838 = vmatpush1.bf16.xpose.msra.mxu0 0
      %7839 = vmatprep.subr.bf16.mxu0 0
      %7840 = vmatpush1.bf16.xpose.msra.mxu0 %v7823
      %7841 = vmatprep.subr.bf16.mxu0 0
      %7842 = vmatpush2.bf16.xpose.msra.mxu0 0
      %7843 = vmatprep.subr.bf16.mxu0 0
      %7844 = vmatpush2.bf16.xpose.msra.mxu0 0
      %7845 = vmatprep.subr.bf16.mxu0 0
      %7846 = vmatpush2.bf16.xpose.msra.mxu0 0
      %7847 = vmatprep.subr.bf16.mxu0 0
      %7848 = vmatpush2.bf16.xpose.msra.mxu0 0
      %7849 = vmatprep.subr.bf16.mxu0 0
      %7850 = vmatpush2.bf16.xpose.msra.mxu0 0
      %7851 = vmatprep.subr.bf16.mxu0 0
      %7852 = vmatpush2.bf16.xpose.msra.mxu0 0
      %7853 = vmatprep.subr.bf16.mxu0 0
      %7854 = vmatpush2.bf16.xpose.msra.mxu0 0
      %7855 = vmatprep.subr.bf16.mxu0 0
      %7856 = vmatpush2.bf16.xpose.msra.mxu0 0
      %7857 = vmatprep.mubr.bf16.mxu0 0
      %7858 = vmatmul.mubr.bf16.gmra.mxu0 %v7820
      %v7859 = vpop.f32.mrf.mxu0
      %v7860 = vadd.f32 0.0, %v7859
      %v7861 = vpop.f32.mrf.mxu0
      %v7862 = vpop.f32.mrf.mxu0
      %v7863 = vadd.f32 0.0, %v7862
      %v7864 = vpop.f32.mrf.mxu0
      %7865 = vdwg.mxu0
      %7866 = vrot.lane.b32.xlu0 %v1106, 104
      %v7867 = vpop.permute.xlu0 %7866
      %7868 = vrot.lane.b32.xlu0 %v1106, 72
      %v7869 = vpop.permute.xlu0 %7868
      %v7871 = vsel %vm1110, %v7867, 0
      %v7874 = vsel %vm1110, %v7869, 0
      %7876 = vmatprep.subr.bf16.mxu0 0
      %7877 = vmatpush1.bf16.xpose.msra.mxu0 0
      %7878 = vmatprep.subr.bf16.mxu0 0
      %7879 = vmatpush1.bf16.xpose.msra.mxu0 0
      %7880 = vmatprep.subr.bf16.mxu0 0
      %7881 = vmatpush1.bf16.xpose.msra.mxu0 0
      %7882 = vmatprep.subr.bf16.mxu0 0
      %7883 = vmatpush1.bf16.xpose.msra.mxu0 0
      %7884 = vmatprep.subr.bf16.mxu0 0
      %7885 = vmatpush1.bf16.xpose.msra.mxu0 0
      %7886 = vmatprep.subr.bf16.mxu0 0
      %7887 = vmatpush1.bf16.xpose.msra.mxu0 0
      %7888 = vmatprep.subr.bf16.mxu0 0
      %7889 = vmatpush1.bf16.xpose.msra.mxu0 0
      %7890 = vmatprep.subr.bf16.mxu0 0
      %7891 = vmatpush1.bf16.xpose.msra.mxu0 %v7874
      %7892 = vmatprep.subr.bf16.mxu0 0
      %7893 = vmatpush2.bf16.xpose.msra.mxu0 0
      %7894 = vmatprep.subr.bf16.mxu0 0
      %7895 = vmatpush2.bf16.xpose.msra.mxu0 0
      %7896 = vmatprep.subr.bf16.mxu0 0
      %7897 = vmatpush2.bf16.xpose.msra.mxu0 0
      %7898 = vmatprep.subr.bf16.mxu0 0
      %7899 = vmatpush2.bf16.xpose.msra.mxu0 0
      %7900 = vmatprep.subr.bf16.mxu0 0
      %7901 = vmatpush2.bf16.xpose.msra.mxu0 0
      %7902 = vmatprep.subr.bf16.mxu0 0
      %7903 = vmatpush2.bf16.xpose.msra.mxu0 0
      %7904 = vmatprep.subr.bf16.mxu0 0
      %7905 = vmatpush2.bf16.xpose.msra.mxu0 0
      %7906 = vmatprep.subr.bf16.mxu0 0
      %7907 = vmatpush2.bf16.xpose.msra.mxu0 0
      %7908 = vmatprep.mubr.bf16.mxu0 0
      %7909 = vmatmul.mubr.bf16.gmra.mxu0 %v7871
      %v7910 = vpop.f32.mrf.mxu0
      %v7911 = vadd.f32 0.0, %v7910
      %v7912 = vpop.f32.mrf.mxu0
      %v7913 = vpop.f32.mrf.mxu0
      %v7914 = vadd.f32 0.0, %v7913
      %v7915 = vpop.f32.mrf.mxu0
      %7916 = vdwg.mxu0
      %v7917 = vmul.f32 %v7146, 0.5
      %v7918 = vmul.f32 %v7149, 0.5
      %v7919 = vmul.f32 %v7197, 0.5
      %v7920 = vmul.f32 %v7200, 0.5
      %v7921 = vmul.f32 %v7248, 0.5
      %v7922 = vmul.f32 %v7251, 0.5
      %v7923 = vmul.f32 %v7299, 0.5
      %v7924 = vmul.f32 %v7302, 0.5
      %v7925 = vmul.f32 %v7350, 0.5
      %v7926 = vmul.f32 %v7353, 0.5
      %v7927 = vmul.f32 %v7401, 0.5
      %v7928 = vmul.f32 %v7404, 0.5
      %v7929 = vmul.f32 %v7452, 0.5
      %v7930 = vmul.f32 %v7455, 0.5
      %v7931 = vmul.f32 %v7503, 0.5
      %v7932 = vmul.f32 %v7506, 0.5
      %v7933 = vmul.f32 %v7554, 0.5
      %v7934 = vmul.f32 %v7557, 0.5
      %v7935 = vmul.f32 %v7605, 0.5
      %v7936 = vmul.f32 %v7608, 0.5
      %v7937 = vmul.f32 %v7656, 0.5
      %v7938 = vmul.f32 %v7659, 0.5
      %v7939 = vmul.f32 %v7707, 0.5
      %v7940 = vmul.f32 %v7710, 0.5
      %v7941 = vmul.f32 %v7758, 0.5
      %v7942 = vmul.f32 %v7761, 0.5
      %v7943 = vmul.f32 %v7809, 0.5
      %v7944 = vmul.f32 %v7812, 0.5
      %v7945 = vmul.f32 %v7860, 0.5
      %v7946 = vmul.f32 %v7863, 0.5
      %v7947 = vmul.f32 %v7911, 0.5
      %v7948 = vmul.f32 %v7914, 0.5
      %s7949 = scalar_lea.vmem %s7, 48
      %v7950 = vld [vmem:[%s7949] sm:$0xff]
      %v7951 = vld [vmem:[%s7949 + $0x8] sm:$0xff]
      %v7952 = vadd.f32 %v7917, %v7950
      %v7953 = vadd.f32 %v7918, %v7951
      %v7954 = vadd.f32 %v7919, %v7950
      %v7955 = vadd.f32 %v7920, %v7951
      %v7956 = vadd.f32 %v7921, %v7950
      %v7957 = vadd.f32 %v7922, %v7951
      %v7958 = vadd.f32 %v7923, %v7950
      %v7959 = vadd.f32 %v7924, %v7951
      %v7960 = vadd.f32 %v7925, %v7950
      %v7961 = vadd.f32 %v7926, %v7951
      %v7962 = vadd.f32 %v7927, %v7950
      %v7963 = vadd.f32 %v7928, %v7951
      %v7964 = vadd.f32 %v7929, %v7950
      %v7965 = vadd.f32 %v7930, %v7951
      %v7966 = vadd.f32 %v7931, %v7950
      %v7967 = vadd.f32 %v7932, %v7951
      %v7968 = vadd.f32 %v7933, %v7950
      %v7969 = vadd.f32 %v7934, %v7951
      %v7970 = vadd.f32 %v7935, %v7950
      %v7971 = vadd.f32 %v7936, %v7951
      %v7972 = vadd.f32 %v7937, %v7950
      %v7973 = vadd.f32 %v7938, %v7951
      %v7974 = vadd.f32 %v7939, %v7950
      %v7975 = vadd.f32 %v7940, %v7951
      %v7976 = vadd.f32 %v7941, %v7950
      %v7977 = vadd.f32 %v7942, %v7951
      %v7978 = vadd.f32 %v7943, %v7950
      %v7979 = vadd.f32 %v7944, %v7951
      %v7980 = vadd.f32 %v7945, %v7950
      %v7981 = vadd.f32 %v7946, %v7951
      %v7982 = vadd.f32 %v7947, %v7950
      %v7983 = vadd.f32 %v7948, %v7951
      %v7984 = vsel %vm1974, %v7952, -inf
      %7985 = vmax.xlane.f32.xlu0 %v7984
      %v7986 = vpop.xlane.xlu0 %7985
      %v7987 = vsel %vm1974, %v7953, -inf
      %7988 = vmax.xlane.f32.xlu0 %v7987
      %v7989 = vpop.xlane.xlu0 %7988
      %v7990 = vsel %vm1974, %v7954, -inf
      %7991 = vmax.xlane.f32.xlu0 %v7990
      %v7992 = vpop.xlane.xlu0 %7991
      %v7993 = vsel %vm1974, %v7955, -inf
      %7994 = vmax.xlane.f32.xlu0 %v7993
      %v7995 = vpop.xlane.xlu0 %7994
      %v7996 = vsel %vm1974, %v7956, -inf
      %7997 = vmax.xlane.f32.xlu0 %v7996
      %v7998 = vpop.xlane.xlu0 %7997
      %v7999 = vsel %vm1974, %v7957, -inf
      %8000 = vmax.xlane.f32.xlu0 %v7999
      %v8001 = vpop.xlane.xlu0 %8000
      %v8002 = vsel %vm1974, %v7958, -inf
      %8003 = vmax.xlane.f32.xlu0 %v8002
      %v8004 = vpop.xlane.xlu0 %8003
      %v8005 = vsel %vm1974, %v7959, -inf
      %8006 = vmax.xlane.f32.xlu0 %v8005
      %v8007 = vpop.xlane.xlu0 %8006
      %v8008 = vsel %vm1974, %v7960, -inf
      %8009 = vmax.xlane.f32.xlu0 %v8008
      %v8010 = vpop.xlane.xlu0 %8009
      %v8011 = vsel %vm1974, %v7961, -inf
      %8012 = vmax.xlane.f32.xlu0 %v8011
      %v8013 = vpop.xlane.xlu0 %8012
      %v8014 = vsel %vm1974, %v7962, -inf
      %8015 = vmax.xlane.f32.xlu0 %v8014
      %v8016 = vpop.xlane.xlu0 %8015
      %v8017 = vsel %vm1974, %v7963, -inf
      %8018 = vmax.xlane.f32.xlu0 %v8017
      %v8019 = vpop.xlane.xlu0 %8018
      %v8020 = vsel %vm1974, %v7964, -inf
      %8021 = vmax.xlane.f32.xlu0 %v8020
      %v8022 = vpop.xlane.xlu0 %8021
      %v8023 = vsel %vm1974, %v7965, -inf
      %8024 = vmax.xlane.f32.xlu0 %v8023
      %v8025 = vpop.xlane.xlu0 %8024
      %v8026 = vsel %vm1974, %v7966, -inf
      %8027 = vmax.xlane.f32.xlu0 %v8026
      %v8028 = vpop.xlane.xlu0 %8027
      %v8029 = vsel %vm1974, %v7967, -inf
      %8030 = vmax.xlane.f32.xlu0 %v8029
      %v8031 = vpop.xlane.xlu0 %8030
      %v8032 = vsel %vm1974, %v7968, -inf
      %8033 = vmax.xlane.f32.xlu0 %v8032
      %v8034 = vpop.xlane.xlu0 %8033
      %v8035 = vsel %vm1974, %v7969, -inf
      %8036 = vmax.xlane.f32.xlu0 %v8035
      %v8037 = vpop.xlane.xlu0 %8036
      %v8038 = vsel %vm1974, %v7970, -inf
      %8039 = vmax.xlane.f32.xlu0 %v8038
      %v8040 = vpop.xlane.xlu0 %8039
      %v8041 = vsel %vm1974, %v7971, -inf
      %8042 = vmax.xlane.f32.xlu0 %v8041
      %v8043 = vpop.xlane.xlu0 %8042
      %v8044 = vsel %vm1974, %v7972, -inf
      %8045 = vmax.xlane.f32.xlu0 %v8044
      %v8046 = vpop.xlane.xlu0 %8045
      %v8047 = vsel %vm1974, %v7973, -inf
      %8048 = vmax.xlane.f32.xlu0 %v8047
      %v8049 = vpop.xlane.xlu0 %8048
      %v8050 = vsel %vm1974, %v7974, -inf
      %8051 = vmax.xlane.f32.xlu0 %v8050
      %v8052 = vpop.xlane.xlu0 %8051
      %v8053 = vsel %vm1974, %v7975, -inf
      %8054 = vmax.xlane.f32.xlu0 %v8053
      %v8055 = vpop.xlane.xlu0 %8054
      %v8056 = vsel %vm1974, %v7976, -inf
      %8057 = vmax.xlane.f32.xlu0 %v8056
      %v8058 = vpop.xlane.xlu0 %8057
      %v8059 = vsel %vm1974, %v7977, -inf
      %8060 = vmax.xlane.f32.xlu0 %v8059
      %v8061 = vpop.xlane.xlu0 %8060
      %v8062 = vsel %vm1974, %v7978, -inf
      %8063 = vmax.xlane.f32.xlu0 %v8062
      %v8064 = vpop.xlane.xlu0 %8063
      %v8065 = vsel %vm1974, %v7979, -inf
      %8066 = vmax.xlane.f32.xlu0 %v8065
      %v8067 = vpop.xlane.xlu0 %8066
      %v8068 = vsel %vm1974, %v7980, -inf
      %8069 = vmax.xlane.f32.xlu0 %v8068
      %v8070 = vpop.xlane.xlu0 %8069
      %v8071 = vsel %vm1974, %v7981, -inf
      %8072 = vmax.xlane.f32.xlu0 %v8071
      %v8073 = vpop.xlane.xlu0 %8072
      %v8074 = vsel %vm1974, %v7982, -inf
      %8075 = vmax.xlane.f32.xlu0 %v8074
      %v8076 = vpop.xlane.xlu0 %8075
      %v8077 = vsel %vm1974, %v7983, -inf
      %8078 = vmax.xlane.f32.xlu0 %v8077
      %v8079 = vpop.xlane.xlu0 %8078
      %v8080 = vsub.f32 %v7952, %v7986
      %v8081 = vsub.f32 %v7953, %v7989
      %v8082 = vsub.f32 %v7954, %v7992
      %v8083 = vsub.f32 %v7955, %v7995
      %v8084 = vsub.f32 %v7956, %v7998
      %v8085 = vsub.f32 %v7957, %v8001
      %v8086 = vsub.f32 %v7958, %v8004
      %v8087 = vsub.f32 %v7959, %v8007
      %v8088 = vsub.f32 %v7960, %v8010
      %v8089 = vsub.f32 %v7961, %v8013
      %v8090 = vsub.f32 %v7962, %v8016
      %v8091 = vsub.f32 %v7963, %v8019
      %v8092 = vsub.f32 %v7964, %v8022
      %v8093 = vsub.f32 %v7965, %v8025
      %v8094 = vsub.f32 %v7966, %v8028
      %v8095 = vsub.f32 %v7967, %v8031
      %v8096 = vsub.f32 %v7968, %v8034
      %v8097 = vsub.f32 %v7969, %v8037
      %v8098 = vsub.f32 %v7970, %v8040
      %v8099 = vsub.f32 %v7971, %v8043
      %v8100 = vsub.f32 %v7972, %v8046
      %v8101 = vsub.f32 %v7973, %v8049
      %v8102 = vsub.f32 %v7974, %v8052
      %v8103 = vsub.f32 %v7975, %v8055
      %v8104 = vsub.f32 %v7976, %v8058
      %v8105 = vsub.f32 %v7977, %v8061
      %v8106 = vsub.f32 %v7978, %v8064
      %v8107 = vsub.f32 %v7979, %v8067
      %v8108 = vsub.f32 %v7980, %v8070
      %v8109 = vsub.f32 %v7981, %v8073
      %v8110 = vsub.f32 %v7982, %v8076
      %v8111 = vsub.f32 %v7983, %v8079
      %v8112 = vmul.f32 %v8080, 1.442695
      %v8113 = vpow.pop %v8112
      %v8114 = vmul.f32 %v8081, 1.442695
      %v8115 = vpow.pop %v8114
      %v8116 = vmul.f32 %v8082, 1.442695
      %v8117 = vpow.pop %v8116
      %v8118 = vmul.f32 %v8083, 1.442695
      %v8119 = vpow.pop %v8118
      %v8120 = vmul.f32 %v8084, 1.442695
      %v8121 = vpow.pop %v8120
      %v8122 = vmul.f32 %v8085, 1.442695
      %v8123 = vpow.pop %v8122
      %v8124 = vmul.f32 %v8086, 1.442695
      %v8125 = vpow.pop %v8124
      %v8126 = vmul.f32 %v8087, 1.442695
      %v8127 = vpow.pop %v8126
      %v8128 = vmul.f32 %v8088, 1.442695
      %v8129 = vpow.pop %v8128
      %v8130 = vmul.f32 %v8089, 1.442695
      %v8131 = vpow.pop %v8130
      %v8132 = vmul.f32 %v8090, 1.442695
      %v8133 = vpow.pop %v8132
      %v8134 = vmul.f32 %v8091, 1.442695
      %v8135 = vpow.pop %v8134
      %v8136 = vmul.f32 %v8092, 1.442695
      %v8137 = vpow.pop %v8136
      %v8138 = vmul.f32 %v8093, 1.442695
      %v8139 = vpow.pop %v8138
      %v8140 = vmul.f32 %v8094, 1.442695
      %v8141 = vpow.pop %v8140
      %v8142 = vmul.f32 %v8095, 1.442695
      %v8143 = vpow.pop %v8142
      %v8144 = vmul.f32 %v8096, 1.442695
      %v8145 = vpow.pop %v8144
      %v8146 = vmul.f32 %v8097, 1.442695
      %v8147 = vpow.pop %v8146
      %v8148 = vmul.f32 %v8098, 1.442695
      %v8149 = vpow.pop %v8148
      %v8150 = vmul.f32 %v8099, 1.442695
      %v8151 = vpow.pop %v8150
      %v8152 = vmul.f32 %v8100, 1.442695
      %v8153 = vpow.pop %v8152
      %v8154 = vmul.f32 %v8101, 1.442695
      %v8155 = vpow.pop %v8154
      %v8156 = vmul.f32 %v8102, 1.442695
      %v8157 = vpow.pop %v8156
      %v8158 = vmul.f32 %v8103, 1.442695
      %v8159 = vpow.pop %v8158
      %v8160 = vmul.f32 %v8104, 1.442695
      %v8161 = vpow.pop %v8160
      %v8162 = vmul.f32 %v8105, 1.442695
      %v8163 = vpow.pop %v8162
      %v8164 = vmul.f32 %v8106, 1.442695
      %v8165 = vpow.pop %v8164
      %v8166 = vmul.f32 %v8107, 1.442695
      %v8167 = vpow.pop %v8166
      %v8168 = vmul.f32 %v8108, 1.442695
      %v8169 = vpow.pop %v8168
      %v8170 = vmul.f32 %v8109, 1.442695
      %v8171 = vpow.pop %v8170
      %v8172 = vmul.f32 %v8110, 1.442695
      %v8173 = vpow.pop %v8172
      %v8174 = vmul.f32 %v8111, 1.442695
      %v8175 = vpow.pop %v8174
      %v8176 = vsel %vm1974, %v8113, 0.0
      %8177 = vadd.xlane.f32.xlu0 %v8176
      %v8178 = vpop.xlane.xlu0 %8177
      %v8179 = vsel %vm1974, %v8115, 0.0
      %8180 = vadd.xlane.f32.xlu0 %v8179
      %v8181 = vpop.xlane.xlu0 %8180
      %v8182 = vsel %vm1974, %v8117, 0.0
      %8183 = vadd.xlane.f32.xlu0 %v8182
      %v8184 = vpop.xlane.xlu0 %8183
      %v8185 = vsel %vm1974, %v8119, 0.0
      %8186 = vadd.xlane.f32.xlu0 %v8185
      %v8187 = vpop.xlane.xlu0 %8186
      %v8188 = vsel %vm1974, %v8121, 0.0
      %8189 = vadd.xlane.f32.xlu0 %v8188
      %v8190 = vpop.xlane.xlu0 %8189
      %v8191 = vsel %vm1974, %v8123, 0.0
      %8192 = vadd.xlane.f32.xlu0 %v8191
      %v8193 = vpop.xlane.xlu0 %8192
      %v8194 = vsel %vm1974, %v8125, 0.0
      %8195 = vadd.xlane.f32.xlu0 %v8194
      %v8196 = vpop.xlane.xlu0 %8195
      %v8197 = vsel %vm1974, %v8127, 0.0
      %8198 = vadd.xlane.f32.xlu0 %v8197
      %v8199 = vpop.xlane.xlu0 %8198
      %v8200 = vsel %vm1974, %v8129, 0.0
      %8201 = vadd.xlane.f32.xlu0 %v8200
      %v8202 = vpop.xlane.xlu0 %8201
      %v8203 = vsel %vm1974, %v8131, 0.0
      %8204 = vadd.xlane.f32.xlu0 %v8203
      %v8205 = vpop.xlane.xlu0 %8204
      %v8206 = vsel %vm1974, %v8133, 0.0
      %8207 = vadd.xlane.f32.xlu0 %v8206
      %v8208 = vpop.xlane.xlu0 %8207
      %v8209 = vsel %vm1974, %v8135, 0.0
      %8210 = vadd.xlane.f32.xlu0 %v8209
      %v8211 = vpop.xlane.xlu0 %8210
      %v8212 = vsel %vm1974, %v8137, 0.0
      %8213 = vadd.xlane.f32.xlu0 %v8212
      %v8214 = vpop.xlane.xlu0 %8213
      %v8215 = vsel %vm1974, %v8139, 0.0
      %8216 = vadd.xlane.f32.xlu0 %v8215
      %v8217 = vpop.xlane.xlu0 %8216
      %v8218 = vsel %vm1974, %v8141, 0.0
      %8219 = vadd.xlane.f32.xlu0 %v8218
      %v8220 = vpop.xlane.xlu0 %8219
      %v8221 = vsel %vm1974, %v8143, 0.0
      %8222 = vadd.xlane.f32.xlu0 %v8221
      %v8223 = vpop.xlane.xlu0 %8222
      %v8224 = vsel %vm1974, %v8145, 0.0
      %8225 = vadd.xlane.f32.xlu0 %v8224
      %v8226 = vpop.xlane.xlu0 %8225
      %v8227 = vsel %vm1974, %v8147, 0.0
      %8228 = vadd.xlane.f32.xlu0 %v8227
      %v8229 = vpop.xlane.xlu0 %8228
      %v8230 = vsel %vm1974, %v8149, 0.0
      %8231 = vadd.xlane.f32.xlu0 %v8230
      %v8232 = vpop.xlane.xlu0 %8231
      %v8233 = vsel %vm1974, %v8151, 0.0
      %8234 = vadd.xlane.f32.xlu0 %v8233
      %v8235 = vpop.xlane.xlu0 %8234
      %v8236 = vsel %vm1974, %v8153, 0.0
      %8237 = vadd.xlane.f32.xlu0 %v8236
      %v8238 = vpop.xlane.xlu0 %8237
      %v8239 = vsel %vm1974, %v8155, 0.0
      %8240 = vadd.xlane.f32.xlu0 %v8239
      %v8241 = vpop.xlane.xlu0 %8240
      %v8242 = vsel %vm1974, %v8157, 0.0
      %8243 = vadd.xlane.f32.xlu0 %v8242
      %v8244 = vpop.xlane.xlu0 %8243
      %v8245 = vsel %vm1974, %v8159, 0.0
      %8246 = vadd.xlane.f32.xlu0 %v8245
      %v8247 = vpop.xlane.xlu0 %8246
      %v8248 = vsel %vm1974, %v8161, 0.0
      %8249 = vadd.xlane.f32.xlu0 %v8248
      %v8250 = vpop.xlane.xlu0 %8249
      %v8251 = vsel %vm1974, %v8163, 0.0
      %8252 = vadd.xlane.f32.xlu0 %v8251
      %v8253 = vpop.xlane.xlu0 %8252
      %v8254 = vsel %vm1974, %v8165, 0.0
      %8255 = vadd.xlane.f32.xlu0 %v8254
      %v8256 = vpop.xlane.xlu0 %8255
      %v8257 = vsel %vm1974, %v8167, 0.0
      %8258 = vadd.xlane.f32.xlu0 %v8257
      %v8259 = vpop.xlane.xlu0 %8258
      %v8260 = vsel %vm1974, %v8169, 0.0
      %8261 = vadd.xlane.f32.xlu0 %v8260
      %v8262 = vpop.xlane.xlu0 %8261
      %v8263 = vsel %vm1974, %v8171, 0.0
      %8264 = vadd.xlane.f32.xlu0 %v8263
      %v8265 = vpop.xlane.xlu0 %8264
      %v8266 = vsel %vm1974, %v8173, 0.0
      %8267 = vadd.xlane.f32.xlu0 %v8266
      %v8268 = vpop.xlane.xlu0 %8267
      %v8269 = vsel %vm1974, %v8175, 0.0
      %8270 = vadd.xlane.f32.xlu0 %v8269
      %v8271 = vpop.xlane.xlu0 %8270
      %v8272 = vrcp.pop %v8178
      %v8273 = vrcp.pop %v8181
      %v8274 = vrcp.pop %v8184
      %v8275 = vrcp.pop %v8187
      %v8276 = vrcp.pop %v8190
      %v8277 = vrcp.pop %v8193
      %v8278 = vrcp.pop %v8196
      %v8279 = vrcp.pop %v8199
      %v8280 = vrcp.pop %v8202
      %v8281 = vrcp.pop %v8205
      %v8282 = vrcp.pop %v8208
      %v8283 = vrcp.pop %v8211
      %v8284 = vrcp.pop %v8214
      %v8285 = vrcp.pop %v8217
      %v8286 = vrcp.pop %v8220
      %v8287 = vrcp.pop %v8223
      %v8288 = vrcp.pop %v8226
      %v8289 = vrcp.pop %v8229
      %v8290 = vrcp.pop %v8232
      %v8291 = vrcp.pop %v8235
      %v8292 = vrcp.pop %v8238
      %v8293 = vrcp.pop %v8241
      %v8294 = vrcp.pop %v8244
      %v8295 = vrcp.pop %v8247
      %v8296 = vrcp.pop %v8250
      %v8297 = vrcp.pop %v8253
      %v8298 = vrcp.pop %v8256
      %v8299 = vrcp.pop %v8259
      %v8300 = vrcp.pop %v8262
      %v8301 = vrcp.pop %v8265
      %v8302 = vrcp.pop %v8268
      %v8303 = vrcp.pop %v8271
      %v8304 = vmul.f32 %v8113, %v8272
      %v8305 = vmul.f32 %v8115, %v8273
      %v8306 = vmul.f32 %v8117, %v8274
      %v8307 = vmul.f32 %v8119, %v8275
      %v8308 = vmul.f32 %v8121, %v8276
      %v8309 = vmul.f32 %v8123, %v8277
      %v8310 = vmul.f32 %v8125, %v8278
      %v8311 = vmul.f32 %v8127, %v8279
      %v8312 = vmul.f32 %v8129, %v8280
      %v8313 = vmul.f32 %v8131, %v8281
      %v8314 = vmul.f32 %v8133, %v8282
      %v8315 = vmul.f32 %v8135, %v8283
      %v8316 = vmul.f32 %v8137, %v8284
      %v8317 = vmul.f32 %v8139, %v8285
      %v8318 = vmul.f32 %v8141, %v8286
      %v8319 = vmul.f32 %v8143, %v8287
      %v8320 = vmul.f32 %v8145, %v8288
      %v8321 = vmul.f32 %v8147, %v8289
      %v8322 = vmul.f32 %v8149, %v8290
      %v8323 = vmul.f32 %v8151, %v8291
      %v8324 = vmul.f32 %v8153, %v8292
      %v8325 = vmul.f32 %v8155, %v8293
      %v8326 = vmul.f32 %v8157, %v8294
      %v8327 = vmul.f32 %v8159, %v8295
      %v8328 = vmul.f32 %v8161, %v8296
      %v8329 = vmul.f32 %v8163, %v8297
      %v8330 = vmul.f32 %v8165, %v8298
      %v8331 = vmul.f32 %v8167, %v8299
      %v8332 = vmul.f32 %v8169, %v8300
      %v8333 = vmul.f32 %v8171, %v8301
      %v8334 = vmul.f32 %v8173, %v8302
      %v8335 = vmul.f32 %v8175, %v8303
      %v8336 = vpack.c.bf16 %v8305, %v8304
      %v8337 = vpack.c.bf16 %v8307, %v8306
      %v8338 = vpack.c.bf16 %v8309, %v8308
      %v8339 = vpack.c.bf16 %v8311, %v8310
      %v8340 = vpack.c.bf16 %v8313, %v8312
      %v8341 = vpack.c.bf16 %v8315, %v8314
      %v8342 = vpack.c.bf16 %v8317, %v8316
      %v8343 = vpack.c.bf16 %v8319, %v8318
      %v8344 = vpack.c.bf16 %v8321, %v8320
      %v8345 = vpack.c.bf16 %v8323, %v8322
      %v8346 = vpack.c.bf16 %v8325, %v8324
      %v8347 = vpack.c.bf16 %v8327, %v8326
      %v8348 = vpack.c.bf16 %v8329, %v8328
      %v8349 = vpack.c.bf16 %v8331, %v8330
      %v8350 = vpack.c.bf16 %v8333, %v8332
      %v8351 = vpack.c.bf16 %v8335, %v8334
      %8352 = vrot.lane.b32.xlu0 %v1091, 40
      %v8353 = vpop.permute.xlu0 %8352
      %v8356 = vsel %vm1974, %v8336, 0
      %8358 = vmatprep.subr.bf16.mxu0 0
      %8359 = vmatpush1.bf16.msra.mxu0 0
      %8360 = vmatprep.subr.bf16.mxu0 0
      %8361 = vmatpush1.bf16.msra.mxu0 0
      %8362 = vmatprep.subr.bf16.mxu0 0
      %8363 = vmatpush1.bf16.msra.mxu0 0
      %8364 = vmatprep.subr.bf16.mxu0 0
      %8365 = vmatpush1.bf16.msra.mxu0 0
      %8366 = vmatprep.subr.bf16.mxu0 0
      %8367 = vmatpush1.bf16.msra.mxu0 0
      %8368 = vmatprep.subr.bf16.mxu0 0
      %8369 = vmatpush1.bf16.msra.mxu0 0
      %8370 = vmatprep.subr.bf16.mxu0 0
      %8371 = vmatpush1.bf16.msra.mxu0 0
      %8372 = vmatprep.subr.bf16.mxu0 0
      %8373 = vmatpush1.bf16.msra.mxu0 %v8353
      %8374 = vmatprep.subr.bf16.mxu0 0
      %8375 = vmatpush2.bf16.msra.mxu0 0
      %8376 = vmatprep.subr.bf16.mxu0 0
      %8377 = vmatpush2.bf16.msra.mxu0 0
      %8378 = vmatprep.subr.bf16.mxu0 0
      %8379 = vmatpush2.bf16.msra.mxu0 0
      %8380 = vmatprep.subr.bf16.mxu0 0
      %8381 = vmatpush2.bf16.msra.mxu0 0
      %8382 = vmatprep.subr.bf16.mxu0 0
      %8383 = vmatpush2.bf16.msra.mxu0 0
      %8384 = vmatprep.subr.bf16.mxu0 0
      %8385 = vmatpush2.bf16.msra.mxu0 0
      %8386 = vmatprep.subr.bf16.mxu0 0
      %8387 = vmatpush2.bf16.msra.mxu0 0
      %8388 = vmatprep.subr.bf16.mxu0 0
      %8389 = vmatpush2.bf16.msra.mxu0 0
      %8390 = vmatprep.mubr.bf16.mxu0 0
      %8391 = vmatmul.mubr.bf16.gmra.mxu0 %v8356
      %v8392 = vpop.f32.mrf.mxu0
      %v8393 = vadd.f32 0.0, %v8392
      %v8394 = vpop.f32.mrf.mxu0
      %v8395 = vpop.f32.mrf.mxu0
      %v8396 = vadd.f32 0.0, %v8395
      %v8397 = vpop.f32.mrf.mxu0
      %8398 = vdwg.mxu0
      %8399 = vrot.lane.b32.xlu0 %v1092, 40
      %v8400 = vpop.permute.xlu0 %8399
      %v8403 = vsel %vm1974, %v8337, 0
      %8405 = vmatprep.subr.bf16.mxu0 0
      %8406 = vmatpush1.bf16.msra.mxu0 0
      %8407 = vmatprep.subr.bf16.mxu0 0
      %8408 = vmatpush1.bf16.msra.mxu0 0
      %8409 = vmatprep.subr.bf16.mxu0 0
      %8410 = vmatpush1.bf16.msra.mxu0 0
      %8411 = vmatprep.subr.bf16.mxu0 0
      %8412 = vmatpush1.bf16.msra.mxu0 0
      %8413 = vmatprep.subr.bf16.mxu0 0
      %8414 = vmatpush1.bf16.msra.mxu0 0
      %8415 = vmatprep.subr.bf16.mxu0 0
      %8416 = vmatpush1.bf16.msra.mxu0 0
      %8417 = vmatprep.subr.bf16.mxu0 0
      %8418 = vmatpush1.bf16.msra.mxu0 0
      %8419 = vmatprep.subr.bf16.mxu0 0
      %8420 = vmatpush1.bf16.msra.mxu0 %v8400
      %8421 = vmatprep.subr.bf16.mxu0 0
      %8422 = vmatpush2.bf16.msra.mxu0 0
      %8423 = vmatprep.subr.bf16.mxu0 0
      %8424 = vmatpush2.bf16.msra.mxu0 0
      %8425 = vmatprep.subr.bf16.mxu0 0
      %8426 = vmatpush2.bf16.msra.mxu0 0
      %8427 = vmatprep.subr.bf16.mxu0 0
      %8428 = vmatpush2.bf16.msra.mxu0 0
      %8429 = vmatprep.subr.bf16.mxu0 0
      %8430 = vmatpush2.bf16.msra.mxu0 0
      %8431 = vmatprep.subr.bf16.mxu0 0
      %8432 = vmatpush2.bf16.msra.mxu0 0
      %8433 = vmatprep.subr.bf16.mxu0 0
      %8434 = vmatpush2.bf16.msra.mxu0 0
      %8435 = vmatprep.subr.bf16.mxu0 0
      %8436 = vmatpush2.bf16.msra.mxu0 0
      %8437 = vmatprep.mubr.bf16.mxu0 0
      %8438 = vmatmul.mubr.bf16.gmra.mxu0 %v8403
      %v8439 = vpop.f32.mrf.mxu0
      %v8440 = vadd.f32 0.0, %v8439
      %v8441 = vpop.f32.mrf.mxu0
      %v8442 = vpop.f32.mrf.mxu0
      %v8443 = vadd.f32 0.0, %v8442
      %v8444 = vpop.f32.mrf.mxu0
      %8445 = vdwg.mxu0
      %8446 = vrot.lane.b32.xlu0 %v1093, 40
      %v8447 = vpop.permute.xlu0 %8446
      %v8450 = vsel %vm1974, %v8338, 0
      %8452 = vmatprep.subr.bf16.mxu0 0
      %8453 = vmatpush1.bf16.msra.mxu0 0
      %8454 = vmatprep.subr.bf16.mxu0 0
      %8455 = vmatpush1.bf16.msra.mxu0 0
      %8456 = vmatprep.subr.bf16.mxu0 0
      %8457 = vmatpush1.bf16.msra.mxu0 0
      %8458 = vmatprep.subr.bf16.mxu0 0
      %8459 = vmatpush1.bf16.msra.mxu0 0
      %8460 = vmatprep.subr.bf16.mxu0 0
      %8461 = vmatpush1.bf16.msra.mxu0 0
      %8462 = vmatprep.subr.bf16.mxu0 0
      %8463 = vmatpush1.bf16.msra.mxu0 0
      %8464 = vmatprep.subr.bf16.mxu0 0
      %8465 = vmatpush1.bf16.msra.mxu0 0
      %8466 = vmatprep.subr.bf16.mxu0 0
      %8467 = vmatpush1.bf16.msra.mxu0 %v8447
      %8468 = vmatprep.subr.bf16.mxu0 0
      %8469 = vmatpush2.bf16.msra.mxu0 0
      %8470 = vmatprep.subr.bf16.mxu0 0
      %8471 = vmatpush2.bf16.msra.mxu0 0
      %8472 = vmatprep.subr.bf16.mxu0 0
      %8473 = vmatpush2.bf16.msra.mxu0 0
      %8474 = vmatprep.subr.bf16.mxu0 0
      %8475 = vmatpush2.bf16.msra.mxu0 0
      %8476 = vmatprep.subr.bf16.mxu0 0
      %8477 = vmatpush2.bf16.msra.mxu0 0
      %8478 = vmatprep.subr.bf16.mxu0 0
      %8479 = vmatpush2.bf16.msra.mxu0 0
      %8480 = vmatprep.subr.bf16.mxu0 0
      %8481 = vmatpush2.bf16.msra.mxu0 0
      %8482 = vmatprep.subr.bf16.mxu0 0
      %8483 = vmatpush2.bf16.msra.mxu0 0
      %8484 = vmatprep.mubr.bf16.mxu0 0
      %8485 = vmatmul.mubr.bf16.gmra.mxu0 %v8450
      %v8486 = vpop.f32.mrf.mxu0
      %v8487 = vadd.f32 0.0, %v8486
      %v8488 = vpop.f32.mrf.mxu0
      %v8489 = vpop.f32.mrf.mxu0
      %v8490 = vadd.f32 0.0, %v8489
      %v8491 = vpop.f32.mrf.mxu0
      %8492 = vdwg.mxu0
      %8493 = vrot.lane.b32.xlu0 %v1094, 40
      %v8494 = vpop.permute.xlu0 %8493
      %v8497 = vsel %vm1974, %v8339, 0
      %8499 = vmatprep.subr.bf16.mxu0 0
      %8500 = vmatpush1.bf16.msra.mxu0 0
      %8501 = vmatprep.subr.bf16.mxu0 0
      %8502 = vmatpush1.bf16.msra.mxu0 0
      %8503 = vmatprep.subr.bf16.mxu0 0
      %8504 = vmatpush1.bf16.msra.mxu0 0
      %8505 = vmatprep.subr.bf16.mxu0 0
      %8506 = vmatpush1.bf16.msra.mxu0 0
      %8507 = vmatprep.subr.bf16.mxu0 0
      %8508 = vmatpush1.bf16.msra.mxu0 0
      %8509 = vmatprep.subr.bf16.mxu0 0
      %8510 = vmatpush1.bf16.msra.mxu0 0
      %8511 = vmatprep.subr.bf16.mxu0 0
      %8512 = vmatpush1.bf16.msra.mxu0 0
      %8513 = vmatprep.subr.bf16.mxu0 0
      %8514 = vmatpush1.bf16.msra.mxu0 %v8494
      %8515 = vmatprep.subr.bf16.mxu0 0
      %8516 = vmatpush2.bf16.msra.mxu0 0
      %8517 = vmatprep.subr.bf16.mxu0 0
      %8518 = vmatpush2.bf16.msra.mxu0 0
      %8519 = vmatprep.subr.bf16.mxu0 0
      %8520 = vmatpush2.bf16.msra.mxu0 0
      %8521 = vmatprep.subr.bf16.mxu0 0
      %8522 = vmatpush2.bf16.msra.mxu0 0
      %8523 = vmatprep.subr.bf16.mxu0 0
      %8524 = vmatpush2.bf16.msra.mxu0 0
      %8525 = vmatprep.subr.bf16.mxu0 0
      %8526 = vmatpush2.bf16.msra.mxu0 0
      %8527 = vmatprep.subr.bf16.mxu0 0
      %8528 = vmatpush2.bf16.msra.mxu0 0
      %8529 = vmatprep.subr.bf16.mxu0 0
      %8530 = vmatpush2.bf16.msra.mxu0 0
      %8531 = vmatprep.mubr.bf16.mxu0 0
      %8532 = vmatmul.mubr.bf16.gmra.mxu0 %v8497
      %v8533 = vpop.f32.mrf.mxu0
      %v8534 = vadd.f32 0.0, %v8533
      %v8535 = vpop.f32.mrf.mxu0
      %v8536 = vpop.f32.mrf.mxu0
      %v8537 = vadd.f32 0.0, %v8536
      %v8538 = vpop.f32.mrf.mxu0
      %8539 = vdwg.mxu0
      %8540 = vrot.lane.b32.xlu0 %v1095, 40
      %v8541 = vpop.permute.xlu0 %8540
      %v8544 = vsel %vm1974, %v8340, 0
      %8546 = vmatprep.subr.bf16.mxu0 0
      %8547 = vmatpush1.bf16.msra.mxu0 0
      %8548 = vmatprep.subr.bf16.mxu0 0
      %8549 = vmatpush1.bf16.msra.mxu0 0
      %8550 = vmatprep.subr.bf16.mxu0 0
      %8551 = vmatpush1.bf16.msra.mxu0 0
      %8552 = vmatprep.subr.bf16.mxu0 0
      %8553 = vmatpush1.bf16.msra.mxu0 0
      %8554 = vmatprep.subr.bf16.mxu0 0
      %8555 = vmatpush1.bf16.msra.mxu0 0
      %8556 = vmatprep.subr.bf16.mxu0 0
      %8557 = vmatpush1.bf16.msra.mxu0 0
      %8558 = vmatprep.subr.bf16.mxu0 0
      %8559 = vmatpush1.bf16.msra.mxu0 0
      %8560 = vmatprep.subr.bf16.mxu0 0
      %8561 = vmatpush1.bf16.msra.mxu0 %v8541
      %8562 = vmatprep.subr.bf16.mxu0 0
      %8563 = vmatpush2.bf16.msra.mxu0 0
      %8564 = vmatprep.subr.bf16.mxu0 0
      %8565 = vmatpush2.bf16.msra.mxu0 0
      %8566 = vmatprep.subr.bf16.mxu0 0
      %8567 = vmatpush2.bf16.msra.mxu0 0
      %8568 = vmatprep.subr.bf16.mxu0 0
      %8569 = vmatpush2.bf16.msra.mxu0 0
      %8570 = vmatprep.subr.bf16.mxu0 0
      %8571 = vmatpush2.bf16.msra.mxu0 0
      %8572 = vmatprep.subr.bf16.mxu0 0
      %8573 = vmatpush2.bf16.msra.mxu0 0
      %8574 = vmatprep.subr.bf16.mxu0 0
      %8575 = vmatpush2.bf16.msra.mxu0 0
      %8576 = vmatprep.subr.bf16.mxu0 0
      %8577 = vmatpush2.bf16.msra.mxu0 0
      %8578 = vmatprep.mubr.bf16.mxu0 0
      %8579 = vmatmul.mubr.bf16.gmra.mxu0 %v8544
      %v8580 = vpop.f32.mrf.mxu0
      %v8581 = vadd.f32 0.0, %v8580
      %v8582 = vpop.f32.mrf.mxu0
      %v8583 = vpop.f32.mrf.mxu0
      %v8584 = vadd.f32 0.0, %v8583
      %v8585 = vpop.f32.mrf.mxu0
      %8586 = vdwg.mxu0
      %8587 = vrot.lane.b32.xlu0 %v1096, 40
      %v8588 = vpop.permute.xlu0 %8587
      %v8591 = vsel %vm1974, %v8341, 0
      %8593 = vmatprep.subr.bf16.mxu0 0
      %8594 = vmatpush1.bf16.msra.mxu0 0
      %8595 = vmatprep.subr.bf16.mxu0 0
      %8596 = vmatpush1.bf16.msra.mxu0 0
      %8597 = vmatprep.subr.bf16.mxu0 0
      %8598 = vmatpush1.bf16.msra.mxu0 0
      %8599 = vmatprep.subr.bf16.mxu0 0
      %8600 = vmatpush1.bf16.msra.mxu0 0
      %8601 = vmatprep.subr.bf16.mxu0 0
      %8602 = vmatpush1.bf16.msra.mxu0 0
      %8603 = vmatprep.subr.bf16.mxu0 0
      %8604 = vmatpush1.bf16.msra.mxu0 0
      %8605 = vmatprep.subr.bf16.mxu0 0
      %8606 = vmatpush1.bf16.msra.mxu0 0
      %8607 = vmatprep.subr.bf16.mxu0 0
      %8608 = vmatpush1.bf16.msra.mxu0 %v8588
      %8609 = vmatprep.subr.bf16.mxu0 0
      %8610 = vmatpush2.bf16.msra.mxu0 0
      %8611 = vmatprep.subr.bf16.mxu0 0
      %8612 = vmatpush2.bf16.msra.mxu0 0
      %8613 = vmatprep.subr.bf16.mxu0 0
      %8614 = vmatpush2.bf16.msra.mxu0 0
      %8615 = vmatprep.subr.bf16.mxu0 0
      %8616 = vmatpush2.bf16.msra.mxu0 0
      %8617 = vmatprep.subr.bf16.mxu0 0
      %8618 = vmatpush2.bf16.msra.mxu0 0
      %8619 = vmatprep.subr.bf16.mxu0 0
      %8620 = vmatpush2.bf16.msra.mxu0 0
      %8621 = vmatprep.subr.bf16.mxu0 0
      %8622 = vmatpush2.bf16.msra.mxu0 0
      %8623 = vmatprep.subr.bf16.mxu0 0
      %8624 = vmatpush2.bf16.msra.mxu0 0
      %8625 = vmatprep.mubr.bf16.mxu0 0
      %8626 = vmatmul.mubr.bf16.gmra.mxu0 %v8591
      %v8627 = vpop.f32.mrf.mxu0
      %v8628 = vadd.f32 0.0, %v8627
      %v8629 = vpop.f32.mrf.mxu0
      %v8630 = vpop.f32.mrf.mxu0
      %v8631 = vadd.f32 0.0, %v8630
      %v8632 = vpop.f32.mrf.mxu0
      %8633 = vdwg.mxu0
      %8634 = vrot.lane.b32.xlu0 %v1097, 40
      %v8635 = vpop.permute.xlu0 %8634
      %v8638 = vsel %vm1974, %v8342, 0
      %8640 = vmatprep.subr.bf16.mxu0 0
      %8641 = vmatpush1.bf16.msra.mxu0 0
      %8642 = vmatprep.subr.bf16.mxu0 0
      %8643 = vmatpush1.bf16.msra.mxu0 0
      %8644 = vmatprep.subr.bf16.mxu0 0
      %8645 = vmatpush1.bf16.msra.mxu0 0
      %8646 = vmatprep.subr.bf16.mxu0 0
      %8647 = vmatpush1.bf16.msra.mxu0 0
      %8648 = vmatprep.subr.bf16.mxu0 0
      %8649 = vmatpush1.bf16.msra.mxu0 0
      %8650 = vmatprep.subr.bf16.mxu0 0
      %8651 = vmatpush1.bf16.msra.mxu0 0
      %8652 = vmatprep.subr.bf16.mxu0 0
      %8653 = vmatpush1.bf16.msra.mxu0 0
      %8654 = vmatprep.subr.bf16.mxu0 0
      %8655 = vmatpush1.bf16.msra.mxu0 %v8635
      %8656 = vmatprep.subr.bf16.mxu0 0
      %8657 = vmatpush2.bf16.msra.mxu0 0
      %8658 = vmatprep.subr.bf16.mxu0 0
      %8659 = vmatpush2.bf16.msra.mxu0 0
      %8660 = vmatprep.subr.bf16.mxu0 0
      %8661 = vmatpush2.bf16.msra.mxu0 0
      %8662 = vmatprep.subr.bf16.mxu0 0
      %8663 = vmatpush2.bf16.msra.mxu0 0
      %8664 = vmatprep.subr.bf16.mxu0 0
      %8665 = vmatpush2.bf16.msra.mxu0 0
      %8666 = vmatprep.subr.bf16.mxu0 0
      %8667 = vmatpush2.bf16.msra.mxu0 0
      %8668 = vmatprep.subr.bf16.mxu0 0
      %8669 = vmatpush2.bf16.msra.mxu0 0
      %8670 = vmatprep.subr.bf16.mxu0 0
      %8671 = vmatpush2.bf16.msra.mxu0 0
      %8672 = vmatprep.mubr.bf16.mxu0 0
      %8673 = vmatmul.mubr.bf16.gmra.mxu0 %v8638
      %v8674 = vpop.f32.mrf.mxu0
      %v8675 = vadd.f32 0.0, %v8674
      %v8676 = vpop.f32.mrf.mxu0
      %v8677 = vpop.f32.mrf.mxu0
      %v8678 = vadd.f32 0.0, %v8677
      %v8679 = vpop.f32.mrf.mxu0
      %8680 = vdwg.mxu0
      %8681 = vrot.lane.b32.xlu0 %v1098, 40
      %v8682 = vpop.permute.xlu0 %8681
      %v8685 = vsel %vm1974, %v8343, 0
      %8687 = vmatprep.subr.bf16.mxu0 0
      %8688 = vmatpush1.bf16.msra.mxu0 0
      %8689 = vmatprep.subr.bf16.mxu0 0
      %8690 = vmatpush1.bf16.msra.mxu0 0
      %8691 = vmatprep.subr.bf16.mxu0 0
      %8692 = vmatpush1.bf16.msra.mxu0 0
      %8693 = vmatprep.subr.bf16.mxu0 0
      %8694 = vmatpush1.bf16.msra.mxu0 0
      %8695 = vmatprep.subr.bf16.mxu0 0
      %8696 = vmatpush1.bf16.msra.mxu0 0
      %8697 = vmatprep.subr.bf16.mxu0 0
      %8698 = vmatpush1.bf16.msra.mxu0 0
      %8699 = vmatprep.subr.bf16.mxu0 0
      %8700 = vmatpush1.bf16.msra.mxu0 0
      %8701 = vmatprep.subr.bf16.mxu0 0
      %8702 = vmatpush1.bf16.msra.mxu0 %v8682
      %8703 = vmatprep.subr.bf16.mxu0 0
      %8704 = vmatpush2.bf16.msra.mxu0 0
      %8705 = vmatprep.subr.bf16.mxu0 0
      %8706 = vmatpush2.bf16.msra.mxu0 0
      %8707 = vmatprep.subr.bf16.mxu0 0
      %8708 = vmatpush2.bf16.msra.mxu0 0
      %8709 = vmatprep.subr.bf16.mxu0 0
      %8710 = vmatpush2.bf16.msra.mxu0 0
      %8711 = vmatprep.subr.bf16.mxu0 0
      %8712 = vmatpush2.bf16.msra.mxu0 0
      %8713 = vmatprep.subr.bf16.mxu0 0
      %8714 = vmatpush2.bf16.msra.mxu0 0
      %8715 = vmatprep.subr.bf16.mxu0 0
      %8716 = vmatpush2.bf16.msra.mxu0 0
      %8717 = vmatprep.subr.bf16.mxu0 0
      %8718 = vmatpush2.bf16.msra.mxu0 0
      %8719 = vmatprep.mubr.bf16.mxu0 0
      %8720 = vmatmul.mubr.bf16.gmra.mxu0 %v8685
      %v8721 = vpop.f32.mrf.mxu0
      %v8722 = vadd.f32 0.0, %v8721
      %v8723 = vpop.f32.mrf.mxu0
      %v8724 = vpop.f32.mrf.mxu0
      %v8725 = vadd.f32 0.0, %v8724
      %v8726 = vpop.f32.mrf.mxu0
      %8727 = vdwg.mxu0
      %8728 = vrot.lane.b32.xlu0 %v1099, 40
      %v8729 = vpop.permute.xlu0 %8728
      %v8732 = vsel %vm1974, %v8344, 0
      %8734 = vmatprep.subr.bf16.mxu0 0
      %8735 = vmatpush1.bf16.msra.mxu0 0
      %8736 = vmatprep.subr.bf16.mxu0 0
      %8737 = vmatpush1.bf16.msra.mxu0 0
      %8738 = vmatprep.subr.bf16.mxu0 0
      %8739 = vmatpush1.bf16.msra.mxu0 0
      %8740 = vmatprep.subr.bf16.mxu0 0
      %8741 = vmatpush1.bf16.msra.mxu0 0
      %8742 = vmatprep.subr.bf16.mxu0 0
      %8743 = vmatpush1.bf16.msra.mxu0 0
      %8744 = vmatprep.subr.bf16.mxu0 0
      %8745 = vmatpush1.bf16.msra.mxu0 0
      %8746 = vmatprep.subr.bf16.mxu0 0
      %8747 = vmatpush1.bf16.msra.mxu0 0
      %8748 = vmatprep.subr.bf16.mxu0 0
      %8749 = vmatpush1.bf16.msra.mxu0 %v8729
      %8750 = vmatprep.subr.bf16.mxu0 0
      %8751 = vmatpush2.bf16.msra.mxu0 0
      %8752 = vmatprep.subr.bf16.mxu0 0
      %8753 = vmatpush2.bf16.msra.mxu0 0
      %8754 = vmatprep.subr.bf16.mxu0 0
      %8755 = vmatpush2.bf16.msra.mxu0 0
      %8756 = vmatprep.subr.bf16.mxu0 0
      %8757 = vmatpush2.bf16.msra.mxu0 0
      %8758 = vmatprep.subr.bf16.mxu0 0
      %8759 = vmatpush2.bf16.msra.mxu0 0
      %8760 = vmatprep.subr.bf16.mxu0 0
      %8761 = vmatpush2.bf16.msra.mxu0 0
      %8762 = vmatprep.subr.bf16.mxu0 0
      %8763 = vmatpush2.bf16.msra.mxu0 0
      %8764 = vmatprep.subr.bf16.mxu0 0
      %8765 = vmatpush2.bf16.msra.mxu0 0
      %8766 = vmatprep.mubr.bf16.mxu0 0
      %8767 = vmatmul.mubr.bf16.gmra.mxu0 %v8732
      %v8768 = vpop.f32.mrf.mxu0
      %v8769 = vadd.f32 0.0, %v8768
      %v8770 = vpop.f32.mrf.mxu0
      %v8771 = vpop.f32.mrf.mxu0
      %v8772 = vadd.f32 0.0, %v8771
      %v8773 = vpop.f32.mrf.mxu0
      %8774 = vdwg.mxu0
      %8775 = vrot.lane.b32.xlu0 %v1100, 40
      %v8776 = vpop.permute.xlu0 %8775
      %v8779 = vsel %vm1974, %v8345, 0
      %8781 = vmatprep.subr.bf16.mxu0 0
      %8782 = vmatpush1.bf16.msra.mxu0 0
      %8783 = vmatprep.subr.bf16.mxu0 0
      %8784 = vmatpush1.bf16.msra.mxu0 0
      %8785 = vmatprep.subr.bf16.mxu0 0
      %8786 = vmatpush1.bf16.msra.mxu0 0
      %8787 = vmatprep.subr.bf16.mxu0 0
      %8788 = vmatpush1.bf16.msra.mxu0 0
      %8789 = vmatprep.subr.bf16.mxu0 0
      %8790 = vmatpush1.bf16.msra.mxu0 0
      %8791 = vmatprep.subr.bf16.mxu0 0
      %8792 = vmatpush1.bf16.msra.mxu0 0
      %8793 = vmatprep.subr.bf16.mxu0 0
      %8794 = vmatpush1.bf16.msra.mxu0 0
      %8795 = vmatprep.subr.bf16.mxu0 0
      %8796 = vmatpush1.bf16.msra.mxu0 %v8776
      %8797 = vmatprep.subr.bf16.mxu0 0
      %8798 = vmatpush2.bf16.msra.mxu0 0
      %8799 = vmatprep.subr.bf16.mxu0 0
      %8800 = vmatpush2.bf16.msra.mxu0 0
      %8801 = vmatprep.subr.bf16.mxu0 0
      %8802 = vmatpush2.bf16.msra.mxu0 0
      %8803 = vmatprep.subr.bf16.mxu0 0
      %8804 = vmatpush2.bf16.msra.mxu0 0
      %8805 = vmatprep.subr.bf16.mxu0 0
      %8806 = vmatpush2.bf16.msra.mxu0 0
      %8807 = vmatprep.subr.bf16.mxu0 0
      %8808 = vmatpush2.bf16.msra.mxu0 0
      %8809 = vmatprep.subr.bf16.mxu0 0
      %8810 = vmatpush2.bf16.msra.mxu0 0
      %8811 = vmatprep.subr.bf16.mxu0 0
      %8812 = vmatpush2.bf16.msra.mxu0 0
      %8813 = vmatprep.mubr.bf16.mxu0 0
      %8814 = vmatmul.mubr.bf16.gmra.mxu0 %v8779
      %v8815 = vpop.f32.mrf.mxu0
      %v8816 = vadd.f32 0.0, %v8815
      %v8817 = vpop.f32.mrf.mxu0
      %v8818 = vpop.f32.mrf.mxu0
      %v8819 = vadd.f32 0.0, %v8818
      %v8820 = vpop.f32.mrf.mxu0
      %8821 = vdwg.mxu0
      %8822 = vrot.lane.b32.xlu0 %v1101, 40
      %v8823 = vpop.permute.xlu0 %8822
      %v8826 = vsel %vm1974, %v8346, 0
      %8828 = vmatprep.subr.bf16.mxu0 0
      %8829 = vmatpush1.bf16.msra.mxu0 0
      %8830 = vmatprep.subr.bf16.mxu0 0
      %8831 = vmatpush1.bf16.msra.mxu0 0
      %8832 = vmatprep.subr.bf16.mxu0 0
      %8833 = vmatpush1.bf16.msra.mxu0 0
      %8834 = vmatprep.subr.bf16.mxu0 0
      %8835 = vmatpush1.bf16.msra.mxu0 0
      %8836 = vmatprep.subr.bf16.mxu0 0
      %8837 = vmatpush1.bf16.msra.mxu0 0
      %8838 = vmatprep.subr.bf16.mxu0 0
      %8839 = vmatpush1.bf16.msra.mxu0 0
      %8840 = vmatprep.subr.bf16.mxu0 0
      %8841 = vmatpush1.bf16.msra.mxu0 0
      %8842 = vmatprep.subr.bf16.mxu0 0
      %8843 = vmatpush1.bf16.msra.mxu0 %v8823
      %8844 = vmatprep.subr.bf16.mxu0 0
      %8845 = vmatpush2.bf16.msra.mxu0 0
      %8846 = vmatprep.subr.bf16.mxu0 0
      %8847 = vmatpush2.bf16.msra.mxu0 0
      %8848 = vmatprep.subr.bf16.mxu0 0
      %8849 = vmatpush2.bf16.msra.mxu0 0
      %8850 = vmatprep.subr.bf16.mxu0 0
      %8851 = vmatpush2.bf16.msra.mxu0 0
      %8852 = vmatprep.subr.bf16.mxu0 0
      %8853 = vmatpush2.bf16.msra.mxu0 0
      %8854 = vmatprep.subr.bf16.mxu0 0
      %8855 = vmatpush2.bf16.msra.mxu0 0
      %8856 = vmatprep.subr.bf16.mxu0 0
      %8857 = vmatpush2.bf16.msra.mxu0 0
      %8858 = vmatprep.subr.bf16.mxu0 0
      %8859 = vmatpush2.bf16.msra.mxu0 0
      %8860 = vmatprep.mubr.bf16.mxu0 0
      %8861 = vmatmul.mubr.bf16.gmra.mxu0 %v8826
      %v8862 = vpop.f32.mrf.mxu0
      %v8863 = vadd.f32 0.0, %v8862
      %v8864 = vpop.f32.mrf.mxu0
      %v8865 = vpop.f32.mrf.mxu0
      %v8866 = vadd.f32 0.0, %v8865
      %v8867 = vpop.f32.mrf.mxu0
      %8868 = vdwg.mxu0
      %8869 = vrot.lane.b32.xlu0 %v1102, 40
      %v8870 = vpop.permute.xlu0 %8869
      %v8873 = vsel %vm1974, %v8347, 0
      %8875 = vmatprep.subr.bf16.mxu0 0
      %8876 = vmatpush1.bf16.msra.mxu0 0
      %8877 = vmatprep.subr.bf16.mxu0 0
      %8878 = vmatpush1.bf16.msra.mxu0 0
      %8879 = vmatprep.subr.bf16.mxu0 0
      %8880 = vmatpush1.bf16.msra.mxu0 0
      %8881 = vmatprep.subr.bf16.mxu0 0
      %8882 = vmatpush1.bf16.msra.mxu0 0
      %8883 = vmatprep.subr.bf16.mxu0 0
      %8884 = vmatpush1.bf16.msra.mxu0 0
      %8885 = vmatprep.subr.bf16.mxu0 0
      %8886 = vmatpush1.bf16.msra.mxu0 0
      %8887 = vmatprep.subr.bf16.mxu0 0
      %8888 = vmatpush1.bf16.msra.mxu0 0
      %8889 = vmatprep.subr.bf16.mxu0 0
      %8890 = vmatpush1.bf16.msra.mxu0 %v8870
      %8891 = vmatprep.subr.bf16.mxu0 0
      %8892 = vmatpush2.bf16.msra.mxu0 0
      %8893 = vmatprep.subr.bf16.mxu0 0
      %8894 = vmatpush2.bf16.msra.mxu0 0
      %8895 = vmatprep.subr.bf16.mxu0 0
      %8896 = vmatpush2.bf16.msra.mxu0 0
      %8897 = vmatprep.subr.bf16.mxu0 0
      %8898 = vmatpush2.bf16.msra.mxu0 0
      %8899 = vmatprep.subr.bf16.mxu0 0
      %8900 = vmatpush2.bf16.msra.mxu0 0
      %8901 = vmatprep.subr.bf16.mxu0 0
      %8902 = vmatpush2.bf16.msra.mxu0 0
      %8903 = vmatprep.subr.bf16.mxu0 0
      %8904 = vmatpush2.bf16.msra.mxu0 0
      %8905 = vmatprep.subr.bf16.mxu0 0
      %8906 = vmatpush2.bf16.msra.mxu0 0
      %8907 = vmatprep.mubr.bf16.mxu0 0
      %8908 = vmatmul.mubr.bf16.gmra.mxu0 %v8873
      %v8909 = vpop.f32.mrf.mxu0
      %v8910 = vadd.f32 0.0, %v8909
      %v8911 = vpop.f32.mrf.mxu0
      %v8912 = vpop.f32.mrf.mxu0
      %v8913 = vadd.f32 0.0, %v8912
      %v8914 = vpop.f32.mrf.mxu0
      %8915 = vdwg.mxu0
      %8916 = vrot.lane.b32.xlu0 %v1103, 40
      %v8917 = vpop.permute.xlu0 %8916
      %v8920 = vsel %vm1974, %v8348, 0
      %8922 = vmatprep.subr.bf16.mxu0 0
      %8923 = vmatpush1.bf16.msra.mxu0 0
      %8924 = vmatprep.subr.bf16.mxu0 0
      %8925 = vmatpush1.bf16.msra.mxu0 0
      %8926 = vmatprep.subr.bf16.mxu0 0
      %8927 = vmatpush1.bf16.msra.mxu0 0
      %8928 = vmatprep.subr.bf16.mxu0 0
      %8929 = vmatpush1.bf16.msra.mxu0 0
      %8930 = vmatprep.subr.bf16.mxu0 0
      %8931 = vmatpush1.bf16.msra.mxu0 0
      %8932 = vmatprep.subr.bf16.mxu0 0
      %8933 = vmatpush1.bf16.msra.mxu0 0
      %8934 = vmatprep.subr.bf16.mxu0 0
      %8935 = vmatpush1.bf16.msra.mxu0 0
      %8936 = vmatprep.subr.bf16.mxu0 0
      %8937 = vmatpush1.bf16.msra.mxu0 %v8917
      %8938 = vmatprep.subr.bf16.mxu0 0
      %8939 = vmatpush2.bf16.msra.mxu0 0
      %8940 = vmatprep.subr.bf16.mxu0 0
      %8941 = vmatpush2.bf16.msra.mxu0 0
      %8942 = vmatprep.subr.bf16.mxu0 0
      %8943 = vmatpush2.bf16.msra.mxu0 0
      %8944 = vmatprep.subr.bf16.mxu0 0
      %8945 = vmatpush2.bf16.msra.mxu0 0
      %8946 = vmatprep.subr.bf16.mxu0 0
      %8947 = vmatpush2.bf16.msra.mxu0 0
      %8948 = vmatprep.subr.bf16.mxu0 0
      %8949 = vmatpush2.bf16.msra.mxu0 0
      %8950 = vmatprep.subr.bf16.mxu0 0
      %8951 = vmatpush2.bf16.msra.mxu0 0
      %8952 = vmatprep.subr.bf16.mxu0 0
      %8953 = vmatpush2.bf16.msra.mxu0 0
      %8954 = vmatprep.mubr.bf16.mxu0 0
      %8955 = vmatmul.mubr.bf16.gmra.mxu0 %v8920
      %v8956 = vpop.f32.mrf.mxu0
      %v8957 = vadd.f32 0.0, %v8956
      %v8958 = vpop.f32.mrf.mxu0
      %v8959 = vpop.f32.mrf.mxu0
      %v8960 = vadd.f32 0.0, %v8959
      %v8961 = vpop.f32.mrf.mxu0
      %8962 = vdwg.mxu0
      %8963 = vrot.lane.b32.xlu0 %v1104, 40
      %v8964 = vpop.permute.xlu0 %8963
      %v8967 = vsel %vm1974, %v8349, 0
      %8969 = vmatprep.subr.bf16.mxu0 0
      %8970 = vmatpush1.bf16.msra.mxu0 0
      %8971 = vmatprep.subr.bf16.mxu0 0
      %8972 = vmatpush1.bf16.msra.mxu0 0
      %8973 = vmatprep.subr.bf16.mxu0 0
      %8974 = vmatpush1.bf16.msra.mxu0 0
      %8975 = vmatprep.subr.bf16.mxu0 0
      %8976 = vmatpush1.bf16.msra.mxu0 0
      %8977 = vmatprep.subr.bf16.mxu0 0
      %8978 = vmatpush1.bf16.msra.mxu0 0
      %8979 = vmatprep.subr.bf16.mxu0 0
      %8980 = vmatpush1.bf16.msra.mxu0 0
      %8981 = vmatprep.subr.bf16.mxu0 0
      %8982 = vmatpush1.bf16.msra.mxu0 0
      %8983 = vmatprep.subr.bf16.mxu0 0
      %8984 = vmatpush1.bf16.msra.mxu0 %v8964
      %8985 = vmatprep.subr.bf16.mxu0 0
      %8986 = vmatpush2.bf16.msra.mxu0 0
      %8987 = vmatprep.subr.bf16.mxu0 0
      %8988 = vmatpush2.bf16.msra.mxu0 0
      %8989 = vmatprep.subr.bf16.mxu0 0
      %8990 = vmatpush2.bf16.msra.mxu0 0
      %8991 = vmatprep.subr.bf16.mxu0 0
      %8992 = vmatpush2.bf16.msra.mxu0 0
      %8993 = vmatprep.subr.bf16.mxu0 0
      %8994 = vmatpush2.bf16.msra.mxu0 0
      %8995 = vmatprep.subr.bf16.mxu0 0
      %8996 = vmatpush2.bf16.msra.mxu0 0
      %8997 = vmatprep.subr.bf16.mxu0 0
      %8998 = vmatpush2.bf16.msra.mxu0 0
      %8999 = vmatprep.subr.bf16.mxu0 0
      %9000 = vmatpush2.bf16.msra.mxu0 0
      %9001 = vmatprep.mubr.bf16.mxu0 0
      %9002 = vmatmul.mubr.bf16.gmra.mxu0 %v8967
      %v9003 = vpop.f32.mrf.mxu0
      %v9004 = vadd.f32 0.0, %v9003
      %v9005 = vpop.f32.mrf.mxu0
      %v9006 = vpop.f32.mrf.mxu0
      %v9007 = vadd.f32 0.0, %v9006
      %v9008 = vpop.f32.mrf.mxu0
      %9009 = vdwg.mxu0
      %9010 = vrot.lane.b32.xlu0 %v1105, 40
      %v9011 = vpop.permute.xlu0 %9010
      %v9014 = vsel %vm1974, %v8350, 0
      %9016 = vmatprep.subr.bf16.mxu0 0
      %9017 = vmatpush1.bf16.msra.mxu0 0
      %9018 = vmatprep.subr.bf16.mxu0 0
      %9019 = vmatpush1.bf16.msra.mxu0 0
      %9020 = vmatprep.subr.bf16.mxu0 0
      %9021 = vmatpush1.bf16.msra.mxu0 0
      %9022 = vmatprep.subr.bf16.mxu0 0
      %9023 = vmatpush1.bf16.msra.mxu0 0
      %9024 = vmatprep.subr.bf16.mxu0 0
      %9025 = vmatpush1.bf16.msra.mxu0 0
      %9026 = vmatprep.subr.bf16.mxu0 0
      %9027 = vmatpush1.bf16.msra.mxu0 0
      %9028 = vmatprep.subr.bf16.mxu0 0
      %9029 = vmatpush1.bf16.msra.mxu0 0
      %9030 = vmatprep.subr.bf16.mxu0 0
      %9031 = vmatpush1.bf16.msra.mxu0 %v9011
      %9032 = vmatprep.subr.bf16.mxu0 0
      %9033 = vmatpush2.bf16.msra.mxu0 0
      %9034 = vmatprep.subr.bf16.mxu0 0
      %9035 = vmatpush2.bf16.msra.mxu0 0
      %9036 = vmatprep.subr.bf16.mxu0 0
      %9037 = vmatpush2.bf16.msra.mxu0 0
      %9038 = vmatprep.subr.bf16.mxu0 0
      %9039 = vmatpush2.bf16.msra.mxu0 0
      %9040 = vmatprep.subr.bf16.mxu0 0
      %9041 = vmatpush2.bf16.msra.mxu0 0
      %9042 = vmatprep.subr.bf16.mxu0 0
      %9043 = vmatpush2.bf16.msra.mxu0 0
      %9044 = vmatprep.subr.bf16.mxu0 0
      %9045 = vmatpush2.bf16.msra.mxu0 0
      %9046 = vmatprep.subr.bf16.mxu0 0
      %9047 = vmatpush2.bf16.msra.mxu0 0
      %9048 = vmatprep.mubr.bf16.mxu0 0
      %9049 = vmatmul.mubr.bf16.gmra.mxu0 %v9014
      %v9050 = vpop.f32.mrf.mxu0
      %v9051 = vadd.f32 0.0, %v9050
      %v9052 = vpop.f32.mrf.mxu0
      %v9053 = vpop.f32.mrf.mxu0
      %v9054 = vadd.f32 0.0, %v9053
      %v9055 = vpop.f32.mrf.mxu0
      %9056 = vdwg.mxu0
      %9057 = vrot.lane.b32.xlu0 %v1106, 40
      %v9058 = vpop.permute.xlu0 %9057
      %v9061 = vsel %vm1974, %v8351, 0
      %9063 = vmatprep.subr.bf16.mxu0 0
      %9064 = vmatpush1.bf16.msra.mxu0 0
      %9065 = vmatprep.subr.bf16.mxu0 0
      %9066 = vmatpush1.bf16.msra.mxu0 0
      %9067 = vmatprep.subr.bf16.mxu0 0
      %9068 = vmatpush1.bf16.msra.mxu0 0
      %9069 = vmatprep.subr.bf16.mxu0 0
      %9070 = vmatpush1.bf16.msra.mxu0 0
      %9071 = vmatprep.subr.bf16.mxu0 0
      %9072 = vmatpush1.bf16.msra.mxu0 0
      %9073 = vmatprep.subr.bf16.mxu0 0
      %9074 = vmatpush1.bf16.msra.mxu0 0
      %9075 = vmatprep.subr.bf16.mxu0 0
      %9076 = vmatpush1.bf16.msra.mxu0 0
      %9077 = vmatprep.subr.bf16.mxu0 0
      %9078 = vmatpush1.bf16.msra.mxu0 %v9058
      %9079 = vmatprep.subr.bf16.mxu0 0
      %9080 = vmatpush2.bf16.msra.mxu0 0
      %9081 = vmatprep.subr.bf16.mxu0 0
      %9082 = vmatpush2.bf16.msra.mxu0 0
      %9083 = vmatprep.subr.bf16.mxu0 0
      %9084 = vmatpush2.bf16.msra.mxu0 0
      %9085 = vmatprep.subr.bf16.mxu0 0
      %9086 = vmatpush2.bf16.msra.mxu0 0
      %9087 = vmatprep.subr.bf16.mxu0 0
      %9088 = vmatpush2.bf16.msra.mxu0 0
      %9089 = vmatprep.subr.bf16.mxu0 0
      %9090 = vmatpush2.bf16.msra.mxu0 0
      %9091 = vmatprep.subr.bf16.mxu0 0
      %9092 = vmatpush2.bf16.msra.mxu0 0
      %9093 = vmatprep.subr.bf16.mxu0 0
      %9094 = vmatpush2.bf16.msra.mxu0 0
      %9095 = vmatprep.mubr.bf16.mxu0 0
      %9096 = vmatmul.mubr.bf16.gmra.mxu0 %v9061
      %v9097 = vpop.f32.mrf.mxu0
      %v9098 = vadd.f32 0.0, %v9097
      %v9099 = vpop.f32.mrf.mxu0
      %v9100 = vpop.f32.mrf.mxu0
      %v9101 = vadd.f32 0.0, %v9100
      %v9102 = vpop.f32.mrf.mxu0
      %9103 = vdwg.mxu0
      %9136 = vrot.lane.b32.xlu0 %v4387, 8
      %v9137 = vpop.permute.xlu0 %9136
      %9138 = vrot.lane.b32.xlu0 %v4390, 8
      %v9139 = vpop.permute.xlu0 %9138
      %9140 = vrot.lane.b32.xlu0 %v4434, 8
      %v9141 = vpop.permute.xlu0 %9140
      %9142 = vrot.lane.b32.xlu0 %v4437, 8
      %v9143 = vpop.permute.xlu0 %9142
      %9144 = vrot.lane.b32.xlu0 %v4481, 8
      %v9145 = vpop.permute.xlu0 %9144
      %9146 = vrot.lane.b32.xlu0 %v4484, 8
      %v9147 = vpop.permute.xlu0 %9146
      %9148 = vrot.lane.b32.xlu0 %v4528, 8
      %v9149 = vpop.permute.xlu0 %9148
      %9150 = vrot.lane.b32.xlu0 %v4531, 8
      %v9151 = vpop.permute.xlu0 %9150
      %9152 = vrot.lane.b32.xlu0 %v4575, 8
      %v9153 = vpop.permute.xlu0 %9152
      %9154 = vrot.lane.b32.xlu0 %v4578, 8
      %v9155 = vpop.permute.xlu0 %9154
      %9156 = vrot.lane.b32.xlu0 %v4622, 8
      %v9157 = vpop.permute.xlu0 %9156
      %9158 = vrot.lane.b32.xlu0 %v4625, 8
      %v9159 = vpop.permute.xlu0 %9158
      %9160 = vrot.lane.b32.xlu0 %v4669, 8
      %v9161 = vpop.permute.xlu0 %9160
      %9162 = vrot.lane.b32.xlu0 %v4672, 8
      %v9163 = vpop.permute.xlu0 %9162
      %9164 = vrot.lane.b32.xlu0 %v4716, 8
      %v9165 = vpop.permute.xlu0 %9164
      %9166 = vrot.lane.b32.xlu0 %v4719, 8
      %v9167 = vpop.permute.xlu0 %9166
      %9168 = vrot.lane.b32.xlu0 %v4763, 8
      %v9169 = vpop.permute.xlu0 %9168
      %9170 = vrot.lane.b32.xlu0 %v4766, 8
      %v9171 = vpop.permute.xlu0 %9170
      %9172 = vrot.lane.b32.xlu0 %v4810, 8
      %v9173 = vpop.permute.xlu0 %9172
      %9174 = vrot.lane.b32.xlu0 %v4813, 8
      %v9175 = vpop.permute.xlu0 %9174
      %9176 = vrot.lane.b32.xlu0 %v4857, 8
      %v9177 = vpop.permute.xlu0 %9176
      %9178 = vrot.lane.b32.xlu0 %v4860, 8
      %v9179 = vpop.permute.xlu0 %9178
      %9180 = vrot.lane.b32.xlu0 %v4904, 8
      %v9181 = vpop.permute.xlu0 %9180
      %9182 = vrot.lane.b32.xlu0 %v4907, 8
      %v9183 = vpop.permute.xlu0 %9182
      %9184 = vrot.lane.b32.xlu0 %v4951, 8
      %v9185 = vpop.permute.xlu0 %9184
      %9186 = vrot.lane.b32.xlu0 %v4954, 8
      %v9187 = vpop.permute.xlu0 %9186
      %9188 = vrot.lane.b32.xlu0 %v4998, 8
      %v9189 = vpop.permute.xlu0 %9188
      %9190 = vrot.lane.b32.xlu0 %v5001, 8
      %v9191 = vpop.permute.xlu0 %9190
      %9192 = vrot.lane.b32.xlu0 %v5045, 8
      %v9193 = vpop.permute.xlu0 %9192
      %9194 = vrot.lane.b32.xlu0 %v5048, 8
      %v9195 = vpop.permute.xlu0 %9194
      %9196 = vrot.lane.b32.xlu0 %v5092, 8
      %v9197 = vpop.permute.xlu0 %9196
      %9198 = vrot.lane.b32.xlu0 %v5095, 8
      %v9199 = vpop.permute.xlu0 %9198
      %9264 = vrot.lane.b32.xlu0 %v6390, 16
      %v9265 = vpop.permute.xlu0 %9264
      %9266 = vrot.lane.b32.xlu0 %v6393, 16
      %v9267 = vpop.permute.xlu0 %9266
      %9268 = vrot.lane.b32.xlu0 %v6437, 16
      %v9269 = vpop.permute.xlu0 %9268
      %9270 = vrot.lane.b32.xlu0 %v6440, 16
      %v9271 = vpop.permute.xlu0 %9270
      %9272 = vrot.lane.b32.xlu0 %v6484, 16
      %v9273 = vpop.permute.xlu0 %9272
      %9274 = vrot.lane.b32.xlu0 %v6487, 16
      %v9275 = vpop.permute.xlu0 %9274
      %9276 = vrot.lane.b32.xlu0 %v6531, 16
      %v9277 = vpop.permute.xlu0 %9276
      %9278 = vrot.lane.b32.xlu0 %v6534, 16
      %v9279 = vpop.permute.xlu0 %9278
      %9280 = vrot.lane.b32.xlu0 %v6578, 16
      %v9281 = vpop.permute.xlu0 %9280
      %9282 = vrot.lane.b32.xlu0 %v6581, 16
      %v9283 = vpop.permute.xlu0 %9282
      %9284 = vrot.lane.b32.xlu0 %v6625, 16
      %v9285 = vpop.permute.xlu0 %9284
      %9286 = vrot.lane.b32.xlu0 %v6628, 16
      %v9287 = vpop.permute.xlu0 %9286
      %9288 = vrot.lane.b32.xlu0 %v6672, 16
      %v9289 = vpop.permute.xlu0 %9288
      %9290 = vrot.lane.b32.xlu0 %v6675, 16
      %v9291 = vpop.permute.xlu0 %9290
      %9292 = vrot.lane.b32.xlu0 %v6719, 16
      %v9293 = vpop.permute.xlu0 %9292
      %9294 = vrot.lane.b32.xlu0 %v6722, 16
      %v9295 = vpop.permute.xlu0 %9294
      %9296 = vrot.lane.b32.xlu0 %v6766, 16
      %v9297 = vpop.permute.xlu0 %9296
      %9298 = vrot.lane.b32.xlu0 %v6769, 16
      %v9299 = vpop.permute.xlu0 %9298
      %9300 = vrot.lane.b32.xlu0 %v6813, 16
      %v9301 = vpop.permute.xlu0 %9300
      %9302 = vrot.lane.b32.xlu0 %v6816, 16
      %v9303 = vpop.permute.xlu0 %9302
      %9304 = vrot.lane.b32.xlu0 %v6860, 16
      %v9305 = vpop.permute.xlu0 %9304
      %9306 = vrot.lane.b32.xlu0 %v6863, 16
      %v9307 = vpop.permute.xlu0 %9306
      %9308 = vrot.lane.b32.xlu0 %v6907, 16
      %v9309 = vpop.permute.xlu0 %9308
      %9310 = vrot.lane.b32.xlu0 %v6910, 16
      %v9311 = vpop.permute.xlu0 %9310
      %9312 = vrot.lane.b32.xlu0 %v6954, 16
      %v9313 = vpop.permute.xlu0 %9312
      %9314 = vrot.lane.b32.xlu0 %v6957, 16
      %v9315 = vpop.permute.xlu0 %9314
      %9316 = vrot.lane.b32.xlu0 %v7001, 16
      %v9317 = vpop.permute.xlu0 %9316
      %9318 = vrot.lane.b32.xlu0 %v7004, 16
      %v9319 = vpop.permute.xlu0 %9318
      %9320 = vrot.lane.b32.xlu0 %v7048, 16
      %v9321 = vpop.permute.xlu0 %9320
      %9322 = vrot.lane.b32.xlu0 %v7051, 16
      %v9323 = vpop.permute.xlu0 %9322
      %9324 = vrot.lane.b32.xlu0 %v7095, 16
      %v9325 = vpop.permute.xlu0 %9324
      %9326 = vrot.lane.b32.xlu0 %v7098, 16
      %v9327 = vpop.permute.xlu0 %9326
      %9392 = vrot.lane.b32.xlu0 %v8393, 24
      %v9393 = vpop.permute.xlu0 %9392
      %9394 = vrot.lane.b32.xlu0 %v8396, 24
      %v9395 = vpop.permute.xlu0 %9394
      %9396 = vrot.lane.b32.xlu0 %v8440, 24
      %v9397 = vpop.permute.xlu0 %9396
      %9398 = vrot.lane.b32.xlu0 %v8443, 24
      %v9399 = vpop.permute.xlu0 %9398
      %9400 = vrot.lane.b32.xlu0 %v8487, 24
      %v9401 = vpop.permute.xlu0 %9400
      %9402 = vrot.lane.b32.xlu0 %v8490, 24
      %v9403 = vpop.permute.xlu0 %9402
      %9404 = vrot.lane.b32.xlu0 %v8534, 24
      %v9405 = vpop.permute.xlu0 %9404
      %9406 = vrot.lane.b32.xlu0 %v8537, 24
      %v9407 = vpop.permute.xlu0 %9406
      %9408 = vrot.lane.b32.xlu0 %v8581, 24
      %v9409 = vpop.permute.xlu0 %9408
      %9410 = vrot.lane.b32.xlu0 %v8584, 24
      %v9411 = vpop.permute.xlu0 %9410
      %9412 = vrot.lane.b32.xlu0 %v8628, 24
      %v9413 = vpop.permute.xlu0 %9412
      %9414 = vrot.lane.b32.xlu0 %v8631, 24
      %v9415 = vpop.permute.xlu0 %9414
      %9416 = vrot.lane.b32.xlu0 %v8675, 24
      %v9417 = vpop.permute.xlu0 %9416
      %9418 = vrot.lane.b32.xlu0 %v8678, 24
      %v9419 = vpop.permute.xlu0 %9418
      %9420 = vrot.lane.b32.xlu0 %v8722, 24
      %v9421 = vpop.permute.xlu0 %9420
      %9422 = vrot.lane.b32.xlu0 %v8725, 24
      %v9423 = vpop.permute.xlu0 %9422
      %9424 = vrot.lane.b32.xlu0 %v8769, 24
      %v9425 = vpop.permute.xlu0 %9424
      %9426 = vrot.lane.b32.xlu0 %v8772, 24
      %v9427 = vpop.permute.xlu0 %9426
      %9428 = vrot.lane.b32.xlu0 %v8816, 24
      %v9429 = vpop.permute.xlu0 %9428
      %9430 = vrot.lane.b32.xlu0 %v8819, 24
      %v9431 = vpop.permute.xlu0 %9430
      %9432 = vrot.lane.b32.xlu0 %v8863, 24
      %v9433 = vpop.permute.xlu0 %9432
      %9434 = vrot.lane.b32.xlu0 %v8866, 24
      %v9435 = vpop.permute.xlu0 %9434
      %9436 = vrot.lane.b32.xlu0 %v8910, 24
      %v9437 = vpop.permute.xlu0 %9436
      %9438 = vrot.lane.b32.xlu0 %v8913, 24
      %v9439 = vpop.permute.xlu0 %9438
      %9440 = vrot.lane.b32.xlu0 %v8957, 24
      %v9441 = vpop.permute.xlu0 %9440
      %9442 = vrot.lane.b32.xlu0 %v8960, 24
      %v9443 = vpop.permute.xlu0 %9442
      %9444 = vrot.lane.b32.xlu0 %v9004, 24
      %v9445 = vpop.permute.xlu0 %9444
      %9446 = vrot.lane.b32.xlu0 %v9007, 24
      %v9447 = vpop.permute.xlu0 %9446
      %9448 = vrot.lane.b32.xlu0 %v9051, 24
      %v9449 = vpop.permute.xlu0 %9448
      %9450 = vrot.lane.b32.xlu0 %v9054, 24
      %v9451 = vpop.permute.xlu0 %9450
      %9452 = vrot.lane.b32.xlu0 %v9098, 24
      %v9453 = vpop.permute.xlu0 %9452
      %9454 = vrot.lane.b32.xlu0 %v9101, 24
      %v9455 = vpop.permute.xlu0 %9454
      %v9488 = vsel %vm1110, %v2384, %v9137
      %v9489 = vsel %vm1110, %v2387, %v9139
      %v9490 = vsel %vm1110, %v2431, %v9141
      %v9491 = vsel %vm1110, %v2434, %v9143
      %v9492 = vsel %vm1110, %v2478, %v9145
      %v9493 = vsel %vm1110, %v2481, %v9147
      %v9494 = vsel %vm1110, %v2525, %v9149
      %v9495 = vsel %vm1110, %v2528, %v9151
      %v9496 = vsel %vm1110, %v2572, %v9153
      %v9497 = vsel %vm1110, %v2575, %v9155
      %v9498 = vsel %vm1110, %v2619, %v9157
      %v9499 = vsel %vm1110, %v2622, %v9159
      %v9500 = vsel %vm1110, %v2666, %v9161
      %v9501 = vsel %vm1110, %v2669, %v9163
      %v9502 = vsel %vm1110, %v2713, %v9165
      %v9503 = vsel %vm1110, %v2716, %v9167
      %v9504 = vsel %vm1110, %v2760, %v9169
      %v9505 = vsel %vm1110, %v2763, %v9171
      %v9506 = vsel %vm1110, %v2807, %v9173
      %v9507 = vsel %vm1110, %v2810, %v9175
      %v9508 = vsel %vm1110, %v2854, %v9177
      %v9509 = vsel %vm1110, %v2857, %v9179
      %v9510 = vsel %vm1110, %v2901, %v9181
      %v9511 = vsel %vm1110, %v2904, %v9183
      %v9512 = vsel %vm1110, %v2948, %v9185
      %v9513 = vsel %vm1110, %v2951, %v9187
      %v9514 = vsel %vm1110, %v2995, %v9189
      %v9515 = vsel %vm1110, %v2998, %v9191
      %v9516 = vsel %vm1110, %v3042, %v9193
      %v9517 = vsel %vm1110, %v3045, %v9195
      %v9518 = vsel %vm1110, %v3089, %v9197
      %v9519 = vsel %vm1110, %v3092, %v9199
      %v9520 = vsel %vm1974, %v9488, %v9265
      %v9521 = vsel %vm1974, %v9489, %v9267
      %v9522 = vsel %vm1974, %v9490, %v9269
      %v9523 = vsel %vm1974, %v9491, %v9271
      %v9524 = vsel %vm1974, %v9492, %v9273
      %v9525 = vsel %vm1974, %v9493, %v9275
      %v9526 = vsel %vm1974, %v9494, %v9277
      %v9527 = vsel %vm1974, %v9495, %v9279
      %v9528 = vsel %vm1974, %v9496, %v9281
      %v9529 = vsel %vm1974, %v9497, %v9283
      %v9530 = vsel %vm1974, %v9498, %v9285
      %v9531 = vsel %vm1974, %v9499, %v9287
      %v9532 = vsel %vm1974, %v9500, %v9289
      %v9533 = vsel %vm1974, %v9501, %v9291
      %v9534 = vsel %vm1974, %v9502, %v9293
      %v9535 = vsel %vm1974, %v9503, %v9295
      %v9536 = vsel %vm1974, %v9504, %v9297
      %v9537 = vsel %vm1974, %v9505, %v9299
      %v9538 = vsel %vm1974, %v9506, %v9301
      %v9539 = vsel %vm1974, %v9507, %v9303
      %v9540 = vsel %vm1974, %v9508, %v9305
      %v9541 = vsel %vm1974, %v9509, %v9307
      %v9542 = vsel %vm1974, %v9510, %v9309
      %v9543 = vsel %vm1974, %v9511, %v9311
      %v9544 = vsel %vm1974, %v9512, %v9313
      %v9545 = vsel %vm1974, %v9513, %v9315
      %v9546 = vsel %vm1974, %v9514, %v9317
      %v9547 = vsel %vm1974, %v9515, %v9319
      %v9548 = vsel %vm1974, %v9516, %v9321
      %v9549 = vsel %vm1974, %v9517, %v9323
      %v9550 = vsel %vm1974, %v9518, %v9325
      %v9551 = vsel %vm1974, %v9519, %v9327
      %vm9552 = vcmask 195584
      %v9553 = vsel %vm9552, %v9520, %v9393
      %v9554 = vsel %vm9552, %v9521, %v9395
      %v9555 = vsel %vm9552, %v9522, %v9397
      %v9556 = vsel %vm9552, %v9523, %v9399
      %v9557 = vsel %vm9552, %v9524, %v9401
      %v9558 = vsel %vm9552, %v9525, %v9403
      %v9559 = vsel %vm9552, %v9526, %v9405
      %v9560 = vsel %vm9552, %v9527, %v9407
      %v9561 = vsel %vm9552, %v9528, %v9409
      %v9562 = vsel %vm9552, %v9529, %v9411
      %v9563 = vsel %vm9552, %v9530, %v9413
      %v9564 = vsel %vm9552, %v9531, %v9415
      %v9565 = vsel %vm9552, %v9532, %v9417
      %v9566 = vsel %vm9552, %v9533, %v9419
      %v9567 = vsel %vm9552, %v9534, %v9421
      %v9568 = vsel %vm9552, %v9535, %v9423
      %v9569 = vsel %vm9552, %v9536, %v9425
      %v9570 = vsel %vm9552, %v9537, %v9427
      %v9571 = vsel %vm9552, %v9538, %v9429
      %v9572 = vsel %vm9552, %v9539, %v9431
      %v9573 = vsel %vm9552, %v9540, %v9433
      %v9574 = vsel %vm9552, %v9541, %v9435
      %v9575 = vsel %vm9552, %v9542, %v9437
      %v9576 = vsel %vm9552, %v9543, %v9439
      %v9577 = vsel %vm9552, %v9544, %v9441
      %v9578 = vsel %vm9552, %v9545, %v9443
      %v9579 = vsel %vm9552, %v9546, %v9445
      %v9580 = vsel %vm9552, %v9547, %v9447
      %v9581 = vsel %vm9552, %v9548, %v9449
      %v9582 = vsel %vm9552, %v9549, %v9451
      %v9583 = vsel %vm9552, %v9550, %v9453
      %v9584 = vsel %vm9552, %v9551, %v9455
      %v9585 = vpack.c.bf16 %v9554, %v9553
      %v9586 = vpack.c.bf16 %v9556, %v9555
      %v9587 = vpack.c.bf16 %v9558, %v9557
      %v9588 = vpack.c.bf16 %v9560, %v9559
      %v9589 = vpack.c.bf16 %v9562, %v9561
      %v9590 = vpack.c.bf16 %v9564, %v9563
      %v9591 = vpack.c.bf16 %v9566, %v9565
      %v9592 = vpack.c.bf16 %v9568, %v9567
      %v9593 = vpack.c.bf16 %v9570, %v9569
      %v9594 = vpack.c.bf16 %v9572, %v9571
      %v9595 = vpack.c.bf16 %v9574, %v9573
      %v9596 = vpack.c.bf16 %v9576, %v9575
      %v9597 = vpack.c.bf16 %v9578, %v9577
      %v9598 = vpack.c.bf16 %v9580, %v9579
      %v9599 = vpack.c.bf16 %v9582, %v9581
      %v9600 = vpack.c.bf16 %v9584, %v9583
      %v9601 = vld [vmem:[%s5] sm:$0xf]
      %v9602 = vld [vmem:[%s5 + $0x4] sm:$0xf]
      %v9603 = vld [vmem:[%s5 + $0x8] sm:$0xf]
      %v9604 = vld [vmem:[%s5 + $0xc] sm:$0xf]
      %v9605 = vld [vmem:[%s6] sm:$0x1]
      %v9607 = vlaneseq
      %v9608 = vshrl.u32 %v9607, 7
      %v9609 = vsub.s32 0, %v9608
      %v9610 = vrot.slane %v9605, %v9609
      %v9616 = vunpack.c.l.b16 %v9601
      %v9617 = vunpack.c.l.b16 %v9602
      %v9618 = vunpack.c.l.b16 %v9603
      %v9619 = vunpack.c.l.b16 %v9604
      %v9620 = vpack.c.b16 %v9617, %v9616
      %v9621 = vpack.c.b16 %v9619, %v9618
      %v9625 = vsel %vm347, %v9585, 0
      %v9628 = vsel %vm347, %v9586, 0
      %v9631 = vsel %vm347, %v9587, 0
      %v9634 = vsel %vm347, %v9588, 0
      %v9637 = vsel %vm347, %v9589, 0
      %v9640 = vsel %vm347, %v9590, 0
      %v9643 = vsel %vm347, %v9591, 0
      %v9646 = vsel %vm347, %v9592, 0
      %v9649 = vsel %vm347, %v9593, 0
      %v9652 = vsel %vm347, %v9594, 0
      %v9655 = vsel %vm347, %v9595, 0
      %v9658 = vsel %vm347, %v9596, 0
      %v9661 = vsel %vm347, %v9597, 0
      %v9664 = vsel %vm347, %v9598, 0
      %v9667 = vsel %vm347, %v9599, 0
      %v9670 = vsel %vm347, %v9600, 0
      %9672 = vmatprep.subr.bf16.mxu0 0
      %9673 = vmatpush1.bf16.msra.mxu0 0
      %9674 = vmatprep.subr.bf16.mxu0 0
      %9675 = vmatpush1.bf16.msra.mxu0 0
      %9676 = vmatprep.subr.bf16.mxu0 0
      %9677 = vmatpush1.bf16.msra.mxu0 0
      %9678 = vmatprep.subr.bf16.mxu0 0
      %9679 = vmatpush1.bf16.msra.mxu0 0
      %9680 = vmatprep.subr.bf16.mxu0 0
      %9681 = vmatpush1.bf16.msra.mxu0 0
      %9682 = vmatprep.subr.bf16.mxu0 0
      %9683 = vmatpush1.bf16.msra.mxu0 0
      %9684 = vmatprep.subr.bf16.mxu0 0
      %9685 = vmatpush1.bf16.msra.mxu0 %v9621
      %9686 = vmatprep.subr.bf16.mxu0 0
      %9687 = vmatpush1.bf16.msra.mxu0 %v9620
      %9688 = vmatprep.subr.bf16.mxu0 0
      %9689 = vmatpush2.bf16.msra.mxu0 0
      %9690 = vmatprep.subr.bf16.mxu0 0
      %9691 = vmatpush2.bf16.msra.mxu0 0
      %9692 = vmatprep.subr.bf16.mxu0 0
      %9693 = vmatpush2.bf16.msra.mxu0 0
      %9694 = vmatprep.subr.bf16.mxu0 0
      %9695 = vmatpush2.bf16.msra.mxu0 0
      %9696 = vmatprep.subr.bf16.mxu0 0
      %9697 = vmatpush2.bf16.msra.mxu0 0
      %9698 = vmatprep.subr.bf16.mxu0 0
      %9699 = vmatpush2.bf16.msra.mxu0 0
      %9700 = vmatprep.subr.bf16.mxu0 0
      %9701 = vmatpush2.bf16.msra.mxu0 0
      %9702 = vmatprep.subr.bf16.mxu0 0
      %9703 = vmatpush2.bf16.msra.mxu0 0
      %9704 = vmatprep.mubr.bf16.mxu0 0
      %9705 = vmatmul.mubr.bf16.gmra.mxu0 %v9625
      %v9706 = vpop.f32.mrf.mxu0
      %v9707 = vadd.f32 %v9610, %v9706
      %v9708 = vpop.f32.mrf.mxu0
      %v9709 = vpop.f32.mrf.mxu0
      %v9710 = vadd.f32 %v9610, %v9709
      %v9711 = vpop.f32.mrf.mxu0
      %9712 = vmatprep.mubr.bf16.mxu0 0
      %9713 = vmatmul.mubr.bf16.gmra.mxu0 %v9628
      %v9714 = vpop.f32.mrf.mxu0
      %v9715 = vadd.f32 %v9610, %v9714
      %v9716 = vpop.f32.mrf.mxu0
      %v9717 = vpop.f32.mrf.mxu0
      %v9718 = vadd.f32 %v9610, %v9717
      %v9719 = vpop.f32.mrf.mxu0
      %9720 = vmatprep.mubr.bf16.mxu0 0
      %9721 = vmatmul.mubr.bf16.gmra.mxu0 %v9631
      %v9722 = vpop.f32.mrf.mxu0
      %v9723 = vadd.f32 %v9610, %v9722
      %v9724 = vpop.f32.mrf.mxu0
      %v9725 = vpop.f32.mrf.mxu0
      %v9726 = vadd.f32 %v9610, %v9725
      %v9727 = vpop.f32.mrf.mxu0
      %9728 = vmatprep.mubr.bf16.mxu0 0
      %9729 = vmatmul.mubr.bf16.gmra.mxu0 %v9634
      %v9730 = vpop.f32.mrf.mxu0
      %v9731 = vadd.f32 %v9610, %v9730
      %v9732 = vpop.f32.mrf.mxu0
      %v9733 = vpop.f32.mrf.mxu0
      %v9734 = vadd.f32 %v9610, %v9733
      %v9735 = vpop.f32.mrf.mxu0
      %9736 = vmatprep.mubr.bf16.mxu0 0
      %9737 = vmatmul.mubr.bf16.gmra.mxu0 %v9637
      %v9738 = vpop.f32.mrf.mxu0
      %v9739 = vadd.f32 %v9610, %v9738
      %v9740 = vpop.f32.mrf.mxu0
      %v9741 = vpop.f32.mrf.mxu0
      %v9742 = vadd.f32 %v9610, %v9741
      %v9743 = vpop.f32.mrf.mxu0
      %9744 = vmatprep.mubr.bf16.mxu0 0
      %9745 = vmatmul.mubr.bf16.gmra.mxu0 %v9640
      %v9746 = vpop.f32.mrf.mxu0
      %v9747 = vadd.f32 %v9610, %v9746
      %v9748 = vpop.f32.mrf.mxu0
      %v9749 = vpop.f32.mrf.mxu0
      %v9750 = vadd.f32 %v9610, %v9749
      %v9751 = vpop.f32.mrf.mxu0
      %9752 = vmatprep.mubr.bf16.mxu0 0
      %9753 = vmatmul.mubr.bf16.gmra.mxu0 %v9643
      %v9754 = vpop.f32.mrf.mxu0
      %v9755 = vadd.f32 %v9610, %v9754
      %v9756 = vpop.f32.mrf.mxu0
      %v9757 = vpop.f32.mrf.mxu0
      %v9758 = vadd.f32 %v9610, %v9757
      %v9759 = vpop.f32.mrf.mxu0
      %9760 = vmatprep.mubr.bf16.mxu0 0
      %9761 = vmatmul.mubr.bf16.gmra.mxu0 %v9646
      %v9762 = vpop.f32.mrf.mxu0
      %v9763 = vadd.f32 %v9610, %v9762
      %v9764 = vpop.f32.mrf.mxu0
      %v9765 = vpop.f32.mrf.mxu0
      %v9766 = vadd.f32 %v9610, %v9765
      %v9767 = vpop.f32.mrf.mxu0
      %9768 = vmatprep.mubr.bf16.mxu0 0
      %9769 = vmatmul.mubr.bf16.gmra.mxu0 %v9649
      %v9770 = vpop.f32.mrf.mxu0
      %v9771 = vadd.f32 %v9610, %v9770
      %v9772 = vpop.f32.mrf.mxu0
      %v9773 = vpop.f32.mrf.mxu0
      %v9774 = vadd.f32 %v9610, %v9773
      %v9775 = vpop.f32.mrf.mxu0
      %9776 = vmatprep.mubr.bf16.mxu0 0
      %9777 = vmatmul.mubr.bf16.gmra.mxu0 %v9652
      %v9778 = vpop.f32.mrf.mxu0
      %v9779 = vadd.f32 %v9610, %v9778
      %v9780 = vpop.f32.mrf.mxu0
      %v9781 = vpop.f32.mrf.mxu0
      %v9782 = vadd.f32 %v9610, %v9781
      %v9783 = vpop.f32.mrf.mxu0
      %9784 = vmatprep.mubr.bf16.mxu0 0
      %9785 = vmatmul.mubr.bf16.gmra.mxu0 %v9655
      %v9786 = vpop.f32.mrf.mxu0
      %v9787 = vadd.f32 %v9610, %v9786
      %v9788 = vpop.f32.mrf.mxu0
      %v9789 = vpop.f32.mrf.mxu0
      %v9790 = vadd.f32 %v9610, %v9789
      %v9791 = vpop.f32.mrf.mxu0
      %9792 = vmatprep.mubr.bf16.mxu0 0
      %9793 = vmatmul.mubr.bf16.gmra.mxu0 %v9658
      %v9794 = vpop.f32.mrf.mxu0
      %v9795 = vadd.f32 %v9610, %v9794
      %v9796 = vpop.f32.mrf.mxu0
      %v9797 = vpop.f32.mrf.mxu0
      %v9798 = vadd.f32 %v9610, %v9797
      %v9799 = vpop.f32.mrf.mxu0
      %9800 = vmatprep.mubr.bf16.mxu0 0
      %9801 = vmatmul.mubr.bf16.gmra.mxu0 %v9661
      %v9802 = vpop.f32.mrf.mxu0
      %v9803 = vadd.f32 %v9610, %v9802
      %v9804 = vpop.f32.mrf.mxu0
      %v9805 = vpop.f32.mrf.mxu0
      %v9806 = vadd.f32 %v9610, %v9805
      %v9807 = vpop.f32.mrf.mxu0
      %9808 = vmatprep.mubr.bf16.mxu0 0
      %9809 = vmatmul.mubr.bf16.gmra.mxu0 %v9664
      %v9810 = vpop.f32.mrf.mxu0
      %v9811 = vadd.f32 %v9610, %v9810
      %v9812 = vpop.f32.mrf.mxu0
      %v9813 = vpop.f32.mrf.mxu0
      %v9814 = vadd.f32 %v9610, %v9813
      %v9815 = vpop.f32.mrf.mxu0
      %9816 = vmatprep.mubr.bf16.mxu0 0
      %9817 = vmatmul.mubr.bf16.gmra.mxu0 %v9667
      %v9818 = vpop.f32.mrf.mxu0
      %v9819 = vadd.f32 %v9610, %v9818
      %v9820 = vpop.f32.mrf.mxu0
      %v9821 = vpop.f32.mrf.mxu0
      %v9822 = vadd.f32 %v9610, %v9821
      %v9823 = vpop.f32.mrf.mxu0
      %9824 = vmatprep.mubr.bf16.mxu0 0
      %9825 = vmatmul.mubr.bf16.gmra.mxu0 %v9670
      %v9826 = vpop.f32.mrf.mxu0
      %v9827 = vadd.f32 %v9610, %v9826
      %v9828 = vpop.f32.mrf.mxu0
      %v9829 = vpop.f32.mrf.mxu0
      %v9830 = vadd.f32 %v9610, %v9829
      %v9831 = vpop.f32.mrf.mxu0
      %9832 = vdwg.mxu0
      %v9833 = vadd.f32 %v315, %v9707
      %v9834 = vadd.f32 %v316, %v9710
      %v9835 = vadd.f32 %v317, %v9715
      %v9836 = vadd.f32 %v318, %v9718
      %v9837 = vadd.f32 %v319, %v9723
      %v9838 = vadd.f32 %v320, %v9726
      %v9839 = vadd.f32 %v321, %v9731
      %v9840 = vadd.f32 %v322, %v9734
      %v9841 = vadd.f32 %v323, %v9739
      %v9842 = vadd.f32 %v324, %v9742
      %v9843 = vadd.f32 %v325, %v9747
      %v9844 = vadd.f32 %v326, %v9750
      %v9845 = vadd.f32 %v327, %v9755
      %v9846 = vadd.f32 %v328, %v9758
      %v9847 = vadd.f32 %v329, %v9763
      %v9848 = vadd.f32 %v330, %v9766
      %v9849 = vadd.f32 %v331, %v9771
      %v9850 = vadd.f32 %v332, %v9774
      %v9851 = vadd.f32 %v333, %v9779
      %v9852 = vadd.f32 %v334, %v9782
      %v9853 = vadd.f32 %v335, %v9787
      %v9854 = vadd.f32 %v336, %v9790
      %v9855 = vadd.f32 %v337, %v9795
      %v9856 = vadd.f32 %v338, %v9798
      %v9857 = vadd.f32 %v339, %v9803
      %v9858 = vadd.f32 %v340, %v9806
      %v9859 = vadd.f32 %v341, %v9811
      %v9860 = vadd.f32 %v342, %v9814
      %v9861 = vadd.f32 %v343, %v9819
      %v9862 = vadd.f32 %v344, %v9822
      %v9863 = vadd.f32 %v345, %v9827
      %v9864 = vadd.f32 %v346, %v9830
      %9865 = vst.msk [vmem:[%s312] sm:$0xff] %vm347, %v9833
      %9866 = vst.msk [vmem:[%s312 + $0x8] sm:$0xff] %vm347, %v9834
      %9867 = vst.msk [vmem:[%s312 + $0x10] sm:$0xff] %vm347, %v9835
      %9868 = vst.msk [vmem:[%s312 + $0x18] sm:$0xff] %vm347, %v9836
      %9869 = vst.msk [vmem:[%s312 + $0x20] sm:$0xff] %vm347, %v9837
      %9870 = vst.msk [vmem:[%s312 + $0x28] sm:$0xff] %vm347, %v9838
      %9871 = vst.msk [vmem:[%s312 + $0x30] sm:$0xff] %vm347, %v9839
      %9872 = vst.msk [vmem:[%s312 + $0x38] sm:$0xff] %vm347, %v9840
      %9873 = vst.msk [vmem:[%s312 + $0x40] sm:$0xff] %vm347, %v9841
      %9874 = vst.msk [vmem:[%s312 + $0x48] sm:$0xff] %vm347, %v9842
      %9875 = vst.msk [vmem:[%s312 + $0x50] sm:$0xff] %vm347, %v9843
      %9876 = vst.msk [vmem:[%s312 + $0x58] sm:$0xff] %vm347, %v9844
      %9877 = vst.msk [vmem:[%s312 + $0x60] sm:$0xff] %vm347, %v9845
      %9878 = vst.msk [vmem:[%s312 + $0x68] sm:$0xff] %vm347, %v9846
      %9879 = vst.msk [vmem:[%s312 + $0x70] sm:$0xff] %vm347, %v9847
      %9880 = vst.msk [vmem:[%s312 + $0x78] sm:$0xff] %vm347, %v9848
      %9881 = vst.msk [vmem:[%s312 + $0x80] sm:$0xff] %vm347, %v9849
      %9882 = vst.msk [vmem:[%s312 + $0x88] sm:$0xff] %vm347, %v9850
      %9883 = vst.msk [vmem:[%s312 + $0x90] sm:$0xff] %vm347, %v9851
      %9884 = vst.msk [vmem:[%s312 + $0x98] sm:$0xff] %vm347, %v9852
      %9885 = vst.msk [vmem:[%s312 + $0xa0] sm:$0xff] %vm347, %v9853
      %9886 = vst.msk [vmem:[%s312 + $0xa8] sm:$0xff] %vm347, %v9854
      %9887 = vst.msk [vmem:[%s312 + $0xb0] sm:$0xff] %vm347, %v9855
      %9888 = vst.msk [vmem:[%s312 + $0xb8] sm:$0xff] %vm347, %v9856
      %9889 = vst.msk [vmem:[%s312 + $0xc0] sm:$0xff] %vm347, %v9857
      %9890 = vst.msk [vmem:[%s312 + $0xc8] sm:$0xff] %vm347, %v9858
      %9891 = vst.msk [vmem:[%s312 + $0xd0] sm:$0xff] %vm347, %v9859
      %9892 = vst.msk [vmem:[%s312 + $0xd8] sm:$0xff] %vm347, %v9860
      %9893 = vst.msk [vmem:[%s312 + $0xe0] sm:$0xff] %vm347, %v9861
      %9894 = vst.msk [vmem:[%s312 + $0xe8] sm:$0xff] %vm347, %v9862
      %9895 = vst.msk [vmem:[%s312 + $0xf0] sm:$0xff] %vm347, %v9863
      %9896 = vst.msk [vmem:[%s312 + $0xf8] sm:$0xff] %vm347, %v9864
      %s9897 = smul.u32 16, %s19
      %p9898 = scmp.lt.s32.totalorder %s9897, 31
      %s9899 = scalar_select %p9898, %s9897, 31
      %s9900 = smul.addr %s9899, 2
      %s9901 = smul.addr %s9900, 8
      %s9902 = scalar_lea.vmem %s8, %s9901
      // Predicated region
      $region53: #{multi_axis_self_attention.2} parent=51 // pred_check
        %p9903 = pneg %p210
      $region54: #{multi_axis_self_attention.2} parent=51 // pred_check_branch
        %9905 = sbr.rel (%p9903) target = $region56
      $region55: #{multi_axis_self_attention.2} parent=51 // pred_region
        %s9906 = smul.u32 16, %s19
      $region56: #{multi_axis_self_attention.2} parent=51 // pred_fallthru
        _
    $region52: #{multi_axis_self_attention.2} parent=5 // pred_fallthru
      _
    %p9907 = scmp.le.s32.totalorder 2, %s14
    // Predicated region
    $region57: #{multi_axis_self_attention.2} parent=5 // pred_check
      %p9908 = pneg %p9907
    $region58: #{multi_axis_self_attention.2} parent=5 // pred_check_branch
      %9910 = sbr.rel (%p9908) target = $region60
    $region59: #{multi_axis_self_attention.2} parent=5 // pred_region
      %s9911 = ssub.s32 %s14, 2
      // Predicated region
      $region61: #{multi_axis_self_attention.2} parent=59 // pred_check
        %p9912 = pneg %p216
      $region62: #{multi_axis_self_attention.2} parent=59 // pred_check_branch
        %9914 = sbr.rel (%p9912) target = $region64
      $region63: #{multi_axis_self_attention.2} parent=59 // pred_region
        %s9915 = smul.u32 16, %s20
        %p9916 = scmp.lt.s32.totalorder %s9915, 31
        %s9917 = scalar_select %p9916, %s9915, 31
        %s9918 = smul.addr %s9917, 2
        %s9919 = smul.addr %s9918, 8
        %s9920 = scalar_lea.vmem %s8, %s9919
      $region64: #{multi_axis_self_attention.2} parent=59 // pred_fallthru
        _
    $region60: #{multi_axis_self_attention.2} parent=5 // pred_fallthru
      _
  $region6: #{multi_axis_self_attention.2} parent=0 // loop_footer
    %s18 = sadd.s32 1, %s14
  $region7: #{multi_axis_self_attention.2} parent=0 // loop_footer_branch
    %13 = sbr.rel target = $region3
  $region8: #{multi_axis_self_attention.2} parent=0 // loop_exit
    _

</llo_original>
